<compile_context>
chip_gen: v7x
topology: tpu7x:2x2x1
jax: 0.10.0
libtpu: 0.0.40
codegen_flags: <defaults>
</compile_context>

<pallas_src>
import jax
import jax.numpy as jnp
from jax.experimental import pallas as pl
from jax.experimental.pallas import tpu as pltpu

IN_DIM = 3072
HIDDEN = 1024
OUT_DIM = 10
OUT_PAD = 128          # lane-dense padded logits width
EPS = 1e-5
TM_MAX = 256           # batch rows per grid step
COMPUTE_DTYPE = jnp.bfloat16  # streaming dtype for x / W1 (f32 accumulation on MXU)


def _round_up(n, m):
    return (n + m - 1) // m * m


# ---------------------------------------------------------------------------
# Kernel: one batch tile -> full fused forward (no reduction axis, no scratch).
# BN + bias are pre-folded into w1 / b1, dropout is identity (eval mode).
# ---------------------------------------------------------------------------
def _mlp_kernel(x_ref, w1_ref, b1_ref, w2_ref, b2_ref, out_ref):
    # Linear1 (+ folded BatchNorm): bf16 x bf16 -> f32 accumulate on the MXU.
    h = jnp.dot(x_ref[...], w1_ref[...], preferred_element_type=jnp.float32)
    h = h + b1_ref[...]                     # folded (b1 - rmean)*s + beta
    a = jnp.maximum(h, 0.0)                 # ReLU; Dropout == identity in eval
    # Linear2 (tiny, lane-padded to 128 outputs for a dense store).
    logits = jnp.dot(a.astype(w2_ref.dtype), w2_ref[...],
                     preferred_element_type=jnp.float32) + b2_ref[...]
    out_ref[...] = logits.astype(out_ref.dtype)


# ---------------------------------------------------------------------------
# Wrapper
# ---------------------------------------------------------------------------
@jax.jit
def mlp_logits(x, w1, b1, w2, b2):
    """x: [B, 3072] f32/bf16; w1: [3072,1024] bf16 (BN-folded); b1: [1,1024] f32;
    w2: [1024,128] f32 (zero-padded); b2: [1,128] f32.  Returns [B, 10] f32 logits."""
    B = x.shape[0]

    # Batch tiling: TM rows per grid step (multiple of 8/16 for sublane tiling).
    if B >= TM_MAX:
        tm = TM_MAX
    else:
        tm = _round_up(max(B, 1), 16)
    Bp = _round_up(B, tm)

    xp = x.astype(w1.dtype)
    if Bp != B:
        xp = jnp.pad(xp, ((0, Bp - B), (0, 0)))

    grid_spec = pltpu.PrefetchScalarGridSpec(
        num_scalar_prefetch=0,
        grid=(Bp // tm,),
        in_specs=[
            pl.BlockSpec((tm, IN_DIM), lambda m: (m, 0)),        # x batch tile
            pl.BlockSpec((IN_DIM, HIDDEN), lambda m: (0, 0)),    # W1 (resident)
            pl.BlockSpec((1, HIDDEN), lambda m: (0, 0)),         # folded b1
            pl.BlockSpec((HIDDEN, OUT_PAD), lambda m: (0, 0)),   # W2 (padded)
            pl.BlockSpec((1, OUT_PAD), lambda m: (0, 0)),        # b2 (padded)
        ],
        out_specs=pl.BlockSpec((tm, OUT_PAD), lambda m: (m, 0)),
    )

    out = pl.pallas_call(
        _mlp_kernel,
        out_shape=jax.ShapeDtypeStruct((Bp, OUT_PAD), jnp.float32),
        grid_spec=grid_spec,
        compiler_params=pltpu.CompilerParams(
            dimension_semantics=("parallel",),        # batch axis: megacore-shardable
            vmem_limit_bytes=32 * 1024 * 1024,        # ~17 MiB actual; legal on v7x
        ),
    )(xp, w1, b1, w2, b2)

    return out[:B, :OUT_DIM]


def fold_params(params, compute_dtype=COMPUTE_DTYPE):
    """One-time prep: fold eval-mode BN + Linear-1 bias into W1/b1, cast W1 to the
    streaming dtype, and zero-pad W2/b2 to a lane-dense 128-wide output."""
    s = params["gamma"] * jax.lax.rsqrt(params["rvar"] + EPS)               # (1, H)
    w1 = (params["w1"].astype(jnp.float32) * s).astype(compute_dtype)       # (IN, H)
    b1 = ((params["b1"] - params["rmean"]) * s + params["beta"]).astype(jnp.float32)
    w2 = jnp.zeros((HIDDEN, OUT_PAD), jnp.float32).at[:, :OUT_DIM].set(
        params["w2"].astype(jnp.float32))
    b2 = jnp.zeros((1, OUT_PAD), jnp.float32).at[:, :OUT_DIM].set(
        params["b2"].astype(jnp.float32))
    return {"w1": w1, "b1": b1, "w2": w2, "b2": b2}


def model_forward(folded_params, x, y=None):
    """Mirrors Model.forward: returns pred if y is None else (loss, acc)."""
    logits = mlp_logits(x, folded_params["w1"], folded_params["b1"],
                        folded_params["w2"], folded_params["b2"])
    pred = jnp.argmax(logits, axis=1)
    if y is None:
        return pred
    # CrossEntropyLoss (mean reduction) + accuracy — tiny [B,10] glue in plain JAX.
    log_probs = logits - jax.scipy.special.logsumexp(logits, axis=1, keepdims=True)
    loss = -jnp.mean(jnp.take_along_axis(log_probs, y[:, None], axis=1))
    acc = jnp.mean((pred.astype(jnp.int32) == y.astype(jnp.int32)).astype(jnp.float32))
    return loss, acc


def init_params(key):
    """Parameter shapes/init matching the PyTorch module:
    Linear layers: torch default uniform(-1/sqrt(fan_in), 1/sqrt(fan_in));
    custom BatchNorm1d: weight=1, bias=0, running_mean=0, running_var=0 (zeros,
    exactly as this module's register_buffer calls — not stock nn.BatchNorm1d)."""
    k1, k2, k3, k4 = jax.random.split(key, 4)
    lim1 = 1.0 / jnp.sqrt(jnp.float32(IN_DIM))
    lim2 = 1.0 / jnp.sqrt(jnp.float32(HIDDEN))
    return {
        "w1": jax.random.uniform(k1, (IN_DIM, HIDDEN), jnp.float32, -lim1, lim1),
        "b1": jax.random.uniform(k2, (1, HIDDEN), jnp.float32, -lim1, lim1),
        "gamma": jnp.ones((1, HIDDEN), jnp.float32),
        "beta": jnp.zeros((1, HIDDEN), jnp.float32),
        "rmean": jnp.zeros((1, HIDDEN), jnp.float32),
        "rvar": jnp.zeros((1, HIDDEN), jnp.float32),
        "w2": jax.random.uniform(k3, (HIDDEN, OUT_DIM), jnp.float32, -lim2, lim2),
        "b2": jax.random.uniform(k4, (1, OUT_DIM), jnp.float32, -lim2, lim2),
    }


if __name__ == "__main__":
    key = jax.random.PRNGKey(0)
    pkey, xkey, ykey = jax.random.split(key, 3)

    B = 8
    params = init_params(pkey)
    folded = jax.tree_util.tree_map(jax.block_until_ready, fold_params(params))

    x = jax.random.normal(xkey, (B, IN_DIM), dtype=jnp.float32)
    y = jax.random.randint(ykey, (B,), 0, OUT_DIM, dtype=jnp.int32)

    # Inference path (y=None): predictions
    pred = jax.block_until_ready(model_forward(folded, x))

    # Supervised path: (loss, acc)
    loss, acc = model_forward(folded, x, y)
    loss = jax.block_until_ready(loss)
    acc = jax.block_until_ready(acc)

    assert pred.shape == (B,)
    assert bool(jnp.isfinite(loss)) and bool(jnp.isfinite(acc))
    print("KERNEL_OK")
</pallas_src>

<mosaic_0001>
module attributes {stable_mosaic.version = 11 : i64} {
  func.func @_mlp_kernel(%arg0: i32, %arg1: memref<16x3072xbf16, #tpu.memory_space<vmem>>, %arg2: memref<3072x1024xbf16, #tpu.memory_space<vmem>>, %arg3: memref<1x1024xf32, #tpu.memory_space<vmem>>, %arg4: memref<1024x128xf32, #tpu.memory_space<vmem>>, %arg5: memref<1x128xf32, #tpu.memory_space<vmem>>, %arg6: memref<16x128xf32, #tpu.memory_space<vmem>>) attributes {dimension_semantics = [#tpu.dimension_semantics<parallel>], iteration_bounds = array<i64: 1>, scalar_prefetch = 0 : i64, scratch_operands = 0 : i64, tpu.core_type = #tpu.core_type<tc>, window_params = [{transform_indices = @transform_0, window_bounds = array<i64: 16, 3072>}, {pipeline_mode = #tpu.pipeline_mode<synchronous>, transform_indices = @transform_1, window_bounds = array<i64: 3072, 1024>}, {pipeline_mode = #tpu.pipeline_mode<synchronous>, transform_indices = @transform_2, window_bounds = array<i64: 1, 1024>}, {pipeline_mode = #tpu.pipeline_mode<synchronous>, transform_indices = @transform_3, window_bounds = array<i64: 1024, 128>}, {pipeline_mode = #tpu.pipeline_mode<synchronous>, transform_indices = @transform_4, window_bounds = array<i64: 1, 128>}, {transform_indices = @transform_5, window_bounds = array<i64: 16, 128>}]} {
    %c0 = arith.constant 0 : index
    %c0_0 = arith.constant 0 : index
    %0 = vector.load %arg1[%c0, %c0_0] : memref<16x3072xbf16, #tpu.memory_space<vmem>>, vector<16x3072xbf16>
    %c0_1 = arith.constant 0 : index
    %c0_2 = arith.constant 0 : index
    %1 = vector.load %arg2[%c0_1, %c0_2] : memref<3072x1024xbf16, #tpu.memory_space<vmem>>, vector<3072x1024xbf16>
    %cst = arith.constant dense<0.000000e+00> : vector<16x1024xf32>
    %2 = tpu.matmul %0, %1, %cst {dimension_numbers = #tpu.dot_dimension_numbers<[1], [0], [0], [1], [0, 0, 1, 1], [], []>} : vector<16x3072xbf16>, vector<3072x1024xbf16>, vector<16x1024xf32> -> vector<16x1024xf32>
    %c0_3 = arith.constant 0 : index
    %c0_4 = arith.constant 0 : index
    %3 = vector.load %arg3[%c0_3, %c0_4] : memref<1x1024xf32, #tpu.memory_space<vmem>>, vector<1x1024xf32>
    %4 = vector.broadcast %3 : vector<1x1024xf32> to vector<16x1024xf32>
    %5 = arith.addf %2, %4 : vector<16x1024xf32>
    %cst_5 = arith.constant 0.000000e+00 : f32
    %6 = vector.broadcast %cst_5 : f32 to vector<16x1024xf32>
    %7 = arith.maximumf %5, %6 : vector<16x1024xf32>
    %c0_6 = arith.constant 0 : index
    %c0_7 = arith.constant 0 : index
    %8 = vector.load %arg4[%c0_6, %c0_7] : memref<1024x128xf32, #tpu.memory_space<vmem>>, vector<1024x128xf32>
    %cst_8 = arith.constant dense<0.000000e+00> : vector<16x128xf32>
    %9 = tpu.matmul %7, %8, %cst_8 {dimension_numbers = #tpu.dot_dimension_numbers<[1], [0], [0], [1], [0, 0, 1, 1], [], []>} : vector<16x1024xf32>, vector<1024x128xf32>, vector<16x128xf32> -> vector<16x128xf32>
    %c0_9 = arith.constant 0 : index
    %c0_10 = arith.constant 0 : index
    %10 = vector.load %arg5[%c0_9, %c0_10] : memref<1x128xf32, #tpu.memory_space<vmem>>, vector<1x128xf32>
    %11 = vector.broadcast %10 : vector<1x128xf32> to vector<16x128xf32>
    %12 = arith.addf %9, %11 : vector<16x128xf32>
    %c0_11 = arith.constant 0 : index
    %c0_12 = arith.constant 0 : index
    %13 = vector.load %arg6[%c0_11, %c0_12] : memref<16x128xf32, #tpu.memory_space<vmem>>, vector<16x128xf32>
    tpu.vector_store %arg6[%c0_11, %c0_12], %12 {strides = array<i32>} : memref<16x128xf32, #tpu.memory_space<vmem>>, vector<16x128xf32>,
    return
  }
  func.func @transform_0(%arg0: i32) -> (i32, i32) {
    %c0_i32 = arith.constant 0 : i32
    %c0_i32_0 = arith.constant 0 : i32
    return %arg0, %c0_i32 : i32, i32
  }
  func.func @transform_1(%arg0: i32) -> (i32, i32) {
    %c0_i32 = arith.constant 0 : i32
    %c0_i32_0 = arith.constant 0 : i32
    %c0_i32_1 = arith.constant 0 : i32
    return %c0_i32, %c0_i32_0 : i32, i32
  }
  func.func @transform_2(%arg0: i32) -> (i32, i32) {
    %c0_i32 = arith.constant 0 : i32
    %c0_i32_0 = arith.constant 0 : i32
    %c0_i32_1 = arith.constant 0 : i32
    return %c0_i32, %c0_i32_0 : i32, i32
  }
  func.func @transform_3(%arg0: i32) -> (i32, i32) {
    %c0_i32 = arith.constant 0 : i32
    %c0_i32_0 = arith.constant 0 : i32
    %c0_i32_1 = arith.constant 0 : i32
    return %c0_i32, %c0_i32_0 : i32, i32
  }
  func.func @transform_4(%arg0: i32) -> (i32, i32) {
    %c0_i32 = arith.constant 0 : i32
    %c0_i32_0 = arith.constant 0 : i32
    %c0_i32_1 = arith.constant 0 : i32
    return %c0_i32, %c0_i32_0 : i32, i32
  }
  func.func @transform_5(%arg0: i32) -> (i32, i32) {
    %c0_i32 = arith.constant 0 : i32
    %c0_i32_0 = arith.constant 0 : i32
    return %arg0, %c0_i32 : i32, i32
  }
}

</mosaic_0001>

<llo_original>
// kernel: mlp_logits.1
$region0: #{mlp_logits.1}
  #allocation0 [shape = 'u32[]', space=smem, size = 0x4, offset = 0x4, fixed_abs, tag = 'smem constant byte address 0x4 - core index']
  #allocation1 [shape = 'u32[144,128]{1,0:T(1,128)}', space=vmem, size = 0x12000, scoped, tag = 'internal scratch']
  %s0 = inlined_call_operand.vmem [shape: bf16[16,3072], index: 0, kind: input, shape index: {}]
  %s1 = inlined_call_operand.hbm [shape: bf16[3072,1024], index: 1, kind: input, shape index: {}]
  %s2 = inlined_call_operand.hbm [shape: f32[1,1024], index: 2, kind: input, shape index: {}]
  %s3 = inlined_call_operand.hbm [shape: f32[1024,128], index: 3, kind: input, shape index: {}]
  %s4 = inlined_call_operand.hbm [shape: f32[1,128], index: 4, kind: input, shape index: {}]
  %s5 = inlined_call_operand.vmem [shape: f32[16,128], index: 5, kind: output, shape index: {}]
  %s6 = sld [smem:[#allocation0]]
  $region46: #{mlp_logits.1} parent=0
    _
  %s8 = ssub.s32 1, %s6
  %s9 = scalar_select 0, %s8, %s6
  $region1: #{mlp_logits.1} parent=0
    #allocation2 [shape = 'u8[6291456]{0}', space=vmem, size = 0x600000, scoped, tag = 'input window, operand 1, single buffered']
    #allocation3 [shape = 's32[1]{0}', space=sflag, size = 0x4, scoped, tag = 'scoped memory for mlp_logits.1']
    #allocation4 [shape = 'u8[4096]{0}', space=vmem, size = 0x1000, scoped, tag = 'input window, operand 2, single buffered']
    #allocation5 [shape = 's32[1]{0}', space=sflag, size = 0x4, scoped, tag = 'scoped memory for mlp_logits.1']
    #allocation6 [shape = 'u8[524288]{0}', space=vmem, size = 0x80000, scoped, tag = 'input window, operand 3, single buffered']
    #allocation7 [shape = 'u8[512]{0}', space=vmem, size = 0x400, scoped, tag = 'input window, operand 4, single buffered']
    #allocation8 [shape = 's32[1]{0}', space=sflag, size = 0x4, scoped, tag = 'scoped memory for mlp_logits.1']
    %10 = vsyncpa [#allocation3], 0
    %11 = vsyncpa [#allocation5], 0
    %12 = vsyncpa [#allocation8], 0
    // Predicated region
    $region2: #{mlp_logits.1} parent=1 // pred_check
      _
    $region3: #{mlp_logits.1} parent=1 // pred_check_branch
      %14 = sbr.rel (0) target = $region5
    $region4: #{mlp_logits.1} parent=1 // pred_region
      _
    $region5: #{mlp_logits.1} parent=1 // pred_fallthru
      _
    // Predicated region
    $region6: #{mlp_logits.1} parent=1 // pred_check
      _
    $region7: #{mlp_logits.1} parent=1 // pred_check_branch
      %16 = sbr.rel (0) target = $region9
    $region8: #{mlp_logits.1} parent=1 // pred_region
      %s18 = ssub.s32 196608, 196608
      %19 = vsyncadd [#allocation3], %s18
      %s20 = sshll.u32 [#allocation2], 4
      %s21 = int_to_ptr.vmem [resolvable:$true] %s20
      %26 = dma.hbm_to_vmem [thread:$0]  %s1, 196608, %s21, [#allocation3], 512, 512, 32
    $region9: #{mlp_logits.1} parent=1 // pred_fallthru
      _
    // Predicated region
    $region10: #{mlp_logits.1} parent=1 // pred_check
      _
    $region11: #{mlp_logits.1} parent=1 // pred_check_branch
      %28 = sbr.rel (0) target = $region13
    $region12: #{mlp_logits.1} parent=1 // pred_region
      %s30 = ssub.s32 128, 128
      %31 = vsyncadd [#allocation5], %s30
      %s33 = sshll.u32 [#allocation4], 4
      %s34 = int_to_ptr.vmem [resolvable:$true] %s33
      %36 = dma.hbm_to_vmem [thread:$0]  %s2, 128, %s34, [#allocation5]
    $region13: #{mlp_logits.1} parent=1 // pred_fallthru
      _
    // Predicated region
    $region14: #{mlp_logits.1} parent=1 // pred_check
      _
    $region15: #{mlp_logits.1} parent=1 // pred_check_branch
      %38 = sbr.rel (0) target = $region17
    $region16: #{mlp_logits.1} parent=1 // pred_region
      %s40 = ssub.s32 16384, 16384
      %41 = vsyncadd [#allocation5], %s40
      %s42 = sshll.u32 [#allocation6], 4
      %s43 = int_to_ptr.vmem [resolvable:$true] %s42
      %48 = dma.hbm_to_vmem [thread:$0]  %s3, 16384, %s43, [#allocation5], 128, 128, 8
    $region17: #{mlp_logits.1} parent=1 // pred_fallthru
      _
    // Predicated region
    $region18: #{mlp_logits.1} parent=1 // pred_check
      _
    $region19: #{mlp_logits.1} parent=1 // pred_check_branch
      %50 = sbr.rel (0) target = $region21
    $region20: #{mlp_logits.1} parent=1 // pred_region
      %s52 = ssub.s32 16, 16
      %53 = vsyncadd [#allocation8], %s52
      %s55 = sshll.u32 [#allocation7], 4
      %s56 = int_to_ptr.vmem [resolvable:$true] %s55
      %58 = dma.hbm_to_vmem [thread:$0]  %s4, 16, %s56, [#allocation8]
    $region21: #{mlp_logits.1} parent=1 // pred_fallthru
      _
    // Predicated region
    $region22: #{mlp_logits.1} parent=1 // pred_check
      _
    $region23: #{mlp_logits.1} parent=1 // pred_check_branch
      %60 = sbr.rel (0) target = $region25
    $region24: #{mlp_logits.1} parent=1 // pred_region
      %61 = dma.done [#allocation3], 196608
    $region25: #{mlp_logits.1} parent=1 // pred_fallthru
      _
    // Predicated region
    $region26: #{mlp_logits.1} parent=1 // pred_check
      _
    $region27: #{mlp_logits.1} parent=1 // pred_check_branch
      %63 = sbr.rel (0) target = $region29
    $region28: #{mlp_logits.1} parent=1 // pred_region
      %64 = dma.done [#allocation5], 128
    $region29: #{mlp_logits.1} parent=1 // pred_fallthru
      _
    // Predicated region
    $region30: #{mlp_logits.1} parent=1 // pred_check
      _
    $region31: #{mlp_logits.1} parent=1 // pred_check_branch
      %66 = sbr.rel (0) target = $region33
    $region32: #{mlp_logits.1} parent=1 // pred_region
      %67 = dma.done [#allocation5], 16384
    $region33: #{mlp_logits.1} parent=1 // pred_fallthru
      _
    // Predicated region
    $region34: #{mlp_logits.1} parent=1 // pred_check
      _
    $region35: #{mlp_logits.1} parent=1 // pred_check_branch
      %69 = sbr.rel (0) target = $region37
    $region36: #{mlp_logits.1} parent=1 // pred_region
      %70 = dma.done [#allocation8], 16
    $region37: #{mlp_logits.1} parent=1 // pred_fallthru
      _
    %v71 = vld [vmem:[%s0] sm:$0xff]
    %v72 = vld [vmem:[%s0 + $0x8] sm:$0xff]
    %v73 = vld [vmem:[%s0 + $0x10] sm:$0xff]
    %v74 = vld [vmem:[%s0 + $0x18] sm:$0xff]
    %v75 = vld [vmem:[%s0 + $0x20] sm:$0xff]
    %v76 = vld [vmem:[%s0 + $0x28] sm:$0xff]
    %v77 = vld [vmem:[%s0 + $0x30] sm:$0xff]
    %v78 = vld [vmem:[%s0 + $0x38] sm:$0xff]
    %v79 = vld [vmem:[%s0 + $0x40] sm:$0xff]
    %v80 = vld [vmem:[%s0 + $0x48] sm:$0xff]
    %v81 = vld [vmem:[%s0 + $0x50] sm:$0xff]
    %v82 = vld [vmem:[%s0 + $0x58] sm:$0xff]
    %v83 = vld [vmem:[%s0 + $0x60] sm:$0xff]
    %v84 = vld [vmem:[%s0 + $0x68] sm:$0xff]
    %v85 = vld [vmem:[%s0 + $0x70] sm:$0xff]
    %v86 = vld [vmem:[%s0 + $0x78] sm:$0xff]
    %v87 = vld [vmem:[%s0 + $0x80] sm:$0xff]
    %v88 = vld [vmem:[%s0 + $0x88] sm:$0xff]
    %v89 = vld [vmem:[%s0 + $0x90] sm:$0xff]
    %v90 = vld [vmem:[%s0 + $0x98] sm:$0xff]
    %v91 = vld [vmem:[%s0 + $0xa0] sm:$0xff]
    %v92 = vld [vmem:[%s0 + $0xa8] sm:$0xff]
    %v93 = vld [vmem:[%s0 + $0xb0] sm:$0xff]
    %v94 = vld [vmem:[%s0 + $0xb8] sm:$0xff]
    %v95 = vld [vmem:[#allocation2] sm:$0xff]
    %v96 = vld [vmem:[#allocation2 + $0x8] sm:$0xff]
    %v97 = vld [vmem:[#allocation2 + $0x10] sm:$0xff]
    %v98 = vld [vmem:[#allocation2 + $0x18] sm:$0xff]
    %v99 = vld [vmem:[#allocation2 + $0x20] sm:$0xff]
    %v100 = vld [vmem:[#allocation2 + $0x28] sm:$0xff]
    %v101 = vld [vmem:[#allocation2 + $0x30] sm:$0xff]
    %v102 = vld [vmem:[#allocation2 + $0x38] sm:$0xff]
    %v103 = vld [vmem:[#allocation2 + $0x40] sm:$0xff]
    %v104 = vld [vmem:[#allocation2 + $0x48] sm:$0xff]
    %v105 = vld [vmem:[#allocation2 + $0x50] sm:$0xff]
    %v106 = vld [vmem:[#allocation2 + $0x58] sm:$0xff]
    %v107 = vld [vmem:[#allocation2 + $0x60] sm:$0xff]
    %v108 = vld [vmem:[#allocation2 + $0x68] sm:$0xff]
    %v109 = vld [vmem:[#allocation2 + $0x70] sm:$0xff]
    %v110 = vld [vmem:[#allocation2 + $0x78] sm:$0xff]
    %v111 = vld [vmem:[#allocation2 + $0x80] sm:$0xff]
    %v112 = vld [vmem:[#allocation2 + $0x88] sm:$0xff]
    %v113 = vld [vmem:[#allocation2 + $0x90] sm:$0xff]
    %v114 = vld [vmem:[#allocation2 + $0x98] sm:$0xff]
    %v115 = vld [vmem:[#allocation2 + $0xa0] sm:$0xff]
    %v116 = vld [vmem:[#allocation2 + $0xa8] sm:$0xff]
    %v117 = vld [vmem:[#allocation2 + $0xb0] sm:$0xff]
    %v118 = vld [vmem:[#allocation2 + $0xb8] sm:$0xff]
    %v119 = vld [vmem:[#allocation2 + $0xc0] sm:$0xff]
    %v120 = vld [vmem:[#allocation2 + $0xc8] sm:$0xff]
    %v121 = vld [vmem:[#allocation2 + $0xd0] sm:$0xff]
    %v122 = vld [vmem:[#allocation2 + $0xd8] sm:$0xff]
    %v123 = vld [vmem:[#allocation2 + $0xe0] sm:$0xff]
    %v124 = vld [vmem:[#allocation2 + $0xe8] sm:$0xff]
    %v125 = vld [vmem:[#allocation2 + $0xf0] sm:$0xff]
    %v126 = vld [vmem:[#allocation2 + $0xf8] sm:$0xff]
    %v127 = vld [vmem:[#allocation2 + $0x100] sm:$0xff]
    %v128 = vld [vmem:[#allocation2 + $0x108] sm:$0xff]
    %v129 = vld [vmem:[#allocation2 + $0x110] sm:$0xff]
    %v130 = vld [vmem:[#allocation2 + $0x118] sm:$0xff]
    %v131 = vld [vmem:[#allocation2 + $0x120] sm:$0xff]
    %v132 = vld [vmem:[#allocation2 + $0x128] sm:$0xff]
    %v133 = vld [vmem:[#allocation2 + $0x130] sm:$0xff]
    %v134 = vld [vmem:[#allocation2 + $0x138] sm:$0xff]
    %v135 = vld [vmem:[#allocation2 + $0x140] sm:$0xff]
    %v136 = vld [vmem:[#allocation2 + $0x148] sm:$0xff]
    %v137 = vld [vmem:[#allocation2 + $0x150] sm:$0xff]
    %v138 = vld [vmem:[#allocation2 + $0x158] sm:$0xff]
    %v139 = vld [vmem:[#allocation2 + $0x160] sm:$0xff]
    %v140 = vld [vmem:[#allocation2 + $0x168] sm:$0xff]
    %v141 = vld [vmem:[#allocation2 + $0x170] sm:$0xff]
    %v142 = vld [vmem:[#allocation2 + $0x178] sm:$0xff]
    %v143 = vld [vmem:[#allocation2 + $0x180] sm:$0xff]
    %v144 = vld [vmem:[#allocation2 + $0x188] sm:$0xff]
    %v145 = vld [vmem:[#allocation2 + $0x190] sm:$0xff]
    %v146 = vld [vmem:[#allocation2 + $0x198] sm:$0xff]
    %v147 = vld [vmem:[#allocation2 + $0x1a0] sm:$0xff]
    %v148 = vld [vmem:[#allocation2 + $0x1a8] sm:$0xff]
    %v149 = vld [vmem:[#allocation2 + $0x1b0] sm:$0xff]
    %v150 = vld [vmem:[#allocation2 + $0x1b8] sm:$0xff]
    %v151 = vld [vmem:[#allocation2 + $0x1c0] sm:$0xff]
    %v152 = vld [vmem:[#allocation2 + $0x1c8] sm:$0xff]
    %v153 = vld [vmem:[#allocation2 + $0x1d0] sm:$0xff]
    %v154 = vld [vmem:[#allocation2 + $0x1d8] sm:$0xff]
    %v155 = vld [vmem:[#allocation2 + $0x1e0] sm:$0xff]
    %v156 = vld [vmem:[#allocation2 + $0x1e8] sm:$0xff]
    %v157 = vld [vmem:[#allocation2 + $0x1f0] sm:$0xff]
    %v158 = vld [vmem:[#allocation2 + $0x1f8] sm:$0xff]
    %v159 = vld [vmem:[#allocation2 + $0x200] sm:$0xff]
    %v160 = vld [vmem:[#allocation2 + $0x208] sm:$0xff]
    %v161 = vld [vmem:[#allocation2 + $0x210] sm:$0xff]
    %v162 = vld [vmem:[#allocation2 + $0x218] sm:$0xff]
    %v163 = vld [vmem:[#allocation2 + $0x220] sm:$0xff]
    %v164 = vld [vmem:[#allocation2 + $0x228] sm:$0xff]
    %v165 = vld [vmem:[#allocation2 + $0x230] sm:$0xff]
    %v166 = vld [vmem:[#allocation2 + $0x238] sm:$0xff]
    %v167 = vld [vmem:[#allocation2 + $0x240] sm:$0xff]
    %v168 = vld [vmem:[#allocation2 + $0x248] sm:$0xff]
    %v169 = vld [vmem:[#allocation2 + $0x250] sm:$0xff]
    %v170 = vld [vmem:[#allocation2 + $0x258] sm:$0xff]
    %v171 = vld [vmem:[#allocation2 + $0x260] sm:$0xff]
    %v172 = vld [vmem:[#allocation2 + $0x268] sm:$0xff]
    %v173 = vld [vmem:[#allocation2 + $0x270] sm:$0xff]
    %v174 = vld [vmem:[#allocation2 + $0x278] sm:$0xff]
    %v175 = vld [vmem:[#allocation2 + $0x280] sm:$0xff]
    %v176 = vld [vmem:[#allocation2 + $0x288] sm:$0xff]
    %v177 = vld [vmem:[#allocation2 + $0x290] sm:$0xff]
    %v178 = vld [vmem:[#allocation2 + $0x298] sm:$0xff]
    %v179 = vld [vmem:[#allocation2 + $0x2a0] sm:$0xff]
    %v180 = vld [vmem:[#allocation2 + $0x2a8] sm:$0xff]
    %v181 = vld [vmem:[#allocation2 + $0x2b0] sm:$0xff]
    %v182 = vld [vmem:[#allocation2 + $0x2b8] sm:$0xff]
    %v183 = vld [vmem:[#allocation2 + $0x2c0] sm:$0xff]
    %v184 = vld [vmem:[#allocation2 + $0x2c8] sm:$0xff]
    %v185 = vld [vmem:[#allocation2 + $0x2d0] sm:$0xff]
    %v186 = vld [vmem:[#allocation2 + $0x2d8] sm:$0xff]
    %v187 = vld [vmem:[#allocation2 + $0x2e0] sm:$0xff]
    %v188 = vld [vmem:[#allocation2 + $0x2e8] sm:$0xff]
    %v189 = vld [vmem:[#allocation2 + $0x2f0] sm:$0xff]
    %v190 = vld [vmem:[#allocation2 + $0x2f8] sm:$0xff]
    %v191 = vld [vmem:[#allocation2 + $0x300] sm:$0xff]
    %v192 = vld [vmem:[#allocation2 + $0x308] sm:$0xff]
    %v193 = vld [vmem:[#allocation2 + $0x310] sm:$0xff]
    %v194 = vld [vmem:[#allocation2 + $0x318] sm:$0xff]
    %v195 = vld [vmem:[#allocation2 + $0x320] sm:$0xff]
    %v196 = vld [vmem:[#allocation2 + $0x328] sm:$0xff]
    %v197 = vld [vmem:[#allocation2 + $0x330] sm:$0xff]
    %v198 = vld [vmem:[#allocation2 + $0x338] sm:$0xff]
    %v199 = vld [vmem:[#allocation2 + $0x340] sm:$0xff]
    %v200 = vld [vmem:[#allocation2 + $0x348] sm:$0xff]
    %v201 = vld [vmem:[#allocation2 + $0x350] sm:$0xff]
    %v202 = vld [vmem:[#allocation2 + $0x358] sm:$0xff]
    %v203 = vld [vmem:[#allocation2 + $0x360] sm:$0xff]
    %v204 = vld [vmem:[#allocation2 + $0x368] sm:$0xff]
    %v205 = vld [vmem:[#allocation2 + $0x370] sm:$0xff]
    %v206 = vld [vmem:[#allocation2 + $0x378] sm:$0xff]
    %v207 = vld [vmem:[#allocation2 + $0x380] sm:$0xff]
    %v208 = vld [vmem:[#allocation2 + $0x388] sm:$0xff]
    %v209 = vld [vmem:[#allocation2 + $0x390] sm:$0xff]
    %v210 = vld [vmem:[#allocation2 + $0x398] sm:$0xff]
    %v211 = vld [vmem:[#allocation2 + $0x3a0] sm:$0xff]
    %v212 = vld [vmem:[#allocation2 + $0x3a8] sm:$0xff]
    %v213 = vld [vmem:[#allocation2 + $0x3b0] sm:$0xff]
    %v214 = vld [vmem:[#allocation2 + $0x3b8] sm:$0xff]
    %v215 = vld [vmem:[#allocation2 + $0x3c0] sm:$0xff]
    %v216 = vld [vmem:[#allocation2 + $0x3c8] sm:$0xff]
    %v217 = vld [vmem:[#allocation2 + $0x3d0] sm:$0xff]
    %v218 = vld [vmem:[#allocation2 + $0x3d8] sm:$0xff]
    %v219 = vld [vmem:[#allocation2 + $0x3e0] sm:$0xff]
    %v220 = vld [vmem:[#allocation2 + $0x3e8] sm:$0xff]
    %v221 = vld [vmem:[#allocation2 + $0x3f0] sm:$0xff]
    %v222 = vld [vmem:[#allocation2 + $0x3f8] sm:$0xff]
    %v223 = vld [vmem:[#allocation2 + $0x400] sm:$0xff]
    %v224 = vld [vmem:[#allocation2 + $0x408] sm:$0xff]
    %v225 = vld [vmem:[#allocation2 + $0x410] sm:$0xff]
    %v226 = vld [vmem:[#allocation2 + $0x418] sm:$0xff]
    %v227 = vld [vmem:[#allocation2 + $0x420] sm:$0xff]
    %v228 = vld [vmem:[#allocation2 + $0x428] sm:$0xff]
    %v229 = vld [vmem:[#allocation2 + $0x430] sm:$0xff]
    %v230 = vld [vmem:[#allocation2 + $0x438] sm:$0xff]
    %v231 = vld [vmem:[#allocation2 + $0x440] sm:$0xff]
    %v232 = vld [vmem:[#allocation2 + $0x448] sm:$0xff]
    %v233 = vld [vmem:[#allocation2 + $0x450] sm:$0xff]
    %v234 = vld [vmem:[#allocation2 + $0x458] sm:$0xff]
    %v235 = vld [vmem:[#allocation2 + $0x460] sm:$0xff]
    %v236 = vld [vmem:[#allocation2 + $0x468] sm:$0xff]
    %v237 = vld [vmem:[#allocation2 + $0x470] sm:$0xff]
    %v238 = vld [vmem:[#allocation2 + $0x478] sm:$0xff]
    %v239 = vld [vmem:[#allocation2 + $0x480] sm:$0xff]
    %v240 = vld [vmem:[#allocation2 + $0x488] sm:$0xff]
    %v241 = vld [vmem:[#allocation2 + $0x490] sm:$0xff]
    %v242 = vld [vmem:[#allocation2 + $0x498] sm:$0xff]
    %v243 = vld [vmem:[#allocation2 + $0x4a0] sm:$0xff]
    %v244 = vld [vmem:[#allocation2 + $0x4a8] sm:$0xff]
    %v245 = vld [vmem:[#allocation2 + $0x4b0] sm:$0xff]
    %v246 = vld [vmem:[#allocation2 + $0x4b8] sm:$0xff]
    %v247 = vld [vmem:[#allocation2 + $0x4c0] sm:$0xff]
    %v248 = vld [vmem:[#allocation2 + $0x4c8] sm:$0xff]
    %v249 = vld [vmem:[#allocation2 + $0x4d0] sm:$0xff]
    %v250 = vld [vmem:[#allocation2 + $0x4d8] sm:$0xff]
    %v251 = vld [vmem:[#allocation2 + $0x4e0] sm:$0xff]
    %v252 = vld [vmem:[#allocation2 + $0x4e8] sm:$0xff]
    %v253 = vld [vmem:[#allocation2 + $0x4f0] sm:$0xff]
    %v254 = vld [vmem:[#allocation2 + $0x4f8] sm:$0xff]
    %v255 = vld [vmem:[#allocation2 + $0x500] sm:$0xff]
    %v256 = vld [vmem:[#allocation2 + $0x508] sm:$0xff]
    %v257 = vld [vmem:[#allocation2 + $0x510] sm:$0xff]
    %v258 = vld [vmem:[#allocation2 + $0x518] sm:$0xff]
    %v259 = vld [vmem:[#allocation2 + $0x520] sm:$0xff]
    %v260 = vld [vmem:[#allocation2 + $0x528] sm:$0xff]
    %v261 = vld [vmem:[#allocation2 + $0x530] sm:$0xff]
    %v262 = vld [vmem:[#allocation2 + $0x538] sm:$0xff]
    %v263 = vld [vmem:[#allocation2 + $0x540] sm:$0xff]
    %v264 = vld [vmem:[#allocation2 + $0x548] sm:$0xff]
    %v265 = vld [vmem:[#allocation2 + $0x550] sm:$0xff]
    %v266 = vld [vmem:[#allocation2 + $0x558] sm:$0xff]
    %v267 = vld [vmem:[#allocation2 + $0x560] sm:$0xff]
    %v268 = vld [vmem:[#allocation2 + $0x568] sm:$0xff]
    %v269 = vld [vmem:[#allocation2 + $0x570] sm:$0xff]
    %v270 = vld [vmem:[#allocation2 + $0x578] sm:$0xff]
    %v271 = vld [vmem:[#allocation2 + $0x580] sm:$0xff]
    %v272 = vld [vmem:[#allocation2 + $0x588] sm:$0xff]
    %v273 = vld [vmem:[#allocation2 + $0x590] sm:$0xff]
    %v274 = vld [vmem:[#allocation2 + $0x598] sm:$0xff]
    %v275 = vld [vmem:[#allocation2 + $0x5a0] sm:$0xff]
    %v276 = vld [vmem:[#allocation2 + $0x5a8] sm:$0xff]
    %v277 = vld [vmem:[#allocation2 + $0x5b0] sm:$0xff]
    %v278 = vld [vmem:[#allocation2 + $0x5b8] sm:$0xff]
    %v279 = vld [vmem:[#allocation2 + $0x5c0] sm:$0xff]
    %v280 = vld [vmem:[#allocation2 + $0x5c8] sm:$0xff]
    %v281 = vld [vmem:[#allocation2 + $0x5d0] sm:$0xff]
    %v282 = vld [vmem:[#allocation2 + $0x5d8] sm:$0xff]
    %v283 = vld [vmem:[#allocation2 + $0x5e0] sm:$0xff]
    %v284 = vld [vmem:[#allocation2 + $0x5e8] sm:$0xff]
    %v285 = vld [vmem:[#allocation2 + $0x5f0] sm:$0xff]
    %v286 = vld [vmem:[#allocation2 + $0x5f8] sm:$0xff]
    %v287 = vld [vmem:[#allocation2 + $0x600] sm:$0xff]
    %v288 = vld [vmem:[#allocation2 + $0x608] sm:$0xff]
    %v289 = vld [vmem:[#allocation2 + $0x610] sm:$0xff]
    %v290 = vld [vmem:[#allocation2 + $0x618] sm:$0xff]
    %v291 = vld [vmem:[#allocation2 + $0x620] sm:$0xff]
    %v292 = vld [vmem:[#allocation2 + $0x628] sm:$0xff]
    %v293 = vld [vmem:[#allocation2 + $0x630] sm:$0xff]
    %v294 = vld [vmem:[#allocation2 + $0x638] sm:$0xff]
    %v295 = vld [vmem:[#allocation2 + $0x640] sm:$0xff]
    %v296 = vld [vmem:[#allocation2 + $0x648] sm:$0xff]
    %v297 = vld [vmem:[#allocation2 + $0x650] sm:$0xff]
    %v298 = vld [vmem:[#allocation2 + $0x658] sm:$0xff]
    %v299 = vld [vmem:[#allocation2 + $0x660] sm:$0xff]
    %v300 = vld [vmem:[#allocation2 + $0x668] sm:$0xff]
    %v301 = vld [vmem:[#allocation2 + $0x670] sm:$0xff]
    %v302 = vld [vmem:[#allocation2 + $0x678] sm:$0xff]
    %v303 = vld [vmem:[#allocation2 + $0x680] sm:$0xff]
    %v304 = vld [vmem:[#allocation2 + $0x688] sm:$0xff]
    %v305 = vld [vmem:[#allocation2 + $0x690] sm:$0xff]
    %v306 = vld [vmem:[#allocation2 + $0x698] sm:$0xff]
    %v307 = vld [vmem:[#allocation2 + $0x6a0] sm:$0xff]
    %v308 = vld [vmem:[#allocation2 + $0x6a8] sm:$0xff]
    %v309 = vld [vmem:[#allocation2 + $0x6b0] sm:$0xff]
    %v310 = vld [vmem:[#allocation2 + $0x6b8] sm:$0xff]
    %v311 = vld [vmem:[#allocation2 + $0x6c0] sm:$0xff]
    %v312 = vld [vmem:[#allocation2 + $0x6c8] sm:$0xff]
    %v313 = vld [vmem:[#allocation2 + $0x6d0] sm:$0xff]
    %v314 = vld [vmem:[#allocation2 + $0x6d8] sm:$0xff]
    %v315 = vld [vmem:[#allocation2 + $0x6e0] sm:$0xff]
    %v316 = vld [vmem:[#allocation2 + $0x6e8] sm:$0xff]
    %v317 = vld [vmem:[#allocation2 + $0x6f0] sm:$0xff]
    %v318 = vld [vmem:[#allocation2 + $0x6f8] sm:$0xff]
    %v319 = vld [vmem:[#allocation2 + $0x700] sm:$0xff]
    %v320 = vld [vmem:[#allocation2 + $0x708] sm:$0xff]
    %v321 = vld [vmem:[#allocation2 + $0x710] sm:$0xff]
    %v322 = vld [vmem:[#allocation2 + $0x718] sm:$0xff]
    %v323 = vld [vmem:[#allocation2 + $0x720] sm:$0xff]
    %v324 = vld [vmem:[#allocation2 + $0x728] sm:$0xff]
    %v325 = vld [vmem:[#allocation2 + $0x730] sm:$0xff]
    %v326 = vld [vmem:[#allocation2 + $0x738] sm:$0xff]
    %v327 = vld [vmem:[#allocation2 + $0x740] sm:$0xff]
    %v328 = vld [vmem:[#allocation2 + $0x748] sm:$0xff]
    %v329 = vld [vmem:[#allocation2 + $0x750] sm:$0xff]
    %v330 = vld [vmem:[#allocation2 + $0x758] sm:$0xff]
    %v331 = vld [vmem:[#allocation2 + $0x760] sm:$0xff]
    %v332 = vld [vmem:[#allocation2 + $0x768] sm:$0xff]
    %v333 = vld [vmem:[#allocation2 + $0x770] sm:$0xff]
    %v334 = vld [vmem:[#allocation2 + $0x778] sm:$0xff]
    %v335 = vld [vmem:[#allocation2 + $0x780] sm:$0xff]
    %v336 = vld [vmem:[#allocation2 + $0x788] sm:$0xff]
    %v337 = vld [vmem:[#allocation2 + $0x790] sm:$0xff]
    %v338 = vld [vmem:[#allocation2 + $0x798] sm:$0xff]
    %v339 = vld [vmem:[#allocation2 + $0x7a0] sm:$0xff]
    %v340 = vld [vmem:[#allocation2 + $0x7a8] sm:$0xff]
    %v341 = vld [vmem:[#allocation2 + $0x7b0] sm:$0xff]
    %v342 = vld [vmem:[#allocation2 + $0x7b8] sm:$0xff]
    %v343 = vld [vmem:[#allocation2 + $0x7c0] sm:$0xff]
    %v344 = vld [vmem:[#allocation2 + $0x7c8] sm:$0xff]
    %v345 = vld [vmem:[#allocation2 + $0x7d0] sm:$0xff]
    %v346 = vld [vmem:[#allocation2 + $0x7d8] sm:$0xff]
    %v347 = vld [vmem:[#allocation2 + $0x7e0] sm:$0xff]
    %v348 = vld [vmem:[#allocation2 + $0x7e8] sm:$0xff]
    %v349 = vld [vmem:[#allocation2 + $0x7f0] sm:$0xff]
    %v350 = vld [vmem:[#allocation2 + $0x7f8] sm:$0xff]
    %v351 = vld [vmem:[#allocation2 + $0x800] sm:$0xff]
    %v352 = vld [vmem:[#allocation2 + $0x808] sm:$0xff]
    %v353 = vld [vmem:[#allocation2 + $0x810] sm:$0xff]
    %v354 = vld [vmem:[#allocation2 + $0x818] sm:$0xff]
    %v355 = vld [vmem:[#allocation2 + $0x820] sm:$0xff]
    %v356 = vld [vmem:[#allocation2 + $0x828] sm:$0xff]
    %v357 = vld [vmem:[#allocation2 + $0x830] sm:$0xff]
    %v358 = vld [vmem:[#allocation2 + $0x838] sm:$0xff]
    %v359 = vld [vmem:[#allocation2 + $0x840] sm:$0xff]
    %v360 = vld [vmem:[#allocation2 + $0x848] sm:$0xff]
    %v361 = vld [vmem:[#allocation2 + $0x850] sm:$0xff]
    %v362 = vld [vmem:[#allocation2 + $0x858] sm:$0xff]
    %v363 = vld [vmem:[#allocation2 + $0x860] sm:$0xff]
    %v364 = vld [vmem:[#allocation2 + $0x868] sm:$0xff]
    %v365 = vld [vmem:[#allocation2 + $0x870] sm:$0xff]
    %v366 = vld [vmem:[#allocation2 + $0x878] sm:$0xff]
    %v367 = vld [vmem:[#allocation2 + $0x880] sm:$0xff]
    %v368 = vld [vmem:[#allocation2 + $0x888] sm:$0xff]
    %v369 = vld [vmem:[#allocation2 + $0x890] sm:$0xff]
    %v370 = vld [vmem:[#allocation2 + $0x898] sm:$0xff]
    %v371 = vld [vmem:[#allocation2 + $0x8a0] sm:$0xff]
    %v372 = vld [vmem:[#allocation2 + $0x8a8] sm:$0xff]
    %v373 = vld [vmem:[#allocation2 + $0x8b0] sm:$0xff]
    %v374 = vld [vmem:[#allocation2 + $0x8b8] sm:$0xff]
    %v375 = vld [vmem:[#allocation2 + $0x8c0] sm:$0xff]
    %v376 = vld [vmem:[#allocation2 + $0x8c8] sm:$0xff]
    %v377 = vld [vmem:[#allocation2 + $0x8d0] sm:$0xff]
    %v378 = vld [vmem:[#allocation2 + $0x8d8] sm:$0xff]
    %v379 = vld [vmem:[#allocation2 + $0x8e0] sm:$0xff]
    %v380 = vld [vmem:[#allocation2 + $0x8e8] sm:$0xff]
    %v381 = vld [vmem:[#allocation2 + $0x8f0] sm:$0xff]
    %v382 = vld [vmem:[#allocation2 + $0x8f8] sm:$0xff]
    %v383 = vld [vmem:[#allocation2 + $0x900] sm:$0xff]
    %v384 = vld [vmem:[#allocation2 + $0x908] sm:$0xff]
    %v385 = vld [vmem:[#allocation2 + $0x910] sm:$0xff]
    %v386 = vld [vmem:[#allocation2 + $0x918] sm:$0xff]
    %v387 = vld [vmem:[#allocation2 + $0x920] sm:$0xff]
    %v388 = vld [vmem:[#allocation2 + $0x928] sm:$0xff]
    %v389 = vld [vmem:[#allocation2 + $0x930] sm:$0xff]
    %v390 = vld [vmem:[#allocation2 + $0x938] sm:$0xff]
    %v391 = vld [vmem:[#allocation2 + $0x940] sm:$0xff]
    %v392 = vld [vmem:[#allocation2 + $0x948] sm:$0xff]
    %v393 = vld [vmem:[#allocation2 + $0x950] sm:$0xff]
    %v394 = vld [vmem:[#allocation2 + $0x958] sm:$0xff]
    %v395 = vld [vmem:[#allocation2 + $0x960] sm:$0xff]
    %v396 = vld [vmem:[#allocation2 + $0x968] sm:$0xff]
    %v397 = vld [vmem:[#allocation2 + $0x970] sm:$0xff]
    %v398 = vld [vmem:[#allocation2 + $0x978] sm:$0xff]
    %v399 = vld [vmem:[#allocation2 + $0x980] sm:$0xff]
    %v400 = vld [vmem:[#allocation2 + $0x988] sm:$0xff]
    %v401 = vld [vmem:[#allocation2 + $0x990] sm:$0xff]
    %v402 = vld [vmem:[#allocation2 + $0x998] sm:$0xff]
    %v403 = vld [vmem:[#allocation2 + $0x9a0] sm:$0xff]
    %v404 = vld [vmem:[#allocation2 + $0x9a8] sm:$0xff]
    %v405 = vld [vmem:[#allocation2 + $0x9b0] sm:$0xff]
    %v406 = vld [vmem:[#allocation2 + $0x9b8] sm:$0xff]
    %v407 = vld [vmem:[#allocation2 + $0x9c0] sm:$0xff]
    %v408 = vld [vmem:[#allocation2 + $0x9c8] sm:$0xff]
    %v409 = vld [vmem:[#allocation2 + $0x9d0] sm:$0xff]
    %v410 = vld [vmem:[#allocation2 + $0x9d8] sm:$0xff]
    %v411 = vld [vmem:[#allocation2 + $0x9e0] sm:$0xff]
    %v412 = vld [vmem:[#allocation2 + $0x9e8] sm:$0xff]
    %v413 = vld [vmem:[#allocation2 + $0x9f0] sm:$0xff]
    %v414 = vld [vmem:[#allocation2 + $0x9f8] sm:$0xff]
    %v415 = vld [vmem:[#allocation2 + $0xa00] sm:$0xff]
    %v416 = vld [vmem:[#allocation2 + $0xa08] sm:$0xff]
    %v417 = vld [vmem:[#allocation2 + $0xa10] sm:$0xff]
    %v418 = vld [vmem:[#allocation2 + $0xa18] sm:$0xff]
    %v419 = vld [vmem:[#allocation2 + $0xa20] sm:$0xff]
    %v420 = vld [vmem:[#allocation2 + $0xa28] sm:$0xff]
    %v421 = vld [vmem:[#allocation2 + $0xa30] sm:$0xff]
    %v422 = vld [vmem:[#allocation2 + $0xa38] sm:$0xff]
    %v423 = vld [vmem:[#allocation2 + $0xa40] sm:$0xff]
    %v424 = vld [vmem:[#allocation2 + $0xa48] sm:$0xff]
    %v425 = vld [vmem:[#allocation2 + $0xa50] sm:$0xff]
    %v426 = vld [vmem:[#allocation2 + $0xa58] sm:$0xff]
    %v427 = vld [vmem:[#allocation2 + $0xa60] sm:$0xff]
    %v428 = vld [vmem:[#allocation2 + $0xa68] sm:$0xff]
    %v429 = vld [vmem:[#allocation2 + $0xa70] sm:$0xff]
    %v430 = vld [vmem:[#allocation2 + $0xa78] sm:$0xff]
    %v431 = vld [vmem:[#allocation2 + $0xa80] sm:$0xff]
    %v432 = vld [vmem:[#allocation2 + $0xa88] sm:$0xff]
    %v433 = vld [vmem:[#allocation2 + $0xa90] sm:$0xff]
    %v434 = vld [vmem:[#allocation2 + $0xa98] sm:$0xff]
    %v435 = vld [vmem:[#allocation2 + $0xaa0] sm:$0xff]
    %v436 = vld [vmem:[#allocation2 + $0xaa8] sm:$0xff]
    %v437 = vld [vmem:[#allocation2 + $0xab0] sm:$0xff]
    %v438 = vld [vmem:[#allocation2 + $0xab8] sm:$0xff]
    %v439 = vld [vmem:[#allocation2 + $0xac0] sm:$0xff]
    %v440 = vld [vmem:[#allocation2 + $0xac8] sm:$0xff]
    %v441 = vld [vmem:[#allocation2 + $0xad0] sm:$0xff]
    %v442 = vld [vmem:[#allocation2 + $0xad8] sm:$0xff]
    %v443 = vld [vmem:[#allocation2 + $0xae0] sm:$0xff]
    %v444 = vld [vmem:[#allocation2 + $0xae8] sm:$0xff]
    %v445 = vld [vmem:[#allocation2 + $0xaf0] sm:$0xff]
    %v446 = vld [vmem:[#allocation2 + $0xaf8] sm:$0xff]
    %v447 = vld [vmem:[#allocation2 + $0xb00] sm:$0xff]
    %v448 = vld [vmem:[#allocation2 + $0xb08] sm:$0xff]
    %v449 = vld [vmem:[#allocation2 + $0xb10] sm:$0xff]
    %v450 = vld [vmem:[#allocation2 + $0xb18] sm:$0xff]
    %v451 = vld [vmem:[#allocation2 + $0xb20] sm:$0xff]
    %v452 = vld [vmem:[#allocation2 + $0xb28] sm:$0xff]
    %v453 = vld [vmem:[#allocation2 + $0xb30] sm:$0xff]
    %v454 = vld [vmem:[#allocation2 + $0xb38] sm:$0xff]
    %v455 = vld [vmem:[#allocation2 + $0xb40] sm:$0xff]
    %v456 = vld [vmem:[#allocation2 + $0xb48] sm:$0xff]
    %v457 = vld [vmem:[#allocation2 + $0xb50] sm:$0xff]
    %v458 = vld [vmem:[#allocation2 + $0xb58] sm:$0xff]
    %v459 = vld [vmem:[#allocation2 + $0xb60] sm:$0xff]
    %v460 = vld [vmem:[#allocation2 + $0xb68] sm:$0xff]
    %v461 = vld [vmem:[#allocation2 + $0xb70] sm:$0xff]
    %v462 = vld [vmem:[#allocation2 + $0xb78] sm:$0xff]
    %v463 = vld [vmem:[#allocation2 + $0xb80] sm:$0xff]
    %v464 = vld [vmem:[#allocation2 + $0xb88] sm:$0xff]
    %v465 = vld [vmem:[#allocation2 + $0xb90] sm:$0xff]
    %v466 = vld [vmem:[#allocation2 + $0xb98] sm:$0xff]
    %v467 = vld [vmem:[#allocation2 + $0xba0] sm:$0xff]
    %v468 = vld [vmem:[#allocation2 + $0xba8] sm:$0xff]
    %v469 = vld [vmem:[#allocation2 + $0xbb0] sm:$0xff]
    %v470 = vld [vmem:[#allocation2 + $0xbb8] sm:$0xff]
    %v471 = vld [vmem:[#allocation2 + $0xbc0] sm:$0xff]
    %v472 = vld [vmem:[#allocation2 + $0xbc8] sm:$0xff]
    %v473 = vld [vmem:[#allocation2 + $0xbd0] sm:$0xff]
    %v474 = vld [vmem:[#allocation2 + $0xbd8] sm:$0xff]
    %v475 = vld [vmem:[#allocation2 + $0xbe0] sm:$0xff]
    %v476 = vld [vmem:[#allocation2 + $0xbe8] sm:$0xff]
    %v477 = vld [vmem:[#allocation2 + $0xbf0] sm:$0xff]
    %v478 = vld [vmem:[#allocation2 + $0xbf8] sm:$0xff]
    %v479 = vld [vmem:[#allocation2 + $0xc00] sm:$0xff]
    %v480 = vld [vmem:[#allocation2 + $0xc08] sm:$0xff]
    %v481 = vld [vmem:[#allocation2 + $0xc10] sm:$0xff]
    %v482 = vld [vmem:[#allocation2 + $0xc18] sm:$0xff]
    %v483 = vld [vmem:[#allocation2 + $0xc20] sm:$0xff]
    %v484 = vld [vmem:[#allocation2 + $0xc28] sm:$0xff]
    %v485 = vld [vmem:[#allocation2 + $0xc30] sm:$0xff]
    %v486 = vld [vmem:[#allocation2 + $0xc38] sm:$0xff]
    %v487 = vld [vmem:[#allocation2 + $0xc40] sm:$0xff]
    %v488 = vld [vmem:[#allocation2 + $0xc48] sm:$0xff]
    %v489 = vld [vmem:[#allocation2 + $0xc50] sm:$0xff]
    %v490 = vld [vmem:[#allocation2 + $0xc58] sm:$0xff]
    %v491 = vld [vmem:[#allocation2 + $0xc60] sm:$0xff]
    %v492 = vld [vmem:[#allocation2 + $0xc68] sm:$0xff]
    %v493 = vld [vmem:[#allocation2 + $0xc70] sm:$0xff]
    %v494 = vld [vmem:[#allocation2 + $0xc78] sm:$0xff]
    %v495 = vld [vmem:[#allocation2 + $0xc80] sm:$0xff]
    %v496 = vld [vmem:[#allocation2 + $0xc88] sm:$0xff]
    %v497 = vld [vmem:[#allocation2 + $0xc90] sm:$0xff]
    %v498 = vld [vmem:[#allocation2 + $0xc98] sm:$0xff]
    %v499 = vld [vmem:[#allocation2 + $0xca0] sm:$0xff]
    %v500 = vld [vmem:[#allocation2 + $0xca8] sm:$0xff]
    %v501 = vld [vmem:[#allocation2 + $0xcb0] sm:$0xff]
    %v502 = vld [vmem:[#allocation2 + $0xcb8] sm:$0xff]
    %v503 = vld [vmem:[#allocation2 + $0xcc0] sm:$0xff]
    %v504 = vld [vmem:[#allocation2 + $0xcc8] sm:$0xff]
    %v505 = vld [vmem:[#allocation2 + $0xcd0] sm:$0xff]
    %v506 = vld [vmem:[#allocation2 + $0xcd8] sm:$0xff]
    %v507 = vld [vmem:[#allocation2 + $0xce0] sm:$0xff]
    %v508 = vld [vmem:[#allocation2 + $0xce8] sm:$0xff]
    %v509 = vld [vmem:[#allocation2 + $0xcf0] sm:$0xff]
    %v510 = vld [vmem:[#allocation2 + $0xcf8] sm:$0xff]
    %v511 = vld [vmem:[#allocation2 + $0xd00] sm:$0xff]
    %v512 = vld [vmem:[#allocation2 + $0xd08] sm:$0xff]
    %v513 = vld [vmem:[#allocation2 + $0xd10] sm:$0xff]
    %v514 = vld [vmem:[#allocation2 + $0xd18] sm:$0xff]
    %v515 = vld [vmem:[#allocation2 + $0xd20] sm:$0xff]
    %v516 = vld [vmem:[#allocation2 + $0xd28] sm:$0xff]
    %v517 = vld [vmem:[#allocation2 + $0xd30] sm:$0xff]
    %v518 = vld [vmem:[#allocation2 + $0xd38] sm:$0xff]
    %v519 = vld [vmem:[#allocation2 + $0xd40] sm:$0xff]
    %v520 = vld [vmem:[#allocation2 + $0xd48] sm:$0xff]
    %v521 = vld [vmem:[#allocation2 + $0xd50] sm:$0xff]
    %v522 = vld [vmem:[#allocation2 + $0xd58] sm:$0xff]
    %v523 = vld [vmem:[#allocation2 + $0xd60] sm:$0xff]
    %v524 = vld [vmem:[#allocation2 + $0xd68] sm:$0xff]
    %v525 = vld [vmem:[#allocation2 + $0xd70] sm:$0xff]
    %v526 = vld [vmem:[#allocation2 + $0xd78] sm:$0xff]
    %v527 = vld [vmem:[#allocation2 + $0xd80] sm:$0xff]
    %v528 = vld [vmem:[#allocation2 + $0xd88] sm:$0xff]
    %v529 = vld [vmem:[#allocation2 + $0xd90] sm:$0xff]
    %v530 = vld [vmem:[#allocation2 + $0xd98] sm:$0xff]
    %v531 = vld [vmem:[#allocation2 + $0xda0] sm:$0xff]
    %v532 = vld [vmem:[#allocation2 + $0xda8] sm:$0xff]
    %v533 = vld [vmem:[#allocation2 + $0xdb0] sm:$0xff]
    %v534 = vld [vmem:[#allocation2 + $0xdb8] sm:$0xff]
    %v535 = vld [vmem:[#allocation2 + $0xdc0] sm:$0xff]
    %v536 = vld [vmem:[#allocation2 + $0xdc8] sm:$0xff]
    %v537 = vld [vmem:[#allocation2 + $0xdd0] sm:$0xff]
    %v538 = vld [vmem:[#allocation2 + $0xdd8] sm:$0xff]
    %v539 = vld [vmem:[#allocation2 + $0xde0] sm:$0xff]
    %v540 = vld [vmem:[#allocation2 + $0xde8] sm:$0xff]
    %v541 = vld [vmem:[#allocation2 + $0xdf0] sm:$0xff]
    %v542 = vld [vmem:[#allocation2 + $0xdf8] sm:$0xff]
    %v543 = vld [vmem:[#allocation2 + $0xe00] sm:$0xff]
    %v544 = vld [vmem:[#allocation2 + $0xe08] sm:$0xff]
    %v545 = vld [vmem:[#allocation2 + $0xe10] sm:$0xff]
    %v546 = vld [vmem:[#allocation2 + $0xe18] sm:$0xff]
    %v547 = vld [vmem:[#allocation2 + $0xe20] sm:$0xff]
    %v548 = vld [vmem:[#allocation2 + $0xe28] sm:$0xff]
    %v549 = vld [vmem:[#allocation2 + $0xe30] sm:$0xff]
    %v550 = vld [vmem:[#allocation2 + $0xe38] sm:$0xff]
    %v551 = vld [vmem:[#allocation2 + $0xe40] sm:$0xff]
    %v552 = vld [vmem:[#allocation2 + $0xe48] sm:$0xff]
    %v553 = vld [vmem:[#allocation2 + $0xe50] sm:$0xff]
    %v554 = vld [vmem:[#allocation2 + $0xe58] sm:$0xff]
    %v555 = vld [vmem:[#allocation2 + $0xe60] sm:$0xff]
    %v556 = vld [vmem:[#allocation2 + $0xe68] sm:$0xff]
    %v557 = vld [vmem:[#allocation2 + $0xe70] sm:$0xff]
    %v558 = vld [vmem:[#allocation2 + $0xe78] sm:$0xff]
    %v559 = vld [vmem:[#allocation2 + $0xe80] sm:$0xff]
    %v560 = vld [vmem:[#allocation2 + $0xe88] sm:$0xff]
    %v561 = vld [vmem:[#allocation2 + $0xe90] sm:$0xff]
    %v562 = vld [vmem:[#allocation2 + $0xe98] sm:$0xff]
    %v563 = vld [vmem:[#allocation2 + $0xea0] sm:$0xff]
    %v564 = vld [vmem:[#allocation2 + $0xea8] sm:$0xff]
    %v565 = vld [vmem:[#allocation2 + $0xeb0] sm:$0xff]
    %v566 = vld [vmem:[#allocation2 + $0xeb8] sm:$0xff]
    %v567 = vld [vmem:[#allocation2 + $0xec0] sm:$0xff]
    %v568 = vld [vmem:[#allocation2 + $0xec8] sm:$0xff]
    %v569 = vld [vmem:[#allocation2 + $0xed0] sm:$0xff]
    %v570 = vld [vmem:[#allocation2 + $0xed8] sm:$0xff]
    %v571 = vld [vmem:[#allocation2 + $0xee0] sm:$0xff]
    %v572 = vld [vmem:[#allocation2 + $0xee8] sm:$0xff]
    %v573 = vld [vmem:[#allocation2 + $0xef0] sm:$0xff]
    %v574 = vld [vmem:[#allocation2 + $0xef8] sm:$0xff]
    %v575 = vld [vmem:[#allocation2 + $0xf00] sm:$0xff]
    %v576 = vld [vmem:[#allocation2 + $0xf08] sm:$0xff]
    %v577 = vld [vmem:[#allocation2 + $0xf10] sm:$0xff]
    %v578 = vld [vmem:[#allocation2 + $0xf18] sm:$0xff]
    %v579 = vld [vmem:[#allocation2 + $0xf20] sm:$0xff]
    %v580 = vld [vmem:[#allocation2 + $0xf28] sm:$0xff]
    %v581 = vld [vmem:[#allocation2 + $0xf30] sm:$0xff]
    %v582 = vld [vmem:[#allocation2 + $0xf38] sm:$0xff]
    %v583 = vld [vmem:[#allocation2 + $0xf40] sm:$0xff]
    %v584 = vld [vmem:[#allocation2 + $0xf48] sm:$0xff]
    %v585 = vld [vmem:[#allocation2 + $0xf50] sm:$0xff]
    %v586 = vld [vmem:[#allocation2 + $0xf58] sm:$0xff]
    %v587 = vld [vmem:[#allocation2 + $0xf60] sm:$0xff]
    %v588 = vld [vmem:[#allocation2 + $0xf68] sm:$0xff]
    %v589 = vld [vmem:[#allocation2 + $0xf70] sm:$0xff]
    %v590 = vld [vmem:[#allocation2 + $0xf78] sm:$0xff]
    %v591 = vld [vmem:[#allocation2 + $0xf80] sm:$0xff]
    %v592 = vld [vmem:[#allocation2 + $0xf88] sm:$0xff]
    %v593 = vld [vmem:[#allocation2 + $0xf90] sm:$0xff]
    %v594 = vld [vmem:[#allocation2 + $0xf98] sm:$0xff]
    %v595 = vld [vmem:[#allocation2 + $0xfa0] sm:$0xff]
    %v596 = vld [vmem:[#allocation2 + $0xfa8] sm:$0xff]
    %v597 = vld [vmem:[#allocation2 + $0xfb0] sm:$0xff]
    %v598 = vld [vmem:[#allocation2 + $0xfb8] sm:$0xff]
    %v599 = vld [vmem:[#allocation2 + $0xfc0] sm:$0xff]
    %v600 = vld [vmem:[#allocation2 + $0xfc8] sm:$0xff]
    %v601 = vld [vmem:[#allocation2 + $0xfd0] sm:$0xff]
    %v602 = vld [vmem:[#allocation2 + $0xfd8] sm:$0xff]
    %v603 = vld [vmem:[#allocation2 + $0xfe0] sm:$0xff]
    %v604 = vld [vmem:[#allocation2 + $0xfe8] sm:$0xff]
    %v605 = vld [vmem:[#allocation2 + $0xff0] sm:$0xff]
    %v606 = vld [vmem:[#allocation2 + $0xff8] sm:$0xff]
    %v607 = vld [vmem:[#allocation2 + $0x1000] sm:$0xff]
    %v608 = vld [vmem:[#allocation2 + $0x1008] sm:$0xff]
    %v609 = vld [vmem:[#allocation2 + $0x1010] sm:$0xff]
    %v610 = vld [vmem:[#allocation2 + $0x1018] sm:$0xff]
    %v611 = vld [vmem:[#allocation2 + $0x1020] sm:$0xff]
    %v612 = vld [vmem:[#allocation2 + $0x1028] sm:$0xff]
    %v613 = vld [vmem:[#allocation2 + $0x1030] sm:$0xff]
    %v614 = vld [vmem:[#allocation2 + $0x1038] sm:$0xff]
    %v615 = vld [vmem:[#allocation2 + $0x1040] sm:$0xff]
    %v616 = vld [vmem:[#allocation2 + $0x1048] sm:$0xff]
    %v617 = vld [vmem:[#allocation2 + $0x1050] sm:$0xff]
    %v618 = vld [vmem:[#allocation2 + $0x1058] sm:$0xff]
    %v619 = vld [vmem:[#allocation2 + $0x1060] sm:$0xff]
    %v620 = vld [vmem:[#allocation2 + $0x1068] sm:$0xff]
    %v621 = vld [vmem:[#allocation2 + $0x1070] sm:$0xff]
    %v622 = vld [vmem:[#allocation2 + $0x1078] sm:$0xff]
    %v623 = vld [vmem:[#allocation2 + $0x1080] sm:$0xff]
    %v624 = vld [vmem:[#allocation2 + $0x1088] sm:$0xff]
    %v625 = vld [vmem:[#allocation2 + $0x1090] sm:$0xff]
    %v626 = vld [vmem:[#allocation2 + $0x1098] sm:$0xff]
    %v627 = vld [vmem:[#allocation2 + $0x10a0] sm:$0xff]
    %v628 = vld [vmem:[#allocation2 + $0x10a8] sm:$0xff]
    %v629 = vld [vmem:[#allocation2 + $0x10b0] sm:$0xff]
    %v630 = vld [vmem:[#allocation2 + $0x10b8] sm:$0xff]
    %v631 = vld [vmem:[#allocation2 + $0x10c0] sm:$0xff]
    %v632 = vld [vmem:[#allocation2 + $0x10c8] sm:$0xff]
    %v633 = vld [vmem:[#allocation2 + $0x10d0] sm:$0xff]
    %v634 = vld [vmem:[#allocation2 + $0x10d8] sm:$0xff]
    %v635 = vld [vmem:[#allocation2 + $0x10e0] sm:$0xff]
    %v636 = vld [vmem:[#allocation2 + $0x10e8] sm:$0xff]
    %v637 = vld [vmem:[#allocation2 + $0x10f0] sm:$0xff]
    %v638 = vld [vmem:[#allocation2 + $0x10f8] sm:$0xff]
    %v639 = vld [vmem:[#allocation2 + $0x1100] sm:$0xff]
    %v640 = vld [vmem:[#allocation2 + $0x1108] sm:$0xff]
    %v641 = vld [vmem:[#allocation2 + $0x1110] sm:$0xff]
    %v642 = vld [vmem:[#allocation2 + $0x1118] sm:$0xff]
    %v643 = vld [vmem:[#allocation2 + $0x1120] sm:$0xff]
    %v644 = vld [vmem:[#allocation2 + $0x1128] sm:$0xff]
    %v645 = vld [vmem:[#allocation2 + $0x1130] sm:$0xff]
    %v646 = vld [vmem:[#allocation2 + $0x1138] sm:$0xff]
    %v647 = vld [vmem:[#allocation2 + $0x1140] sm:$0xff]
    %v648 = vld [vmem:[#allocation2 + $0x1148] sm:$0xff]
    %v649 = vld [vmem:[#allocation2 + $0x1150] sm:$0xff]
    %v650 = vld [vmem:[#allocation2 + $0x1158] sm:$0xff]
    %v651 = vld [vmem:[#allocation2 + $0x1160] sm:$0xff]
    %v652 = vld [vmem:[#allocation2 + $0x1168] sm:$0xff]
    %v653 = vld [vmem:[#allocation2 + $0x1170] sm:$0xff]
    %v654 = vld [vmem:[#allocation2 + $0x1178] sm:$0xff]
    %v655 = vld [vmem:[#allocation2 + $0x1180] sm:$0xff]
    %v656 = vld [vmem:[#allocation2 + $0x1188] sm:$0xff]
    %v657 = vld [vmem:[#allocation2 + $0x1190] sm:$0xff]
    %v658 = vld [vmem:[#allocation2 + $0x1198] sm:$0xff]
    %v659 = vld [vmem:[#allocation2 + $0x11a0] sm:$0xff]
    %v660 = vld [vmem:[#allocation2 + $0x11a8] sm:$0xff]
    %v661 = vld [vmem:[#allocation2 + $0x11b0] sm:$0xff]
    %v662 = vld [vmem:[#allocation2 + $0x11b8] sm:$0xff]
    %v663 = vld [vmem:[#allocation2 + $0x11c0] sm:$0xff]
    %v664 = vld [vmem:[#allocation2 + $0x11c8] sm:$0xff]
    %v665 = vld [vmem:[#allocation2 + $0x11d0] sm:$0xff]
    %v666 = vld [vmem:[#allocation2 + $0x11d8] sm:$0xff]
    %v667 = vld [vmem:[#allocation2 + $0x11e0] sm:$0xff]
    %v668 = vld [vmem:[#allocation2 + $0x11e8] sm:$0xff]
    %v669 = vld [vmem:[#allocation2 + $0x11f0] sm:$0xff]
    %v670 = vld [vmem:[#allocation2 + $0x11f8] sm:$0xff]
    %v671 = vld [vmem:[#allocation2 + $0x1200] sm:$0xff]
    %v672 = vld [vmem:[#allocation2 + $0x1208] sm:$0xff]
    %v673 = vld [vmem:[#allocation2 + $0x1210] sm:$0xff]
    %v674 = vld [vmem:[#allocation2 + $0x1218] sm:$0xff]
    %v675 = vld [vmem:[#allocation2 + $0x1220] sm:$0xff]
    %v676 = vld [vmem:[#allocation2 + $0x1228] sm:$0xff]
    %v677 = vld [vmem:[#allocation2 + $0x1230] sm:$0xff]
    %v678 = vld [vmem:[#allocation2 + $0x1238] sm:$0xff]
    %v679 = vld [vmem:[#allocation2 + $0x1240] sm:$0xff]
    %v680 = vld [vmem:[#allocation2 + $0x1248] sm:$0xff]
    %v681 = vld [vmem:[#allocation2 + $0x1250] sm:$0xff]
    %v682 = vld [vmem:[#allocation2 + $0x1258] sm:$0xff]
    %v683 = vld [vmem:[#allocation2 + $0x1260] sm:$0xff]
    %v684 = vld [vmem:[#allocation2 + $0x1268] sm:$0xff]
    %v685 = vld [vmem:[#allocation2 + $0x1270] sm:$0xff]
    %v686 = vld [vmem:[#allocation2 + $0x1278] sm:$0xff]
    %v687 = vld [vmem:[#allocation2 + $0x1280] sm:$0xff]
    %v688 = vld [vmem:[#allocation2 + $0x1288] sm:$0xff]
    %v689 = vld [vmem:[#allocation2 + $0x1290] sm:$0xff]
    %v690 = vld [vmem:[#allocation2 + $0x1298] sm:$0xff]
    %v691 = vld [vmem:[#allocation2 + $0x12a0] sm:$0xff]
    %v692 = vld [vmem:[#allocation2 + $0x12a8] sm:$0xff]
    %v693 = vld [vmem:[#allocation2 + $0x12b0] sm:$0xff]
    %v694 = vld [vmem:[#allocation2 + $0x12b8] sm:$0xff]
    %v695 = vld [vmem:[#allocation2 + $0x12c0] sm:$0xff]
    %v696 = vld [vmem:[#allocation2 + $0x12c8] sm:$0xff]
    %v697 = vld [vmem:[#allocation2 + $0x12d0] sm:$0xff]
    %v698 = vld [vmem:[#allocation2 + $0x12d8] sm:$0xff]
    %v699 = vld [vmem:[#allocation2 + $0x12e0] sm:$0xff]
    %v700 = vld [vmem:[#allocation2 + $0x12e8] sm:$0xff]
    %v701 = vld [vmem:[#allocation2 + $0x12f0] sm:$0xff]
    %v702 = vld [vmem:[#allocation2 + $0x12f8] sm:$0xff]
    %v703 = vld [vmem:[#allocation2 + $0x1300] sm:$0xff]
    %v704 = vld [vmem:[#allocation2 + $0x1308] sm:$0xff]
    %v705 = vld [vmem:[#allocation2 + $0x1310] sm:$0xff]
    %v706 = vld [vmem:[#allocation2 + $0x1318] sm:$0xff]
    %v707 = vld [vmem:[#allocation2 + $0x1320] sm:$0xff]
    %v708 = vld [vmem:[#allocation2 + $0x1328] sm:$0xff]
    %v709 = vld [vmem:[#allocation2 + $0x1330] sm:$0xff]
    %v710 = vld [vmem:[#allocation2 + $0x1338] sm:$0xff]
    %v711 = vld [vmem:[#allocation2 + $0x1340] sm:$0xff]
    %v712 = vld [vmem:[#allocation2 + $0x1348] sm:$0xff]
    %v713 = vld [vmem:[#allocation2 + $0x1350] sm:$0xff]
    %v714 = vld [vmem:[#allocation2 + $0x1358] sm:$0xff]
    %v715 = vld [vmem:[#allocation2 + $0x1360] sm:$0xff]
    %v716 = vld [vmem:[#allocation2 + $0x1368] sm:$0xff]
    %v717 = vld [vmem:[#allocation2 + $0x1370] sm:$0xff]
    %v718 = vld [vmem:[#allocation2 + $0x1378] sm:$0xff]
    %v719 = vld [vmem:[#allocation2 + $0x1380] sm:$0xff]
    %v720 = vld [vmem:[#allocation2 + $0x1388] sm:$0xff]
    %v721 = vld [vmem:[#allocation2 + $0x1390] sm:$0xff]
    %v722 = vld [vmem:[#allocation2 + $0x1398] sm:$0xff]
    %v723 = vld [vmem:[#allocation2 + $0x13a0] sm:$0xff]
    %v724 = vld [vmem:[#allocation2 + $0x13a8] sm:$0xff]
    %v725 = vld [vmem:[#allocation2 + $0x13b0] sm:$0xff]
    %v726 = vld [vmem:[#allocation2 + $0x13b8] sm:$0xff]
    %v727 = vld [vmem:[#allocation2 + $0x13c0] sm:$0xff]
    %v728 = vld [vmem:[#allocation2 + $0x13c8] sm:$0xff]
    %v729 = vld [vmem:[#allocation2 + $0x13d0] sm:$0xff]
    %v730 = vld [vmem:[#allocation2 + $0x13d8] sm:$0xff]
    %v731 = vld [vmem:[#allocation2 + $0x13e0] sm:$0xff]
    %v732 = vld [vmem:[#allocation2 + $0x13e8] sm:$0xff]
    %v733 = vld [vmem:[#allocation2 + $0x13f0] sm:$0xff]
    %v734 = vld [vmem:[#allocation2 + $0x13f8] sm:$0xff]
    %v735 = vld [vmem:[#allocation2 + $0x1400] sm:$0xff]
    %v736 = vld [vmem:[#allocation2 + $0x1408] sm:$0xff]
    %v737 = vld [vmem:[#allocation2 + $0x1410] sm:$0xff]
    %v738 = vld [vmem:[#allocation2 + $0x1418] sm:$0xff]
    %v739 = vld [vmem:[#allocation2 + $0x1420] sm:$0xff]
    %v740 = vld [vmem:[#allocation2 + $0x1428] sm:$0xff]
    %v741 = vld [vmem:[#allocation2 + $0x1430] sm:$0xff]
    %v742 = vld [vmem:[#allocation2 + $0x1438] sm:$0xff]
    %v743 = vld [vmem:[#allocation2 + $0x1440] sm:$0xff]
    %v744 = vld [vmem:[#allocation2 + $0x1448] sm:$0xff]
    %v745 = vld [vmem:[#allocation2 + $0x1450] sm:$0xff]
    %v746 = vld [vmem:[#allocation2 + $0x1458] sm:$0xff]
    %v747 = vld [vmem:[#allocation2 + $0x1460] sm:$0xff]
    %v748 = vld [vmem:[#allocation2 + $0x1468] sm:$0xff]
    %v749 = vld [vmem:[#allocation2 + $0x1470] sm:$0xff]
    %v750 = vld [vmem:[#allocation2 + $0x1478] sm:$0xff]
    %v751 = vld [vmem:[#allocation2 + $0x1480] sm:$0xff]
    %v752 = vld [vmem:[#allocation2 + $0x1488] sm:$0xff]
    %v753 = vld [vmem:[#allocation2 + $0x1490] sm:$0xff]
    %v754 = vld [vmem:[#allocation2 + $0x1498] sm:$0xff]
    %v755 = vld [vmem:[#allocation2 + $0x14a0] sm:$0xff]
    %v756 = vld [vmem:[#allocation2 + $0x14a8] sm:$0xff]
    %v757 = vld [vmem:[#allocation2 + $0x14b0] sm:$0xff]
    %v758 = vld [vmem:[#allocation2 + $0x14b8] sm:$0xff]
    %v759 = vld [vmem:[#allocation2 + $0x14c0] sm:$0xff]
    %v760 = vld [vmem:[#allocation2 + $0x14c8] sm:$0xff]
    %v761 = vld [vmem:[#allocation2 + $0x14d0] sm:$0xff]
    %v762 = vld [vmem:[#allocation2 + $0x14d8] sm:$0xff]
    %v763 = vld [vmem:[#allocation2 + $0x14e0] sm:$0xff]
    %v764 = vld [vmem:[#allocation2 + $0x14e8] sm:$0xff]
    %v765 = vld [vmem:[#allocation2 + $0x14f0] sm:$0xff]
    %v766 = vld [vmem:[#allocation2 + $0x14f8] sm:$0xff]
    %v767 = vld [vmem:[#allocation2 + $0x1500] sm:$0xff]
    %v768 = vld [vmem:[#allocation2 + $0x1508] sm:$0xff]
    %v769 = vld [vmem:[#allocation2 + $0x1510] sm:$0xff]
    %v770 = vld [vmem:[#allocation2 + $0x1518] sm:$0xff]
    %v771 = vld [vmem:[#allocation2 + $0x1520] sm:$0xff]
    %v772 = vld [vmem:[#allocation2 + $0x1528] sm:$0xff]
    %v773 = vld [vmem:[#allocation2 + $0x1530] sm:$0xff]
    %v774 = vld [vmem:[#allocation2 + $0x1538] sm:$0xff]
    %v775 = vld [vmem:[#allocation2 + $0x1540] sm:$0xff]
    %v776 = vld [vmem:[#allocation2 + $0x1548] sm:$0xff]
    %v777 = vld [vmem:[#allocation2 + $0x1550] sm:$0xff]
    %v778 = vld [vmem:[#allocation2 + $0x1558] sm:$0xff]
    %v779 = vld [vmem:[#allocation2 + $0x1560] sm:$0xff]
    %v780 = vld [vmem:[#allocation2 + $0x1568] sm:$0xff]
    %v781 = vld [vmem:[#allocation2 + $0x1570] sm:$0xff]
    %v782 = vld [vmem:[#allocation2 + $0x1578] sm:$0xff]
    %v783 = vld [vmem:[#allocation2 + $0x1580] sm:$0xff]
    %v784 = vld [vmem:[#allocation2 + $0x1588] sm:$0xff]
    %v785 = vld [vmem:[#allocation2 + $0x1590] sm:$0xff]
    %v786 = vld [vmem:[#allocation2 + $0x1598] sm:$0xff]
    %v787 = vld [vmem:[#allocation2 + $0x15a0] sm:$0xff]
    %v788 = vld [vmem:[#allocation2 + $0x15a8] sm:$0xff]
    %v789 = vld [vmem:[#allocation2 + $0x15b0] sm:$0xff]
    %v790 = vld [vmem:[#allocation2 + $0x15b8] sm:$0xff]
    %v791 = vld [vmem:[#allocation2 + $0x15c0] sm:$0xff]
    %v792 = vld [vmem:[#allocation2 + $0x15c8] sm:$0xff]
    %v793 = vld [vmem:[#allocation2 + $0x15d0] sm:$0xff]
    %v794 = vld [vmem:[#allocation2 + $0x15d8] sm:$0xff]
    %v795 = vld [vmem:[#allocation2 + $0x15e0] sm:$0xff]
    %v796 = vld [vmem:[#allocation2 + $0x15e8] sm:$0xff]
    %v797 = vld [vmem:[#allocation2 + $0x15f0] sm:$0xff]
    %v798 = vld [vmem:[#allocation2 + $0x15f8] sm:$0xff]
    %v799 = vld [vmem:[#allocation2 + $0x1600] sm:$0xff]
    %v800 = vld [vmem:[#allocation2 + $0x1608] sm:$0xff]
    %v801 = vld [vmem:[#allocation2 + $0x1610] sm:$0xff]
    %v802 = vld [vmem:[#allocation2 + $0x1618] sm:$0xff]
    %v803 = vld [vmem:[#allocation2 + $0x1620] sm:$0xff]
    %v804 = vld [vmem:[#allocation2 + $0x1628] sm:$0xff]
    %v805 = vld [vmem:[#allocation2 + $0x1630] sm:$0xff]
    %v806 = vld [vmem:[#allocation2 + $0x1638] sm:$0xff]
    %v807 = vld [vmem:[#allocation2 + $0x1640] sm:$0xff]
    %v808 = vld [vmem:[#allocation2 + $0x1648] sm:$0xff]
    %v809 = vld [vmem:[#allocation2 + $0x1650] sm:$0xff]
    %v810 = vld [vmem:[#allocation2 + $0x1658] sm:$0xff]
    %v811 = vld [vmem:[#allocation2 + $0x1660] sm:$0xff]
    %v812 = vld [vmem:[#allocation2 + $0x1668] sm:$0xff]
    %v813 = vld [vmem:[#allocation2 + $0x1670] sm:$0xff]
    %v814 = vld [vmem:[#allocation2 + $0x1678] sm:$0xff]
    %v815 = vld [vmem:[#allocation2 + $0x1680] sm:$0xff]
    %v816 = vld [vmem:[#allocation2 + $0x1688] sm:$0xff]
    %v817 = vld [vmem:[#allocation2 + $0x1690] sm:$0xff]
    %v818 = vld [vmem:[#allocation2 + $0x1698] sm:$0xff]
    %v819 = vld [vmem:[#allocation2 + $0x16a0] sm:$0xff]
    %v820 = vld [vmem:[#allocation2 + $0x16a8] sm:$0xff]
    %v821 = vld [vmem:[#allocation2 + $0x16b0] sm:$0xff]
    %v822 = vld [vmem:[#allocation2 + $0x16b8] sm:$0xff]
    %v823 = vld [vmem:[#allocation2 + $0x16c0] sm:$0xff]
    %v824 = vld [vmem:[#allocation2 + $0x16c8] sm:$0xff]
    %v825 = vld [vmem:[#allocation2 + $0x16d0] sm:$0xff]
    %v826 = vld [vmem:[#allocation2 + $0x16d8] sm:$0xff]
    %v827 = vld [vmem:[#allocation2 + $0x16e0] sm:$0xff]
    %v828 = vld [vmem:[#allocation2 + $0x16e8] sm:$0xff]
    %v829 = vld [vmem:[#allocation2 + $0x16f0] sm:$0xff]
    %v830 = vld [vmem:[#allocation2 + $0x16f8] sm:$0xff]
    %v831 = vld [vmem:[#allocation2 + $0x1700] sm:$0xff]
    %v832 = vld [vmem:[#allocation2 + $0x1708] sm:$0xff]
    %v833 = vld [vmem:[#allocation2 + $0x1710] sm:$0xff]
    %v834 = vld [vmem:[#allocation2 + $0x1718] sm:$0xff]
    %v835 = vld [vmem:[#allocation2 + $0x1720] sm:$0xff]
    %v836 = vld [vmem:[#allocation2 + $0x1728] sm:$0xff]
    %v837 = vld [vmem:[#allocation2 + $0x1730] sm:$0xff]
    %v838 = vld [vmem:[#allocation2 + $0x1738] sm:$0xff]
    %v839 = vld [vmem:[#allocation2 + $0x1740] sm:$0xff]
    %v840 = vld [vmem:[#allocation2 + $0x1748] sm:$0xff]
    %v841 = vld [vmem:[#allocation2 + $0x1750] sm:$0xff]
    %v842 = vld [vmem:[#allocation2 + $0x1758] sm:$0xff]
    %v843 = vld [vmem:[#allocation2 + $0x1760] sm:$0xff]
    %v844 = vld [vmem:[#allocation2 + $0x1768] sm:$0xff]
    %v845 = vld [vmem:[#allocation2 + $0x1770] sm:$0xff]
    %v846 = vld [vmem:[#allocation2 + $0x1778] sm:$0xff]
    %v847 = vld [vmem:[#allocation2 + $0x1780] sm:$0xff]
    %v848 = vld [vmem:[#allocation2 + $0x1788] sm:$0xff]
    %v849 = vld [vmem:[#allocation2 + $0x1790] sm:$0xff]
    %v850 = vld [vmem:[#allocation2 + $0x1798] sm:$0xff]
    %v851 = vld [vmem:[#allocation2 + $0x17a0] sm:$0xff]
    %v852 = vld [vmem:[#allocation2 + $0x17a8] sm:$0xff]
    %v853 = vld [vmem:[#allocation2 + $0x17b0] sm:$0xff]
    %v854 = vld [vmem:[#allocation2 + $0x17b8] sm:$0xff]
    %v855 = vld [vmem:[#allocation2 + $0x17c0] sm:$0xff]
    %v856 = vld [vmem:[#allocation2 + $0x17c8] sm:$0xff]
    %v857 = vld [vmem:[#allocation2 + $0x17d0] sm:$0xff]
    %v858 = vld [vmem:[#allocation2 + $0x17d8] sm:$0xff]
    %v859 = vld [vmem:[#allocation2 + $0x17e0] sm:$0xff]
    %v860 = vld [vmem:[#allocation2 + $0x17e8] sm:$0xff]
    %v861 = vld [vmem:[#allocation2 + $0x17f0] sm:$0xff]
    %v862 = vld [vmem:[#allocation2 + $0x17f8] sm:$0xff]
    %v863 = vld [vmem:[#allocation2 + $0x1800] sm:$0xff]
    %v864 = vld [vmem:[#allocation2 + $0x1808] sm:$0xff]
    %v865 = vld [vmem:[#allocation2 + $0x1810] sm:$0xff]
    %v866 = vld [vmem:[#allocation2 + $0x1818] sm:$0xff]
    %v867 = vld [vmem:[#allocation2 + $0x1820] sm:$0xff]
    %v868 = vld [vmem:[#allocation2 + $0x1828] sm:$0xff]
    %v869 = vld [vmem:[#allocation2 + $0x1830] sm:$0xff]
    %v870 = vld [vmem:[#allocation2 + $0x1838] sm:$0xff]
    %v871 = vld [vmem:[#allocation2 + $0x1840] sm:$0xff]
    %v872 = vld [vmem:[#allocation2 + $0x1848] sm:$0xff]
    %v873 = vld [vmem:[#allocation2 + $0x1850] sm:$0xff]
    %v874 = vld [vmem:[#allocation2 + $0x1858] sm:$0xff]
    %v875 = vld [vmem:[#allocation2 + $0x1860] sm:$0xff]
    %v876 = vld [vmem:[#allocation2 + $0x1868] sm:$0xff]
    %v877 = vld [vmem:[#allocation2 + $0x1870] sm:$0xff]
    %v878 = vld [vmem:[#allocation2 + $0x1878] sm:$0xff]
    %v879 = vld [vmem:[#allocation2 + $0x1880] sm:$0xff]
    %v880 = vld [vmem:[#allocation2 + $0x1888] sm:$0xff]
    %v881 = vld [vmem:[#allocation2 + $0x1890] sm:$0xff]
    %v882 = vld [vmem:[#allocation2 + $0x1898] sm:$0xff]
    %v883 = vld [vmem:[#allocation2 + $0x18a0] sm:$0xff]
    %v884 = vld [vmem:[#allocation2 + $0x18a8] sm:$0xff]
    %v885 = vld [vmem:[#allocation2 + $0x18b0] sm:$0xff]
    %v886 = vld [vmem:[#allocation2 + $0x18b8] sm:$0xff]
    %v887 = vld [vmem:[#allocation2 + $0x18c0] sm:$0xff]
    %v888 = vld [vmem:[#allocation2 + $0x18c8] sm:$0xff]
    %v889 = vld [vmem:[#allocation2 + $0x18d0] sm:$0xff]
    %v890 = vld [vmem:[#allocation2 + $0x18d8] sm:$0xff]
    %v891 = vld [vmem:[#allocation2 + $0x18e0] sm:$0xff]
    %v892 = vld [vmem:[#allocation2 + $0x18e8] sm:$0xff]
    %v893 = vld [vmem:[#allocation2 + $0x18f0] sm:$0xff]
    %v894 = vld [vmem:[#allocation2 + $0x18f8] sm:$0xff]
    %v895 = vld [vmem:[#allocation2 + $0x1900] sm:$0xff]
    %v896 = vld [vmem:[#allocation2 + $0x1908] sm:$0xff]
    %v897 = vld [vmem:[#allocation2 + $0x1910] sm:$0xff]
    %v898 = vld [vmem:[#allocation2 + $0x1918] sm:$0xff]
    %v899 = vld [vmem:[#allocation2 + $0x1920] sm:$0xff]
    %v900 = vld [vmem:[#allocation2 + $0x1928] sm:$0xff]
    %v901 = vld [vmem:[#allocation2 + $0x1930] sm:$0xff]
    %v902 = vld [vmem:[#allocation2 + $0x1938] sm:$0xff]
    %v903 = vld [vmem:[#allocation2 + $0x1940] sm:$0xff]
    %v904 = vld [vmem:[#allocation2 + $0x1948] sm:$0xff]
    %v905 = vld [vmem:[#allocation2 + $0x1950] sm:$0xff]
    %v906 = vld [vmem:[#allocation2 + $0x1958] sm:$0xff]
    %v907 = vld [vmem:[#allocation2 + $0x1960] sm:$0xff]
    %v908 = vld [vmem:[#allocation2 + $0x1968] sm:$0xff]
    %v909 = vld [vmem:[#allocation2 + $0x1970] sm:$0xff]
    %v910 = vld [vmem:[#allocation2 + $0x1978] sm:$0xff]
    %v911 = vld [vmem:[#allocation2 + $0x1980] sm:$0xff]
    %v912 = vld [vmem:[#allocation2 + $0x1988] sm:$0xff]
    %v913 = vld [vmem:[#allocation2 + $0x1990] sm:$0xff]
    %v914 = vld [vmem:[#allocation2 + $0x1998] sm:$0xff]
    %v915 = vld [vmem:[#allocation2 + $0x19a0] sm:$0xff]
    %v916 = vld [vmem:[#allocation2 + $0x19a8] sm:$0xff]
    %v917 = vld [vmem:[#allocation2 + $0x19b0] sm:$0xff]
    %v918 = vld [vmem:[#allocation2 + $0x19b8] sm:$0xff]
    %v919 = vld [vmem:[#allocation2 + $0x19c0] sm:$0xff]
    %v920 = vld [vmem:[#allocation2 + $0x19c8] sm:$0xff]
    %v921 = vld [vmem:[#allocation2 + $0x19d0] sm:$0xff]
    %v922 = vld [vmem:[#allocation2 + $0x19d8] sm:$0xff]
    %v923 = vld [vmem:[#allocation2 + $0x19e0] sm:$0xff]
    %v924 = vld [vmem:[#allocation2 + $0x19e8] sm:$0xff]
    %v925 = vld [vmem:[#allocation2 + $0x19f0] sm:$0xff]
    %v926 = vld [vmem:[#allocation2 + $0x19f8] sm:$0xff]
    %v927 = vld [vmem:[#allocation2 + $0x1a00] sm:$0xff]
    %v928 = vld [vmem:[#allocation2 + $0x1a08] sm:$0xff]
    %v929 = vld [vmem:[#allocation2 + $0x1a10] sm:$0xff]
    %v930 = vld [vmem:[#allocation2 + $0x1a18] sm:$0xff]
    %v931 = vld [vmem:[#allocation2 + $0x1a20] sm:$0xff]
    %v932 = vld [vmem:[#allocation2 + $0x1a28] sm:$0xff]
    %v933 = vld [vmem:[#allocation2 + $0x1a30] sm:$0xff]
    %v934 = vld [vmem:[#allocation2 + $0x1a38] sm:$0xff]
    %v935 = vld [vmem:[#allocation2 + $0x1a40] sm:$0xff]
    %v936 = vld [vmem:[#allocation2 + $0x1a48] sm:$0xff]
    %v937 = vld [vmem:[#allocation2 + $0x1a50] sm:$0xff]
    %v938 = vld [vmem:[#allocation2 + $0x1a58] sm:$0xff]
    %v939 = vld [vmem:[#allocation2 + $0x1a60] sm:$0xff]
    %v940 = vld [vmem:[#allocation2 + $0x1a68] sm:$0xff]
    %v941 = vld [vmem:[#allocation2 + $0x1a70] sm:$0xff]
    %v942 = vld [vmem:[#allocation2 + $0x1a78] sm:$0xff]
    %v943 = vld [vmem:[#allocation2 + $0x1a80] sm:$0xff]
    %v944 = vld [vmem:[#allocation2 + $0x1a88] sm:$0xff]
    %v945 = vld [vmem:[#allocation2 + $0x1a90] sm:$0xff]
    %v946 = vld [vmem:[#allocation2 + $0x1a98] sm:$0xff]
    %v947 = vld [vmem:[#allocation2 + $0x1aa0] sm:$0xff]
    %v948 = vld [vmem:[#allocation2 + $0x1aa8] sm:$0xff]
    %v949 = vld [vmem:[#allocation2 + $0x1ab0] sm:$0xff]
    %v950 = vld [vmem:[#allocation2 + $0x1ab8] sm:$0xff]
    %v951 = vld [vmem:[#allocation2 + $0x1ac0] sm:$0xff]
    %v952 = vld [vmem:[#allocation2 + $0x1ac8] sm:$0xff]
    %v953 = vld [vmem:[#allocation2 + $0x1ad0] sm:$0xff]
    %v954 = vld [vmem:[#allocation2 + $0x1ad8] sm:$0xff]
    %v955 = vld [vmem:[#allocation2 + $0x1ae0] sm:$0xff]
    %v956 = vld [vmem:[#allocation2 + $0x1ae8] sm:$0xff]
    %v957 = vld [vmem:[#allocation2 + $0x1af0] sm:$0xff]
    %v958 = vld [vmem:[#allocation2 + $0x1af8] sm:$0xff]
    %v959 = vld [vmem:[#allocation2 + $0x1b00] sm:$0xff]
    %v960 = vld [vmem:[#allocation2 + $0x1b08] sm:$0xff]
    %v961 = vld [vmem:[#allocation2 + $0x1b10] sm:$0xff]
    %v962 = vld [vmem:[#allocation2 + $0x1b18] sm:$0xff]
    %v963 = vld [vmem:[#allocation2 + $0x1b20] sm:$0xff]
    %v964 = vld [vmem:[#allocation2 + $0x1b28] sm:$0xff]
    %v965 = vld [vmem:[#allocation2 + $0x1b30] sm:$0xff]
    %v966 = vld [vmem:[#allocation2 + $0x1b38] sm:$0xff]
    %v967 = vld [vmem:[#allocation2 + $0x1b40] sm:$0xff]
    %v968 = vld [vmem:[#allocation2 + $0x1b48] sm:$0xff]
    %v969 = vld [vmem:[#allocation2 + $0x1b50] sm:$0xff]
    %v970 = vld [vmem:[#allocation2 + $0x1b58] sm:$0xff]
    %v971 = vld [vmem:[#allocation2 + $0x1b60] sm:$0xff]
    %v972 = vld [vmem:[#allocation2 + $0x1b68] sm:$0xff]
    %v973 = vld [vmem:[#allocation2 + $0x1b70] sm:$0xff]
    %v974 = vld [vmem:[#allocation2 + $0x1b78] sm:$0xff]
    %v975 = vld [vmem:[#allocation2 + $0x1b80] sm:$0xff]
    %v976 = vld [vmem:[#allocation2 + $0x1b88] sm:$0xff]
    %v977 = vld [vmem:[#allocation2 + $0x1b90] sm:$0xff]
    %v978 = vld [vmem:[#allocation2 + $0x1b98] sm:$0xff]
    %v979 = vld [vmem:[#allocation2 + $0x1ba0] sm:$0xff]
    %v980 = vld [vmem:[#allocation2 + $0x1ba8] sm:$0xff]
    %v981 = vld [vmem:[#allocation2 + $0x1bb0] sm:$0xff]
    %v982 = vld [vmem:[#allocation2 + $0x1bb8] sm:$0xff]
    %v983 = vld [vmem:[#allocation2 + $0x1bc0] sm:$0xff]
    %v984 = vld [vmem:[#allocation2 + $0x1bc8] sm:$0xff]
    %v985 = vld [vmem:[#allocation2 + $0x1bd0] sm:$0xff]
    %v986 = vld [vmem:[#allocation2 + $0x1bd8] sm:$0xff]
    %v987 = vld [vmem:[#allocation2 + $0x1be0] sm:$0xff]
    %v988 = vld [vmem:[#allocation2 + $0x1be8] sm:$0xff]
    %v989 = vld [vmem:[#allocation2 + $0x1bf0] sm:$0xff]
    %v990 = vld [vmem:[#allocation2 + $0x1bf8] sm:$0xff]
    %v991 = vld [vmem:[#allocation2 + $0x1c00] sm:$0xff]
    %v992 = vld [vmem:[#allocation2 + $0x1c08] sm:$0xff]
    %v993 = vld [vmem:[#allocation2 + $0x1c10] sm:$0xff]
    %v994 = vld [vmem:[#allocation2 + $0x1c18] sm:$0xff]
    %v995 = vld [vmem:[#allocation2 + $0x1c20] sm:$0xff]
    %v996 = vld [vmem:[#allocation2 + $0x1c28] sm:$0xff]
    %v997 = vld [vmem:[#allocation2 + $0x1c30] sm:$0xff]
    %v998 = vld [vmem:[#allocation2 + $0x1c38] sm:$0xff]
    %v999 = vld [vmem:[#allocation2 + $0x1c40] sm:$0xff]
    %v1000 = vld [vmem:[#allocation2 + $0x1c48] sm:$0xff]
    %v1001 = vld [vmem:[#allocation2 + $0x1c50] sm:$0xff]
    %v1002 = vld [vmem:[#allocation2 + $0x1c58] sm:$0xff]
    %v1003 = vld [vmem:[#allocation2 + $0x1c60] sm:$0xff]
    %v1004 = vld [vmem:[#allocation2 + $0x1c68] sm:$0xff]
    %v1005 = vld [vmem:[#allocation2 + $0x1c70] sm:$0xff]
    %v1006 = vld [vmem:[#allocation2 + $0x1c78] sm:$0xff]
    %v1007 = vld [vmem:[#allocation2 + $0x1c80] sm:$0xff]
    %v1008 = vld [vmem:[#allocation2 + $0x1c88] sm:$0xff]
    %v1009 = vld [vmem:[#allocation2 + $0x1c90] sm:$0xff]
    %v1010 = vld [vmem:[#allocation2 + $0x1c98] sm:$0xff]
    %v1011 = vld [vmem:[#allocation2 + $0x1ca0] sm:$0xff]
    %v1012 = vld [vmem:[#allocation2 + $0x1ca8] sm:$0xff]
    %v1013 = vld [vmem:[#allocation2 + $0x1cb0] sm:$0xff]
    %v1014 = vld [vmem:[#allocation2 + $0x1cb8] sm:$0xff]
    %v1015 = vld [vmem:[#allocation2 + $0x1cc0] sm:$0xff]
    %v1016 = vld [vmem:[#allocation2 + $0x1cc8] sm:$0xff]
    %v1017 = vld [vmem:[#allocation2 + $0x1cd0] sm:$0xff]
    %v1018 = vld [vmem:[#allocation2 + $0x1cd8] sm:$0xff]
    %v1019 = vld [vmem:[#allocation2 + $0x1ce0] sm:$0xff]
    %v1020 = vld [vmem:[#allocation2 + $0x1ce8] sm:$0xff]
    %v1021 = vld [vmem:[#allocation2 + $0x1cf0] sm:$0xff]
    %v1022 = vld [vmem:[#allocation2 + $0x1cf8] sm:$0xff]
    %v1023 = vld [vmem:[#allocation2 + $0x1d00] sm:$0xff]
    %v1024 = vld [vmem:[#allocation2 + $0x1d08] sm:$0xff]
    %v1025 = vld [vmem:[#allocation2 + $0x1d10] sm:$0xff]
    %v1026 = vld [vmem:[#allocation2 + $0x1d18] sm:$0xff]
    %v1027 = vld [vmem:[#allocation2 + $0x1d20] sm:$0xff]
    %v1028 = vld [vmem:[#allocation2 + $0x1d28] sm:$0xff]
    %v1029 = vld [vmem:[#allocation2 + $0x1d30] sm:$0xff]
    %v1030 = vld [vmem:[#allocation2 + $0x1d38] sm:$0xff]
    %v1031 = vld [vmem:[#allocation2 + $0x1d40] sm:$0xff]
    %v1032 = vld [vmem:[#allocation2 + $0x1d48] sm:$0xff]
    %v1033 = vld [vmem:[#allocation2 + $0x1d50] sm:$0xff]
    %v1034 = vld [vmem:[#allocation2 + $0x1d58] sm:$0xff]
    %v1035 = vld [vmem:[#allocation2 + $0x1d60] sm:$0xff]
    %v1036 = vld [vmem:[#allocation2 + $0x1d68] sm:$0xff]
    %v1037 = vld [vmem:[#allocation2 + $0x1d70] sm:$0xff]
    %v1038 = vld [vmem:[#allocation2 + $0x1d78] sm:$0xff]
    %v1039 = vld [vmem:[#allocation2 + $0x1d80] sm:$0xff]
    %v1040 = vld [vmem:[#allocation2 + $0x1d88] sm:$0xff]
    %v1041 = vld [vmem:[#allocation2 + $0x1d90] sm:$0xff]
    %v1042 = vld [vmem:[#allocation2 + $0x1d98] sm:$0xff]
    %v1043 = vld [vmem:[#allocation2 + $0x1da0] sm:$0xff]
    %v1044 = vld [vmem:[#allocation2 + $0x1da8] sm:$0xff]
    %v1045 = vld [vmem:[#allocation2 + $0x1db0] sm:$0xff]
    %v1046 = vld [vmem:[#allocation2 + $0x1db8] sm:$0xff]
    %v1047 = vld [vmem:[#allocation2 + $0x1dc0] sm:$0xff]
    %v1048 = vld [vmem:[#allocation2 + $0x1dc8] sm:$0xff]
    %v1049 = vld [vmem:[#allocation2 + $0x1dd0] sm:$0xff]
    %v1050 = vld [vmem:[#allocation2 + $0x1dd8] sm:$0xff]
    %v1051 = vld [vmem:[#allocation2 + $0x1de0] sm:$0xff]
    %v1052 = vld [vmem:[#allocation2 + $0x1de8] sm:$0xff]
    %v1053 = vld [vmem:[#allocation2 + $0x1df0] sm:$0xff]
    %v1054 = vld [vmem:[#allocation2 + $0x1df8] sm:$0xff]
    %v1055 = vld [vmem:[#allocation2 + $0x1e00] sm:$0xff]
    %v1056 = vld [vmem:[#allocation2 + $0x1e08] sm:$0xff]
    %v1057 = vld [vmem:[#allocation2 + $0x1e10] sm:$0xff]
    %v1058 = vld [vmem:[#allocation2 + $0x1e18] sm:$0xff]
    %v1059 = vld [vmem:[#allocation2 + $0x1e20] sm:$0xff]
    %v1060 = vld [vmem:[#allocation2 + $0x1e28] sm:$0xff]
    %v1061 = vld [vmem:[#allocation2 + $0x1e30] sm:$0xff]
    %v1062 = vld [vmem:[#allocation2 + $0x1e38] sm:$0xff]
    %v1063 = vld [vmem:[#allocation2 + $0x1e40] sm:$0xff]
    %v1064 = vld [vmem:[#allocation2 + $0x1e48] sm:$0xff]
    %v1065 = vld [vmem:[#allocation2 + $0x1e50] sm:$0xff]
    %v1066 = vld [vmem:[#allocation2 + $0x1e58] sm:$0xff]
    %v1067 = vld [vmem:[#allocation2 + $0x1e60] sm:$0xff]
    %v1068 = vld [vmem:[#allocation2 + $0x1e68] sm:$0xff]
    %v1069 = vld [vmem:[#allocation2 + $0x1e70] sm:$0xff]
    %v1070 = vld [vmem:[#allocation2 + $0x1e78] sm:$0xff]
    %v1071 = vld [vmem:[#allocation2 + $0x1e80] sm:$0xff]
    %v1072 = vld [vmem:[#allocation2 + $0x1e88] sm:$0xff]
    %v1073 = vld [vmem:[#allocation2 + $0x1e90] sm:$0xff]
    %v1074 = vld [vmem:[#allocation2 + $0x1e98] sm:$0xff]
    %v1075 = vld [vmem:[#allocation2 + $0x1ea0] sm:$0xff]
    %v1076 = vld [vmem:[#allocation2 + $0x1ea8] sm:$0xff]
    %v1077 = vld [vmem:[#allocation2 + $0x1eb0] sm:$0xff]
    %v1078 = vld [vmem:[#allocation2 + $0x1eb8] sm:$0xff]
    %v1079 = vld [vmem:[#allocation2 + $0x1ec0] sm:$0xff]
    %v1080 = vld [vmem:[#allocation2 + $0x1ec8] sm:$0xff]
    %v1081 = vld [vmem:[#allocation2 + $0x1ed0] sm:$0xff]
    %v1082 = vld [vmem:[#allocation2 + $0x1ed8] sm:$0xff]
    %v1083 = vld [vmem:[#allocation2 + $0x1ee0] sm:$0xff]
    %v1084 = vld [vmem:[#allocation2 + $0x1ee8] sm:$0xff]
    %v1085 = vld [vmem:[#allocation2 + $0x1ef0] sm:$0xff]
    %v1086 = vld [vmem:[#allocation2 + $0x1ef8] sm:$0xff]
    %v1087 = vld [vmem:[#allocation2 + $0x1f00] sm:$0xff]
    %v1088 = vld [vmem:[#allocation2 + $0x1f08] sm:$0xff]
    %v1089 = vld [vmem:[#allocation2 + $0x1f10] sm:$0xff]
    %v1090 = vld [vmem:[#allocation2 + $0x1f18] sm:$0xff]
    %v1091 = vld [vmem:[#allocation2 + $0x1f20] sm:$0xff]
    %v1092 = vld [vmem:[#allocation2 + $0x1f28] sm:$0xff]
    %v1093 = vld [vmem:[#allocation2 + $0x1f30] sm:$0xff]
    %v1094 = vld [vmem:[#allocation2 + $0x1f38] sm:$0xff]
    %v1095 = vld [vmem:[#allocation2 + $0x1f40] sm:$0xff]
    %v1096 = vld [vmem:[#allocation2 + $0x1f48] sm:$0xff]
    %v1097 = vld [vmem:[#allocation2 + $0x1f50] sm:$0xff]
    %v1098 = vld [vmem:[#allocation2 + $0x1f58] sm:$0xff]
    %v1099 = vld [vmem:[#allocation2 + $0x1f60] sm:$0xff]
    %v1100 = vld [vmem:[#allocation2 + $0x1f68] sm:$0xff]
    %v1101 = vld [vmem:[#allocation2 + $0x1f70] sm:$0xff]
    %v1102 = vld [vmem:[#allocation2 + $0x1f78] sm:$0xff]
    %v1103 = vld [vmem:[#allocation2 + $0x1f80] sm:$0xff]
    %v1104 = vld [vmem:[#allocation2 + $0x1f88] sm:$0xff]
    %v1105 = vld [vmem:[#allocation2 + $0x1f90] sm:$0xff]
    %v1106 = vld [vmem:[#allocation2 + $0x1f98] sm:$0xff]
    %v1107 = vld [vmem:[#allocation2 + $0x1fa0] sm:$0xff]
    %v1108 = vld [vmem:[#allocation2 + $0x1fa8] sm:$0xff]
    %v1109 = vld [vmem:[#allocation2 + $0x1fb0] sm:$0xff]
    %v1110 = vld [vmem:[#allocation2 + $0x1fb8] sm:$0xff]
    %v1111 = vld [vmem:[#allocation2 + $0x1fc0] sm:$0xff]
    %v1112 = vld [vmem:[#allocation2 + $0x1fc8] sm:$0xff]
    %v1113 = vld [vmem:[#allocation2 + $0x1fd0] sm:$0xff]
    %v1114 = vld [vmem:[#allocation2 + $0x1fd8] sm:$0xff]
    %v1115 = vld [vmem:[#allocation2 + $0x1fe0] sm:$0xff]
    %v1116 = vld [vmem:[#allocation2 + $0x1fe8] sm:$0xff]
    %v1117 = vld [vmem:[#allocation2 + $0x1ff0] sm:$0xff]
    %v1118 = vld [vmem:[#allocation2 + $0x1ff8] sm:$0xff]
    %v1119 = vld [vmem:[#allocation2 + $0x2000] sm:$0xff]
    %v1120 = vld [vmem:[#allocation2 + $0x2008] sm:$0xff]
    %v1121 = vld [vmem:[#allocation2 + $0x2010] sm:$0xff]
    %v1122 = vld [vmem:[#allocation2 + $0x2018] sm:$0xff]
    %v1123 = vld [vmem:[#allocation2 + $0x2020] sm:$0xff]
    %v1124 = vld [vmem:[#allocation2 + $0x2028] sm:$0xff]
    %v1125 = vld [vmem:[#allocation2 + $0x2030] sm:$0xff]
    %v1126 = vld [vmem:[#allocation2 + $0x2038] sm:$0xff]
    %v1127 = vld [vmem:[#allocation2 + $0x2040] sm:$0xff]
    %v1128 = vld [vmem:[#allocation2 + $0x2048] sm:$0xff]
    %v1129 = vld [vmem:[#allocation2 + $0x2050] sm:$0xff]
    %v1130 = vld [vmem:[#allocation2 + $0x2058] sm:$0xff]
    %v1131 = vld [vmem:[#allocation2 + $0x2060] sm:$0xff]
    %v1132 = vld [vmem:[#allocation2 + $0x2068] sm:$0xff]
    %v1133 = vld [vmem:[#allocation2 + $0x2070] sm:$0xff]
    %v1134 = vld [vmem:[#allocation2 + $0x2078] sm:$0xff]
    %v1135 = vld [vmem:[#allocation2 + $0x2080] sm:$0xff]
    %v1136 = vld [vmem:[#allocation2 + $0x2088] sm:$0xff]
    %v1137 = vld [vmem:[#allocation2 + $0x2090] sm:$0xff]
    %v1138 = vld [vmem:[#allocation2 + $0x2098] sm:$0xff]
    %v1139 = vld [vmem:[#allocation2 + $0x20a0] sm:$0xff]
    %v1140 = vld [vmem:[#allocation2 + $0x20a8] sm:$0xff]
    %v1141 = vld [vmem:[#allocation2 + $0x20b0] sm:$0xff]
    %v1142 = vld [vmem:[#allocation2 + $0x20b8] sm:$0xff]
    %v1143 = vld [vmem:[#allocation2 + $0x20c0] sm:$0xff]
    %v1144 = vld [vmem:[#allocation2 + $0x20c8] sm:$0xff]
    %v1145 = vld [vmem:[#allocation2 + $0x20d0] sm:$0xff]
    %v1146 = vld [vmem:[#allocation2 + $0x20d8] sm:$0xff]
    %v1147 = vld [vmem:[#allocation2 + $0x20e0] sm:$0xff]
    %v1148 = vld [vmem:[#allocation2 + $0x20e8] sm:$0xff]
    %v1149 = vld [vmem:[#allocation2 + $0x20f0] sm:$0xff]
    %v1150 = vld [vmem:[#allocation2 + $0x20f8] sm:$0xff]
    %v1151 = vld [vmem:[#allocation2 + $0x2100] sm:$0xff]
    %v1152 = vld [vmem:[#allocation2 + $0x2108] sm:$0xff]
    %v1153 = vld [vmem:[#allocation2 + $0x2110] sm:$0xff]
    %v1154 = vld [vmem:[#allocation2 + $0x2118] sm:$0xff]
    %v1155 = vld [vmem:[#allocation2 + $0x2120] sm:$0xff]
    %v1156 = vld [vmem:[#allocation2 + $0x2128] sm:$0xff]
    %v1157 = vld [vmem:[#allocation2 + $0x2130] sm:$0xff]
    %v1158 = vld [vmem:[#allocation2 + $0x2138] sm:$0xff]
    %v1159 = vld [vmem:[#allocation2 + $0x2140] sm:$0xff]
    %v1160 = vld [vmem:[#allocation2 + $0x2148] sm:$0xff]
    %v1161 = vld [vmem:[#allocation2 + $0x2150] sm:$0xff]
    %v1162 = vld [vmem:[#allocation2 + $0x2158] sm:$0xff]
    %v1163 = vld [vmem:[#allocation2 + $0x2160] sm:$0xff]
    %v1164 = vld [vmem:[#allocation2 + $0x2168] sm:$0xff]
    %v1165 = vld [vmem:[#allocation2 + $0x2170] sm:$0xff]
    %v1166 = vld [vmem:[#allocation2 + $0x2178] sm:$0xff]
    %v1167 = vld [vmem:[#allocation2 + $0x2180] sm:$0xff]
    %v1168 = vld [vmem:[#allocation2 + $0x2188] sm:$0xff]
    %v1169 = vld [vmem:[#allocation2 + $0x2190] sm:$0xff]
    %v1170 = vld [vmem:[#allocation2 + $0x2198] sm:$0xff]
    %v1171 = vld [vmem:[#allocation2 + $0x21a0] sm:$0xff]
    %v1172 = vld [vmem:[#allocation2 + $0x21a8] sm:$0xff]
    %v1173 = vld [vmem:[#allocation2 + $0x21b0] sm:$0xff]
    %v1174 = vld [vmem:[#allocation2 + $0x21b8] sm:$0xff]
    %v1175 = vld [vmem:[#allocation2 + $0x21c0] sm:$0xff]
    %v1176 = vld [vmem:[#allocation2 + $0x21c8] sm:$0xff]
    %v1177 = vld [vmem:[#allocation2 + $0x21d0] sm:$0xff]
    %v1178 = vld [vmem:[#allocation2 + $0x21d8] sm:$0xff]
    %v1179 = vld [vmem:[#allocation2 + $0x21e0] sm:$0xff]
    %v1180 = vld [vmem:[#allocation2 + $0x21e8] sm:$0xff]
    %v1181 = vld [vmem:[#allocation2 + $0x21f0] sm:$0xff]
    %v1182 = vld [vmem:[#allocation2 + $0x21f8] sm:$0xff]
    %v1183 = vld [vmem:[#allocation2 + $0x2200] sm:$0xff]
    %v1184 = vld [vmem:[#allocation2 + $0x2208] sm:$0xff]
    %v1185 = vld [vmem:[#allocation2 + $0x2210] sm:$0xff]
    %v1186 = vld [vmem:[#allocation2 + $0x2218] sm:$0xff]
    %v1187 = vld [vmem:[#allocation2 + $0x2220] sm:$0xff]
    %v1188 = vld [vmem:[#allocation2 + $0x2228] sm:$0xff]
    %v1189 = vld [vmem:[#allocation2 + $0x2230] sm:$0xff]
    %v1190 = vld [vmem:[#allocation2 + $0x2238] sm:$0xff]
    %v1191 = vld [vmem:[#allocation2 + $0x2240] sm:$0xff]
    %v1192 = vld [vmem:[#allocation2 + $0x2248] sm:$0xff]
    %v1193 = vld [vmem:[#allocation2 + $0x2250] sm:$0xff]
    %v1194 = vld [vmem:[#allocation2 + $0x2258] sm:$0xff]
    %v1195 = vld [vmem:[#allocation2 + $0x2260] sm:$0xff]
    %v1196 = vld [vmem:[#allocation2 + $0x2268] sm:$0xff]
    %v1197 = vld [vmem:[#allocation2 + $0x2270] sm:$0xff]
    %v1198 = vld [vmem:[#allocation2 + $0x2278] sm:$0xff]
    %v1199 = vld [vmem:[#allocation2 + $0x2280] sm:$0xff]
    %v1200 = vld [vmem:[#allocation2 + $0x2288] sm:$0xff]
    %v1201 = vld [vmem:[#allocation2 + $0x2290] sm:$0xff]
    %v1202 = vld [vmem:[#allocation2 + $0x2298] sm:$0xff]
    %v1203 = vld [vmem:[#allocation2 + $0x22a0] sm:$0xff]
    %v1204 = vld [vmem:[#allocation2 + $0x22a8] sm:$0xff]
    %v1205 = vld [vmem:[#allocation2 + $0x22b0] sm:$0xff]
    %v1206 = vld [vmem:[#allocation2 + $0x22b8] sm:$0xff]
    %v1207 = vld [vmem:[#allocation2 + $0x22c0] sm:$0xff]
    %v1208 = vld [vmem:[#allocation2 + $0x22c8] sm:$0xff]
    %v1209 = vld [vmem:[#allocation2 + $0x22d0] sm:$0xff]
    %v1210 = vld [vmem:[#allocation2 + $0x22d8] sm:$0xff]
    %v1211 = vld [vmem:[#allocation2 + $0x22e0] sm:$0xff]
    %v1212 = vld [vmem:[#allocation2 + $0x22e8] sm:$0xff]
    %v1213 = vld [vmem:[#allocation2 + $0x22f0] sm:$0xff]
    %v1214 = vld [vmem:[#allocation2 + $0x22f8] sm:$0xff]
    %v1215 = vld [vmem:[#allocation2 + $0x2300] sm:$0xff]
    %v1216 = vld [vmem:[#allocation2 + $0x2308] sm:$0xff]
    %v1217 = vld [vmem:[#allocation2 + $0x2310] sm:$0xff]
    %v1218 = vld [vmem:[#allocation2 + $0x2318] sm:$0xff]
    %v1219 = vld [vmem:[#allocation2 + $0x2320] sm:$0xff]
    %v1220 = vld [vmem:[#allocation2 + $0x2328] sm:$0xff]
    %v1221 = vld [vmem:[#allocation2 + $0x2330] sm:$0xff]
    %v1222 = vld [vmem:[#allocation2 + $0x2338] sm:$0xff]
    %v1223 = vld [vmem:[#allocation2 + $0x2340] sm:$0xff]
    %v1224 = vld [vmem:[#allocation2 + $0x2348] sm:$0xff]
    %v1225 = vld [vmem:[#allocation2 + $0x2350] sm:$0xff]
    %v1226 = vld [vmem:[#allocation2 + $0x2358] sm:$0xff]
    %v1227 = vld [vmem:[#allocation2 + $0x2360] sm:$0xff]
    %v1228 = vld [vmem:[#allocation2 + $0x2368] sm:$0xff]
    %v1229 = vld [vmem:[#allocation2 + $0x2370] sm:$0xff]
    %v1230 = vld [vmem:[#allocation2 + $0x2378] sm:$0xff]
    %v1231 = vld [vmem:[#allocation2 + $0x2380] sm:$0xff]
    %v1232 = vld [vmem:[#allocation2 + $0x2388] sm:$0xff]
    %v1233 = vld [vmem:[#allocation2 + $0x2390] sm:$0xff]
    %v1234 = vld [vmem:[#allocation2 + $0x2398] sm:$0xff]
    %v1235 = vld [vmem:[#allocation2 + $0x23a0] sm:$0xff]
    %v1236 = vld [vmem:[#allocation2 + $0x23a8] sm:$0xff]
    %v1237 = vld [vmem:[#allocation2 + $0x23b0] sm:$0xff]
    %v1238 = vld [vmem:[#allocation2 + $0x23b8] sm:$0xff]
    %v1239 = vld [vmem:[#allocation2 + $0x23c0] sm:$0xff]
    %v1240 = vld [vmem:[#allocation2 + $0x23c8] sm:$0xff]
    %v1241 = vld [vmem:[#allocation2 + $0x23d0] sm:$0xff]
    %v1242 = vld [vmem:[#allocation2 + $0x23d8] sm:$0xff]
    %v1243 = vld [vmem:[#allocation2 + $0x23e0] sm:$0xff]
    %v1244 = vld [vmem:[#allocation2 + $0x23e8] sm:$0xff]
    %v1245 = vld [vmem:[#allocation2 + $0x23f0] sm:$0xff]
    %v1246 = vld [vmem:[#allocation2 + $0x23f8] sm:$0xff]
    %v1247 = vld [vmem:[#allocation2 + $0x2400] sm:$0xff]
    %v1248 = vld [vmem:[#allocation2 + $0x2408] sm:$0xff]
    %v1249 = vld [vmem:[#allocation2 + $0x2410] sm:$0xff]
    %v1250 = vld [vmem:[#allocation2 + $0x2418] sm:$0xff]
    %v1251 = vld [vmem:[#allocation2 + $0x2420] sm:$0xff]
    %v1252 = vld [vmem:[#allocation2 + $0x2428] sm:$0xff]
    %v1253 = vld [vmem:[#allocation2 + $0x2430] sm:$0xff]
    %v1254 = vld [vmem:[#allocation2 + $0x2438] sm:$0xff]
    %v1255 = vld [vmem:[#allocation2 + $0x2440] sm:$0xff]
    %v1256 = vld [vmem:[#allocation2 + $0x2448] sm:$0xff]
    %v1257 = vld [vmem:[#allocation2 + $0x2450] sm:$0xff]
    %v1258 = vld [vmem:[#allocation2 + $0x2458] sm:$0xff]
    %v1259 = vld [vmem:[#allocation2 + $0x2460] sm:$0xff]
    %v1260 = vld [vmem:[#allocation2 + $0x2468] sm:$0xff]
    %v1261 = vld [vmem:[#allocation2 + $0x2470] sm:$0xff]
    %v1262 = vld [vmem:[#allocation2 + $0x2478] sm:$0xff]
    %v1263 = vld [vmem:[#allocation2 + $0x2480] sm:$0xff]
    %v1264 = vld [vmem:[#allocation2 + $0x2488] sm:$0xff]
    %v1265 = vld [vmem:[#allocation2 + $0x2490] sm:$0xff]
    %v1266 = vld [vmem:[#allocation2 + $0x2498] sm:$0xff]
    %v1267 = vld [vmem:[#allocation2 + $0x24a0] sm:$0xff]
    %v1268 = vld [vmem:[#allocation2 + $0x24a8] sm:$0xff]
    %v1269 = vld [vmem:[#allocation2 + $0x24b0] sm:$0xff]
    %v1270 = vld [vmem:[#allocation2 + $0x24b8] sm:$0xff]
    %v1271 = vld [vmem:[#allocation2 + $0x24c0] sm:$0xff]
    %v1272 = vld [vmem:[#allocation2 + $0x24c8] sm:$0xff]
    %v1273 = vld [vmem:[#allocation2 + $0x24d0] sm:$0xff]
    %v1274 = vld [vmem:[#allocation2 + $0x24d8] sm:$0xff]
    %v1275 = vld [vmem:[#allocation2 + $0x24e0] sm:$0xff]
    %v1276 = vld [vmem:[#allocation2 + $0x24e8] sm:$0xff]
    %v1277 = vld [vmem:[#allocation2 + $0x24f0] sm:$0xff]
    %v1278 = vld [vmem:[#allocation2 + $0x24f8] sm:$0xff]
    %v1279 = vld [vmem:[#allocation2 + $0x2500] sm:$0xff]
    %v1280 = vld [vmem:[#allocation2 + $0x2508] sm:$0xff]
    %v1281 = vld [vmem:[#allocation2 + $0x2510] sm:$0xff]
    %v1282 = vld [vmem:[#allocation2 + $0x2518] sm:$0xff]
    %v1283 = vld [vmem:[#allocation2 + $0x2520] sm:$0xff]
    %v1284 = vld [vmem:[#allocation2 + $0x2528] sm:$0xff]
    %v1285 = vld [vmem:[#allocation2 + $0x2530] sm:$0xff]
    %v1286 = vld [vmem:[#allocation2 + $0x2538] sm:$0xff]
    %v1287 = vld [vmem:[#allocation2 + $0x2540] sm:$0xff]
    %v1288 = vld [vmem:[#allocation2 + $0x2548] sm:$0xff]
    %v1289 = vld [vmem:[#allocation2 + $0x2550] sm:$0xff]
    %v1290 = vld [vmem:[#allocation2 + $0x2558] sm:$0xff]
    %v1291 = vld [vmem:[#allocation2 + $0x2560] sm:$0xff]
    %v1292 = vld [vmem:[#allocation2 + $0x2568] sm:$0xff]
    %v1293 = vld [vmem:[#allocation2 + $0x2570] sm:$0xff]
    %v1294 = vld [vmem:[#allocation2 + $0x2578] sm:$0xff]
    %v1295 = vld [vmem:[#allocation2 + $0x2580] sm:$0xff]
    %v1296 = vld [vmem:[#allocation2 + $0x2588] sm:$0xff]
    %v1297 = vld [vmem:[#allocation2 + $0x2590] sm:$0xff]
    %v1298 = vld [vmem:[#allocation2 + $0x2598] sm:$0xff]
    %v1299 = vld [vmem:[#allocation2 + $0x25a0] sm:$0xff]
    %v1300 = vld [vmem:[#allocation2 + $0x25a8] sm:$0xff]
    %v1301 = vld [vmem:[#allocation2 + $0x25b0] sm:$0xff]
    %v1302 = vld [vmem:[#allocation2 + $0x25b8] sm:$0xff]
    %v1303 = vld [vmem:[#allocation2 + $0x25c0] sm:$0xff]
    %v1304 = vld [vmem:[#allocation2 + $0x25c8] sm:$0xff]
    %v1305 = vld [vmem:[#allocation2 + $0x25d0] sm:$0xff]
    %v1306 = vld [vmem:[#allocation2 + $0x25d8] sm:$0xff]
    %v1307 = vld [vmem:[#allocation2 + $0x25e0] sm:$0xff]
    %v1308 = vld [vmem:[#allocation2 + $0x25e8] sm:$0xff]
    %v1309 = vld [vmem:[#allocation2 + $0x25f0] sm:$0xff]
    %v1310 = vld [vmem:[#allocation2 + $0x25f8] sm:$0xff]
    %v1311 = vld [vmem:[#allocation2 + $0x2600] sm:$0xff]
    %v1312 = vld [vmem:[#allocation2 + $0x2608] sm:$0xff]
    %v1313 = vld [vmem:[#allocation2 + $0x2610] sm:$0xff]
    %v1314 = vld [vmem:[#allocation2 + $0x2618] sm:$0xff]
    %v1315 = vld [vmem:[#allocation2 + $0x2620] sm:$0xff]
    %v1316 = vld [vmem:[#allocation2 + $0x2628] sm:$0xff]
    %v1317 = vld [vmem:[#allocation2 + $0x2630] sm:$0xff]
    %v1318 = vld [vmem:[#allocation2 + $0x2638] sm:$0xff]
    %v1319 = vld [vmem:[#allocation2 + $0x2640] sm:$0xff]
    %v1320 = vld [vmem:[#allocation2 + $0x2648] sm:$0xff]
    %v1321 = vld [vmem:[#allocation2 + $0x2650] sm:$0xff]
    %v1322 = vld [vmem:[#allocation2 + $0x2658] sm:$0xff]
    %v1323 = vld [vmem:[#allocation2 + $0x2660] sm:$0xff]
    %v1324 = vld [vmem:[#allocation2 + $0x2668] sm:$0xff]
    %v1325 = vld [vmem:[#allocation2 + $0x2670] sm:$0xff]
    %v1326 = vld [vmem:[#allocation2 + $0x2678] sm:$0xff]
    %v1327 = vld [vmem:[#allocation2 + $0x2680] sm:$0xff]
    %v1328 = vld [vmem:[#allocation2 + $0x2688] sm:$0xff]
    %v1329 = vld [vmem:[#allocation2 + $0x2690] sm:$0xff]
    %v1330 = vld [vmem:[#allocation2 + $0x2698] sm:$0xff]
    %v1331 = vld [vmem:[#allocation2 + $0x26a0] sm:$0xff]
    %v1332 = vld [vmem:[#allocation2 + $0x26a8] sm:$0xff]
    %v1333 = vld [vmem:[#allocation2 + $0x26b0] sm:$0xff]
    %v1334 = vld [vmem:[#allocation2 + $0x26b8] sm:$0xff]
    %v1335 = vld [vmem:[#allocation2 + $0x26c0] sm:$0xff]
    %v1336 = vld [vmem:[#allocation2 + $0x26c8] sm:$0xff]
    %v1337 = vld [vmem:[#allocation2 + $0x26d0] sm:$0xff]
    %v1338 = vld [vmem:[#allocation2 + $0x26d8] sm:$0xff]
    %v1339 = vld [vmem:[#allocation2 + $0x26e0] sm:$0xff]
    %v1340 = vld [vmem:[#allocation2 + $0x26e8] sm:$0xff]
    %v1341 = vld [vmem:[#allocation2 + $0x26f0] sm:$0xff]
    %v1342 = vld [vmem:[#allocation2 + $0x26f8] sm:$0xff]
    %v1343 = vld [vmem:[#allocation2 + $0x2700] sm:$0xff]
    %v1344 = vld [vmem:[#allocation2 + $0x2708] sm:$0xff]
    %v1345 = vld [vmem:[#allocation2 + $0x2710] sm:$0xff]
    %v1346 = vld [vmem:[#allocation2 + $0x2718] sm:$0xff]
    %v1347 = vld [vmem:[#allocation2 + $0x2720] sm:$0xff]
    %v1348 = vld [vmem:[#allocation2 + $0x2728] sm:$0xff]
    %v1349 = vld [vmem:[#allocation2 + $0x2730] sm:$0xff]
    %v1350 = vld [vmem:[#allocation2 + $0x2738] sm:$0xff]
    %v1351 = vld [vmem:[#allocation2 + $0x2740] sm:$0xff]
    %v1352 = vld [vmem:[#allocation2 + $0x2748] sm:$0xff]
    %v1353 = vld [vmem:[#allocation2 + $0x2750] sm:$0xff]
    %v1354 = vld [vmem:[#allocation2 + $0x2758] sm:$0xff]
    %v1355 = vld [vmem:[#allocation2 + $0x2760] sm:$0xff]
    %v1356 = vld [vmem:[#allocation2 + $0x2768] sm:$0xff]
    %v1357 = vld [vmem:[#allocation2 + $0x2770] sm:$0xff]
    %v1358 = vld [vmem:[#allocation2 + $0x2778] sm:$0xff]
    %v1359 = vld [vmem:[#allocation2 + $0x2780] sm:$0xff]
    %v1360 = vld [vmem:[#allocation2 + $0x2788] sm:$0xff]
    %v1361 = vld [vmem:[#allocation2 + $0x2790] sm:$0xff]
    %v1362 = vld [vmem:[#allocation2 + $0x2798] sm:$0xff]
    %v1363 = vld [vmem:[#allocation2 + $0x27a0] sm:$0xff]
    %v1364 = vld [vmem:[#allocation2 + $0x27a8] sm:$0xff]
    %v1365 = vld [vmem:[#allocation2 + $0x27b0] sm:$0xff]
    %v1366 = vld [vmem:[#allocation2 + $0x27b8] sm:$0xff]
    %v1367 = vld [vmem:[#allocation2 + $0x27c0] sm:$0xff]
    %v1368 = vld [vmem:[#allocation2 + $0x27c8] sm:$0xff]
    %v1369 = vld [vmem:[#allocation2 + $0x27d0] sm:$0xff]
    %v1370 = vld [vmem:[#allocation2 + $0x27d8] sm:$0xff]
    %v1371 = vld [vmem:[#allocation2 + $0x27e0] sm:$0xff]
    %v1372 = vld [vmem:[#allocation2 + $0x27e8] sm:$0xff]
    %v1373 = vld [vmem:[#allocation2 + $0x27f0] sm:$0xff]
    %v1374 = vld [vmem:[#allocation2 + $0x27f8] sm:$0xff]
    %v1375 = vld [vmem:[#allocation2 + $0x2800] sm:$0xff]
    %v1376 = vld [vmem:[#allocation2 + $0x2808] sm:$0xff]
    %v1377 = vld [vmem:[#allocation2 + $0x2810] sm:$0xff]
    %v1378 = vld [vmem:[#allocation2 + $0x2818] sm:$0xff]
    %v1379 = vld [vmem:[#allocation2 + $0x2820] sm:$0xff]
    %v1380 = vld [vmem:[#allocation2 + $0x2828] sm:$0xff]
    %v1381 = vld [vmem:[#allocation2 + $0x2830] sm:$0xff]
    %v1382 = vld [vmem:[#allocation2 + $0x2838] sm:$0xff]
    %v1383 = vld [vmem:[#allocation2 + $0x2840] sm:$0xff]
    %v1384 = vld [vmem:[#allocation2 + $0x2848] sm:$0xff]
    %v1385 = vld [vmem:[#allocation2 + $0x2850] sm:$0xff]
    %v1386 = vld [vmem:[#allocation2 + $0x2858] sm:$0xff]
    %v1387 = vld [vmem:[#allocation2 + $0x2860] sm:$0xff]
    %v1388 = vld [vmem:[#allocation2 + $0x2868] sm:$0xff]
    %v1389 = vld [vmem:[#allocation2 + $0x2870] sm:$0xff]
    %v1390 = vld [vmem:[#allocation2 + $0x2878] sm:$0xff]
    %v1391 = vld [vmem:[#allocation2 + $0x2880] sm:$0xff]
    %v1392 = vld [vmem:[#allocation2 + $0x2888] sm:$0xff]
    %v1393 = vld [vmem:[#allocation2 + $0x2890] sm:$0xff]
    %v1394 = vld [vmem:[#allocation2 + $0x2898] sm:$0xff]
    %v1395 = vld [vmem:[#allocation2 + $0x28a0] sm:$0xff]
    %v1396 = vld [vmem:[#allocation2 + $0x28a8] sm:$0xff]
    %v1397 = vld [vmem:[#allocation2 + $0x28b0] sm:$0xff]
    %v1398 = vld [vmem:[#allocation2 + $0x28b8] sm:$0xff]
    %v1399 = vld [vmem:[#allocation2 + $0x28c0] sm:$0xff]
    %v1400 = vld [vmem:[#allocation2 + $0x28c8] sm:$0xff]
    %v1401 = vld [vmem:[#allocation2 + $0x28d0] sm:$0xff]
    %v1402 = vld [vmem:[#allocation2 + $0x28d8] sm:$0xff]
    %v1403 = vld [vmem:[#allocation2 + $0x28e0] sm:$0xff]
    %v1404 = vld [vmem:[#allocation2 + $0x28e8] sm:$0xff]
    %v1405 = vld [vmem:[#allocation2 + $0x28f0] sm:$0xff]
    %v1406 = vld [vmem:[#allocation2 + $0x28f8] sm:$0xff]
    %v1407 = vld [vmem:[#allocation2 + $0x2900] sm:$0xff]
    %v1408 = vld [vmem:[#allocation2 + $0x2908] sm:$0xff]
    %v1409 = vld [vmem:[#allocation2 + $0x2910] sm:$0xff]
    %v1410 = vld [vmem:[#allocation2 + $0x2918] sm:$0xff]
    %v1411 = vld [vmem:[#allocation2 + $0x2920] sm:$0xff]
    %v1412 = vld [vmem:[#allocation2 + $0x2928] sm:$0xff]
    %v1413 = vld [vmem:[#allocation2 + $0x2930] sm:$0xff]
    %v1414 = vld [vmem:[#allocation2 + $0x2938] sm:$0xff]
    %v1415 = vld [vmem:[#allocation2 + $0x2940] sm:$0xff]
    %v1416 = vld [vmem:[#allocation2 + $0x2948] sm:$0xff]
    %v1417 = vld [vmem:[#allocation2 + $0x2950] sm:$0xff]
    %v1418 = vld [vmem:[#allocation2 + $0x2958] sm:$0xff]
    %v1419 = vld [vmem:[#allocation2 + $0x2960] sm:$0xff]
    %v1420 = vld [vmem:[#allocation2 + $0x2968] sm:$0xff]
    %v1421 = vld [vmem:[#allocation2 + $0x2970] sm:$0xff]
    %v1422 = vld [vmem:[#allocation2 + $0x2978] sm:$0xff]
    %v1423 = vld [vmem:[#allocation2 + $0x2980] sm:$0xff]
    %v1424 = vld [vmem:[#allocation2 + $0x2988] sm:$0xff]
    %v1425 = vld [vmem:[#allocation2 + $0x2990] sm:$0xff]
    %v1426 = vld [vmem:[#allocation2 + $0x2998] sm:$0xff]
    %v1427 = vld [vmem:[#allocation2 + $0x29a0] sm:$0xff]
    %v1428 = vld [vmem:[#allocation2 + $0x29a8] sm:$0xff]
    %v1429 = vld [vmem:[#allocation2 + $0x29b0] sm:$0xff]
    %v1430 = vld [vmem:[#allocation2 + $0x29b8] sm:$0xff]
    %v1431 = vld [vmem:[#allocation2 + $0x29c0] sm:$0xff]
    %v1432 = vld [vmem:[#allocation2 + $0x29c8] sm:$0xff]
    %v1433 = vld [vmem:[#allocation2 + $0x29d0] sm:$0xff]
    %v1434 = vld [vmem:[#allocation2 + $0x29d8] sm:$0xff]
    %v1435 = vld [vmem:[#allocation2 + $0x29e0] sm:$0xff]
    %v1436 = vld [vmem:[#allocation2 + $0x29e8] sm:$0xff]
    %v1437 = vld [vmem:[#allocation2 + $0x29f0] sm:$0xff]
    %v1438 = vld [vmem:[#allocation2 + $0x29f8] sm:$0xff]
    %v1439 = vld [vmem:[#allocation2 + $0x2a00] sm:$0xff]
    %v1440 = vld [vmem:[#allocation2 + $0x2a08] sm:$0xff]
    %v1441 = vld [vmem:[#allocation2 + $0x2a10] sm:$0xff]
    %v1442 = vld [vmem:[#allocation2 + $0x2a18] sm:$0xff]
    %v1443 = vld [vmem:[#allocation2 + $0x2a20] sm:$0xff]
    %v1444 = vld [vmem:[#allocation2 + $0x2a28] sm:$0xff]
    %v1445 = vld [vmem:[#allocation2 + $0x2a30] sm:$0xff]
    %v1446 = vld [vmem:[#allocation2 + $0x2a38] sm:$0xff]
    %v1447 = vld [vmem:[#allocation2 + $0x2a40] sm:$0xff]
    %v1448 = vld [vmem:[#allocation2 + $0x2a48] sm:$0xff]
    %v1449 = vld [vmem:[#allocation2 + $0x2a50] sm:$0xff]
    %v1450 = vld [vmem:[#allocation2 + $0x2a58] sm:$0xff]
    %v1451 = vld [vmem:[#allocation2 + $0x2a60] sm:$0xff]
    %v1452 = vld [vmem:[#allocation2 + $0x2a68] sm:$0xff]
    %v1453 = vld [vmem:[#allocation2 + $0x2a70] sm:$0xff]
    %v1454 = vld [vmem:[#allocation2 + $0x2a78] sm:$0xff]
    %v1455 = vld [vmem:[#allocation2 + $0x2a80] sm:$0xff]
    %v1456 = vld [vmem:[#allocation2 + $0x2a88] sm:$0xff]
    %v1457 = vld [vmem:[#allocation2 + $0x2a90] sm:$0xff]
    %v1458 = vld [vmem:[#allocation2 + $0x2a98] sm:$0xff]
    %v1459 = vld [vmem:[#allocation2 + $0x2aa0] sm:$0xff]
    %v1460 = vld [vmem:[#allocation2 + $0x2aa8] sm:$0xff]
    %v1461 = vld [vmem:[#allocation2 + $0x2ab0] sm:$0xff]
    %v1462 = vld [vmem:[#allocation2 + $0x2ab8] sm:$0xff]
    %v1463 = vld [vmem:[#allocation2 + $0x2ac0] sm:$0xff]
    %v1464 = vld [vmem:[#allocation2 + $0x2ac8] sm:$0xff]
    %v1465 = vld [vmem:[#allocation2 + $0x2ad0] sm:$0xff]
    %v1466 = vld [vmem:[#allocation2 + $0x2ad8] sm:$0xff]
    %v1467 = vld [vmem:[#allocation2 + $0x2ae0] sm:$0xff]
    %v1468 = vld [vmem:[#allocation2 + $0x2ae8] sm:$0xff]
    %v1469 = vld [vmem:[#allocation2 + $0x2af0] sm:$0xff]
    %v1470 = vld [vmem:[#allocation2 + $0x2af8] sm:$0xff]
    %v1471 = vld [vmem:[#allocation2 + $0x2b00] sm:$0xff]
    %v1472 = vld [vmem:[#allocation2 + $0x2b08] sm:$0xff]
    %v1473 = vld [vmem:[#allocation2 + $0x2b10] sm:$0xff]
    %v1474 = vld [vmem:[#allocation2 + $0x2b18] sm:$0xff]
    %v1475 = vld [vmem:[#allocation2 + $0x2b20] sm:$0xff]
    %v1476 = vld [vmem:[#allocation2 + $0x2b28] sm:$0xff]
    %v1477 = vld [vmem:[#allocation2 + $0x2b30] sm:$0xff]
    %v1478 = vld [vmem:[#allocation2 + $0x2b38] sm:$0xff]
    %v1479 = vld [vmem:[#allocation2 + $0x2b40] sm:$0xff]
    %v1480 = vld [vmem:[#allocation2 + $0x2b48] sm:$0xff]
    %v1481 = vld [vmem:[#allocation2 + $0x2b50] sm:$0xff]
    %v1482 = vld [vmem:[#allocation2 + $0x2b58] sm:$0xff]
    %v1483 = vld [vmem:[#allocation2 + $0x2b60] sm:$0xff]
    %v1484 = vld [vmem:[#allocation2 + $0x2b68] sm:$0xff]
    %v1485 = vld [vmem:[#allocation2 + $0x2b70] sm:$0xff]
    %v1486 = vld [vmem:[#allocation2 + $0x2b78] sm:$0xff]
    %v1487 = vld [vmem:[#allocation2 + $0x2b80] sm:$0xff]
    %v1488 = vld [vmem:[#allocation2 + $0x2b88] sm:$0xff]
    %v1489 = vld [vmem:[#allocation2 + $0x2b90] sm:$0xff]
    %v1490 = vld [vmem:[#allocation2 + $0x2b98] sm:$0xff]
    %v1491 = vld [vmem:[#allocation2 + $0x2ba0] sm:$0xff]
    %v1492 = vld [vmem:[#allocation2 + $0x2ba8] sm:$0xff]
    %v1493 = vld [vmem:[#allocation2 + $0x2bb0] sm:$0xff]
    %v1494 = vld [vmem:[#allocation2 + $0x2bb8] sm:$0xff]
    %v1495 = vld [vmem:[#allocation2 + $0x2bc0] sm:$0xff]
    %v1496 = vld [vmem:[#allocation2 + $0x2bc8] sm:$0xff]
    %v1497 = vld [vmem:[#allocation2 + $0x2bd0] sm:$0xff]
    %v1498 = vld [vmem:[#allocation2 + $0x2bd8] sm:$0xff]
    %v1499 = vld [vmem:[#allocation2 + $0x2be0] sm:$0xff]
    %v1500 = vld [vmem:[#allocation2 + $0x2be8] sm:$0xff]
    %v1501 = vld [vmem:[#allocation2 + $0x2bf0] sm:$0xff]
    %v1502 = vld [vmem:[#allocation2 + $0x2bf8] sm:$0xff]
    %v1503 = vld [vmem:[#allocation2 + $0x2c00] sm:$0xff]
    %v1504 = vld [vmem:[#allocation2 + $0x2c08] sm:$0xff]
    %v1505 = vld [vmem:[#allocation2 + $0x2c10] sm:$0xff]
    %v1506 = vld [vmem:[#allocation2 + $0x2c18] sm:$0xff]
    %v1507 = vld [vmem:[#allocation2 + $0x2c20] sm:$0xff]
    %v1508 = vld [vmem:[#allocation2 + $0x2c28] sm:$0xff]
    %v1509 = vld [vmem:[#allocation2 + $0x2c30] sm:$0xff]
    %v1510 = vld [vmem:[#allocation2 + $0x2c38] sm:$0xff]
    %v1511 = vld [vmem:[#allocation2 + $0x2c40] sm:$0xff]
    %v1512 = vld [vmem:[#allocation2 + $0x2c48] sm:$0xff]
    %v1513 = vld [vmem:[#allocation2 + $0x2c50] sm:$0xff]
    %v1514 = vld [vmem:[#allocation2 + $0x2c58] sm:$0xff]
    %v1515 = vld [vmem:[#allocation2 + $0x2c60] sm:$0xff]
    %v1516 = vld [vmem:[#allocation2 + $0x2c68] sm:$0xff]
    %v1517 = vld [vmem:[#allocation2 + $0x2c70] sm:$0xff]
    %v1518 = vld [vmem:[#allocation2 + $0x2c78] sm:$0xff]
    %v1519 = vld [vmem:[#allocation2 + $0x2c80] sm:$0xff]
    %v1520 = vld [vmem:[#allocation2 + $0x2c88] sm:$0xff]
    %v1521 = vld [vmem:[#allocation2 + $0x2c90] sm:$0xff]
    %v1522 = vld [vmem:[#allocation2 + $0x2c98] sm:$0xff]
    %v1523 = vld [vmem:[#allocation2 + $0x2ca0] sm:$0xff]
    %v1524 = vld [vmem:[#allocation2 + $0x2ca8] sm:$0xff]
    %v1525 = vld [vmem:[#allocation2 + $0x2cb0] sm:$0xff]
    %v1526 = vld [vmem:[#allocation2 + $0x2cb8] sm:$0xff]
    %v1527 = vld [vmem:[#allocation2 + $0x2cc0] sm:$0xff]
    %v1528 = vld [vmem:[#allocation2 + $0x2cc8] sm:$0xff]
    %v1529 = vld [vmem:[#allocation2 + $0x2cd0] sm:$0xff]
    %v1530 = vld [vmem:[#allocation2 + $0x2cd8] sm:$0xff]
    %v1531 = vld [vmem:[#allocation2 + $0x2ce0] sm:$0xff]
    %v1532 = vld [vmem:[#allocation2 + $0x2ce8] sm:$0xff]
    %v1533 = vld [vmem:[#allocation2 + $0x2cf0] sm:$0xff]
    %v1534 = vld [vmem:[#allocation2 + $0x2cf8] sm:$0xff]
    %v1535 = vld [vmem:[#allocation2 + $0x2d00] sm:$0xff]
    %v1536 = vld [vmem:[#allocation2 + $0x2d08] sm:$0xff]
    %v1537 = vld [vmem:[#allocation2 + $0x2d10] sm:$0xff]
    %v1538 = vld [vmem:[#allocation2 + $0x2d18] sm:$0xff]
    %v1539 = vld [vmem:[#allocation2 + $0x2d20] sm:$0xff]
    %v1540 = vld [vmem:[#allocation2 + $0x2d28] sm:$0xff]
    %v1541 = vld [vmem:[#allocation2 + $0x2d30] sm:$0xff]
    %v1542 = vld [vmem:[#allocation2 + $0x2d38] sm:$0xff]
    %v1543 = vld [vmem:[#allocation2 + $0x2d40] sm:$0xff]
    %v1544 = vld [vmem:[#allocation2 + $0x2d48] sm:$0xff]
    %v1545 = vld [vmem:[#allocation2 + $0x2d50] sm:$0xff]
    %v1546 = vld [vmem:[#allocation2 + $0x2d58] sm:$0xff]
    %v1547 = vld [vmem:[#allocation2 + $0x2d60] sm:$0xff]
    %v1548 = vld [vmem:[#allocation2 + $0x2d68] sm:$0xff]
    %v1549 = vld [vmem:[#allocation2 + $0x2d70] sm:$0xff]
    %v1550 = vld [vmem:[#allocation2 + $0x2d78] sm:$0xff]
    %v1551 = vld [vmem:[#allocation2 + $0x2d80] sm:$0xff]
    %v1552 = vld [vmem:[#allocation2 + $0x2d88] sm:$0xff]
    %v1553 = vld [vmem:[#allocation2 + $0x2d90] sm:$0xff]
    %v1554 = vld [vmem:[#allocation2 + $0x2d98] sm:$0xff]
    %v1555 = vld [vmem:[#allocation2 + $0x2da0] sm:$0xff]
    %v1556 = vld [vmem:[#allocation2 + $0x2da8] sm:$0xff]
    %v1557 = vld [vmem:[#allocation2 + $0x2db0] sm:$0xff]
    %v1558 = vld [vmem:[#allocation2 + $0x2db8] sm:$0xff]
    %v1559 = vld [vmem:[#allocation2 + $0x2dc0] sm:$0xff]
    %v1560 = vld [vmem:[#allocation2 + $0x2dc8] sm:$0xff]
    %v1561 = vld [vmem:[#allocation2 + $0x2dd0] sm:$0xff]
    %v1562 = vld [vmem:[#allocation2 + $0x2dd8] sm:$0xff]
    %v1563 = vld [vmem:[#allocation2 + $0x2de0] sm:$0xff]
    %v1564 = vld [vmem:[#allocation2 + $0x2de8] sm:$0xff]
    %v1565 = vld [vmem:[#allocation2 + $0x2df0] sm:$0xff]
    %v1566 = vld [vmem:[#allocation2 + $0x2df8] sm:$0xff]
    %v1567 = vld [vmem:[#allocation2 + $0x2e00] sm:$0xff]
    %v1568 = vld [vmem:[#allocation2 + $0x2e08] sm:$0xff]
    %v1569 = vld [vmem:[#allocation2 + $0x2e10] sm:$0xff]
    %v1570 = vld [vmem:[#allocation2 + $0x2e18] sm:$0xff]
    %v1571 = vld [vmem:[#allocation2 + $0x2e20] sm:$0xff]
    %v1572 = vld [vmem:[#allocation2 + $0x2e28] sm:$0xff]
    %v1573 = vld [vmem:[#allocation2 + $0x2e30] sm:$0xff]
    %v1574 = vld [vmem:[#allocation2 + $0x2e38] sm:$0xff]
    %v1575 = vld [vmem:[#allocation2 + $0x2e40] sm:$0xff]
    %v1576 = vld [vmem:[#allocation2 + $0x2e48] sm:$0xff]
    %v1577 = vld [vmem:[#allocation2 + $0x2e50] sm:$0xff]
    %v1578 = vld [vmem:[#allocation2 + $0x2e58] sm:$0xff]
    %v1579 = vld [vmem:[#allocation2 + $0x2e60] sm:$0xff]
    %v1580 = vld [vmem:[#allocation2 + $0x2e68] sm:$0xff]
    %v1581 = vld [vmem:[#allocation2 + $0x2e70] sm:$0xff]
    %v1582 = vld [vmem:[#allocation2 + $0x2e78] sm:$0xff]
    %v1583 = vld [vmem:[#allocation2 + $0x2e80] sm:$0xff]
    %v1584 = vld [vmem:[#allocation2 + $0x2e88] sm:$0xff]
    %v1585 = vld [vmem:[#allocation2 + $0x2e90] sm:$0xff]
    %v1586 = vld [vmem:[#allocation2 + $0x2e98] sm:$0xff]
    %v1587 = vld [vmem:[#allocation2 + $0x2ea0] sm:$0xff]
    %v1588 = vld [vmem:[#allocation2 + $0x2ea8] sm:$0xff]
    %v1589 = vld [vmem:[#allocation2 + $0x2eb0] sm:$0xff]
    %v1590 = vld [vmem:[#allocation2 + $0x2eb8] sm:$0xff]
    %v1591 = vld [vmem:[#allocation2 + $0x2ec0] sm:$0xff]
    %v1592 = vld [vmem:[#allocation2 + $0x2ec8] sm:$0xff]
    %v1593 = vld [vmem:[#allocation2 + $0x2ed0] sm:$0xff]
    %v1594 = vld [vmem:[#allocation2 + $0x2ed8] sm:$0xff]
    %v1595 = vld [vmem:[#allocation2 + $0x2ee0] sm:$0xff]
    %v1596 = vld [vmem:[#allocation2 + $0x2ee8] sm:$0xff]
    %v1597 = vld [vmem:[#allocation2 + $0x2ef0] sm:$0xff]
    %v1598 = vld [vmem:[#allocation2 + $0x2ef8] sm:$0xff]
    %v1599 = vld [vmem:[#allocation2 + $0x2f00] sm:$0xff]
    %v1600 = vld [vmem:[#allocation2 + $0x2f08] sm:$0xff]
    %v1601 = vld [vmem:[#allocation2 + $0x2f10] sm:$0xff]
    %v1602 = vld [vmem:[#allocation2 + $0x2f18] sm:$0xff]
    %v1603 = vld [vmem:[#allocation2 + $0x2f20] sm:$0xff]
    %v1604 = vld [vmem:[#allocation2 + $0x2f28] sm:$0xff]
    %v1605 = vld [vmem:[#allocation2 + $0x2f30] sm:$0xff]
    %v1606 = vld [vmem:[#allocation2 + $0x2f38] sm:$0xff]
    %v1607 = vld [vmem:[#allocation2 + $0x2f40] sm:$0xff]
    %v1608 = vld [vmem:[#allocation2 + $0x2f48] sm:$0xff]
    %v1609 = vld [vmem:[#allocation2 + $0x2f50] sm:$0xff]
    %v1610 = vld [vmem:[#allocation2 + $0x2f58] sm:$0xff]
    %v1611 = vld [vmem:[#allocation2 + $0x2f60] sm:$0xff]
    %v1612 = vld [vmem:[#allocation2 + $0x2f68] sm:$0xff]
    %v1613 = vld [vmem:[#allocation2 + $0x2f70] sm:$0xff]
    %v1614 = vld [vmem:[#allocation2 + $0x2f78] sm:$0xff]
    %v1615 = vld [vmem:[#allocation2 + $0x2f80] sm:$0xff]
    %v1616 = vld [vmem:[#allocation2 + $0x2f88] sm:$0xff]
    %v1617 = vld [vmem:[#allocation2 + $0x2f90] sm:$0xff]
    %v1618 = vld [vmem:[#allocation2 + $0x2f98] sm:$0xff]
    %v1619 = vld [vmem:[#allocation2 + $0x2fa0] sm:$0xff]
    %v1620 = vld [vmem:[#allocation2 + $0x2fa8] sm:$0xff]
    %v1621 = vld [vmem:[#allocation2 + $0x2fb0] sm:$0xff]
    %v1622 = vld [vmem:[#allocation2 + $0x2fb8] sm:$0xff]
    %v1623 = vld [vmem:[#allocation2 + $0x2fc0] sm:$0xff]
    %v1624 = vld [vmem:[#allocation2 + $0x2fc8] sm:$0xff]
    %v1625 = vld [vmem:[#allocation2 + $0x2fd0] sm:$0xff]
    %v1626 = vld [vmem:[#allocation2 + $0x2fd8] sm:$0xff]
    %v1627 = vld [vmem:[#allocation2 + $0x2fe0] sm:$0xff]
    %v1628 = vld [vmem:[#allocation2 + $0x2fe8] sm:$0xff]
    %v1629 = vld [vmem:[#allocation2 + $0x2ff0] sm:$0xff]
    %v1630 = vld [vmem:[#allocation2 + $0x2ff8] sm:$0xff]
    %v1631 = vld [vmem:[#allocation4] sm:$0xff]
    %v1633 = vlaneseq
    %v1634 = vshrl.u32 %v1633, 7
    %v1635 = vsub.s32 0, %v1634
    %v1636 = vrot.slane %v1631, %v1635
    %v1637 = vlaneseq
    %v1638 = vshrl.u32 %v1637, 7
    %v1639 = vsub.s32 1, %v1638
    %v1640 = vrot.slane %v1631, %v1639
    %v1641 = vlaneseq
    %v1642 = vshrl.u32 %v1641, 7
    %v1643 = vsub.s32 2, %v1642
    %v1644 = vrot.slane %v1631, %v1643
    %v1645 = vlaneseq
    %v1646 = vshrl.u32 %v1645, 7
    %v1647 = vsub.s32 3, %v1646
    %v1648 = vrot.slane %v1631, %v1647
    %v1649 = vlaneseq
    %v1650 = vshrl.u32 %v1649, 7
    %v1651 = vsub.s32 4, %v1650
    %v1652 = vrot.slane %v1631, %v1651
    %v1653 = vlaneseq
    %v1654 = vshrl.u32 %v1653, 7
    %v1655 = vsub.s32 5, %v1654
    %v1656 = vrot.slane %v1631, %v1655
    %v1657 = vlaneseq
    %v1658 = vshrl.u32 %v1657, 7
    %v1659 = vsub.s32 6, %v1658
    %v1660 = vrot.slane %v1631, %v1659
    %v1661 = vlaneseq
    %v1662 = vshrl.u32 %v1661, 7
    %v1663 = vsub.s32 7, %v1662
    %v1664 = vrot.slane %v1631, %v1663
    %v1697 = vunpack.c.l.b16 %v71
    %v1698 = vunpack.c.h.b16 %v71
    %v1699 = vunpack.c.l.b16 %v72
    %v1700 = vunpack.c.h.b16 %v72
    %v1701 = vunpack.c.l.b16 %v73
    %v1702 = vunpack.c.h.b16 %v73
    %v1703 = vunpack.c.l.b16 %v74
    %v1704 = vunpack.c.h.b16 %v74
    %v1705 = vunpack.c.l.b16 %v75
    %v1706 = vunpack.c.h.b16 %v75
    %v1707 = vunpack.c.l.b16 %v76
    %v1708 = vunpack.c.h.b16 %v76
    %v1709 = vunpack.c.l.b16 %v77
    %v1710 = vunpack.c.h.b16 %v77
    %v1711 = vunpack.c.l.b16 %v78
    %v1712 = vunpack.c.h.b16 %v78
    %v1713 = vunpack.c.l.b16 %v79
    %v1714 = vunpack.c.h.b16 %v79
    %v1715 = vunpack.c.l.b16 %v80
    %v1716 = vunpack.c.h.b16 %v80
    %v1717 = vunpack.c.l.b16 %v81
    %v1718 = vunpack.c.h.b16 %v81
    %v1719 = vunpack.c.l.b16 %v82
    %v1720 = vunpack.c.h.b16 %v82
    %v1721 = vunpack.c.l.b16 %v83
    %v1722 = vunpack.c.h.b16 %v83
    %v1723 = vunpack.c.l.b16 %v84
    %v1724 = vunpack.c.h.b16 %v84
    %v1725 = vunpack.c.l.b16 %v85
    %v1726 = vunpack.c.h.b16 %v85
    %v1727 = vunpack.c.l.b16 %v86
    %v1728 = vunpack.c.h.b16 %v86
    %v1729 = vunpack.c.l.b16 %v87
    %v1730 = vunpack.c.h.b16 %v87
    %v1731 = vunpack.c.l.b16 %v88
    %v1732 = vunpack.c.h.b16 %v88
    %v1733 = vunpack.c.l.b16 %v89
    %v1734 = vunpack.c.h.b16 %v89
    %v1735 = vunpack.c.l.b16 %v90
    %v1736 = vunpack.c.h.b16 %v90
    %v1737 = vunpack.c.l.b16 %v91
    %v1738 = vunpack.c.h.b16 %v91
    %v1739 = vunpack.c.l.b16 %v92
    %v1740 = vunpack.c.h.b16 %v92
    %v1741 = vunpack.c.l.b16 %v93
    %v1742 = vunpack.c.h.b16 %v93
    %v1743 = vunpack.c.l.b16 %v94
    %v1744 = vunpack.c.h.b16 %v94
    %v1745 = vpack.c.b16 %v1721, %v1697
    %v1746 = vpack.c.b16 %v1722, %v1698
    %v1747 = vpack.c.b16 %v1723, %v1699
    %v1748 = vpack.c.b16 %v1724, %v1700
    %v1749 = vpack.c.b16 %v1725, %v1701
    %v1750 = vpack.c.b16 %v1726, %v1702
    %v1751 = vpack.c.b16 %v1727, %v1703
    %v1752 = vpack.c.b16 %v1728, %v1704
    %v1753 = vpack.c.b16 %v1729, %v1705
    %v1754 = vpack.c.b16 %v1730, %v1706
    %v1755 = vpack.c.b16 %v1731, %v1707
    %v1756 = vpack.c.b16 %v1732, %v1708
    %v1757 = vpack.c.b16 %v1733, %v1709
    %v1758 = vpack.c.b16 %v1734, %v1710
    %v1759 = vpack.c.b16 %v1735, %v1711
    %v1760 = vpack.c.b16 %v1736, %v1712
    %v1761 = vpack.c.b16 %v1737, %v1713
    %v1762 = vpack.c.b16 %v1738, %v1714
    %v1763 = vpack.c.b16 %v1739, %v1715
    %v1764 = vpack.c.b16 %v1740, %v1716
    %v1765 = vpack.c.b16 %v1741, %v1717
    %v1766 = vpack.c.b16 %v1742, %v1718
    %v1767 = vpack.c.b16 %v1743, %v1719
    %v1768 = vpack.c.b16 %v1744, %v1720
    %v3329 = vunpack.c.l.b16 %v95
    %v3330 = vunpack.c.h.b16 %v95
    %v3331 = vunpack.c.l.b16 %v96
    %v3332 = vunpack.c.h.b16 %v96
    %v3333 = vunpack.c.l.b16 %v97
    %v3334 = vunpack.c.h.b16 %v97
    %v3335 = vunpack.c.l.b16 %v98
    %v3336 = vunpack.c.h.b16 %v98
    %v3337 = vunpack.c.l.b16 %v99
    %v3338 = vunpack.c.h.b16 %v99
    %v3339 = vunpack.c.l.b16 %v100
    %v3340 = vunpack.c.h.b16 %v100
    %v3341 = vunpack.c.l.b16 %v101
    %v3342 = vunpack.c.h.b16 %v101
    %v3343 = vunpack.c.l.b16 %v102
    %v3344 = vunpack.c.h.b16 %v102
    %v3345 = vunpack.c.l.b16 %v103
    %v3346 = vunpack.c.h.b16 %v103
    %v3347 = vunpack.c.l.b16 %v104
    %v3348 = vunpack.c.h.b16 %v104
    %v3349 = vunpack.c.l.b16 %v105
    %v3350 = vunpack.c.h.b16 %v105
    %v3351 = vunpack.c.l.b16 %v106
    %v3352 = vunpack.c.h.b16 %v106
    %v3353 = vunpack.c.l.b16 %v107
    %v3354 = vunpack.c.h.b16 %v107
    %v3355 = vunpack.c.l.b16 %v108
    %v3356 = vunpack.c.h.b16 %v108
    %v3357 = vunpack.c.l.b16 %v109
    %v3358 = vunpack.c.h.b16 %v109
    %v3359 = vunpack.c.l.b16 %v110
    %v3360 = vunpack.c.h.b16 %v110
    %v3361 = vunpack.c.l.b16 %v111
    %v3362 = vunpack.c.h.b16 %v111
    %v3363 = vunpack.c.l.b16 %v112
    %v3364 = vunpack.c.h.b16 %v112
    %v3365 = vunpack.c.l.b16 %v113
    %v3366 = vunpack.c.h.b16 %v113
    %v3367 = vunpack.c.l.b16 %v114
    %v3368 = vunpack.c.h.b16 %v114
    %v3369 = vunpack.c.l.b16 %v115
    %v3370 = vunpack.c.h.b16 %v115
    %v3371 = vunpack.c.l.b16 %v116
    %v3372 = vunpack.c.h.b16 %v116
    %v3373 = vunpack.c.l.b16 %v117
    %v3374 = vunpack.c.h.b16 %v117
    %v3375 = vunpack.c.l.b16 %v118
    %v3376 = vunpack.c.h.b16 %v118
    %v3377 = vunpack.c.l.b16 %v119
    %v3378 = vunpack.c.h.b16 %v119
    %v3379 = vunpack.c.l.b16 %v120
    %v3380 = vunpack.c.h.b16 %v120
    %v3381 = vunpack.c.l.b16 %v121
    %v3382 = vunpack.c.h.b16 %v121
    %v3383 = vunpack.c.l.b16 %v122
    %v3384 = vunpack.c.h.b16 %v122
    %v3385 = vunpack.c.l.b16 %v123
    %v3386 = vunpack.c.h.b16 %v123
    %v3387 = vunpack.c.l.b16 %v124
    %v3388 = vunpack.c.h.b16 %v124
    %v3389 = vunpack.c.l.b16 %v125
    %v3390 = vunpack.c.h.b16 %v125
    %v3391 = vunpack.c.l.b16 %v126
    %v3392 = vunpack.c.h.b16 %v126
    %v3393 = vunpack.c.l.b16 %v127
    %v3394 = vunpack.c.h.b16 %v127
    %v3395 = vunpack.c.l.b16 %v128
    %v3396 = vunpack.c.h.b16 %v128
    %v3397 = vunpack.c.l.b16 %v129
    %v3398 = vunpack.c.h.b16 %v129
    %v3399 = vunpack.c.l.b16 %v130
    %v3400 = vunpack.c.h.b16 %v130
    %v3401 = vunpack.c.l.b16 %v131
    %v3402 = vunpack.c.h.b16 %v131
    %v3403 = vunpack.c.l.b16 %v132
    %v3404 = vunpack.c.h.b16 %v132
    %v3405 = vunpack.c.l.b16 %v133
    %v3406 = vunpack.c.h.b16 %v133
    %v3407 = vunpack.c.l.b16 %v134
    %v3408 = vunpack.c.h.b16 %v134
    %v3409 = vunpack.c.l.b16 %v135
    %v3410 = vunpack.c.h.b16 %v135
    %v3411 = vunpack.c.l.b16 %v136
    %v3412 = vunpack.c.h.b16 %v136
    %v3413 = vunpack.c.l.b16 %v137
    %v3414 = vunpack.c.h.b16 %v137
    %v3415 = vunpack.c.l.b16 %v138
    %v3416 = vunpack.c.h.b16 %v138
    %v3417 = vunpack.c.l.b16 %v139
    %v3418 = vunpack.c.h.b16 %v139
    %v3419 = vunpack.c.l.b16 %v140
    %v3420 = vunpack.c.h.b16 %v140
    %v3421 = vunpack.c.l.b16 %v141
    %v3422 = vunpack.c.h.b16 %v141
    %v3423 = vunpack.c.l.b16 %v142
    %v3424 = vunpack.c.h.b16 %v142
    %v3425 = vunpack.c.l.b16 %v143
    %v3426 = vunpack.c.h.b16 %v143
    %v3427 = vunpack.c.l.b16 %v144
    %v3428 = vunpack.c.h.b16 %v144
    %v3429 = vunpack.c.l.b16 %v145
    %v3430 = vunpack.c.h.b16 %v145
    %v3431 = vunpack.c.l.b16 %v146
    %v3432 = vunpack.c.h.b16 %v146
    %v3433 = vunpack.c.l.b16 %v147
    %v3434 = vunpack.c.h.b16 %v147
    %v3435 = vunpack.c.l.b16 %v148
    %v3436 = vunpack.c.h.b16 %v148
    %v3437 = vunpack.c.l.b16 %v149
    %v3438 = vunpack.c.h.b16 %v149
    %v3439 = vunpack.c.l.b16 %v150
    %v3440 = vunpack.c.h.b16 %v150
    %v3441 = vunpack.c.l.b16 %v151
    %v3442 = vunpack.c.h.b16 %v151
    %v3443 = vunpack.c.l.b16 %v152
    %v3444 = vunpack.c.h.b16 %v152
    %v3445 = vunpack.c.l.b16 %v153
    %v3446 = vunpack.c.h.b16 %v153
    %v3447 = vunpack.c.l.b16 %v154
    %v3448 = vunpack.c.h.b16 %v154
    %v3449 = vunpack.c.l.b16 %v155
    %v3450 = vunpack.c.h.b16 %v155
    %v3451 = vunpack.c.l.b16 %v156
    %v3452 = vunpack.c.h.b16 %v156
    %v3453 = vunpack.c.l.b16 %v157
    %v3454 = vunpack.c.h.b16 %v157
    %v3455 = vunpack.c.l.b16 %v158
    %v3456 = vunpack.c.h.b16 %v158
    %v3457 = vunpack.c.l.b16 %v159
    %v3458 = vunpack.c.h.b16 %v159
    %v3459 = vunpack.c.l.b16 %v160
    %v3460 = vunpack.c.h.b16 %v160
    %v3461 = vunpack.c.l.b16 %v161
    %v3462 = vunpack.c.h.b16 %v161
    %v3463 = vunpack.c.l.b16 %v162
    %v3464 = vunpack.c.h.b16 %v162
    %v3465 = vunpack.c.l.b16 %v163
    %v3466 = vunpack.c.h.b16 %v163
    %v3467 = vunpack.c.l.b16 %v164
    %v3468 = vunpack.c.h.b16 %v164
    %v3469 = vunpack.c.l.b16 %v165
    %v3470 = vunpack.c.h.b16 %v165
    %v3471 = vunpack.c.l.b16 %v166
    %v3472 = vunpack.c.h.b16 %v166
    %v3473 = vunpack.c.l.b16 %v167
    %v3474 = vunpack.c.h.b16 %v167
    %v3475 = vunpack.c.l.b16 %v168
    %v3476 = vunpack.c.h.b16 %v168
    %v3477 = vunpack.c.l.b16 %v169
    %v3478 = vunpack.c.h.b16 %v169
    %v3479 = vunpack.c.l.b16 %v170
    %v3480 = vunpack.c.h.b16 %v170
    %v3481 = vunpack.c.l.b16 %v171
    %v3482 = vunpack.c.h.b16 %v171
    %v3483 = vunpack.c.l.b16 %v172
    %v3484 = vunpack.c.h.b16 %v172
    %v3485 = vunpack.c.l.b16 %v173
    %v3486 = vunpack.c.h.b16 %v173
    %v3487 = vunpack.c.l.b16 %v174
    %v3488 = vunpack.c.h.b16 %v174
    %v3489 = vunpack.c.l.b16 %v175
    %v3490 = vunpack.c.h.b16 %v175
    %v3491 = vunpack.c.l.b16 %v176
    %v3492 = vunpack.c.h.b16 %v176
    %v3493 = vunpack.c.l.b16 %v177
    %v3494 = vunpack.c.h.b16 %v177
    %v3495 = vunpack.c.l.b16 %v178
    %v3496 = vunpack.c.h.b16 %v178
    %v3497 = vunpack.c.l.b16 %v179
    %v3498 = vunpack.c.h.b16 %v179
    %v3499 = vunpack.c.l.b16 %v180
    %v3500 = vunpack.c.h.b16 %v180
    %v3501 = vunpack.c.l.b16 %v181
    %v3502 = vunpack.c.h.b16 %v181
    %v3503 = vunpack.c.l.b16 %v182
    %v3504 = vunpack.c.h.b16 %v182
    %v3505 = vunpack.c.l.b16 %v183
    %v3506 = vunpack.c.h.b16 %v183
    %v3507 = vunpack.c.l.b16 %v184
    %v3508 = vunpack.c.h.b16 %v184
    %v3509 = vunpack.c.l.b16 %v185
    %v3510 = vunpack.c.h.b16 %v185
    %v3511 = vunpack.c.l.b16 %v186
    %v3512 = vunpack.c.h.b16 %v186
    %v3513 = vunpack.c.l.b16 %v187
    %v3514 = vunpack.c.h.b16 %v187
    %v3515 = vunpack.c.l.b16 %v188
    %v3516 = vunpack.c.h.b16 %v188
    %v3517 = vunpack.c.l.b16 %v189
    %v3518 = vunpack.c.h.b16 %v189
    %v3519 = vunpack.c.l.b16 %v190
    %v3520 = vunpack.c.h.b16 %v190
    %v3521 = vunpack.c.l.b16 %v191
    %v3522 = vunpack.c.h.b16 %v191
    %v3523 = vunpack.c.l.b16 %v192
    %v3524 = vunpack.c.h.b16 %v192
    %v3525 = vunpack.c.l.b16 %v193
    %v3526 = vunpack.c.h.b16 %v193
    %v3527 = vunpack.c.l.b16 %v194
    %v3528 = vunpack.c.h.b16 %v194
    %v3529 = vunpack.c.l.b16 %v195
    %v3530 = vunpack.c.h.b16 %v195
    %v3531 = vunpack.c.l.b16 %v196
    %v3532 = vunpack.c.h.b16 %v196
    %v3533 = vunpack.c.l.b16 %v197
    %v3534 = vunpack.c.h.b16 %v197
    %v3535 = vunpack.c.l.b16 %v198
    %v3536 = vunpack.c.h.b16 %v198
    %v3537 = vunpack.c.l.b16 %v199
    %v3538 = vunpack.c.h.b16 %v199
    %v3539 = vunpack.c.l.b16 %v200
    %v3540 = vunpack.c.h.b16 %v200
    %v3541 = vunpack.c.l.b16 %v201
    %v3542 = vunpack.c.h.b16 %v201
    %v3543 = vunpack.c.l.b16 %v202
    %v3544 = vunpack.c.h.b16 %v202
    %v3545 = vunpack.c.l.b16 %v203
    %v3546 = vunpack.c.h.b16 %v203
    %v3547 = vunpack.c.l.b16 %v204
    %v3548 = vunpack.c.h.b16 %v204
    %v3549 = vunpack.c.l.b16 %v205
    %v3550 = vunpack.c.h.b16 %v205
    %v3551 = vunpack.c.l.b16 %v206
    %v3552 = vunpack.c.h.b16 %v206
    %v3553 = vunpack.c.l.b16 %v207
    %v3554 = vunpack.c.h.b16 %v207
    %v3555 = vunpack.c.l.b16 %v208
    %v3556 = vunpack.c.h.b16 %v208
    %v3557 = vunpack.c.l.b16 %v209
    %v3558 = vunpack.c.h.b16 %v209
    %v3559 = vunpack.c.l.b16 %v210
    %v3560 = vunpack.c.h.b16 %v210
    %v3561 = vunpack.c.l.b16 %v211
    %v3562 = vunpack.c.h.b16 %v211
    %v3563 = vunpack.c.l.b16 %v212
    %v3564 = vunpack.c.h.b16 %v212
    %v3565 = vunpack.c.l.b16 %v213
    %v3566 = vunpack.c.h.b16 %v213
    %v3567 = vunpack.c.l.b16 %v214
    %v3568 = vunpack.c.h.b16 %v214
    %v3569 = vunpack.c.l.b16 %v215
    %v3570 = vunpack.c.h.b16 %v215
    %v3571 = vunpack.c.l.b16 %v216
    %v3572 = vunpack.c.h.b16 %v216
    %v3573 = vunpack.c.l.b16 %v217
    %v3574 = vunpack.c.h.b16 %v217
    %v3575 = vunpack.c.l.b16 %v218
    %v3576 = vunpack.c.h.b16 %v218
    %v3577 = vunpack.c.l.b16 %v219
    %v3578 = vunpack.c.h.b16 %v219
    %v3579 = vunpack.c.l.b16 %v220
    %v3580 = vunpack.c.h.b16 %v220
    %v3581 = vunpack.c.l.b16 %v221
    %v3582 = vunpack.c.h.b16 %v221
    %v3583 = vunpack.c.l.b16 %v222
    %v3584 = vunpack.c.h.b16 %v222
    %v3585 = vunpack.c.l.b16 %v223
    %v3586 = vunpack.c.h.b16 %v223
    %v3587 = vunpack.c.l.b16 %v224
    %v3588 = vunpack.c.h.b16 %v224
    %v3589 = vunpack.c.l.b16 %v225
    %v3590 = vunpack.c.h.b16 %v225
    %v3591 = vunpack.c.l.b16 %v226
    %v3592 = vunpack.c.h.b16 %v226
    %v3593 = vunpack.c.l.b16 %v227
    %v3594 = vunpack.c.h.b16 %v227
    %v3595 = vunpack.c.l.b16 %v228
    %v3596 = vunpack.c.h.b16 %v228
    %v3597 = vunpack.c.l.b16 %v229
    %v3598 = vunpack.c.h.b16 %v229
    %v3599 = vunpack.c.l.b16 %v230
    %v3600 = vunpack.c.h.b16 %v230
    %v3601 = vunpack.c.l.b16 %v231
    %v3602 = vunpack.c.h.b16 %v231
    %v3603 = vunpack.c.l.b16 %v232
    %v3604 = vunpack.c.h.b16 %v232
    %v3605 = vunpack.c.l.b16 %v233
    %v3606 = vunpack.c.h.b16 %v233
    %v3607 = vunpack.c.l.b16 %v234
    %v3608 = vunpack.c.h.b16 %v234
    %v3609 = vunpack.c.l.b16 %v235
    %v3610 = vunpack.c.h.b16 %v235
    %v3611 = vunpack.c.l.b16 %v236
    %v3612 = vunpack.c.h.b16 %v236
    %v3613 = vunpack.c.l.b16 %v237
    %v3614 = vunpack.c.h.b16 %v237
    %v3615 = vunpack.c.l.b16 %v238
    %v3616 = vunpack.c.h.b16 %v238
    %v3617 = vunpack.c.l.b16 %v239
    %v3618 = vunpack.c.h.b16 %v239
    %v3619 = vunpack.c.l.b16 %v240
    %v3620 = vunpack.c.h.b16 %v240
    %v3621 = vunpack.c.l.b16 %v241
    %v3622 = vunpack.c.h.b16 %v241
    %v3623 = vunpack.c.l.b16 %v242
    %v3624 = vunpack.c.h.b16 %v242
    %v3625 = vunpack.c.l.b16 %v243
    %v3626 = vunpack.c.h.b16 %v243
    %v3627 = vunpack.c.l.b16 %v244
    %v3628 = vunpack.c.h.b16 %v244
    %v3629 = vunpack.c.l.b16 %v245
    %v3630 = vunpack.c.h.b16 %v245
    %v3631 = vunpack.c.l.b16 %v246
    %v3632 = vunpack.c.h.b16 %v246
    %v3633 = vunpack.c.l.b16 %v247
    %v3634 = vunpack.c.h.b16 %v247
    %v3635 = vunpack.c.l.b16 %v248
    %v3636 = vunpack.c.h.b16 %v248
    %v3637 = vunpack.c.l.b16 %v249
    %v3638 = vunpack.c.h.b16 %v249
    %v3639 = vunpack.c.l.b16 %v250
    %v3640 = vunpack.c.h.b16 %v250
    %v3641 = vunpack.c.l.b16 %v251
    %v3642 = vunpack.c.h.b16 %v251
    %v3643 = vunpack.c.l.b16 %v252
    %v3644 = vunpack.c.h.b16 %v252
    %v3645 = vunpack.c.l.b16 %v253
    %v3646 = vunpack.c.h.b16 %v253
    %v3647 = vunpack.c.l.b16 %v254
    %v3648 = vunpack.c.h.b16 %v254
    %v3649 = vunpack.c.l.b16 %v255
    %v3650 = vunpack.c.h.b16 %v255
    %v3651 = vunpack.c.l.b16 %v256
    %v3652 = vunpack.c.h.b16 %v256
    %v3653 = vunpack.c.l.b16 %v257
    %v3654 = vunpack.c.h.b16 %v257
    %v3655 = vunpack.c.l.b16 %v258
    %v3656 = vunpack.c.h.b16 %v258
    %v3657 = vunpack.c.l.b16 %v259
    %v3658 = vunpack.c.h.b16 %v259
    %v3659 = vunpack.c.l.b16 %v260
    %v3660 = vunpack.c.h.b16 %v260
    %v3661 = vunpack.c.l.b16 %v261
    %v3662 = vunpack.c.h.b16 %v261
    %v3663 = vunpack.c.l.b16 %v262
    %v3664 = vunpack.c.h.b16 %v262
    %v3665 = vunpack.c.l.b16 %v263
    %v3666 = vunpack.c.h.b16 %v263
    %v3667 = vunpack.c.l.b16 %v264
    %v3668 = vunpack.c.h.b16 %v264
    %v3669 = vunpack.c.l.b16 %v265
    %v3670 = vunpack.c.h.b16 %v265
    %v3671 = vunpack.c.l.b16 %v266
    %v3672 = vunpack.c.h.b16 %v266
    %v3673 = vunpack.c.l.b16 %v267
    %v3674 = vunpack.c.h.b16 %v267
    %v3675 = vunpack.c.l.b16 %v268
    %v3676 = vunpack.c.h.b16 %v268
    %v3677 = vunpack.c.l.b16 %v269
    %v3678 = vunpack.c.h.b16 %v269
    %v3679 = vunpack.c.l.b16 %v270
    %v3680 = vunpack.c.h.b16 %v270
    %v3681 = vunpack.c.l.b16 %v271
    %v3682 = vunpack.c.h.b16 %v271
    %v3683 = vunpack.c.l.b16 %v272
    %v3684 = vunpack.c.h.b16 %v272
    %v3685 = vunpack.c.l.b16 %v273
    %v3686 = vunpack.c.h.b16 %v273
    %v3687 = vunpack.c.l.b16 %v274
    %v3688 = vunpack.c.h.b16 %v274
    %v3689 = vunpack.c.l.b16 %v275
    %v3690 = vunpack.c.h.b16 %v275
    %v3691 = vunpack.c.l.b16 %v276
    %v3692 = vunpack.c.h.b16 %v276
    %v3693 = vunpack.c.l.b16 %v277
    %v3694 = vunpack.c.h.b16 %v277
    %v3695 = vunpack.c.l.b16 %v278
    %v3696 = vunpack.c.h.b16 %v278
    %v3697 = vunpack.c.l.b16 %v279
    %v3698 = vunpack.c.h.b16 %v279
    %v3699 = vunpack.c.l.b16 %v280
    %v3700 = vunpack.c.h.b16 %v280
    %v3701 = vunpack.c.l.b16 %v281
    %v3702 = vunpack.c.h.b16 %v281
    %v3703 = vunpack.c.l.b16 %v282
    %v3704 = vunpack.c.h.b16 %v282
    %v3705 = vunpack.c.l.b16 %v283
    %v3706 = vunpack.c.h.b16 %v283
    %v3707 = vunpack.c.l.b16 %v284
    %v3708 = vunpack.c.h.b16 %v284
    %v3709 = vunpack.c.l.b16 %v285
    %v3710 = vunpack.c.h.b16 %v285
    %v3711 = vunpack.c.l.b16 %v286
    %v3712 = vunpack.c.h.b16 %v286
    %v3713 = vunpack.c.l.b16 %v287
    %v3714 = vunpack.c.h.b16 %v287
    %v3715 = vunpack.c.l.b16 %v288
    %v3716 = vunpack.c.h.b16 %v288
    %v3717 = vunpack.c.l.b16 %v289
    %v3718 = vunpack.c.h.b16 %v289
    %v3719 = vunpack.c.l.b16 %v290
    %v3720 = vunpack.c.h.b16 %v290
    %v3721 = vunpack.c.l.b16 %v291
    %v3722 = vunpack.c.h.b16 %v291
    %v3723 = vunpack.c.l.b16 %v292
    %v3724 = vunpack.c.h.b16 %v292
    %v3725 = vunpack.c.l.b16 %v293
    %v3726 = vunpack.c.h.b16 %v293
    %v3727 = vunpack.c.l.b16 %v294
    %v3728 = vunpack.c.h.b16 %v294
    %v3729 = vunpack.c.l.b16 %v295
    %v3730 = vunpack.c.h.b16 %v295
    %v3731 = vunpack.c.l.b16 %v296
    %v3732 = vunpack.c.h.b16 %v296
    %v3733 = vunpack.c.l.b16 %v297
    %v3734 = vunpack.c.h.b16 %v297
    %v3735 = vunpack.c.l.b16 %v298
    %v3736 = vunpack.c.h.b16 %v298
    %v3737 = vunpack.c.l.b16 %v299
    %v3738 = vunpack.c.h.b16 %v299
    %v3739 = vunpack.c.l.b16 %v300
    %v3740 = vunpack.c.h.b16 %v300
    %v3741 = vunpack.c.l.b16 %v301
    %v3742 = vunpack.c.h.b16 %v301
    %v3743 = vunpack.c.l.b16 %v302
    %v3744 = vunpack.c.h.b16 %v302
    %v3745 = vunpack.c.l.b16 %v303
    %v3746 = vunpack.c.h.b16 %v303
    %v3747 = vunpack.c.l.b16 %v304
    %v3748 = vunpack.c.h.b16 %v304
    %v3749 = vunpack.c.l.b16 %v305
    %v3750 = vunpack.c.h.b16 %v305
    %v3751 = vunpack.c.l.b16 %v306
    %v3752 = vunpack.c.h.b16 %v306
    %v3753 = vunpack.c.l.b16 %v307
    %v3754 = vunpack.c.h.b16 %v307
    %v3755 = vunpack.c.l.b16 %v308
    %v3756 = vunpack.c.h.b16 %v308
    %v3757 = vunpack.c.l.b16 %v309
    %v3758 = vunpack.c.h.b16 %v309
    %v3759 = vunpack.c.l.b16 %v310
    %v3760 = vunpack.c.h.b16 %v310
    %v3761 = vunpack.c.l.b16 %v311
    %v3762 = vunpack.c.h.b16 %v311
    %v3763 = vunpack.c.l.b16 %v312
    %v3764 = vunpack.c.h.b16 %v312
    %v3765 = vunpack.c.l.b16 %v313
    %v3766 = vunpack.c.h.b16 %v313
    %v3767 = vunpack.c.l.b16 %v314
    %v3768 = vunpack.c.h.b16 %v314
    %v3769 = vunpack.c.l.b16 %v315
    %v3770 = vunpack.c.h.b16 %v315
    %v3771 = vunpack.c.l.b16 %v316
    %v3772 = vunpack.c.h.b16 %v316
    %v3773 = vunpack.c.l.b16 %v317
    %v3774 = vunpack.c.h.b16 %v317
    %v3775 = vunpack.c.l.b16 %v318
    %v3776 = vunpack.c.h.b16 %v318
    %v3777 = vunpack.c.l.b16 %v319
    %v3778 = vunpack.c.h.b16 %v319
    %v3779 = vunpack.c.l.b16 %v320
    %v3780 = vunpack.c.h.b16 %v320
    %v3781 = vunpack.c.l.b16 %v321
    %v3782 = vunpack.c.h.b16 %v321
    %v3783 = vunpack.c.l.b16 %v322
    %v3784 = vunpack.c.h.b16 %v322
    %v3785 = vunpack.c.l.b16 %v323
    %v3786 = vunpack.c.h.b16 %v323
    %v3787 = vunpack.c.l.b16 %v324
    %v3788 = vunpack.c.h.b16 %v324
    %v3789 = vunpack.c.l.b16 %v325
    %v3790 = vunpack.c.h.b16 %v325
    %v3791 = vunpack.c.l.b16 %v326
    %v3792 = vunpack.c.h.b16 %v326
    %v3793 = vunpack.c.l.b16 %v327
    %v3794 = vunpack.c.h.b16 %v327
    %v3795 = vunpack.c.l.b16 %v328
    %v3796 = vunpack.c.h.b16 %v328
    %v3797 = vunpack.c.l.b16 %v329
    %v3798 = vunpack.c.h.b16 %v329
    %v3799 = vunpack.c.l.b16 %v330
    %v3800 = vunpack.c.h.b16 %v330
    %v3801 = vunpack.c.l.b16 %v331
    %v3802 = vunpack.c.h.b16 %v331
    %v3803 = vunpack.c.l.b16 %v332
    %v3804 = vunpack.c.h.b16 %v332
    %v3805 = vunpack.c.l.b16 %v333
    %v3806 = vunpack.c.h.b16 %v333
    %v3807 = vunpack.c.l.b16 %v334
    %v3808 = vunpack.c.h.b16 %v334
    %v3809 = vunpack.c.l.b16 %v335
    %v3810 = vunpack.c.h.b16 %v335
    %v3811 = vunpack.c.l.b16 %v336
    %v3812 = vunpack.c.h.b16 %v336
    %v3813 = vunpack.c.l.b16 %v337
    %v3814 = vunpack.c.h.b16 %v337
    %v3815 = vunpack.c.l.b16 %v338
    %v3816 = vunpack.c.h.b16 %v338
    %v3817 = vunpack.c.l.b16 %v339
    %v3818 = vunpack.c.h.b16 %v339
    %v3819 = vunpack.c.l.b16 %v340
    %v3820 = vunpack.c.h.b16 %v340
    %v3821 = vunpack.c.l.b16 %v341
    %v3822 = vunpack.c.h.b16 %v341
    %v3823 = vunpack.c.l.b16 %v342
    %v3824 = vunpack.c.h.b16 %v342
    %v3825 = vunpack.c.l.b16 %v343
    %v3826 = vunpack.c.h.b16 %v343
    %v3827 = vunpack.c.l.b16 %v344
    %v3828 = vunpack.c.h.b16 %v344
    %v3829 = vunpack.c.l.b16 %v345
    %v3830 = vunpack.c.h.b16 %v345
    %v3831 = vunpack.c.l.b16 %v346
    %v3832 = vunpack.c.h.b16 %v346
    %v3833 = vunpack.c.l.b16 %v347
    %v3834 = vunpack.c.h.b16 %v347
    %v3835 = vunpack.c.l.b16 %v348
    %v3836 = vunpack.c.h.b16 %v348
    %v3837 = vunpack.c.l.b16 %v349
    %v3838 = vunpack.c.h.b16 %v349
    %v3839 = vunpack.c.l.b16 %v350
    %v3840 = vunpack.c.h.b16 %v350
    %v3841 = vunpack.c.l.b16 %v351
    %v3842 = vunpack.c.h.b16 %v351
    %v3843 = vunpack.c.l.b16 %v352
    %v3844 = vunpack.c.h.b16 %v352
    %v3845 = vunpack.c.l.b16 %v353
    %v3846 = vunpack.c.h.b16 %v353
    %v3847 = vunpack.c.l.b16 %v354
    %v3848 = vunpack.c.h.b16 %v354
    %v3849 = vunpack.c.l.b16 %v355
    %v3850 = vunpack.c.h.b16 %v355
    %v3851 = vunpack.c.l.b16 %v356
    %v3852 = vunpack.c.h.b16 %v356
    %v3853 = vunpack.c.l.b16 %v357
    %v3854 = vunpack.c.h.b16 %v357
    %v3855 = vunpack.c.l.b16 %v358
    %v3856 = vunpack.c.h.b16 %v358
    %v3857 = vunpack.c.l.b16 %v359
    %v3858 = vunpack.c.h.b16 %v359
    %v3859 = vunpack.c.l.b16 %v360
    %v3860 = vunpack.c.h.b16 %v360
    %v3861 = vunpack.c.l.b16 %v361
    %v3862 = vunpack.c.h.b16 %v361
    %v3863 = vunpack.c.l.b16 %v362
    %v3864 = vunpack.c.h.b16 %v362
    %v3865 = vunpack.c.l.b16 %v363
    %v3866 = vunpack.c.h.b16 %v363
    %v3867 = vunpack.c.l.b16 %v364
    %v3868 = vunpack.c.h.b16 %v364
    %v3869 = vunpack.c.l.b16 %v365
    %v3870 = vunpack.c.h.b16 %v365
    %v3871 = vunpack.c.l.b16 %v366
    %v3872 = vunpack.c.h.b16 %v366
    %v3873 = vunpack.c.l.b16 %v367
    %v3874 = vunpack.c.h.b16 %v367
    %v3875 = vunpack.c.l.b16 %v368
    %v3876 = vunpack.c.h.b16 %v368
    %v3877 = vunpack.c.l.b16 %v369
    %v3878 = vunpack.c.h.b16 %v369
    %v3879 = vunpack.c.l.b16 %v370
    %v3880 = vunpack.c.h.b16 %v370
    %v3881 = vunpack.c.l.b16 %v371
    %v3882 = vunpack.c.h.b16 %v371
    %v3883 = vunpack.c.l.b16 %v372
    %v3884 = vunpack.c.h.b16 %v372
    %v3885 = vunpack.c.l.b16 %v373
    %v3886 = vunpack.c.h.b16 %v373
    %v3887 = vunpack.c.l.b16 %v374
    %v3888 = vunpack.c.h.b16 %v374
    %v3889 = vunpack.c.l.b16 %v375
    %v3890 = vunpack.c.h.b16 %v375
    %v3891 = vunpack.c.l.b16 %v376
    %v3892 = vunpack.c.h.b16 %v376
    %v3893 = vunpack.c.l.b16 %v377
    %v3894 = vunpack.c.h.b16 %v377
    %v3895 = vunpack.c.l.b16 %v378
    %v3896 = vunpack.c.h.b16 %v378
    %v3897 = vunpack.c.l.b16 %v379
    %v3898 = vunpack.c.h.b16 %v379
    %v3899 = vunpack.c.l.b16 %v380
    %v3900 = vunpack.c.h.b16 %v380
    %v3901 = vunpack.c.l.b16 %v381
    %v3902 = vunpack.c.h.b16 %v381
    %v3903 = vunpack.c.l.b16 %v382
    %v3904 = vunpack.c.h.b16 %v382
    %v3905 = vunpack.c.l.b16 %v383
    %v3906 = vunpack.c.h.b16 %v383
    %v3907 = vunpack.c.l.b16 %v384
    %v3908 = vunpack.c.h.b16 %v384
    %v3909 = vunpack.c.l.b16 %v385
    %v3910 = vunpack.c.h.b16 %v385
    %v3911 = vunpack.c.l.b16 %v386
    %v3912 = vunpack.c.h.b16 %v386
    %v3913 = vunpack.c.l.b16 %v387
    %v3914 = vunpack.c.h.b16 %v387
    %v3915 = vunpack.c.l.b16 %v388
    %v3916 = vunpack.c.h.b16 %v388
    %v3917 = vunpack.c.l.b16 %v389
    %v3918 = vunpack.c.h.b16 %v389
    %v3919 = vunpack.c.l.b16 %v390
    %v3920 = vunpack.c.h.b16 %v390
    %v3921 = vunpack.c.l.b16 %v391
    %v3922 = vunpack.c.h.b16 %v391
    %v3923 = vunpack.c.l.b16 %v392
    %v3924 = vunpack.c.h.b16 %v392
    %v3925 = vunpack.c.l.b16 %v393
    %v3926 = vunpack.c.h.b16 %v393
    %v3927 = vunpack.c.l.b16 %v394
    %v3928 = vunpack.c.h.b16 %v394
    %v3929 = vunpack.c.l.b16 %v395
    %v3930 = vunpack.c.h.b16 %v395
    %v3931 = vunpack.c.l.b16 %v396
    %v3932 = vunpack.c.h.b16 %v396
    %v3933 = vunpack.c.l.b16 %v397
    %v3934 = vunpack.c.h.b16 %v397
    %v3935 = vunpack.c.l.b16 %v398
    %v3936 = vunpack.c.h.b16 %v398
    %v3937 = vunpack.c.l.b16 %v399
    %v3938 = vunpack.c.h.b16 %v399
    %v3939 = vunpack.c.l.b16 %v400
    %v3940 = vunpack.c.h.b16 %v400
    %v3941 = vunpack.c.l.b16 %v401
    %v3942 = vunpack.c.h.b16 %v401
    %v3943 = vunpack.c.l.b16 %v402
    %v3944 = vunpack.c.h.b16 %v402
    %v3945 = vunpack.c.l.b16 %v403
    %v3946 = vunpack.c.h.b16 %v403
    %v3947 = vunpack.c.l.b16 %v404
    %v3948 = vunpack.c.h.b16 %v404
    %v3949 = vunpack.c.l.b16 %v405
    %v3950 = vunpack.c.h.b16 %v405
    %v3951 = vunpack.c.l.b16 %v406
    %v3952 = vunpack.c.h.b16 %v406
    %v3953 = vunpack.c.l.b16 %v407
    %v3954 = vunpack.c.h.b16 %v407
    %v3955 = vunpack.c.l.b16 %v408
    %v3956 = vunpack.c.h.b16 %v408
    %v3957 = vunpack.c.l.b16 %v409
    %v3958 = vunpack.c.h.b16 %v409
    %v3959 = vunpack.c.l.b16 %v410
    %v3960 = vunpack.c.h.b16 %v410
    %v3961 = vunpack.c.l.b16 %v411
    %v3962 = vunpack.c.h.b16 %v411
    %v3963 = vunpack.c.l.b16 %v412
    %v3964 = vunpack.c.h.b16 %v412
    %v3965 = vunpack.c.l.b16 %v413
    %v3966 = vunpack.c.h.b16 %v413
    %v3967 = vunpack.c.l.b16 %v414
    %v3968 = vunpack.c.h.b16 %v414
    %v3969 = vunpack.c.l.b16 %v415
    %v3970 = vunpack.c.h.b16 %v415
    %v3971 = vunpack.c.l.b16 %v416
    %v3972 = vunpack.c.h.b16 %v416
    %v3973 = vunpack.c.l.b16 %v417
    %v3974 = vunpack.c.h.b16 %v417
    %v3975 = vunpack.c.l.b16 %v418
    %v3976 = vunpack.c.h.b16 %v418
    %v3977 = vunpack.c.l.b16 %v419
    %v3978 = vunpack.c.h.b16 %v419
    %v3979 = vunpack.c.l.b16 %v420
    %v3980 = vunpack.c.h.b16 %v420
    %v3981 = vunpack.c.l.b16 %v421
    %v3982 = vunpack.c.h.b16 %v421
    %v3983 = vunpack.c.l.b16 %v422
    %v3984 = vunpack.c.h.b16 %v422
    %v3985 = vunpack.c.l.b16 %v423
    %v3986 = vunpack.c.h.b16 %v423
    %v3987 = vunpack.c.l.b16 %v424
    %v3988 = vunpack.c.h.b16 %v424
    %v3989 = vunpack.c.l.b16 %v425
    %v3990 = vunpack.c.h.b16 %v425
    %v3991 = vunpack.c.l.b16 %v426
    %v3992 = vunpack.c.h.b16 %v426
    %v3993 = vunpack.c.l.b16 %v427
    %v3994 = vunpack.c.h.b16 %v427
    %v3995 = vunpack.c.l.b16 %v428
    %v3996 = vunpack.c.h.b16 %v428
    %v3997 = vunpack.c.l.b16 %v429
    %v3998 = vunpack.c.h.b16 %v429
    %v3999 = vunpack.c.l.b16 %v430
    %v4000 = vunpack.c.h.b16 %v430
    %v4001 = vunpack.c.l.b16 %v431
    %v4002 = vunpack.c.h.b16 %v431
    %v4003 = vunpack.c.l.b16 %v432
    %v4004 = vunpack.c.h.b16 %v432
    %v4005 = vunpack.c.l.b16 %v433
    %v4006 = vunpack.c.h.b16 %v433
    %v4007 = vunpack.c.l.b16 %v434
    %v4008 = vunpack.c.h.b16 %v434
    %v4009 = vunpack.c.l.b16 %v435
    %v4010 = vunpack.c.h.b16 %v435
    %v4011 = vunpack.c.l.b16 %v436
    %v4012 = vunpack.c.h.b16 %v436
    %v4013 = vunpack.c.l.b16 %v437
    %v4014 = vunpack.c.h.b16 %v437
    %v4015 = vunpack.c.l.b16 %v438
    %v4016 = vunpack.c.h.b16 %v438
    %v4017 = vunpack.c.l.b16 %v439
    %v4018 = vunpack.c.h.b16 %v439
    %v4019 = vunpack.c.l.b16 %v440
    %v4020 = vunpack.c.h.b16 %v440
    %v4021 = vunpack.c.l.b16 %v441
    %v4022 = vunpack.c.h.b16 %v441
    %v4023 = vunpack.c.l.b16 %v442
    %v4024 = vunpack.c.h.b16 %v442
    %v4025 = vunpack.c.l.b16 %v443
    %v4026 = vunpack.c.h.b16 %v443
    %v4027 = vunpack.c.l.b16 %v444
    %v4028 = vunpack.c.h.b16 %v444
    %v4029 = vunpack.c.l.b16 %v445
    %v4030 = vunpack.c.h.b16 %v445
    %v4031 = vunpack.c.l.b16 %v446
    %v4032 = vunpack.c.h.b16 %v446
    %v4033 = vunpack.c.l.b16 %v447
    %v4034 = vunpack.c.h.b16 %v447
    %v4035 = vunpack.c.l.b16 %v448
    %v4036 = vunpack.c.h.b16 %v448
    %v4037 = vunpack.c.l.b16 %v449
    %v4038 = vunpack.c.h.b16 %v449
    %v4039 = vunpack.c.l.b16 %v450
    %v4040 = vunpack.c.h.b16 %v450
    %v4041 = vunpack.c.l.b16 %v451
    %v4042 = vunpack.c.h.b16 %v451
    %v4043 = vunpack.c.l.b16 %v452
    %v4044 = vunpack.c.h.b16 %v452
    %v4045 = vunpack.c.l.b16 %v453
    %v4046 = vunpack.c.h.b16 %v453
    %v4047 = vunpack.c.l.b16 %v454
    %v4048 = vunpack.c.h.b16 %v454
    %v4049 = vunpack.c.l.b16 %v455
    %v4050 = vunpack.c.h.b16 %v455
    %v4051 = vunpack.c.l.b16 %v456
    %v4052 = vunpack.c.h.b16 %v456
    %v4053 = vunpack.c.l.b16 %v457
    %v4054 = vunpack.c.h.b16 %v457
    %v4055 = vunpack.c.l.b16 %v458
    %v4056 = vunpack.c.h.b16 %v458
    %v4057 = vunpack.c.l.b16 %v459
    %v4058 = vunpack.c.h.b16 %v459
    %v4059 = vunpack.c.l.b16 %v460
    %v4060 = vunpack.c.h.b16 %v460
    %v4061 = vunpack.c.l.b16 %v461
    %v4062 = vunpack.c.h.b16 %v461
    %v4063 = vunpack.c.l.b16 %v462
    %v4064 = vunpack.c.h.b16 %v462
    %v4065 = vunpack.c.l.b16 %v463
    %v4066 = vunpack.c.h.b16 %v463
    %v4067 = vunpack.c.l.b16 %v464
    %v4068 = vunpack.c.h.b16 %v464
    %v4069 = vunpack.c.l.b16 %v465
    %v4070 = vunpack.c.h.b16 %v465
    %v4071 = vunpack.c.l.b16 %v466
    %v4072 = vunpack.c.h.b16 %v466
    %v4073 = vunpack.c.l.b16 %v467
    %v4074 = vunpack.c.h.b16 %v467
    %v4075 = vunpack.c.l.b16 %v468
    %v4076 = vunpack.c.h.b16 %v468
    %v4077 = vunpack.c.l.b16 %v469
    %v4078 = vunpack.c.h.b16 %v469
    %v4079 = vunpack.c.l.b16 %v470
    %v4080 = vunpack.c.h.b16 %v470
    %v4081 = vunpack.c.l.b16 %v471
    %v4082 = vunpack.c.h.b16 %v471
    %v4083 = vunpack.c.l.b16 %v472
    %v4084 = vunpack.c.h.b16 %v472
    %v4085 = vunpack.c.l.b16 %v473
    %v4086 = vunpack.c.h.b16 %v473
    %v4087 = vunpack.c.l.b16 %v474
    %v4088 = vunpack.c.h.b16 %v474
    %v4089 = vunpack.c.l.b16 %v475
    %v4090 = vunpack.c.h.b16 %v475
    %v4091 = vunpack.c.l.b16 %v476
    %v4092 = vunpack.c.h.b16 %v476
    %v4093 = vunpack.c.l.b16 %v477
    %v4094 = vunpack.c.h.b16 %v477
    %v4095 = vunpack.c.l.b16 %v478
    %v4096 = vunpack.c.h.b16 %v478
    %v4097 = vunpack.c.l.b16 %v479
    %v4098 = vunpack.c.h.b16 %v479
    %v4099 = vunpack.c.l.b16 %v480
    %v4100 = vunpack.c.h.b16 %v480
    %v4101 = vunpack.c.l.b16 %v481
    %v4102 = vunpack.c.h.b16 %v481
    %v4103 = vunpack.c.l.b16 %v482
    %v4104 = vunpack.c.h.b16 %v482
    %v4105 = vunpack.c.l.b16 %v483
    %v4106 = vunpack.c.h.b16 %v483
    %v4107 = vunpack.c.l.b16 %v484
    %v4108 = vunpack.c.h.b16 %v484
    %v4109 = vunpack.c.l.b16 %v485
    %v4110 = vunpack.c.h.b16 %v485
    %v4111 = vunpack.c.l.b16 %v486
    %v4112 = vunpack.c.h.b16 %v486
    %v4113 = vunpack.c.l.b16 %v487
    %v4114 = vunpack.c.h.b16 %v487
    %v4115 = vunpack.c.l.b16 %v488
    %v4116 = vunpack.c.h.b16 %v488
    %v4117 = vunpack.c.l.b16 %v489
    %v4118 = vunpack.c.h.b16 %v489
    %v4119 = vunpack.c.l.b16 %v490
    %v4120 = vunpack.c.h.b16 %v490
    %v4121 = vunpack.c.l.b16 %v491
    %v4122 = vunpack.c.h.b16 %v491
    %v4123 = vunpack.c.l.b16 %v492
    %v4124 = vunpack.c.h.b16 %v492
    %v4125 = vunpack.c.l.b16 %v493
    %v4126 = vunpack.c.h.b16 %v493
    %v4127 = vunpack.c.l.b16 %v494
    %v4128 = vunpack.c.h.b16 %v494
    %v4129 = vunpack.c.l.b16 %v495
    %v4130 = vunpack.c.h.b16 %v495
    %v4131 = vunpack.c.l.b16 %v496
    %v4132 = vunpack.c.h.b16 %v496
    %v4133 = vunpack.c.l.b16 %v497
    %v4134 = vunpack.c.h.b16 %v497
    %v4135 = vunpack.c.l.b16 %v498
    %v4136 = vunpack.c.h.b16 %v498
    %v4137 = vunpack.c.l.b16 %v499
    %v4138 = vunpack.c.h.b16 %v499
    %v4139 = vunpack.c.l.b16 %v500
    %v4140 = vunpack.c.h.b16 %v500
    %v4141 = vunpack.c.l.b16 %v501
    %v4142 = vunpack.c.h.b16 %v501
    %v4143 = vunpack.c.l.b16 %v502
    %v4144 = vunpack.c.h.b16 %v502
    %v4145 = vunpack.c.l.b16 %v503
    %v4146 = vunpack.c.h.b16 %v503
    %v4147 = vunpack.c.l.b16 %v504
    %v4148 = vunpack.c.h.b16 %v504
    %v4149 = vunpack.c.l.b16 %v505
    %v4150 = vunpack.c.h.b16 %v505
    %v4151 = vunpack.c.l.b16 %v506
    %v4152 = vunpack.c.h.b16 %v506
    %v4153 = vunpack.c.l.b16 %v507
    %v4154 = vunpack.c.h.b16 %v507
    %v4155 = vunpack.c.l.b16 %v508
    %v4156 = vunpack.c.h.b16 %v508
    %v4157 = vunpack.c.l.b16 %v509
    %v4158 = vunpack.c.h.b16 %v509
    %v4159 = vunpack.c.l.b16 %v510
    %v4160 = vunpack.c.h.b16 %v510
    %v4161 = vunpack.c.l.b16 %v511
    %v4162 = vunpack.c.h.b16 %v511
    %v4163 = vunpack.c.l.b16 %v512
    %v4164 = vunpack.c.h.b16 %v512
    %v4165 = vunpack.c.l.b16 %v513
    %v4166 = vunpack.c.h.b16 %v513
    %v4167 = vunpack.c.l.b16 %v514
    %v4168 = vunpack.c.h.b16 %v514
    %v4169 = vunpack.c.l.b16 %v515
    %v4170 = vunpack.c.h.b16 %v515
    %v4171 = vunpack.c.l.b16 %v516
    %v4172 = vunpack.c.h.b16 %v516
    %v4173 = vunpack.c.l.b16 %v517
    %v4174 = vunpack.c.h.b16 %v517
    %v4175 = vunpack.c.l.b16 %v518
    %v4176 = vunpack.c.h.b16 %v518
    %v4177 = vunpack.c.l.b16 %v519
    %v4178 = vunpack.c.h.b16 %v519
    %v4179 = vunpack.c.l.b16 %v520
    %v4180 = vunpack.c.h.b16 %v520
    %v4181 = vunpack.c.l.b16 %v521
    %v4182 = vunpack.c.h.b16 %v521
    %v4183 = vunpack.c.l.b16 %v522
    %v4184 = vunpack.c.h.b16 %v522
    %v4185 = vunpack.c.l.b16 %v523
    %v4186 = vunpack.c.h.b16 %v523
    %v4187 = vunpack.c.l.b16 %v524
    %v4188 = vunpack.c.h.b16 %v524
    %v4189 = vunpack.c.l.b16 %v525
    %v4190 = vunpack.c.h.b16 %v525
    %v4191 = vunpack.c.l.b16 %v526
    %v4192 = vunpack.c.h.b16 %v526
    %v4193 = vunpack.c.l.b16 %v527
    %v4194 = vunpack.c.h.b16 %v527
    %v4195 = vunpack.c.l.b16 %v528
    %v4196 = vunpack.c.h.b16 %v528
    %v4197 = vunpack.c.l.b16 %v529
    %v4198 = vunpack.c.h.b16 %v529
    %v4199 = vunpack.c.l.b16 %v530
    %v4200 = vunpack.c.h.b16 %v530
    %v4201 = vunpack.c.l.b16 %v531
    %v4202 = vunpack.c.h.b16 %v531
    %v4203 = vunpack.c.l.b16 %v532
    %v4204 = vunpack.c.h.b16 %v532
    %v4205 = vunpack.c.l.b16 %v533
    %v4206 = vunpack.c.h.b16 %v533
    %v4207 = vunpack.c.l.b16 %v534
    %v4208 = vunpack.c.h.b16 %v534
    %v4209 = vunpack.c.l.b16 %v535
    %v4210 = vunpack.c.h.b16 %v535
    %v4211 = vunpack.c.l.b16 %v536
    %v4212 = vunpack.c.h.b16 %v536
    %v4213 = vunpack.c.l.b16 %v537
    %v4214 = vunpack.c.h.b16 %v537
    %v4215 = vunpack.c.l.b16 %v538
    %v4216 = vunpack.c.h.b16 %v538
    %v4217 = vunpack.c.l.b16 %v539
    %v4218 = vunpack.c.h.b16 %v539
    %v4219 = vunpack.c.l.b16 %v540
    %v4220 = vunpack.c.h.b16 %v540
    %v4221 = vunpack.c.l.b16 %v541
    %v4222 = vunpack.c.h.b16 %v541
    %v4223 = vunpack.c.l.b16 %v542
    %v4224 = vunpack.c.h.b16 %v542
    %v4225 = vunpack.c.l.b16 %v543
    %v4226 = vunpack.c.h.b16 %v543
    %v4227 = vunpack.c.l.b16 %v544
    %v4228 = vunpack.c.h.b16 %v544
    %v4229 = vunpack.c.l.b16 %v545
    %v4230 = vunpack.c.h.b16 %v545
    %v4231 = vunpack.c.l.b16 %v546
    %v4232 = vunpack.c.h.b16 %v546
    %v4233 = vunpack.c.l.b16 %v547
    %v4234 = vunpack.c.h.b16 %v547
    %v4235 = vunpack.c.l.b16 %v548
    %v4236 = vunpack.c.h.b16 %v548
    %v4237 = vunpack.c.l.b16 %v549
    %v4238 = vunpack.c.h.b16 %v549
    %v4239 = vunpack.c.l.b16 %v550
    %v4240 = vunpack.c.h.b16 %v550
    %v4241 = vunpack.c.l.b16 %v551
    %v4242 = vunpack.c.h.b16 %v551
    %v4243 = vunpack.c.l.b16 %v552
    %v4244 = vunpack.c.h.b16 %v552
    %v4245 = vunpack.c.l.b16 %v553
    %v4246 = vunpack.c.h.b16 %v553
    %v4247 = vunpack.c.l.b16 %v554
    %v4248 = vunpack.c.h.b16 %v554
    %v4249 = vunpack.c.l.b16 %v555
    %v4250 = vunpack.c.h.b16 %v555
    %v4251 = vunpack.c.l.b16 %v556
    %v4252 = vunpack.c.h.b16 %v556
    %v4253 = vunpack.c.l.b16 %v557
    %v4254 = vunpack.c.h.b16 %v557
    %v4255 = vunpack.c.l.b16 %v558
    %v4256 = vunpack.c.h.b16 %v558
    %v4257 = vunpack.c.l.b16 %v559
    %v4258 = vunpack.c.h.b16 %v559
    %v4259 = vunpack.c.l.b16 %v560
    %v4260 = vunpack.c.h.b16 %v560
    %v4261 = vunpack.c.l.b16 %v561
    %v4262 = vunpack.c.h.b16 %v561
    %v4263 = vunpack.c.l.b16 %v562
    %v4264 = vunpack.c.h.b16 %v562
    %v4265 = vunpack.c.l.b16 %v563
    %v4266 = vunpack.c.h.b16 %v563
    %v4267 = vunpack.c.l.b16 %v564
    %v4268 = vunpack.c.h.b16 %v564
    %v4269 = vunpack.c.l.b16 %v565
    %v4270 = vunpack.c.h.b16 %v565
    %v4271 = vunpack.c.l.b16 %v566
    %v4272 = vunpack.c.h.b16 %v566
    %v4273 = vunpack.c.l.b16 %v567
    %v4274 = vunpack.c.h.b16 %v567
    %v4275 = vunpack.c.l.b16 %v568
    %v4276 = vunpack.c.h.b16 %v568
    %v4277 = vunpack.c.l.b16 %v569
    %v4278 = vunpack.c.h.b16 %v569
    %v4279 = vunpack.c.l.b16 %v570
    %v4280 = vunpack.c.h.b16 %v570
    %v4281 = vunpack.c.l.b16 %v571
    %v4282 = vunpack.c.h.b16 %v571
    %v4283 = vunpack.c.l.b16 %v572
    %v4284 = vunpack.c.h.b16 %v572
    %v4285 = vunpack.c.l.b16 %v573
    %v4286 = vunpack.c.h.b16 %v573
    %v4287 = vunpack.c.l.b16 %v574
    %v4288 = vunpack.c.h.b16 %v574
    %v4289 = vunpack.c.l.b16 %v575
    %v4290 = vunpack.c.h.b16 %v575
    %v4291 = vunpack.c.l.b16 %v576
    %v4292 = vunpack.c.h.b16 %v576
    %v4293 = vunpack.c.l.b16 %v577
    %v4294 = vunpack.c.h.b16 %v577
    %v4295 = vunpack.c.l.b16 %v578
    %v4296 = vunpack.c.h.b16 %v578
    %v4297 = vunpack.c.l.b16 %v579
    %v4298 = vunpack.c.h.b16 %v579
    %v4299 = vunpack.c.l.b16 %v580
    %v4300 = vunpack.c.h.b16 %v580
    %v4301 = vunpack.c.l.b16 %v581
    %v4302 = vunpack.c.h.b16 %v581
    %v4303 = vunpack.c.l.b16 %v582
    %v4304 = vunpack.c.h.b16 %v582
    %v4305 = vunpack.c.l.b16 %v583
    %v4306 = vunpack.c.h.b16 %v583
    %v4307 = vunpack.c.l.b16 %v584
    %v4308 = vunpack.c.h.b16 %v584
    %v4309 = vunpack.c.l.b16 %v585
    %v4310 = vunpack.c.h.b16 %v585
    %v4311 = vunpack.c.l.b16 %v586
    %v4312 = vunpack.c.h.b16 %v586
    %v4313 = vunpack.c.l.b16 %v587
    %v4314 = vunpack.c.h.b16 %v587
    %v4315 = vunpack.c.l.b16 %v588
    %v4316 = vunpack.c.h.b16 %v588
    %v4317 = vunpack.c.l.b16 %v589
    %v4318 = vunpack.c.h.b16 %v589
    %v4319 = vunpack.c.l.b16 %v590
    %v4320 = vunpack.c.h.b16 %v590
    %v4321 = vunpack.c.l.b16 %v591
    %v4322 = vunpack.c.h.b16 %v591
    %v4323 = vunpack.c.l.b16 %v592
    %v4324 = vunpack.c.h.b16 %v592
    %v4325 = vunpack.c.l.b16 %v593
    %v4326 = vunpack.c.h.b16 %v593
    %v4327 = vunpack.c.l.b16 %v594
    %v4328 = vunpack.c.h.b16 %v594
    %v4329 = vunpack.c.l.b16 %v595
    %v4330 = vunpack.c.h.b16 %v595
    %v4331 = vunpack.c.l.b16 %v596
    %v4332 = vunpack.c.h.b16 %v596
    %v4333 = vunpack.c.l.b16 %v597
    %v4334 = vunpack.c.h.b16 %v597
    %v4335 = vunpack.c.l.b16 %v598
    %v4336 = vunpack.c.h.b16 %v598
    %v4337 = vunpack.c.l.b16 %v599
    %v4338 = vunpack.c.h.b16 %v599
    %v4339 = vunpack.c.l.b16 %v600
    %v4340 = vunpack.c.h.b16 %v600
    %v4341 = vunpack.c.l.b16 %v601
    %v4342 = vunpack.c.h.b16 %v601
    %v4343 = vunpack.c.l.b16 %v602
    %v4344 = vunpack.c.h.b16 %v602
    %v4345 = vunpack.c.l.b16 %v603
    %v4346 = vunpack.c.h.b16 %v603
    %v4347 = vunpack.c.l.b16 %v604
    %v4348 = vunpack.c.h.b16 %v604
    %v4349 = vunpack.c.l.b16 %v605
    %v4350 = vunpack.c.h.b16 %v605
    %v4351 = vunpack.c.l.b16 %v606
    %v4352 = vunpack.c.h.b16 %v606
    %v4353 = vunpack.c.l.b16 %v607
    %v4354 = vunpack.c.h.b16 %v607
    %v4355 = vunpack.c.l.b16 %v608
    %v4356 = vunpack.c.h.b16 %v608
    %v4357 = vunpack.c.l.b16 %v609
    %v4358 = vunpack.c.h.b16 %v609
    %v4359 = vunpack.c.l.b16 %v610
    %v4360 = vunpack.c.h.b16 %v610
    %v4361 = vunpack.c.l.b16 %v611
    %v4362 = vunpack.c.h.b16 %v611
    %v4363 = vunpack.c.l.b16 %v612
    %v4364 = vunpack.c.h.b16 %v612
    %v4365 = vunpack.c.l.b16 %v613
    %v4366 = vunpack.c.h.b16 %v613
    %v4367 = vunpack.c.l.b16 %v614
    %v4368 = vunpack.c.h.b16 %v614
    %v4369 = vunpack.c.l.b16 %v615
    %v4370 = vunpack.c.h.b16 %v615
    %v4371 = vunpack.c.l.b16 %v616
    %v4372 = vunpack.c.h.b16 %v616
    %v4373 = vunpack.c.l.b16 %v617
    %v4374 = vunpack.c.h.b16 %v617
    %v4375 = vunpack.c.l.b16 %v618
    %v4376 = vunpack.c.h.b16 %v618
    %v4377 = vunpack.c.l.b16 %v619
    %v4378 = vunpack.c.h.b16 %v619
    %v4379 = vunpack.c.l.b16 %v620
    %v4380 = vunpack.c.h.b16 %v620
    %v4381 = vunpack.c.l.b16 %v621
    %v4382 = vunpack.c.h.b16 %v621
    %v4383 = vunpack.c.l.b16 %v622
    %v4384 = vunpack.c.h.b16 %v622
    %v4385 = vunpack.c.l.b16 %v623
    %v4386 = vunpack.c.h.b16 %v623
    %v4387 = vunpack.c.l.b16 %v624
    %v4388 = vunpack.c.h.b16 %v624
    %v4389 = vunpack.c.l.b16 %v625
    %v4390 = vunpack.c.h.b16 %v625
    %v4391 = vunpack.c.l.b16 %v626
    %v4392 = vunpack.c.h.b16 %v626
    %v4393 = vunpack.c.l.b16 %v627
    %v4394 = vunpack.c.h.b16 %v627
    %v4395 = vunpack.c.l.b16 %v628
    %v4396 = vunpack.c.h.b16 %v628
    %v4397 = vunpack.c.l.b16 %v629
    %v4398 = vunpack.c.h.b16 %v629
    %v4399 = vunpack.c.l.b16 %v630
    %v4400 = vunpack.c.h.b16 %v630
    %v4401 = vunpack.c.l.b16 %v631
    %v4402 = vunpack.c.h.b16 %v631
    %v4403 = vunpack.c.l.b16 %v632
    %v4404 = vunpack.c.h.b16 %v632
    %v4405 = vunpack.c.l.b16 %v633
    %v4406 = vunpack.c.h.b16 %v633
    %v4407 = vunpack.c.l.b16 %v634
    %v4408 = vunpack.c.h.b16 %v634
    %v4409 = vunpack.c.l.b16 %v635
    %v4410 = vunpack.c.h.b16 %v635
    %v4411 = vunpack.c.l.b16 %v636
    %v4412 = vunpack.c.h.b16 %v636
    %v4413 = vunpack.c.l.b16 %v637
    %v4414 = vunpack.c.h.b16 %v637
    %v4415 = vunpack.c.l.b16 %v638
    %v4416 = vunpack.c.h.b16 %v638
    %v4417 = vunpack.c.l.b16 %v639
    %v4418 = vunpack.c.h.b16 %v639
    %v4419 = vunpack.c.l.b16 %v640
    %v4420 = vunpack.c.h.b16 %v640
    %v4421 = vunpack.c.l.b16 %v641
    %v4422 = vunpack.c.h.b16 %v641
    %v4423 = vunpack.c.l.b16 %v642
    %v4424 = vunpack.c.h.b16 %v642
    %v4425 = vunpack.c.l.b16 %v643
    %v4426 = vunpack.c.h.b16 %v643
    %v4427 = vunpack.c.l.b16 %v644
    %v4428 = vunpack.c.h.b16 %v644
    %v4429 = vunpack.c.l.b16 %v645
    %v4430 = vunpack.c.h.b16 %v645
    %v4431 = vunpack.c.l.b16 %v646
    %v4432 = vunpack.c.h.b16 %v646
    %v4433 = vunpack.c.l.b16 %v647
    %v4434 = vunpack.c.h.b16 %v647
    %v4435 = vunpack.c.l.b16 %v648
    %v4436 = vunpack.c.h.b16 %v648
    %v4437 = vunpack.c.l.b16 %v649
    %v4438 = vunpack.c.h.b16 %v649
    %v4439 = vunpack.c.l.b16 %v650
    %v4440 = vunpack.c.h.b16 %v650
    %v4441 = vunpack.c.l.b16 %v651
    %v4442 = vunpack.c.h.b16 %v651
    %v4443 = vunpack.c.l.b16 %v652
    %v4444 = vunpack.c.h.b16 %v652
    %v4445 = vunpack.c.l.b16 %v653
    %v4446 = vunpack.c.h.b16 %v653
    %v4447 = vunpack.c.l.b16 %v654
    %v4448 = vunpack.c.h.b16 %v654
    %v4449 = vunpack.c.l.b16 %v655
    %v4450 = vunpack.c.h.b16 %v655
    %v4451 = vunpack.c.l.b16 %v656
    %v4452 = vunpack.c.h.b16 %v656
    %v4453 = vunpack.c.l.b16 %v657
    %v4454 = vunpack.c.h.b16 %v657
    %v4455 = vunpack.c.l.b16 %v658
    %v4456 = vunpack.c.h.b16 %v658
    %v4457 = vunpack.c.l.b16 %v659
    %v4458 = vunpack.c.h.b16 %v659
    %v4459 = vunpack.c.l.b16 %v660
    %v4460 = vunpack.c.h.b16 %v660
    %v4461 = vunpack.c.l.b16 %v661
    %v4462 = vunpack.c.h.b16 %v661
    %v4463 = vunpack.c.l.b16 %v662
    %v4464 = vunpack.c.h.b16 %v662
    %v4465 = vunpack.c.l.b16 %v663
    %v4466 = vunpack.c.h.b16 %v663
    %v4467 = vunpack.c.l.b16 %v664
    %v4468 = vunpack.c.h.b16 %v664
    %v4469 = vunpack.c.l.b16 %v665
    %v4470 = vunpack.c.h.b16 %v665
    %v4471 = vunpack.c.l.b16 %v666
    %v4472 = vunpack.c.h.b16 %v666
    %v4473 = vunpack.c.l.b16 %v667
    %v4474 = vunpack.c.h.b16 %v667
    %v4475 = vunpack.c.l.b16 %v668
    %v4476 = vunpack.c.h.b16 %v668
    %v4477 = vunpack.c.l.b16 %v669
    %v4478 = vunpack.c.h.b16 %v669
    %v4479 = vunpack.c.l.b16 %v670
    %v4480 = vunpack.c.h.b16 %v670
    %v4481 = vunpack.c.l.b16 %v671
    %v4482 = vunpack.c.h.b16 %v671
    %v4483 = vunpack.c.l.b16 %v672
    %v4484 = vunpack.c.h.b16 %v672
    %v4485 = vunpack.c.l.b16 %v673
    %v4486 = vunpack.c.h.b16 %v673
    %v4487 = vunpack.c.l.b16 %v674
    %v4488 = vunpack.c.h.b16 %v674
    %v4489 = vunpack.c.l.b16 %v675
    %v4490 = vunpack.c.h.b16 %v675
    %v4491 = vunpack.c.l.b16 %v676
    %v4492 = vunpack.c.h.b16 %v676
    %v4493 = vunpack.c.l.b16 %v677
    %v4494 = vunpack.c.h.b16 %v677
    %v4495 = vunpack.c.l.b16 %v678
    %v4496 = vunpack.c.h.b16 %v678
    %v4497 = vunpack.c.l.b16 %v679
    %v4498 = vunpack.c.h.b16 %v679
    %v4499 = vunpack.c.l.b16 %v680
    %v4500 = vunpack.c.h.b16 %v680
    %v4501 = vunpack.c.l.b16 %v681
    %v4502 = vunpack.c.h.b16 %v681
    %v4503 = vunpack.c.l.b16 %v682
    %v4504 = vunpack.c.h.b16 %v682
    %v4505 = vunpack.c.l.b16 %v683
    %v4506 = vunpack.c.h.b16 %v683
    %v4507 = vunpack.c.l.b16 %v684
    %v4508 = vunpack.c.h.b16 %v684
    %v4509 = vunpack.c.l.b16 %v685
    %v4510 = vunpack.c.h.b16 %v685
    %v4511 = vunpack.c.l.b16 %v686
    %v4512 = vunpack.c.h.b16 %v686
    %v4513 = vunpack.c.l.b16 %v687
    %v4514 = vunpack.c.h.b16 %v687
    %v4515 = vunpack.c.l.b16 %v688
    %v4516 = vunpack.c.h.b16 %v688
    %v4517 = vunpack.c.l.b16 %v689
    %v4518 = vunpack.c.h.b16 %v689
    %v4519 = vunpack.c.l.b16 %v690
    %v4520 = vunpack.c.h.b16 %v690
    %v4521 = vunpack.c.l.b16 %v691
    %v4522 = vunpack.c.h.b16 %v691
    %v4523 = vunpack.c.l.b16 %v692
    %v4524 = vunpack.c.h.b16 %v692
    %v4525 = vunpack.c.l.b16 %v693
    %v4526 = vunpack.c.h.b16 %v693
    %v4527 = vunpack.c.l.b16 %v694
    %v4528 = vunpack.c.h.b16 %v694
    %v4529 = vunpack.c.l.b16 %v695
    %v4530 = vunpack.c.h.b16 %v695
    %v4531 = vunpack.c.l.b16 %v696
    %v4532 = vunpack.c.h.b16 %v696
    %v4533 = vunpack.c.l.b16 %v697
    %v4534 = vunpack.c.h.b16 %v697
    %v4535 = vunpack.c.l.b16 %v698
    %v4536 = vunpack.c.h.b16 %v698
    %v4537 = vunpack.c.l.b16 %v699
    %v4538 = vunpack.c.h.b16 %v699
    %v4539 = vunpack.c.l.b16 %v700
    %v4540 = vunpack.c.h.b16 %v700
    %v4541 = vunpack.c.l.b16 %v701
    %v4542 = vunpack.c.h.b16 %v701
    %v4543 = vunpack.c.l.b16 %v702
    %v4544 = vunpack.c.h.b16 %v702
    %v4545 = vunpack.c.l.b16 %v703
    %v4546 = vunpack.c.h.b16 %v703
    %v4547 = vunpack.c.l.b16 %v704
    %v4548 = vunpack.c.h.b16 %v704
    %v4549 = vunpack.c.l.b16 %v705
    %v4550 = vunpack.c.h.b16 %v705
    %v4551 = vunpack.c.l.b16 %v706
    %v4552 = vunpack.c.h.b16 %v706
    %v4553 = vunpack.c.l.b16 %v707
    %v4554 = vunpack.c.h.b16 %v707
    %v4555 = vunpack.c.l.b16 %v708
    %v4556 = vunpack.c.h.b16 %v708
    %v4557 = vunpack.c.l.b16 %v709
    %v4558 = vunpack.c.h.b16 %v709
    %v4559 = vunpack.c.l.b16 %v710
    %v4560 = vunpack.c.h.b16 %v710
    %v4561 = vunpack.c.l.b16 %v711
    %v4562 = vunpack.c.h.b16 %v711
    %v4563 = vunpack.c.l.b16 %v712
    %v4564 = vunpack.c.h.b16 %v712
    %v4565 = vunpack.c.l.b16 %v713
    %v4566 = vunpack.c.h.b16 %v713
    %v4567 = vunpack.c.l.b16 %v714
    %v4568 = vunpack.c.h.b16 %v714
    %v4569 = vunpack.c.l.b16 %v715
    %v4570 = vunpack.c.h.b16 %v715
    %v4571 = vunpack.c.l.b16 %v716
    %v4572 = vunpack.c.h.b16 %v716
    %v4573 = vunpack.c.l.b16 %v717
    %v4574 = vunpack.c.h.b16 %v717
    %v4575 = vunpack.c.l.b16 %v718
    %v4576 = vunpack.c.h.b16 %v718
    %v4577 = vunpack.c.l.b16 %v719
    %v4578 = vunpack.c.h.b16 %v719
    %v4579 = vunpack.c.l.b16 %v720
    %v4580 = vunpack.c.h.b16 %v720
    %v4581 = vunpack.c.l.b16 %v721
    %v4582 = vunpack.c.h.b16 %v721
    %v4583 = vunpack.c.l.b16 %v722
    %v4584 = vunpack.c.h.b16 %v722
    %v4585 = vunpack.c.l.b16 %v723
    %v4586 = vunpack.c.h.b16 %v723
    %v4587 = vunpack.c.l.b16 %v724
    %v4588 = vunpack.c.h.b16 %v724
    %v4589 = vunpack.c.l.b16 %v725
    %v4590 = vunpack.c.h.b16 %v725
    %v4591 = vunpack.c.l.b16 %v726
    %v4592 = vunpack.c.h.b16 %v726
    %v4593 = vunpack.c.l.b16 %v727
    %v4594 = vunpack.c.h.b16 %v727
    %v4595 = vunpack.c.l.b16 %v728
    %v4596 = vunpack.c.h.b16 %v728
    %v4597 = vunpack.c.l.b16 %v729
    %v4598 = vunpack.c.h.b16 %v729
    %v4599 = vunpack.c.l.b16 %v730
    %v4600 = vunpack.c.h.b16 %v730
    %v4601 = vunpack.c.l.b16 %v731
    %v4602 = vunpack.c.h.b16 %v731
    %v4603 = vunpack.c.l.b16 %v732
    %v4604 = vunpack.c.h.b16 %v732
    %v4605 = vunpack.c.l.b16 %v733
    %v4606 = vunpack.c.h.b16 %v733
    %v4607 = vunpack.c.l.b16 %v734
    %v4608 = vunpack.c.h.b16 %v734
    %v4609 = vunpack.c.l.b16 %v735
    %v4610 = vunpack.c.h.b16 %v735
    %v4611 = vunpack.c.l.b16 %v736
    %v4612 = vunpack.c.h.b16 %v736
    %v4613 = vunpack.c.l.b16 %v737
    %v4614 = vunpack.c.h.b16 %v737
    %v4615 = vunpack.c.l.b16 %v738
    %v4616 = vunpack.c.h.b16 %v738
    %v4617 = vunpack.c.l.b16 %v739
    %v4618 = vunpack.c.h.b16 %v739
    %v4619 = vunpack.c.l.b16 %v740
    %v4620 = vunpack.c.h.b16 %v740
    %v4621 = vunpack.c.l.b16 %v741
    %v4622 = vunpack.c.h.b16 %v741
    %v4623 = vunpack.c.l.b16 %v742
    %v4624 = vunpack.c.h.b16 %v742
    %v4625 = vunpack.c.l.b16 %v743
    %v4626 = vunpack.c.h.b16 %v743
    %v4627 = vunpack.c.l.b16 %v744
    %v4628 = vunpack.c.h.b16 %v744
    %v4629 = vunpack.c.l.b16 %v745
    %v4630 = vunpack.c.h.b16 %v745
    %v4631 = vunpack.c.l.b16 %v746
    %v4632 = vunpack.c.h.b16 %v746
    %v4633 = vunpack.c.l.b16 %v747
    %v4634 = vunpack.c.h.b16 %v747
    %v4635 = vunpack.c.l.b16 %v748
    %v4636 = vunpack.c.h.b16 %v748
    %v4637 = vunpack.c.l.b16 %v749
    %v4638 = vunpack.c.h.b16 %v749
    %v4639 = vunpack.c.l.b16 %v750
    %v4640 = vunpack.c.h.b16 %v750
    %v4641 = vunpack.c.l.b16 %v751
    %v4642 = vunpack.c.h.b16 %v751
    %v4643 = vunpack.c.l.b16 %v752
    %v4644 = vunpack.c.h.b16 %v752
    %v4645 = vunpack.c.l.b16 %v753
    %v4646 = vunpack.c.h.b16 %v753
    %v4647 = vunpack.c.l.b16 %v754
    %v4648 = vunpack.c.h.b16 %v754
    %v4649 = vunpack.c.l.b16 %v755
    %v4650 = vunpack.c.h.b16 %v755
    %v4651 = vunpack.c.l.b16 %v756
    %v4652 = vunpack.c.h.b16 %v756
    %v4653 = vunpack.c.l.b16 %v757
    %v4654 = vunpack.c.h.b16 %v757
    %v4655 = vunpack.c.l.b16 %v758
    %v4656 = vunpack.c.h.b16 %v758
    %v4657 = vunpack.c.l.b16 %v759
    %v4658 = vunpack.c.h.b16 %v759
    %v4659 = vunpack.c.l.b16 %v760
    %v4660 = vunpack.c.h.b16 %v760
    %v4661 = vunpack.c.l.b16 %v761
    %v4662 = vunpack.c.h.b16 %v761
    %v4663 = vunpack.c.l.b16 %v762
    %v4664 = vunpack.c.h.b16 %v762
    %v4665 = vunpack.c.l.b16 %v763
    %v4666 = vunpack.c.h.b16 %v763
    %v4667 = vunpack.c.l.b16 %v764
    %v4668 = vunpack.c.h.b16 %v764
    %v4669 = vunpack.c.l.b16 %v765
    %v4670 = vunpack.c.h.b16 %v765
    %v4671 = vunpack.c.l.b16 %v766
    %v4672 = vunpack.c.h.b16 %v766
    %v4673 = vunpack.c.l.b16 %v767
    %v4674 = vunpack.c.h.b16 %v767
    %v4675 = vunpack.c.l.b16 %v768
    %v4676 = vunpack.c.h.b16 %v768
    %v4677 = vunpack.c.l.b16 %v769
    %v4678 = vunpack.c.h.b16 %v769
    %v4679 = vunpack.c.l.b16 %v770
    %v4680 = vunpack.c.h.b16 %v770
    %v4681 = vunpack.c.l.b16 %v771
    %v4682 = vunpack.c.h.b16 %v771
    %v4683 = vunpack.c.l.b16 %v772
    %v4684 = vunpack.c.h.b16 %v772
    %v4685 = vunpack.c.l.b16 %v773
    %v4686 = vunpack.c.h.b16 %v773
    %v4687 = vunpack.c.l.b16 %v774
    %v4688 = vunpack.c.h.b16 %v774
    %v4689 = vunpack.c.l.b16 %v775
    %v4690 = vunpack.c.h.b16 %v775
    %v4691 = vunpack.c.l.b16 %v776
    %v4692 = vunpack.c.h.b16 %v776
    %v4693 = vunpack.c.l.b16 %v777
    %v4694 = vunpack.c.h.b16 %v777
    %v4695 = vunpack.c.l.b16 %v778
    %v4696 = vunpack.c.h.b16 %v778
    %v4697 = vunpack.c.l.b16 %v779
    %v4698 = vunpack.c.h.b16 %v779
    %v4699 = vunpack.c.l.b16 %v780
    %v4700 = vunpack.c.h.b16 %v780
    %v4701 = vunpack.c.l.b16 %v781
    %v4702 = vunpack.c.h.b16 %v781
    %v4703 = vunpack.c.l.b16 %v782
    %v4704 = vunpack.c.h.b16 %v782
    %v4705 = vunpack.c.l.b16 %v783
    %v4706 = vunpack.c.h.b16 %v783
    %v4707 = vunpack.c.l.b16 %v784
    %v4708 = vunpack.c.h.b16 %v784
    %v4709 = vunpack.c.l.b16 %v785
    %v4710 = vunpack.c.h.b16 %v785
    %v4711 = vunpack.c.l.b16 %v786
    %v4712 = vunpack.c.h.b16 %v786
    %v4713 = vunpack.c.l.b16 %v787
    %v4714 = vunpack.c.h.b16 %v787
    %v4715 = vunpack.c.l.b16 %v788
    %v4716 = vunpack.c.h.b16 %v788
    %v4717 = vunpack.c.l.b16 %v789
    %v4718 = vunpack.c.h.b16 %v789
    %v4719 = vunpack.c.l.b16 %v790
    %v4720 = vunpack.c.h.b16 %v790
    %v4721 = vunpack.c.l.b16 %v791
    %v4722 = vunpack.c.h.b16 %v791
    %v4723 = vunpack.c.l.b16 %v792
    %v4724 = vunpack.c.h.b16 %v792
    %v4725 = vunpack.c.l.b16 %v793
    %v4726 = vunpack.c.h.b16 %v793
    %v4727 = vunpack.c.l.b16 %v794
    %v4728 = vunpack.c.h.b16 %v794
    %v4729 = vunpack.c.l.b16 %v795
    %v4730 = vunpack.c.h.b16 %v795
    %v4731 = vunpack.c.l.b16 %v796
    %v4732 = vunpack.c.h.b16 %v796
    %v4733 = vunpack.c.l.b16 %v797
    %v4734 = vunpack.c.h.b16 %v797
    %v4735 = vunpack.c.l.b16 %v798
    %v4736 = vunpack.c.h.b16 %v798
    %v4737 = vunpack.c.l.b16 %v799
    %v4738 = vunpack.c.h.b16 %v799
    %v4739 = vunpack.c.l.b16 %v800
    %v4740 = vunpack.c.h.b16 %v800
    %v4741 = vunpack.c.l.b16 %v801
    %v4742 = vunpack.c.h.b16 %v801
    %v4743 = vunpack.c.l.b16 %v802
    %v4744 = vunpack.c.h.b16 %v802
    %v4745 = vunpack.c.l.b16 %v803
    %v4746 = vunpack.c.h.b16 %v803
    %v4747 = vunpack.c.l.b16 %v804
    %v4748 = vunpack.c.h.b16 %v804
    %v4749 = vunpack.c.l.b16 %v805
    %v4750 = vunpack.c.h.b16 %v805
    %v4751 = vunpack.c.l.b16 %v806
    %v4752 = vunpack.c.h.b16 %v806
    %v4753 = vunpack.c.l.b16 %v807
    %v4754 = vunpack.c.h.b16 %v807
    %v4755 = vunpack.c.l.b16 %v808
    %v4756 = vunpack.c.h.b16 %v808
    %v4757 = vunpack.c.l.b16 %v809
    %v4758 = vunpack.c.h.b16 %v809
    %v4759 = vunpack.c.l.b16 %v810
    %v4760 = vunpack.c.h.b16 %v810
    %v4761 = vunpack.c.l.b16 %v811
    %v4762 = vunpack.c.h.b16 %v811
    %v4763 = vunpack.c.l.b16 %v812
    %v4764 = vunpack.c.h.b16 %v812
    %v4765 = vunpack.c.l.b16 %v813
    %v4766 = vunpack.c.h.b16 %v813
    %v4767 = vunpack.c.l.b16 %v814
    %v4768 = vunpack.c.h.b16 %v814
    %v4769 = vunpack.c.l.b16 %v815
    %v4770 = vunpack.c.h.b16 %v815
    %v4771 = vunpack.c.l.b16 %v816
    %v4772 = vunpack.c.h.b16 %v816
    %v4773 = vunpack.c.l.b16 %v817
    %v4774 = vunpack.c.h.b16 %v817
    %v4775 = vunpack.c.l.b16 %v818
    %v4776 = vunpack.c.h.b16 %v818
    %v4777 = vunpack.c.l.b16 %v819
    %v4778 = vunpack.c.h.b16 %v819
    %v4779 = vunpack.c.l.b16 %v820
    %v4780 = vunpack.c.h.b16 %v820
    %v4781 = vunpack.c.l.b16 %v821
    %v4782 = vunpack.c.h.b16 %v821
    %v4783 = vunpack.c.l.b16 %v822
    %v4784 = vunpack.c.h.b16 %v822
    %v4785 = vunpack.c.l.b16 %v823
    %v4786 = vunpack.c.h.b16 %v823
    %v4787 = vunpack.c.l.b16 %v824
    %v4788 = vunpack.c.h.b16 %v824
    %v4789 = vunpack.c.l.b16 %v825
    %v4790 = vunpack.c.h.b16 %v825
    %v4791 = vunpack.c.l.b16 %v826
    %v4792 = vunpack.c.h.b16 %v826
    %v4793 = vunpack.c.l.b16 %v827
    %v4794 = vunpack.c.h.b16 %v827
    %v4795 = vunpack.c.l.b16 %v828
    %v4796 = vunpack.c.h.b16 %v828
    %v4797 = vunpack.c.l.b16 %v829
    %v4798 = vunpack.c.h.b16 %v829
    %v4799 = vunpack.c.l.b16 %v830
    %v4800 = vunpack.c.h.b16 %v830
    %v4801 = vunpack.c.l.b16 %v831
    %v4802 = vunpack.c.h.b16 %v831
    %v4803 = vunpack.c.l.b16 %v832
    %v4804 = vunpack.c.h.b16 %v832
    %v4805 = vunpack.c.l.b16 %v833
    %v4806 = vunpack.c.h.b16 %v833
    %v4807 = vunpack.c.l.b16 %v834
    %v4808 = vunpack.c.h.b16 %v834
    %v4809 = vunpack.c.l.b16 %v835
    %v4810 = vunpack.c.h.b16 %v835
    %v4811 = vunpack.c.l.b16 %v836
    %v4812 = vunpack.c.h.b16 %v836
    %v4813 = vunpack.c.l.b16 %v837
    %v4814 = vunpack.c.h.b16 %v837
    %v4815 = vunpack.c.l.b16 %v838
    %v4816 = vunpack.c.h.b16 %v838
    %v4817 = vunpack.c.l.b16 %v839
    %v4818 = vunpack.c.h.b16 %v839
    %v4819 = vunpack.c.l.b16 %v840
    %v4820 = vunpack.c.h.b16 %v840
    %v4821 = vunpack.c.l.b16 %v841
    %v4822 = vunpack.c.h.b16 %v841
    %v4823 = vunpack.c.l.b16 %v842
    %v4824 = vunpack.c.h.b16 %v842
    %v4825 = vunpack.c.l.b16 %v843
    %v4826 = vunpack.c.h.b16 %v843
    %v4827 = vunpack.c.l.b16 %v844
    %v4828 = vunpack.c.h.b16 %v844
    %v4829 = vunpack.c.l.b16 %v845
    %v4830 = vunpack.c.h.b16 %v845
    %v4831 = vunpack.c.l.b16 %v846
    %v4832 = vunpack.c.h.b16 %v846
    %v4833 = vunpack.c.l.b16 %v847
    %v4834 = vunpack.c.h.b16 %v847
    %v4835 = vunpack.c.l.b16 %v848
    %v4836 = vunpack.c.h.b16 %v848
    %v4837 = vunpack.c.l.b16 %v849
    %v4838 = vunpack.c.h.b16 %v849
    %v4839 = vunpack.c.l.b16 %v850
    %v4840 = vunpack.c.h.b16 %v850
    %v4841 = vunpack.c.l.b16 %v851
    %v4842 = vunpack.c.h.b16 %v851
    %v4843 = vunpack.c.l.b16 %v852
    %v4844 = vunpack.c.h.b16 %v852
    %v4845 = vunpack.c.l.b16 %v853
    %v4846 = vunpack.c.h.b16 %v853
    %v4847 = vunpack.c.l.b16 %v854
    %v4848 = vunpack.c.h.b16 %v854
    %v4849 = vunpack.c.l.b16 %v855
    %v4850 = vunpack.c.h.b16 %v855
    %v4851 = vunpack.c.l.b16 %v856
    %v4852 = vunpack.c.h.b16 %v856
    %v4853 = vunpack.c.l.b16 %v857
    %v4854 = vunpack.c.h.b16 %v857
    %v4855 = vunpack.c.l.b16 %v858
    %v4856 = vunpack.c.h.b16 %v858
    %v4857 = vunpack.c.l.b16 %v859
    %v4858 = vunpack.c.h.b16 %v859
    %v4859 = vunpack.c.l.b16 %v860
    %v4860 = vunpack.c.h.b16 %v860
    %v4861 = vunpack.c.l.b16 %v861
    %v4862 = vunpack.c.h.b16 %v861
    %v4863 = vunpack.c.l.b16 %v862
    %v4864 = vunpack.c.h.b16 %v862
    %v4865 = vunpack.c.l.b16 %v863
    %v4866 = vunpack.c.h.b16 %v863
    %v4867 = vunpack.c.l.b16 %v864
    %v4868 = vunpack.c.h.b16 %v864
    %v4869 = vunpack.c.l.b16 %v865
    %v4870 = vunpack.c.h.b16 %v865
    %v4871 = vunpack.c.l.b16 %v866
    %v4872 = vunpack.c.h.b16 %v866
    %v4873 = vunpack.c.l.b16 %v867
    %v4874 = vunpack.c.h.b16 %v867
    %v4875 = vunpack.c.l.b16 %v868
    %v4876 = vunpack.c.h.b16 %v868
    %v4877 = vunpack.c.l.b16 %v869
    %v4878 = vunpack.c.h.b16 %v869
    %v4879 = vunpack.c.l.b16 %v870
    %v4880 = vunpack.c.h.b16 %v870
    %v4881 = vunpack.c.l.b16 %v871
    %v4882 = vunpack.c.h.b16 %v871
    %v4883 = vunpack.c.l.b16 %v872
    %v4884 = vunpack.c.h.b16 %v872
    %v4885 = vunpack.c.l.b16 %v873
    %v4886 = vunpack.c.h.b16 %v873
    %v4887 = vunpack.c.l.b16 %v874
    %v4888 = vunpack.c.h.b16 %v874
    %v4889 = vunpack.c.l.b16 %v875
    %v4890 = vunpack.c.h.b16 %v875
    %v4891 = vunpack.c.l.b16 %v876
    %v4892 = vunpack.c.h.b16 %v876
    %v4893 = vunpack.c.l.b16 %v877
    %v4894 = vunpack.c.h.b16 %v877
    %v4895 = vunpack.c.l.b16 %v878
    %v4896 = vunpack.c.h.b16 %v878
    %v4897 = vunpack.c.l.b16 %v879
    %v4898 = vunpack.c.h.b16 %v879
    %v4899 = vunpack.c.l.b16 %v880
    %v4900 = vunpack.c.h.b16 %v880
    %v4901 = vunpack.c.l.b16 %v881
    %v4902 = vunpack.c.h.b16 %v881
    %v4903 = vunpack.c.l.b16 %v882
    %v4904 = vunpack.c.h.b16 %v882
    %v4905 = vunpack.c.l.b16 %v883
    %v4906 = vunpack.c.h.b16 %v883
    %v4907 = vunpack.c.l.b16 %v884
    %v4908 = vunpack.c.h.b16 %v884
    %v4909 = vunpack.c.l.b16 %v885
    %v4910 = vunpack.c.h.b16 %v885
    %v4911 = vunpack.c.l.b16 %v886
    %v4912 = vunpack.c.h.b16 %v886
    %v4913 = vunpack.c.l.b16 %v887
    %v4914 = vunpack.c.h.b16 %v887
    %v4915 = vunpack.c.l.b16 %v888
    %v4916 = vunpack.c.h.b16 %v888
    %v4917 = vunpack.c.l.b16 %v889
    %v4918 = vunpack.c.h.b16 %v889
    %v4919 = vunpack.c.l.b16 %v890
    %v4920 = vunpack.c.h.b16 %v890
    %v4921 = vunpack.c.l.b16 %v891
    %v4922 = vunpack.c.h.b16 %v891
    %v4923 = vunpack.c.l.b16 %v892
    %v4924 = vunpack.c.h.b16 %v892
    %v4925 = vunpack.c.l.b16 %v893
    %v4926 = vunpack.c.h.b16 %v893
    %v4927 = vunpack.c.l.b16 %v894
    %v4928 = vunpack.c.h.b16 %v894
    %v4929 = vunpack.c.l.b16 %v895
    %v4930 = vunpack.c.h.b16 %v895
    %v4931 = vunpack.c.l.b16 %v896
    %v4932 = vunpack.c.h.b16 %v896
    %v4933 = vunpack.c.l.b16 %v897
    %v4934 = vunpack.c.h.b16 %v897
    %v4935 = vunpack.c.l.b16 %v898
    %v4936 = vunpack.c.h.b16 %v898
    %v4937 = vunpack.c.l.b16 %v899
    %v4938 = vunpack.c.h.b16 %v899
    %v4939 = vunpack.c.l.b16 %v900
    %v4940 = vunpack.c.h.b16 %v900
    %v4941 = vunpack.c.l.b16 %v901
    %v4942 = vunpack.c.h.b16 %v901
    %v4943 = vunpack.c.l.b16 %v902
    %v4944 = vunpack.c.h.b16 %v902
    %v4945 = vunpack.c.l.b16 %v903
    %v4946 = vunpack.c.h.b16 %v903
    %v4947 = vunpack.c.l.b16 %v904
    %v4948 = vunpack.c.h.b16 %v904
    %v4949 = vunpack.c.l.b16 %v905
    %v4950 = vunpack.c.h.b16 %v905
    %v4951 = vunpack.c.l.b16 %v906
    %v4952 = vunpack.c.h.b16 %v906
    %v4953 = vunpack.c.l.b16 %v907
    %v4954 = vunpack.c.h.b16 %v907
    %v4955 = vunpack.c.l.b16 %v908
    %v4956 = vunpack.c.h.b16 %v908
    %v4957 = vunpack.c.l.b16 %v909
    %v4958 = vunpack.c.h.b16 %v909
    %v4959 = vunpack.c.l.b16 %v910
    %v4960 = vunpack.c.h.b16 %v910
    %v4961 = vunpack.c.l.b16 %v911
    %v4962 = vunpack.c.h.b16 %v911
    %v4963 = vunpack.c.l.b16 %v912
    %v4964 = vunpack.c.h.b16 %v912
    %v4965 = vunpack.c.l.b16 %v913
    %v4966 = vunpack.c.h.b16 %v913
    %v4967 = vunpack.c.l.b16 %v914
    %v4968 = vunpack.c.h.b16 %v914
    %v4969 = vunpack.c.l.b16 %v915
    %v4970 = vunpack.c.h.b16 %v915
    %v4971 = vunpack.c.l.b16 %v916
    %v4972 = vunpack.c.h.b16 %v916
    %v4973 = vunpack.c.l.b16 %v917
    %v4974 = vunpack.c.h.b16 %v917
    %v4975 = vunpack.c.l.b16 %v918
    %v4976 = vunpack.c.h.b16 %v918
    %v4977 = vunpack.c.l.b16 %v919
    %v4978 = vunpack.c.h.b16 %v919
    %v4979 = vunpack.c.l.b16 %v920
    %v4980 = vunpack.c.h.b16 %v920
    %v4981 = vunpack.c.l.b16 %v921
    %v4982 = vunpack.c.h.b16 %v921
    %v4983 = vunpack.c.l.b16 %v922
    %v4984 = vunpack.c.h.b16 %v922
    %v4985 = vunpack.c.l.b16 %v923
    %v4986 = vunpack.c.h.b16 %v923
    %v4987 = vunpack.c.l.b16 %v924
    %v4988 = vunpack.c.h.b16 %v924
    %v4989 = vunpack.c.l.b16 %v925
    %v4990 = vunpack.c.h.b16 %v925
    %v4991 = vunpack.c.l.b16 %v926
    %v4992 = vunpack.c.h.b16 %v926
    %v4993 = vunpack.c.l.b16 %v927
    %v4994 = vunpack.c.h.b16 %v927
    %v4995 = vunpack.c.l.b16 %v928
    %v4996 = vunpack.c.h.b16 %v928
    %v4997 = vunpack.c.l.b16 %v929
    %v4998 = vunpack.c.h.b16 %v929
    %v4999 = vunpack.c.l.b16 %v930
    %v5000 = vunpack.c.h.b16 %v930
    %v5001 = vunpack.c.l.b16 %v931
    %v5002 = vunpack.c.h.b16 %v931
    %v5003 = vunpack.c.l.b16 %v932
    %v5004 = vunpack.c.h.b16 %v932
    %v5005 = vunpack.c.l.b16 %v933
    %v5006 = vunpack.c.h.b16 %v933
    %v5007 = vunpack.c.l.b16 %v934
    %v5008 = vunpack.c.h.b16 %v934
    %v5009 = vunpack.c.l.b16 %v935
    %v5010 = vunpack.c.h.b16 %v935
    %v5011 = vunpack.c.l.b16 %v936
    %v5012 = vunpack.c.h.b16 %v936
    %v5013 = vunpack.c.l.b16 %v937
    %v5014 = vunpack.c.h.b16 %v937
    %v5015 = vunpack.c.l.b16 %v938
    %v5016 = vunpack.c.h.b16 %v938
    %v5017 = vunpack.c.l.b16 %v939
    %v5018 = vunpack.c.h.b16 %v939
    %v5019 = vunpack.c.l.b16 %v940
    %v5020 = vunpack.c.h.b16 %v940
    %v5021 = vunpack.c.l.b16 %v941
    %v5022 = vunpack.c.h.b16 %v941
    %v5023 = vunpack.c.l.b16 %v942
    %v5024 = vunpack.c.h.b16 %v942
    %v5025 = vunpack.c.l.b16 %v943
    %v5026 = vunpack.c.h.b16 %v943
    %v5027 = vunpack.c.l.b16 %v944
    %v5028 = vunpack.c.h.b16 %v944
    %v5029 = vunpack.c.l.b16 %v945
    %v5030 = vunpack.c.h.b16 %v945
    %v5031 = vunpack.c.l.b16 %v946
    %v5032 = vunpack.c.h.b16 %v946
    %v5033 = vunpack.c.l.b16 %v947
    %v5034 = vunpack.c.h.b16 %v947
    %v5035 = vunpack.c.l.b16 %v948
    %v5036 = vunpack.c.h.b16 %v948
    %v5037 = vunpack.c.l.b16 %v949
    %v5038 = vunpack.c.h.b16 %v949
    %v5039 = vunpack.c.l.b16 %v950
    %v5040 = vunpack.c.h.b16 %v950
    %v5041 = vunpack.c.l.b16 %v951
    %v5042 = vunpack.c.h.b16 %v951
    %v5043 = vunpack.c.l.b16 %v952
    %v5044 = vunpack.c.h.b16 %v952
    %v5045 = vunpack.c.l.b16 %v953
    %v5046 = vunpack.c.h.b16 %v953
    %v5047 = vunpack.c.l.b16 %v954
    %v5048 = vunpack.c.h.b16 %v954
    %v5049 = vunpack.c.l.b16 %v955
    %v5050 = vunpack.c.h.b16 %v955
    %v5051 = vunpack.c.l.b16 %v956
    %v5052 = vunpack.c.h.b16 %v956
    %v5053 = vunpack.c.l.b16 %v957
    %v5054 = vunpack.c.h.b16 %v957
    %v5055 = vunpack.c.l.b16 %v958
    %v5056 = vunpack.c.h.b16 %v958
    %v5057 = vunpack.c.l.b16 %v959
    %v5058 = vunpack.c.h.b16 %v959
    %v5059 = vunpack.c.l.b16 %v960
    %v5060 = vunpack.c.h.b16 %v960
    %v5061 = vunpack.c.l.b16 %v961
    %v5062 = vunpack.c.h.b16 %v961
    %v5063 = vunpack.c.l.b16 %v962
    %v5064 = vunpack.c.h.b16 %v962
    %v5065 = vunpack.c.l.b16 %v963
    %v5066 = vunpack.c.h.b16 %v963
    %v5067 = vunpack.c.l.b16 %v964
    %v5068 = vunpack.c.h.b16 %v964
    %v5069 = vunpack.c.l.b16 %v965
    %v5070 = vunpack.c.h.b16 %v965
    %v5071 = vunpack.c.l.b16 %v966
    %v5072 = vunpack.c.h.b16 %v966
    %v5073 = vunpack.c.l.b16 %v967
    %v5074 = vunpack.c.h.b16 %v967
    %v5075 = vunpack.c.l.b16 %v968
    %v5076 = vunpack.c.h.b16 %v968
    %v5077 = vunpack.c.l.b16 %v969
    %v5078 = vunpack.c.h.b16 %v969
    %v5079 = vunpack.c.l.b16 %v970
    %v5080 = vunpack.c.h.b16 %v970
    %v5081 = vunpack.c.l.b16 %v971
    %v5082 = vunpack.c.h.b16 %v971
    %v5083 = vunpack.c.l.b16 %v972
    %v5084 = vunpack.c.h.b16 %v972
    %v5085 = vunpack.c.l.b16 %v973
    %v5086 = vunpack.c.h.b16 %v973
    %v5087 = vunpack.c.l.b16 %v974
    %v5088 = vunpack.c.h.b16 %v974
    %v5089 = vunpack.c.l.b16 %v975
    %v5090 = vunpack.c.h.b16 %v975
    %v5091 = vunpack.c.l.b16 %v976
    %v5092 = vunpack.c.h.b16 %v976
    %v5093 = vunpack.c.l.b16 %v977
    %v5094 = vunpack.c.h.b16 %v977
    %v5095 = vunpack.c.l.b16 %v978
    %v5096 = vunpack.c.h.b16 %v978
    %v5097 = vunpack.c.l.b16 %v979
    %v5098 = vunpack.c.h.b16 %v979
    %v5099 = vunpack.c.l.b16 %v980
    %v5100 = vunpack.c.h.b16 %v980
    %v5101 = vunpack.c.l.b16 %v981
    %v5102 = vunpack.c.h.b16 %v981
    %v5103 = vunpack.c.l.b16 %v982
    %v5104 = vunpack.c.h.b16 %v982
    %v5105 = vunpack.c.l.b16 %v983
    %v5106 = vunpack.c.h.b16 %v983
    %v5107 = vunpack.c.l.b16 %v984
    %v5108 = vunpack.c.h.b16 %v984
    %v5109 = vunpack.c.l.b16 %v985
    %v5110 = vunpack.c.h.b16 %v985
    %v5111 = vunpack.c.l.b16 %v986
    %v5112 = vunpack.c.h.b16 %v986
    %v5113 = vunpack.c.l.b16 %v987
    %v5114 = vunpack.c.h.b16 %v987
    %v5115 = vunpack.c.l.b16 %v988
    %v5116 = vunpack.c.h.b16 %v988
    %v5117 = vunpack.c.l.b16 %v989
    %v5118 = vunpack.c.h.b16 %v989
    %v5119 = vunpack.c.l.b16 %v990
    %v5120 = vunpack.c.h.b16 %v990
    %v5121 = vunpack.c.l.b16 %v991
    %v5122 = vunpack.c.h.b16 %v991
    %v5123 = vunpack.c.l.b16 %v992
    %v5124 = vunpack.c.h.b16 %v992
    %v5125 = vunpack.c.l.b16 %v993
    %v5126 = vunpack.c.h.b16 %v993
    %v5127 = vunpack.c.l.b16 %v994
    %v5128 = vunpack.c.h.b16 %v994
    %v5129 = vunpack.c.l.b16 %v995
    %v5130 = vunpack.c.h.b16 %v995
    %v5131 = vunpack.c.l.b16 %v996
    %v5132 = vunpack.c.h.b16 %v996
    %v5133 = vunpack.c.l.b16 %v997
    %v5134 = vunpack.c.h.b16 %v997
    %v5135 = vunpack.c.l.b16 %v998
    %v5136 = vunpack.c.h.b16 %v998
    %v5137 = vunpack.c.l.b16 %v999
    %v5138 = vunpack.c.h.b16 %v999
    %v5139 = vunpack.c.l.b16 %v1000
    %v5140 = vunpack.c.h.b16 %v1000
    %v5141 = vunpack.c.l.b16 %v1001
    %v5142 = vunpack.c.h.b16 %v1001
    %v5143 = vunpack.c.l.b16 %v1002
    %v5144 = vunpack.c.h.b16 %v1002
    %v5145 = vunpack.c.l.b16 %v1003
    %v5146 = vunpack.c.h.b16 %v1003
    %v5147 = vunpack.c.l.b16 %v1004
    %v5148 = vunpack.c.h.b16 %v1004
    %v5149 = vunpack.c.l.b16 %v1005
    %v5150 = vunpack.c.h.b16 %v1005
    %v5151 = vunpack.c.l.b16 %v1006
    %v5152 = vunpack.c.h.b16 %v1006
    %v5153 = vunpack.c.l.b16 %v1007
    %v5154 = vunpack.c.h.b16 %v1007
    %v5155 = vunpack.c.l.b16 %v1008
    %v5156 = vunpack.c.h.b16 %v1008
    %v5157 = vunpack.c.l.b16 %v1009
    %v5158 = vunpack.c.h.b16 %v1009
    %v5159 = vunpack.c.l.b16 %v1010
    %v5160 = vunpack.c.h.b16 %v1010
    %v5161 = vunpack.c.l.b16 %v1011
    %v5162 = vunpack.c.h.b16 %v1011
    %v5163 = vunpack.c.l.b16 %v1012
    %v5164 = vunpack.c.h.b16 %v1012
    %v5165 = vunpack.c.l.b16 %v1013
    %v5166 = vunpack.c.h.b16 %v1013
    %v5167 = vunpack.c.l.b16 %v1014
    %v5168 = vunpack.c.h.b16 %v1014
    %v5169 = vunpack.c.l.b16 %v1015
    %v5170 = vunpack.c.h.b16 %v1015
    %v5171 = vunpack.c.l.b16 %v1016
    %v5172 = vunpack.c.h.b16 %v1016
    %v5173 = vunpack.c.l.b16 %v1017
    %v5174 = vunpack.c.h.b16 %v1017
    %v5175 = vunpack.c.l.b16 %v1018
    %v5176 = vunpack.c.h.b16 %v1018
    %v5177 = vunpack.c.l.b16 %v1019
    %v5178 = vunpack.c.h.b16 %v1019
    %v5179 = vunpack.c.l.b16 %v1020
    %v5180 = vunpack.c.h.b16 %v1020
    %v5181 = vunpack.c.l.b16 %v1021
    %v5182 = vunpack.c.h.b16 %v1021
    %v5183 = vunpack.c.l.b16 %v1022
    %v5184 = vunpack.c.h.b16 %v1022
    %v5185 = vunpack.c.l.b16 %v1023
    %v5186 = vunpack.c.h.b16 %v1023
    %v5187 = vunpack.c.l.b16 %v1024
    %v5188 = vunpack.c.h.b16 %v1024
    %v5189 = vunpack.c.l.b16 %v1025
    %v5190 = vunpack.c.h.b16 %v1025
    %v5191 = vunpack.c.l.b16 %v1026
    %v5192 = vunpack.c.h.b16 %v1026
    %v5193 = vunpack.c.l.b16 %v1027
    %v5194 = vunpack.c.h.b16 %v1027
    %v5195 = vunpack.c.l.b16 %v1028
    %v5196 = vunpack.c.h.b16 %v1028
    %v5197 = vunpack.c.l.b16 %v1029
    %v5198 = vunpack.c.h.b16 %v1029
    %v5199 = vunpack.c.l.b16 %v1030
    %v5200 = vunpack.c.h.b16 %v1030
    %v5201 = vunpack.c.l.b16 %v1031
    %v5202 = vunpack.c.h.b16 %v1031
    %v5203 = vunpack.c.l.b16 %v1032
    %v5204 = vunpack.c.h.b16 %v1032
    %v5205 = vunpack.c.l.b16 %v1033
    %v5206 = vunpack.c.h.b16 %v1033
    %v5207 = vunpack.c.l.b16 %v1034
    %v5208 = vunpack.c.h.b16 %v1034
    %v5209 = vunpack.c.l.b16 %v1035
    %v5210 = vunpack.c.h.b16 %v1035
    %v5211 = vunpack.c.l.b16 %v1036
    %v5212 = vunpack.c.h.b16 %v1036
    %v5213 = vunpack.c.l.b16 %v1037
    %v5214 = vunpack.c.h.b16 %v1037
    %v5215 = vunpack.c.l.b16 %v1038
    %v5216 = vunpack.c.h.b16 %v1038
    %v5217 = vunpack.c.l.b16 %v1039
    %v5218 = vunpack.c.h.b16 %v1039
    %v5219 = vunpack.c.l.b16 %v1040
    %v5220 = vunpack.c.h.b16 %v1040
    %v5221 = vunpack.c.l.b16 %v1041
    %v5222 = vunpack.c.h.b16 %v1041
    %v5223 = vunpack.c.l.b16 %v1042
    %v5224 = vunpack.c.h.b16 %v1042
    %v5225 = vunpack.c.l.b16 %v1043
    %v5226 = vunpack.c.h.b16 %v1043
    %v5227 = vunpack.c.l.b16 %v1044
    %v5228 = vunpack.c.h.b16 %v1044
    %v5229 = vunpack.c.l.b16 %v1045
    %v5230 = vunpack.c.h.b16 %v1045
    %v5231 = vunpack.c.l.b16 %v1046
    %v5232 = vunpack.c.h.b16 %v1046
    %v5233 = vunpack.c.l.b16 %v1047
    %v5234 = vunpack.c.h.b16 %v1047
    %v5235 = vunpack.c.l.b16 %v1048
    %v5236 = vunpack.c.h.b16 %v1048
    %v5237 = vunpack.c.l.b16 %v1049
    %v5238 = vunpack.c.h.b16 %v1049
    %v5239 = vunpack.c.l.b16 %v1050
    %v5240 = vunpack.c.h.b16 %v1050
    %v5241 = vunpack.c.l.b16 %v1051
    %v5242 = vunpack.c.h.b16 %v1051
    %v5243 = vunpack.c.l.b16 %v1052
    %v5244 = vunpack.c.h.b16 %v1052
    %v5245 = vunpack.c.l.b16 %v1053
    %v5246 = vunpack.c.h.b16 %v1053
    %v5247 = vunpack.c.l.b16 %v1054
    %v5248 = vunpack.c.h.b16 %v1054
    %v5249 = vunpack.c.l.b16 %v1055
    %v5250 = vunpack.c.h.b16 %v1055
    %v5251 = vunpack.c.l.b16 %v1056
    %v5252 = vunpack.c.h.b16 %v1056
    %v5253 = vunpack.c.l.b16 %v1057
    %v5254 = vunpack.c.h.b16 %v1057
    %v5255 = vunpack.c.l.b16 %v1058
    %v5256 = vunpack.c.h.b16 %v1058
    %v5257 = vunpack.c.l.b16 %v1059
    %v5258 = vunpack.c.h.b16 %v1059
    %v5259 = vunpack.c.l.b16 %v1060
    %v5260 = vunpack.c.h.b16 %v1060
    %v5261 = vunpack.c.l.b16 %v1061
    %v5262 = vunpack.c.h.b16 %v1061
    %v5263 = vunpack.c.l.b16 %v1062
    %v5264 = vunpack.c.h.b16 %v1062
    %v5265 = vunpack.c.l.b16 %v1063
    %v5266 = vunpack.c.h.b16 %v1063
    %v5267 = vunpack.c.l.b16 %v1064
    %v5268 = vunpack.c.h.b16 %v1064
    %v5269 = vunpack.c.l.b16 %v1065
    %v5270 = vunpack.c.h.b16 %v1065
    %v5271 = vunpack.c.l.b16 %v1066
    %v5272 = vunpack.c.h.b16 %v1066
    %v5273 = vunpack.c.l.b16 %v1067
    %v5274 = vunpack.c.h.b16 %v1067
    %v5275 = vunpack.c.l.b16 %v1068
    %v5276 = vunpack.c.h.b16 %v1068
    %v5277 = vunpack.c.l.b16 %v1069
    %v5278 = vunpack.c.h.b16 %v1069
    %v5279 = vunpack.c.l.b16 %v1070
    %v5280 = vunpack.c.h.b16 %v1070
    %v5281 = vunpack.c.l.b16 %v1071
    %v5282 = vunpack.c.h.b16 %v1071
    %v5283 = vunpack.c.l.b16 %v1072
    %v5284 = vunpack.c.h.b16 %v1072
    %v5285 = vunpack.c.l.b16 %v1073
    %v5286 = vunpack.c.h.b16 %v1073
    %v5287 = vunpack.c.l.b16 %v1074
    %v5288 = vunpack.c.h.b16 %v1074
    %v5289 = vunpack.c.l.b16 %v1075
    %v5290 = vunpack.c.h.b16 %v1075
    %v5291 = vunpack.c.l.b16 %v1076
    %v5292 = vunpack.c.h.b16 %v1076
    %v5293 = vunpack.c.l.b16 %v1077
    %v5294 = vunpack.c.h.b16 %v1077
    %v5295 = vunpack.c.l.b16 %v1078
    %v5296 = vunpack.c.h.b16 %v1078
    %v5297 = vunpack.c.l.b16 %v1079
    %v5298 = vunpack.c.h.b16 %v1079
    %v5299 = vunpack.c.l.b16 %v1080
    %v5300 = vunpack.c.h.b16 %v1080
    %v5301 = vunpack.c.l.b16 %v1081
    %v5302 = vunpack.c.h.b16 %v1081
    %v5303 = vunpack.c.l.b16 %v1082
    %v5304 = vunpack.c.h.b16 %v1082
    %v5305 = vunpack.c.l.b16 %v1083
    %v5306 = vunpack.c.h.b16 %v1083
    %v5307 = vunpack.c.l.b16 %v1084
    %v5308 = vunpack.c.h.b16 %v1084
    %v5309 = vunpack.c.l.b16 %v1085
    %v5310 = vunpack.c.h.b16 %v1085
    %v5311 = vunpack.c.l.b16 %v1086
    %v5312 = vunpack.c.h.b16 %v1086
    %v5313 = vunpack.c.l.b16 %v1087
    %v5314 = vunpack.c.h.b16 %v1087
    %v5315 = vunpack.c.l.b16 %v1088
    %v5316 = vunpack.c.h.b16 %v1088
    %v5317 = vunpack.c.l.b16 %v1089
    %v5318 = vunpack.c.h.b16 %v1089
    %v5319 = vunpack.c.l.b16 %v1090
    %v5320 = vunpack.c.h.b16 %v1090
    %v5321 = vunpack.c.l.b16 %v1091
    %v5322 = vunpack.c.h.b16 %v1091
    %v5323 = vunpack.c.l.b16 %v1092
    %v5324 = vunpack.c.h.b16 %v1092
    %v5325 = vunpack.c.l.b16 %v1093
    %v5326 = vunpack.c.h.b16 %v1093
    %v5327 = vunpack.c.l.b16 %v1094
    %v5328 = vunpack.c.h.b16 %v1094
    %v5329 = vunpack.c.l.b16 %v1095
    %v5330 = vunpack.c.h.b16 %v1095
    %v5331 = vunpack.c.l.b16 %v1096
    %v5332 = vunpack.c.h.b16 %v1096
    %v5333 = vunpack.c.l.b16 %v1097
    %v5334 = vunpack.c.h.b16 %v1097
    %v5335 = vunpack.c.l.b16 %v1098
    %v5336 = vunpack.c.h.b16 %v1098
    %v5337 = vunpack.c.l.b16 %v1099
    %v5338 = vunpack.c.h.b16 %v1099
    %v5339 = vunpack.c.l.b16 %v1100
    %v5340 = vunpack.c.h.b16 %v1100
    %v5341 = vunpack.c.l.b16 %v1101
    %v5342 = vunpack.c.h.b16 %v1101
    %v5343 = vunpack.c.l.b16 %v1102
    %v5344 = vunpack.c.h.b16 %v1102
    %v5345 = vunpack.c.l.b16 %v1103
    %v5346 = vunpack.c.h.b16 %v1103
    %v5347 = vunpack.c.l.b16 %v1104
    %v5348 = vunpack.c.h.b16 %v1104
    %v5349 = vunpack.c.l.b16 %v1105
    %v5350 = vunpack.c.h.b16 %v1105
    %v5351 = vunpack.c.l.b16 %v1106
    %v5352 = vunpack.c.h.b16 %v1106
    %v5353 = vunpack.c.l.b16 %v1107
    %v5354 = vunpack.c.h.b16 %v1107
    %v5355 = vunpack.c.l.b16 %v1108
    %v5356 = vunpack.c.h.b16 %v1108
    %v5357 = vunpack.c.l.b16 %v1109
    %v5358 = vunpack.c.h.b16 %v1109
    %v5359 = vunpack.c.l.b16 %v1110
    %v5360 = vunpack.c.h.b16 %v1110
    %v5361 = vunpack.c.l.b16 %v1111
    %v5362 = vunpack.c.h.b16 %v1111
    %v5363 = vunpack.c.l.b16 %v1112
    %v5364 = vunpack.c.h.b16 %v1112
    %v5365 = vunpack.c.l.b16 %v1113
    %v5366 = vunpack.c.h.b16 %v1113
    %v5367 = vunpack.c.l.b16 %v1114
    %v5368 = vunpack.c.h.b16 %v1114
    %v5369 = vunpack.c.l.b16 %v1115
    %v5370 = vunpack.c.h.b16 %v1115
    %v5371 = vunpack.c.l.b16 %v1116
    %v5372 = vunpack.c.h.b16 %v1116
    %v5373 = vunpack.c.l.b16 %v1117
    %v5374 = vunpack.c.h.b16 %v1117
    %v5375 = vunpack.c.l.b16 %v1118
    %v5376 = vunpack.c.h.b16 %v1118
    %v5377 = vunpack.c.l.b16 %v1119
    %v5378 = vunpack.c.h.b16 %v1119
    %v5379 = vunpack.c.l.b16 %v1120
    %v5380 = vunpack.c.h.b16 %v1120
    %v5381 = vunpack.c.l.b16 %v1121
    %v5382 = vunpack.c.h.b16 %v1121
    %v5383 = vunpack.c.l.b16 %v1122
    %v5384 = vunpack.c.h.b16 %v1122
    %v5385 = vunpack.c.l.b16 %v1123
    %v5386 = vunpack.c.h.b16 %v1123
    %v5387 = vunpack.c.l.b16 %v1124
    %v5388 = vunpack.c.h.b16 %v1124
    %v5389 = vunpack.c.l.b16 %v1125
    %v5390 = vunpack.c.h.b16 %v1125
    %v5391 = vunpack.c.l.b16 %v1126
    %v5392 = vunpack.c.h.b16 %v1126
    %v5393 = vunpack.c.l.b16 %v1127
    %v5394 = vunpack.c.h.b16 %v1127
    %v5395 = vunpack.c.l.b16 %v1128
    %v5396 = vunpack.c.h.b16 %v1128
    %v5397 = vunpack.c.l.b16 %v1129
    %v5398 = vunpack.c.h.b16 %v1129
    %v5399 = vunpack.c.l.b16 %v1130
    %v5400 = vunpack.c.h.b16 %v1130
    %v5401 = vunpack.c.l.b16 %v1131
    %v5402 = vunpack.c.h.b16 %v1131
    %v5403 = vunpack.c.l.b16 %v1132
    %v5404 = vunpack.c.h.b16 %v1132
    %v5405 = vunpack.c.l.b16 %v1133
    %v5406 = vunpack.c.h.b16 %v1133
    %v5407 = vunpack.c.l.b16 %v1134
    %v5408 = vunpack.c.h.b16 %v1134
    %v5409 = vunpack.c.l.b16 %v1135
    %v5410 = vunpack.c.h.b16 %v1135
    %v5411 = vunpack.c.l.b16 %v1136
    %v5412 = vunpack.c.h.b16 %v1136
    %v5413 = vunpack.c.l.b16 %v1137
    %v5414 = vunpack.c.h.b16 %v1137
    %v5415 = vunpack.c.l.b16 %v1138
    %v5416 = vunpack.c.h.b16 %v1138
    %v5417 = vunpack.c.l.b16 %v1139
    %v5418 = vunpack.c.h.b16 %v1139
    %v5419 = vunpack.c.l.b16 %v1140
    %v5420 = vunpack.c.h.b16 %v1140
    %v5421 = vunpack.c.l.b16 %v1141
    %v5422 = vunpack.c.h.b16 %v1141
    %v5423 = vunpack.c.l.b16 %v1142
    %v5424 = vunpack.c.h.b16 %v1142
    %v5425 = vunpack.c.l.b16 %v1143
    %v5426 = vunpack.c.h.b16 %v1143
    %v5427 = vunpack.c.l.b16 %v1144
    %v5428 = vunpack.c.h.b16 %v1144
    %v5429 = vunpack.c.l.b16 %v1145
    %v5430 = vunpack.c.h.b16 %v1145
    %v5431 = vunpack.c.l.b16 %v1146
    %v5432 = vunpack.c.h.b16 %v1146
    %v5433 = vunpack.c.l.b16 %v1147
    %v5434 = vunpack.c.h.b16 %v1147
    %v5435 = vunpack.c.l.b16 %v1148
    %v5436 = vunpack.c.h.b16 %v1148
    %v5437 = vunpack.c.l.b16 %v1149
    %v5438 = vunpack.c.h.b16 %v1149
    %v5439 = vunpack.c.l.b16 %v1150
    %v5440 = vunpack.c.h.b16 %v1150
    %v5441 = vunpack.c.l.b16 %v1151
    %v5442 = vunpack.c.h.b16 %v1151
    %v5443 = vunpack.c.l.b16 %v1152
    %v5444 = vunpack.c.h.b16 %v1152
    %v5445 = vunpack.c.l.b16 %v1153
    %v5446 = vunpack.c.h.b16 %v1153
    %v5447 = vunpack.c.l.b16 %v1154
    %v5448 = vunpack.c.h.b16 %v1154
    %v5449 = vunpack.c.l.b16 %v1155
    %v5450 = vunpack.c.h.b16 %v1155
    %v5451 = vunpack.c.l.b16 %v1156
    %v5452 = vunpack.c.h.b16 %v1156
    %v5453 = vunpack.c.l.b16 %v1157
    %v5454 = vunpack.c.h.b16 %v1157
    %v5455 = vunpack.c.l.b16 %v1158
    %v5456 = vunpack.c.h.b16 %v1158
    %v5457 = vunpack.c.l.b16 %v1159
    %v5458 = vunpack.c.h.b16 %v1159
    %v5459 = vunpack.c.l.b16 %v1160
    %v5460 = vunpack.c.h.b16 %v1160
    %v5461 = vunpack.c.l.b16 %v1161
    %v5462 = vunpack.c.h.b16 %v1161
    %v5463 = vunpack.c.l.b16 %v1162
    %v5464 = vunpack.c.h.b16 %v1162
    %v5465 = vunpack.c.l.b16 %v1163
    %v5466 = vunpack.c.h.b16 %v1163
    %v5467 = vunpack.c.l.b16 %v1164
    %v5468 = vunpack.c.h.b16 %v1164
    %v5469 = vunpack.c.l.b16 %v1165
    %v5470 = vunpack.c.h.b16 %v1165
    %v5471 = vunpack.c.l.b16 %v1166
    %v5472 = vunpack.c.h.b16 %v1166
    %v5473 = vunpack.c.l.b16 %v1167
    %v5474 = vunpack.c.h.b16 %v1167
    %v5475 = vunpack.c.l.b16 %v1168
    %v5476 = vunpack.c.h.b16 %v1168
    %v5477 = vunpack.c.l.b16 %v1169
    %v5478 = vunpack.c.h.b16 %v1169
    %v5479 = vunpack.c.l.b16 %v1170
    %v5480 = vunpack.c.h.b16 %v1170
    %v5481 = vunpack.c.l.b16 %v1171
    %v5482 = vunpack.c.h.b16 %v1171
    %v5483 = vunpack.c.l.b16 %v1172
    %v5484 = vunpack.c.h.b16 %v1172
    %v5485 = vunpack.c.l.b16 %v1173
    %v5486 = vunpack.c.h.b16 %v1173
    %v5487 = vunpack.c.l.b16 %v1174
    %v5488 = vunpack.c.h.b16 %v1174
    %v5489 = vunpack.c.l.b16 %v1175
    %v5490 = vunpack.c.h.b16 %v1175
    %v5491 = vunpack.c.l.b16 %v1176
    %v5492 = vunpack.c.h.b16 %v1176
    %v5493 = vunpack.c.l.b16 %v1177
    %v5494 = vunpack.c.h.b16 %v1177
    %v5495 = vunpack.c.l.b16 %v1178
    %v5496 = vunpack.c.h.b16 %v1178
    %v5497 = vunpack.c.l.b16 %v1179
    %v5498 = vunpack.c.h.b16 %v1179
    %v5499 = vunpack.c.l.b16 %v1180
    %v5500 = vunpack.c.h.b16 %v1180
    %v5501 = vunpack.c.l.b16 %v1181
    %v5502 = vunpack.c.h.b16 %v1181
    %v5503 = vunpack.c.l.b16 %v1182
    %v5504 = vunpack.c.h.b16 %v1182
    %v5505 = vunpack.c.l.b16 %v1183
    %v5506 = vunpack.c.h.b16 %v1183
    %v5507 = vunpack.c.l.b16 %v1184
    %v5508 = vunpack.c.h.b16 %v1184
    %v5509 = vunpack.c.l.b16 %v1185
    %v5510 = vunpack.c.h.b16 %v1185
    %v5511 = vunpack.c.l.b16 %v1186
    %v5512 = vunpack.c.h.b16 %v1186
    %v5513 = vunpack.c.l.b16 %v1187
    %v5514 = vunpack.c.h.b16 %v1187
    %v5515 = vunpack.c.l.b16 %v1188
    %v5516 = vunpack.c.h.b16 %v1188
    %v5517 = vunpack.c.l.b16 %v1189
    %v5518 = vunpack.c.h.b16 %v1189
    %v5519 = vunpack.c.l.b16 %v1190
    %v5520 = vunpack.c.h.b16 %v1190
    %v5521 = vunpack.c.l.b16 %v1191
    %v5522 = vunpack.c.h.b16 %v1191
    %v5523 = vunpack.c.l.b16 %v1192
    %v5524 = vunpack.c.h.b16 %v1192
    %v5525 = vunpack.c.l.b16 %v1193
    %v5526 = vunpack.c.h.b16 %v1193
    %v5527 = vunpack.c.l.b16 %v1194
    %v5528 = vunpack.c.h.b16 %v1194
    %v5529 = vunpack.c.l.b16 %v1195
    %v5530 = vunpack.c.h.b16 %v1195
    %v5531 = vunpack.c.l.b16 %v1196
    %v5532 = vunpack.c.h.b16 %v1196
    %v5533 = vunpack.c.l.b16 %v1197
    %v5534 = vunpack.c.h.b16 %v1197
    %v5535 = vunpack.c.l.b16 %v1198
    %v5536 = vunpack.c.h.b16 %v1198
    %v5537 = vunpack.c.l.b16 %v1199
    %v5538 = vunpack.c.h.b16 %v1199
    %v5539 = vunpack.c.l.b16 %v1200
    %v5540 = vunpack.c.h.b16 %v1200
    %v5541 = vunpack.c.l.b16 %v1201
    %v5542 = vunpack.c.h.b16 %v1201
    %v5543 = vunpack.c.l.b16 %v1202
    %v5544 = vunpack.c.h.b16 %v1202
    %v5545 = vunpack.c.l.b16 %v1203
    %v5546 = vunpack.c.h.b16 %v1203
    %v5547 = vunpack.c.l.b16 %v1204
    %v5548 = vunpack.c.h.b16 %v1204
    %v5549 = vunpack.c.l.b16 %v1205
    %v5550 = vunpack.c.h.b16 %v1205
    %v5551 = vunpack.c.l.b16 %v1206
    %v5552 = vunpack.c.h.b16 %v1206
    %v5553 = vunpack.c.l.b16 %v1207
    %v5554 = vunpack.c.h.b16 %v1207
    %v5555 = vunpack.c.l.b16 %v1208
    %v5556 = vunpack.c.h.b16 %v1208
    %v5557 = vunpack.c.l.b16 %v1209
    %v5558 = vunpack.c.h.b16 %v1209
    %v5559 = vunpack.c.l.b16 %v1210
    %v5560 = vunpack.c.h.b16 %v1210
    %v5561 = vunpack.c.l.b16 %v1211
    %v5562 = vunpack.c.h.b16 %v1211
    %v5563 = vunpack.c.l.b16 %v1212
    %v5564 = vunpack.c.h.b16 %v1212
    %v5565 = vunpack.c.l.b16 %v1213
    %v5566 = vunpack.c.h.b16 %v1213
    %v5567 = vunpack.c.l.b16 %v1214
    %v5568 = vunpack.c.h.b16 %v1214
    %v5569 = vunpack.c.l.b16 %v1215
    %v5570 = vunpack.c.h.b16 %v1215
    %v5571 = vunpack.c.l.b16 %v1216
    %v5572 = vunpack.c.h.b16 %v1216
    %v5573 = vunpack.c.l.b16 %v1217
    %v5574 = vunpack.c.h.b16 %v1217
    %v5575 = vunpack.c.l.b16 %v1218
    %v5576 = vunpack.c.h.b16 %v1218
    %v5577 = vunpack.c.l.b16 %v1219
    %v5578 = vunpack.c.h.b16 %v1219
    %v5579 = vunpack.c.l.b16 %v1220
    %v5580 = vunpack.c.h.b16 %v1220
    %v5581 = vunpack.c.l.b16 %v1221
    %v5582 = vunpack.c.h.b16 %v1221
    %v5583 = vunpack.c.l.b16 %v1222
    %v5584 = vunpack.c.h.b16 %v1222
    %v5585 = vunpack.c.l.b16 %v1223
    %v5586 = vunpack.c.h.b16 %v1223
    %v5587 = vunpack.c.l.b16 %v1224
    %v5588 = vunpack.c.h.b16 %v1224
    %v5589 = vunpack.c.l.b16 %v1225
    %v5590 = vunpack.c.h.b16 %v1225
    %v5591 = vunpack.c.l.b16 %v1226
    %v5592 = vunpack.c.h.b16 %v1226
    %v5593 = vunpack.c.l.b16 %v1227
    %v5594 = vunpack.c.h.b16 %v1227
    %v5595 = vunpack.c.l.b16 %v1228
    %v5596 = vunpack.c.h.b16 %v1228
    %v5597 = vunpack.c.l.b16 %v1229
    %v5598 = vunpack.c.h.b16 %v1229
    %v5599 = vunpack.c.l.b16 %v1230
    %v5600 = vunpack.c.h.b16 %v1230
    %v5601 = vunpack.c.l.b16 %v1231
    %v5602 = vunpack.c.h.b16 %v1231
    %v5603 = vunpack.c.l.b16 %v1232
    %v5604 = vunpack.c.h.b16 %v1232
    %v5605 = vunpack.c.l.b16 %v1233
    %v5606 = vunpack.c.h.b16 %v1233
    %v5607 = vunpack.c.l.b16 %v1234
    %v5608 = vunpack.c.h.b16 %v1234
    %v5609 = vunpack.c.l.b16 %v1235
    %v5610 = vunpack.c.h.b16 %v1235
    %v5611 = vunpack.c.l.b16 %v1236
    %v5612 = vunpack.c.h.b16 %v1236
    %v5613 = vunpack.c.l.b16 %v1237
    %v5614 = vunpack.c.h.b16 %v1237
    %v5615 = vunpack.c.l.b16 %v1238
    %v5616 = vunpack.c.h.b16 %v1238
    %v5617 = vunpack.c.l.b16 %v1239
    %v5618 = vunpack.c.h.b16 %v1239
    %v5619 = vunpack.c.l.b16 %v1240
    %v5620 = vunpack.c.h.b16 %v1240
    %v5621 = vunpack.c.l.b16 %v1241
    %v5622 = vunpack.c.h.b16 %v1241
    %v5623 = vunpack.c.l.b16 %v1242
    %v5624 = vunpack.c.h.b16 %v1242
    %v5625 = vunpack.c.l.b16 %v1243
    %v5626 = vunpack.c.h.b16 %v1243
    %v5627 = vunpack.c.l.b16 %v1244
    %v5628 = vunpack.c.h.b16 %v1244
    %v5629 = vunpack.c.l.b16 %v1245
    %v5630 = vunpack.c.h.b16 %v1245
    %v5631 = vunpack.c.l.b16 %v1246
    %v5632 = vunpack.c.h.b16 %v1246
    %v5633 = vunpack.c.l.b16 %v1247
    %v5634 = vunpack.c.h.b16 %v1247
    %v5635 = vunpack.c.l.b16 %v1248
    %v5636 = vunpack.c.h.b16 %v1248
    %v5637 = vunpack.c.l.b16 %v1249
    %v5638 = vunpack.c.h.b16 %v1249
    %v5639 = vunpack.c.l.b16 %v1250
    %v5640 = vunpack.c.h.b16 %v1250
    %v5641 = vunpack.c.l.b16 %v1251
    %v5642 = vunpack.c.h.b16 %v1251
    %v5643 = vunpack.c.l.b16 %v1252
    %v5644 = vunpack.c.h.b16 %v1252
    %v5645 = vunpack.c.l.b16 %v1253
    %v5646 = vunpack.c.h.b16 %v1253
    %v5647 = vunpack.c.l.b16 %v1254
    %v5648 = vunpack.c.h.b16 %v1254
    %v5649 = vunpack.c.l.b16 %v1255
    %v5650 = vunpack.c.h.b16 %v1255
    %v5651 = vunpack.c.l.b16 %v1256
    %v5652 = vunpack.c.h.b16 %v1256
    %v5653 = vunpack.c.l.b16 %v1257
    %v5654 = vunpack.c.h.b16 %v1257
    %v5655 = vunpack.c.l.b16 %v1258
    %v5656 = vunpack.c.h.b16 %v1258
    %v5657 = vunpack.c.l.b16 %v1259
    %v5658 = vunpack.c.h.b16 %v1259
    %v5659 = vunpack.c.l.b16 %v1260
    %v5660 = vunpack.c.h.b16 %v1260
    %v5661 = vunpack.c.l.b16 %v1261
    %v5662 = vunpack.c.h.b16 %v1261
    %v5663 = vunpack.c.l.b16 %v1262
    %v5664 = vunpack.c.h.b16 %v1262
    %v5665 = vunpack.c.l.b16 %v1263
    %v5666 = vunpack.c.h.b16 %v1263
    %v5667 = vunpack.c.l.b16 %v1264
    %v5668 = vunpack.c.h.b16 %v1264
    %v5669 = vunpack.c.l.b16 %v1265
    %v5670 = vunpack.c.h.b16 %v1265
    %v5671 = vunpack.c.l.b16 %v1266
    %v5672 = vunpack.c.h.b16 %v1266
    %v5673 = vunpack.c.l.b16 %v1267
    %v5674 = vunpack.c.h.b16 %v1267
    %v5675 = vunpack.c.l.b16 %v1268
    %v5676 = vunpack.c.h.b16 %v1268
    %v5677 = vunpack.c.l.b16 %v1269
    %v5678 = vunpack.c.h.b16 %v1269
    %v5679 = vunpack.c.l.b16 %v1270
    %v5680 = vunpack.c.h.b16 %v1270
    %v5681 = vunpack.c.l.b16 %v1271
    %v5682 = vunpack.c.h.b16 %v1271
    %v5683 = vunpack.c.l.b16 %v1272
    %v5684 = vunpack.c.h.b16 %v1272
    %v5685 = vunpack.c.l.b16 %v1273
    %v5686 = vunpack.c.h.b16 %v1273
    %v5687 = vunpack.c.l.b16 %v1274
    %v5688 = vunpack.c.h.b16 %v1274
    %v5689 = vunpack.c.l.b16 %v1275
    %v5690 = vunpack.c.h.b16 %v1275
    %v5691 = vunpack.c.l.b16 %v1276
    %v5692 = vunpack.c.h.b16 %v1276
    %v5693 = vunpack.c.l.b16 %v1277
    %v5694 = vunpack.c.h.b16 %v1277
    %v5695 = vunpack.c.l.b16 %v1278
    %v5696 = vunpack.c.h.b16 %v1278
    %v5697 = vunpack.c.l.b16 %v1279
    %v5698 = vunpack.c.h.b16 %v1279
    %v5699 = vunpack.c.l.b16 %v1280
    %v5700 = vunpack.c.h.b16 %v1280
    %v5701 = vunpack.c.l.b16 %v1281
    %v5702 = vunpack.c.h.b16 %v1281
    %v5703 = vunpack.c.l.b16 %v1282
    %v5704 = vunpack.c.h.b16 %v1282
    %v5705 = vunpack.c.l.b16 %v1283
    %v5706 = vunpack.c.h.b16 %v1283
    %v5707 = vunpack.c.l.b16 %v1284
    %v5708 = vunpack.c.h.b16 %v1284
    %v5709 = vunpack.c.l.b16 %v1285
    %v5710 = vunpack.c.h.b16 %v1285
    %v5711 = vunpack.c.l.b16 %v1286
    %v5712 = vunpack.c.h.b16 %v1286
    %v5713 = vunpack.c.l.b16 %v1287
    %v5714 = vunpack.c.h.b16 %v1287
    %v5715 = vunpack.c.l.b16 %v1288
    %v5716 = vunpack.c.h.b16 %v1288
    %v5717 = vunpack.c.l.b16 %v1289
    %v5718 = vunpack.c.h.b16 %v1289
    %v5719 = vunpack.c.l.b16 %v1290
    %v5720 = vunpack.c.h.b16 %v1290
    %v5721 = vunpack.c.l.b16 %v1291
    %v5722 = vunpack.c.h.b16 %v1291
    %v5723 = vunpack.c.l.b16 %v1292
    %v5724 = vunpack.c.h.b16 %v1292
    %v5725 = vunpack.c.l.b16 %v1293
    %v5726 = vunpack.c.h.b16 %v1293
    %v5727 = vunpack.c.l.b16 %v1294
    %v5728 = vunpack.c.h.b16 %v1294
    %v5729 = vunpack.c.l.b16 %v1295
    %v5730 = vunpack.c.h.b16 %v1295
    %v5731 = vunpack.c.l.b16 %v1296
    %v5732 = vunpack.c.h.b16 %v1296
    %v5733 = vunpack.c.l.b16 %v1297
    %v5734 = vunpack.c.h.b16 %v1297
    %v5735 = vunpack.c.l.b16 %v1298
    %v5736 = vunpack.c.h.b16 %v1298
    %v5737 = vunpack.c.l.b16 %v1299
    %v5738 = vunpack.c.h.b16 %v1299
    %v5739 = vunpack.c.l.b16 %v1300
    %v5740 = vunpack.c.h.b16 %v1300
    %v5741 = vunpack.c.l.b16 %v1301
    %v5742 = vunpack.c.h.b16 %v1301
    %v5743 = vunpack.c.l.b16 %v1302
    %v5744 = vunpack.c.h.b16 %v1302
    %v5745 = vunpack.c.l.b16 %v1303
    %v5746 = vunpack.c.h.b16 %v1303
    %v5747 = vunpack.c.l.b16 %v1304
    %v5748 = vunpack.c.h.b16 %v1304
    %v5749 = vunpack.c.l.b16 %v1305
    %v5750 = vunpack.c.h.b16 %v1305
    %v5751 = vunpack.c.l.b16 %v1306
    %v5752 = vunpack.c.h.b16 %v1306
    %v5753 = vunpack.c.l.b16 %v1307
    %v5754 = vunpack.c.h.b16 %v1307
    %v5755 = vunpack.c.l.b16 %v1308
    %v5756 = vunpack.c.h.b16 %v1308
    %v5757 = vunpack.c.l.b16 %v1309
    %v5758 = vunpack.c.h.b16 %v1309
    %v5759 = vunpack.c.l.b16 %v1310
    %v5760 = vunpack.c.h.b16 %v1310
    %v5761 = vunpack.c.l.b16 %v1311
    %v5762 = vunpack.c.h.b16 %v1311
    %v5763 = vunpack.c.l.b16 %v1312
    %v5764 = vunpack.c.h.b16 %v1312
    %v5765 = vunpack.c.l.b16 %v1313
    %v5766 = vunpack.c.h.b16 %v1313
    %v5767 = vunpack.c.l.b16 %v1314
    %v5768 = vunpack.c.h.b16 %v1314
    %v5769 = vunpack.c.l.b16 %v1315
    %v5770 = vunpack.c.h.b16 %v1315
    %v5771 = vunpack.c.l.b16 %v1316
    %v5772 = vunpack.c.h.b16 %v1316
    %v5773 = vunpack.c.l.b16 %v1317
    %v5774 = vunpack.c.h.b16 %v1317
    %v5775 = vunpack.c.l.b16 %v1318
    %v5776 = vunpack.c.h.b16 %v1318
    %v5777 = vunpack.c.l.b16 %v1319
    %v5778 = vunpack.c.h.b16 %v1319
    %v5779 = vunpack.c.l.b16 %v1320
    %v5780 = vunpack.c.h.b16 %v1320
    %v5781 = vunpack.c.l.b16 %v1321
    %v5782 = vunpack.c.h.b16 %v1321
    %v5783 = vunpack.c.l.b16 %v1322
    %v5784 = vunpack.c.h.b16 %v1322
    %v5785 = vunpack.c.l.b16 %v1323
    %v5786 = vunpack.c.h.b16 %v1323
    %v5787 = vunpack.c.l.b16 %v1324
    %v5788 = vunpack.c.h.b16 %v1324
    %v5789 = vunpack.c.l.b16 %v1325
    %v5790 = vunpack.c.h.b16 %v1325
    %v5791 = vunpack.c.l.b16 %v1326
    %v5792 = vunpack.c.h.b16 %v1326
    %v5793 = vunpack.c.l.b16 %v1327
    %v5794 = vunpack.c.h.b16 %v1327
    %v5795 = vunpack.c.l.b16 %v1328
    %v5796 = vunpack.c.h.b16 %v1328
    %v5797 = vunpack.c.l.b16 %v1329
    %v5798 = vunpack.c.h.b16 %v1329
    %v5799 = vunpack.c.l.b16 %v1330
    %v5800 = vunpack.c.h.b16 %v1330
    %v5801 = vunpack.c.l.b16 %v1331
    %v5802 = vunpack.c.h.b16 %v1331
    %v5803 = vunpack.c.l.b16 %v1332
    %v5804 = vunpack.c.h.b16 %v1332
    %v5805 = vunpack.c.l.b16 %v1333
    %v5806 = vunpack.c.h.b16 %v1333
    %v5807 = vunpack.c.l.b16 %v1334
    %v5808 = vunpack.c.h.b16 %v1334
    %v5809 = vunpack.c.l.b16 %v1335
    %v5810 = vunpack.c.h.b16 %v1335
    %v5811 = vunpack.c.l.b16 %v1336
    %v5812 = vunpack.c.h.b16 %v1336
    %v5813 = vunpack.c.l.b16 %v1337
    %v5814 = vunpack.c.h.b16 %v1337
    %v5815 = vunpack.c.l.b16 %v1338
    %v5816 = vunpack.c.h.b16 %v1338
    %v5817 = vunpack.c.l.b16 %v1339
    %v5818 = vunpack.c.h.b16 %v1339
    %v5819 = vunpack.c.l.b16 %v1340
    %v5820 = vunpack.c.h.b16 %v1340
    %v5821 = vunpack.c.l.b16 %v1341
    %v5822 = vunpack.c.h.b16 %v1341
    %v5823 = vunpack.c.l.b16 %v1342
    %v5824 = vunpack.c.h.b16 %v1342
    %v5825 = vunpack.c.l.b16 %v1343
    %v5826 = vunpack.c.h.b16 %v1343
    %v5827 = vunpack.c.l.b16 %v1344
    %v5828 = vunpack.c.h.b16 %v1344
    %v5829 = vunpack.c.l.b16 %v1345
    %v5830 = vunpack.c.h.b16 %v1345
    %v5831 = vunpack.c.l.b16 %v1346
    %v5832 = vunpack.c.h.b16 %v1346
    %v5833 = vunpack.c.l.b16 %v1347
    %v5834 = vunpack.c.h.b16 %v1347
    %v5835 = vunpack.c.l.b16 %v1348
    %v5836 = vunpack.c.h.b16 %v1348
    %v5837 = vunpack.c.l.b16 %v1349
    %v5838 = vunpack.c.h.b16 %v1349
    %v5839 = vunpack.c.l.b16 %v1350
    %v5840 = vunpack.c.h.b16 %v1350
    %v5841 = vunpack.c.l.b16 %v1351
    %v5842 = vunpack.c.h.b16 %v1351
    %v5843 = vunpack.c.l.b16 %v1352
    %v5844 = vunpack.c.h.b16 %v1352
    %v5845 = vunpack.c.l.b16 %v1353
    %v5846 = vunpack.c.h.b16 %v1353
    %v5847 = vunpack.c.l.b16 %v1354
    %v5848 = vunpack.c.h.b16 %v1354
    %v5849 = vunpack.c.l.b16 %v1355
    %v5850 = vunpack.c.h.b16 %v1355
    %v5851 = vunpack.c.l.b16 %v1356
    %v5852 = vunpack.c.h.b16 %v1356
    %v5853 = vunpack.c.l.b16 %v1357
    %v5854 = vunpack.c.h.b16 %v1357
    %v5855 = vunpack.c.l.b16 %v1358
    %v5856 = vunpack.c.h.b16 %v1358
    %v5857 = vunpack.c.l.b16 %v1359
    %v5858 = vunpack.c.h.b16 %v1359
    %v5859 = vunpack.c.l.b16 %v1360
    %v5860 = vunpack.c.h.b16 %v1360
    %v5861 = vunpack.c.l.b16 %v1361
    %v5862 = vunpack.c.h.b16 %v1361
    %v5863 = vunpack.c.l.b16 %v1362
    %v5864 = vunpack.c.h.b16 %v1362
    %v5865 = vunpack.c.l.b16 %v1363
    %v5866 = vunpack.c.h.b16 %v1363
    %v5867 = vunpack.c.l.b16 %v1364
    %v5868 = vunpack.c.h.b16 %v1364
    %v5869 = vunpack.c.l.b16 %v1365
    %v5870 = vunpack.c.h.b16 %v1365
    %v5871 = vunpack.c.l.b16 %v1366
    %v5872 = vunpack.c.h.b16 %v1366
    %v5873 = vunpack.c.l.b16 %v1367
    %v5874 = vunpack.c.h.b16 %v1367
    %v5875 = vunpack.c.l.b16 %v1368
    %v5876 = vunpack.c.h.b16 %v1368
    %v5877 = vunpack.c.l.b16 %v1369
    %v5878 = vunpack.c.h.b16 %v1369
    %v5879 = vunpack.c.l.b16 %v1370
    %v5880 = vunpack.c.h.b16 %v1370
    %v5881 = vunpack.c.l.b16 %v1371
    %v5882 = vunpack.c.h.b16 %v1371
    %v5883 = vunpack.c.l.b16 %v1372
    %v5884 = vunpack.c.h.b16 %v1372
    %v5885 = vunpack.c.l.b16 %v1373
    %v5886 = vunpack.c.h.b16 %v1373
    %v5887 = vunpack.c.l.b16 %v1374
    %v5888 = vunpack.c.h.b16 %v1374
    %v5889 = vunpack.c.l.b16 %v1375
    %v5890 = vunpack.c.h.b16 %v1375
    %v5891 = vunpack.c.l.b16 %v1376
    %v5892 = vunpack.c.h.b16 %v1376
    %v5893 = vunpack.c.l.b16 %v1377
    %v5894 = vunpack.c.h.b16 %v1377
    %v5895 = vunpack.c.l.b16 %v1378
    %v5896 = vunpack.c.h.b16 %v1378
    %v5897 = vunpack.c.l.b16 %v1379
    %v5898 = vunpack.c.h.b16 %v1379
    %v5899 = vunpack.c.l.b16 %v1380
    %v5900 = vunpack.c.h.b16 %v1380
    %v5901 = vunpack.c.l.b16 %v1381
    %v5902 = vunpack.c.h.b16 %v1381
    %v5903 = vunpack.c.l.b16 %v1382
    %v5904 = vunpack.c.h.b16 %v1382
    %v5905 = vunpack.c.l.b16 %v1383
    %v5906 = vunpack.c.h.b16 %v1383
    %v5907 = vunpack.c.l.b16 %v1384
    %v5908 = vunpack.c.h.b16 %v1384
    %v5909 = vunpack.c.l.b16 %v1385
    %v5910 = vunpack.c.h.b16 %v1385
    %v5911 = vunpack.c.l.b16 %v1386
    %v5912 = vunpack.c.h.b16 %v1386
    %v5913 = vunpack.c.l.b16 %v1387
    %v5914 = vunpack.c.h.b16 %v1387
    %v5915 = vunpack.c.l.b16 %v1388
    %v5916 = vunpack.c.h.b16 %v1388
    %v5917 = vunpack.c.l.b16 %v1389
    %v5918 = vunpack.c.h.b16 %v1389
    %v5919 = vunpack.c.l.b16 %v1390
    %v5920 = vunpack.c.h.b16 %v1390
    %v5921 = vunpack.c.l.b16 %v1391
    %v5922 = vunpack.c.h.b16 %v1391
    %v5923 = vunpack.c.l.b16 %v1392
    %v5924 = vunpack.c.h.b16 %v1392
    %v5925 = vunpack.c.l.b16 %v1393
    %v5926 = vunpack.c.h.b16 %v1393
    %v5927 = vunpack.c.l.b16 %v1394
    %v5928 = vunpack.c.h.b16 %v1394
    %v5929 = vunpack.c.l.b16 %v1395
    %v5930 = vunpack.c.h.b16 %v1395
    %v5931 = vunpack.c.l.b16 %v1396
    %v5932 = vunpack.c.h.b16 %v1396
    %v5933 = vunpack.c.l.b16 %v1397
    %v5934 = vunpack.c.h.b16 %v1397
    %v5935 = vunpack.c.l.b16 %v1398
    %v5936 = vunpack.c.h.b16 %v1398
    %v5937 = vunpack.c.l.b16 %v1399
    %v5938 = vunpack.c.h.b16 %v1399
    %v5939 = vunpack.c.l.b16 %v1400
    %v5940 = vunpack.c.h.b16 %v1400
    %v5941 = vunpack.c.l.b16 %v1401
    %v5942 = vunpack.c.h.b16 %v1401
    %v5943 = vunpack.c.l.b16 %v1402
    %v5944 = vunpack.c.h.b16 %v1402
    %v5945 = vunpack.c.l.b16 %v1403
    %v5946 = vunpack.c.h.b16 %v1403
    %v5947 = vunpack.c.l.b16 %v1404
    %v5948 = vunpack.c.h.b16 %v1404
    %v5949 = vunpack.c.l.b16 %v1405
    %v5950 = vunpack.c.h.b16 %v1405
    %v5951 = vunpack.c.l.b16 %v1406
    %v5952 = vunpack.c.h.b16 %v1406
    %v5953 = vunpack.c.l.b16 %v1407
    %v5954 = vunpack.c.h.b16 %v1407
    %v5955 = vunpack.c.l.b16 %v1408
    %v5956 = vunpack.c.h.b16 %v1408
    %v5957 = vunpack.c.l.b16 %v1409
    %v5958 = vunpack.c.h.b16 %v1409
    %v5959 = vunpack.c.l.b16 %v1410
    %v5960 = vunpack.c.h.b16 %v1410
    %v5961 = vunpack.c.l.b16 %v1411
    %v5962 = vunpack.c.h.b16 %v1411
    %v5963 = vunpack.c.l.b16 %v1412
    %v5964 = vunpack.c.h.b16 %v1412
    %v5965 = vunpack.c.l.b16 %v1413
    %v5966 = vunpack.c.h.b16 %v1413
    %v5967 = vunpack.c.l.b16 %v1414
    %v5968 = vunpack.c.h.b16 %v1414
    %v5969 = vunpack.c.l.b16 %v1415
    %v5970 = vunpack.c.h.b16 %v1415
    %v5971 = vunpack.c.l.b16 %v1416
    %v5972 = vunpack.c.h.b16 %v1416
    %v5973 = vunpack.c.l.b16 %v1417
    %v5974 = vunpack.c.h.b16 %v1417
    %v5975 = vunpack.c.l.b16 %v1418
    %v5976 = vunpack.c.h.b16 %v1418
    %v5977 = vunpack.c.l.b16 %v1419
    %v5978 = vunpack.c.h.b16 %v1419
    %v5979 = vunpack.c.l.b16 %v1420
    %v5980 = vunpack.c.h.b16 %v1420
    %v5981 = vunpack.c.l.b16 %v1421
    %v5982 = vunpack.c.h.b16 %v1421
    %v5983 = vunpack.c.l.b16 %v1422
    %v5984 = vunpack.c.h.b16 %v1422
    %v5985 = vunpack.c.l.b16 %v1423
    %v5986 = vunpack.c.h.b16 %v1423
    %v5987 = vunpack.c.l.b16 %v1424
    %v5988 = vunpack.c.h.b16 %v1424
    %v5989 = vunpack.c.l.b16 %v1425
    %v5990 = vunpack.c.h.b16 %v1425
    %v5991 = vunpack.c.l.b16 %v1426
    %v5992 = vunpack.c.h.b16 %v1426
    %v5993 = vunpack.c.l.b16 %v1427
    %v5994 = vunpack.c.h.b16 %v1427
    %v5995 = vunpack.c.l.b16 %v1428
    %v5996 = vunpack.c.h.b16 %v1428
    %v5997 = vunpack.c.l.b16 %v1429
    %v5998 = vunpack.c.h.b16 %v1429
    %v5999 = vunpack.c.l.b16 %v1430
    %v6000 = vunpack.c.h.b16 %v1430
    %v6001 = vunpack.c.l.b16 %v1431
    %v6002 = vunpack.c.h.b16 %v1431
    %v6003 = vunpack.c.l.b16 %v1432
    %v6004 = vunpack.c.h.b16 %v1432
    %v6005 = vunpack.c.l.b16 %v1433
    %v6006 = vunpack.c.h.b16 %v1433
    %v6007 = vunpack.c.l.b16 %v1434
    %v6008 = vunpack.c.h.b16 %v1434
    %v6009 = vunpack.c.l.b16 %v1435
    %v6010 = vunpack.c.h.b16 %v1435
    %v6011 = vunpack.c.l.b16 %v1436
    %v6012 = vunpack.c.h.b16 %v1436
    %v6013 = vunpack.c.l.b16 %v1437
    %v6014 = vunpack.c.h.b16 %v1437
    %v6015 = vunpack.c.l.b16 %v1438
    %v6016 = vunpack.c.h.b16 %v1438
    %v6017 = vunpack.c.l.b16 %v1439
    %v6018 = vunpack.c.h.b16 %v1439
    %v6019 = vunpack.c.l.b16 %v1440
    %v6020 = vunpack.c.h.b16 %v1440
    %v6021 = vunpack.c.l.b16 %v1441
    %v6022 = vunpack.c.h.b16 %v1441
    %v6023 = vunpack.c.l.b16 %v1442
    %v6024 = vunpack.c.h.b16 %v1442
    %v6025 = vunpack.c.l.b16 %v1443
    %v6026 = vunpack.c.h.b16 %v1443
    %v6027 = vunpack.c.l.b16 %v1444
    %v6028 = vunpack.c.h.b16 %v1444
    %v6029 = vunpack.c.l.b16 %v1445
    %v6030 = vunpack.c.h.b16 %v1445
    %v6031 = vunpack.c.l.b16 %v1446
    %v6032 = vunpack.c.h.b16 %v1446
    %v6033 = vunpack.c.l.b16 %v1447
    %v6034 = vunpack.c.h.b16 %v1447
    %v6035 = vunpack.c.l.b16 %v1448
    %v6036 = vunpack.c.h.b16 %v1448
    %v6037 = vunpack.c.l.b16 %v1449
    %v6038 = vunpack.c.h.b16 %v1449
    %v6039 = vunpack.c.l.b16 %v1450
    %v6040 = vunpack.c.h.b16 %v1450
    %v6041 = vunpack.c.l.b16 %v1451
    %v6042 = vunpack.c.h.b16 %v1451
    %v6043 = vunpack.c.l.b16 %v1452
    %v6044 = vunpack.c.h.b16 %v1452
    %v6045 = vunpack.c.l.b16 %v1453
    %v6046 = vunpack.c.h.b16 %v1453
    %v6047 = vunpack.c.l.b16 %v1454
    %v6048 = vunpack.c.h.b16 %v1454
    %v6049 = vunpack.c.l.b16 %v1455
    %v6050 = vunpack.c.h.b16 %v1455
    %v6051 = vunpack.c.l.b16 %v1456
    %v6052 = vunpack.c.h.b16 %v1456
    %v6053 = vunpack.c.l.b16 %v1457
    %v6054 = vunpack.c.h.b16 %v1457
    %v6055 = vunpack.c.l.b16 %v1458
    %v6056 = vunpack.c.h.b16 %v1458
    %v6057 = vunpack.c.l.b16 %v1459
    %v6058 = vunpack.c.h.b16 %v1459
    %v6059 = vunpack.c.l.b16 %v1460
    %v6060 = vunpack.c.h.b16 %v1460
    %v6061 = vunpack.c.l.b16 %v1461
    %v6062 = vunpack.c.h.b16 %v1461
    %v6063 = vunpack.c.l.b16 %v1462
    %v6064 = vunpack.c.h.b16 %v1462
    %v6065 = vunpack.c.l.b16 %v1463
    %v6066 = vunpack.c.h.b16 %v1463
    %v6067 = vunpack.c.l.b16 %v1464
    %v6068 = vunpack.c.h.b16 %v1464
    %v6069 = vunpack.c.l.b16 %v1465
    %v6070 = vunpack.c.h.b16 %v1465
    %v6071 = vunpack.c.l.b16 %v1466
    %v6072 = vunpack.c.h.b16 %v1466
    %v6073 = vunpack.c.l.b16 %v1467
    %v6074 = vunpack.c.h.b16 %v1467
    %v6075 = vunpack.c.l.b16 %v1468
    %v6076 = vunpack.c.h.b16 %v1468
    %v6077 = vunpack.c.l.b16 %v1469
    %v6078 = vunpack.c.h.b16 %v1469
    %v6079 = vunpack.c.l.b16 %v1470
    %v6080 = vunpack.c.h.b16 %v1470
    %v6081 = vunpack.c.l.b16 %v1471
    %v6082 = vunpack.c.h.b16 %v1471
    %v6083 = vunpack.c.l.b16 %v1472
    %v6084 = vunpack.c.h.b16 %v1472
    %v6085 = vunpack.c.l.b16 %v1473
    %v6086 = vunpack.c.h.b16 %v1473
    %v6087 = vunpack.c.l.b16 %v1474
    %v6088 = vunpack.c.h.b16 %v1474
    %v6089 = vunpack.c.l.b16 %v1475
    %v6090 = vunpack.c.h.b16 %v1475
    %v6091 = vunpack.c.l.b16 %v1476
    %v6092 = vunpack.c.h.b16 %v1476
    %v6093 = vunpack.c.l.b16 %v1477
    %v6094 = vunpack.c.h.b16 %v1477
    %v6095 = vunpack.c.l.b16 %v1478
    %v6096 = vunpack.c.h.b16 %v1478
    %v6097 = vunpack.c.l.b16 %v1479
    %v6098 = vunpack.c.h.b16 %v1479
    %v6099 = vunpack.c.l.b16 %v1480
    %v6100 = vunpack.c.h.b16 %v1480
    %v6101 = vunpack.c.l.b16 %v1481
    %v6102 = vunpack.c.h.b16 %v1481
    %v6103 = vunpack.c.l.b16 %v1482
    %v6104 = vunpack.c.h.b16 %v1482
    %v6105 = vunpack.c.l.b16 %v1483
    %v6106 = vunpack.c.h.b16 %v1483
    %v6107 = vunpack.c.l.b16 %v1484
    %v6108 = vunpack.c.h.b16 %v1484
    %v6109 = vunpack.c.l.b16 %v1485
    %v6110 = vunpack.c.h.b16 %v1485
    %v6111 = vunpack.c.l.b16 %v1486
    %v6112 = vunpack.c.h.b16 %v1486
    %v6113 = vunpack.c.l.b16 %v1487
    %v6114 = vunpack.c.h.b16 %v1487
    %v6115 = vunpack.c.l.b16 %v1488
    %v6116 = vunpack.c.h.b16 %v1488
    %v6117 = vunpack.c.l.b16 %v1489
    %v6118 = vunpack.c.h.b16 %v1489
    %v6119 = vunpack.c.l.b16 %v1490
    %v6120 = vunpack.c.h.b16 %v1490
    %v6121 = vunpack.c.l.b16 %v1491
    %v6122 = vunpack.c.h.b16 %v1491
    %v6123 = vunpack.c.l.b16 %v1492
    %v6124 = vunpack.c.h.b16 %v1492
    %v6125 = vunpack.c.l.b16 %v1493
    %v6126 = vunpack.c.h.b16 %v1493
    %v6127 = vunpack.c.l.b16 %v1494
    %v6128 = vunpack.c.h.b16 %v1494
    %v6129 = vunpack.c.l.b16 %v1495
    %v6130 = vunpack.c.h.b16 %v1495
    %v6131 = vunpack.c.l.b16 %v1496
    %v6132 = vunpack.c.h.b16 %v1496
    %v6133 = vunpack.c.l.b16 %v1497
    %v6134 = vunpack.c.h.b16 %v1497
    %v6135 = vunpack.c.l.b16 %v1498
    %v6136 = vunpack.c.h.b16 %v1498
    %v6137 = vunpack.c.l.b16 %v1499
    %v6138 = vunpack.c.h.b16 %v1499
    %v6139 = vunpack.c.l.b16 %v1500
    %v6140 = vunpack.c.h.b16 %v1500
    %v6141 = vunpack.c.l.b16 %v1501
    %v6142 = vunpack.c.h.b16 %v1501
    %v6143 = vunpack.c.l.b16 %v1502
    %v6144 = vunpack.c.h.b16 %v1502
    %v6145 = vunpack.c.l.b16 %v1503
    %v6146 = vunpack.c.h.b16 %v1503
    %v6147 = vunpack.c.l.b16 %v1504
    %v6148 = vunpack.c.h.b16 %v1504
    %v6149 = vunpack.c.l.b16 %v1505
    %v6150 = vunpack.c.h.b16 %v1505
    %v6151 = vunpack.c.l.b16 %v1506
    %v6152 = vunpack.c.h.b16 %v1506
    %v6153 = vunpack.c.l.b16 %v1507
    %v6154 = vunpack.c.h.b16 %v1507
    %v6155 = vunpack.c.l.b16 %v1508
    %v6156 = vunpack.c.h.b16 %v1508
    %v6157 = vunpack.c.l.b16 %v1509
    %v6158 = vunpack.c.h.b16 %v1509
    %v6159 = vunpack.c.l.b16 %v1510
    %v6160 = vunpack.c.h.b16 %v1510
    %v6161 = vunpack.c.l.b16 %v1511
    %v6162 = vunpack.c.h.b16 %v1511
    %v6163 = vunpack.c.l.b16 %v1512
    %v6164 = vunpack.c.h.b16 %v1512
    %v6165 = vunpack.c.l.b16 %v1513
    %v6166 = vunpack.c.h.b16 %v1513
    %v6167 = vunpack.c.l.b16 %v1514
    %v6168 = vunpack.c.h.b16 %v1514
    %v6169 = vunpack.c.l.b16 %v1515
    %v6170 = vunpack.c.h.b16 %v1515
    %v6171 = vunpack.c.l.b16 %v1516
    %v6172 = vunpack.c.h.b16 %v1516
    %v6173 = vunpack.c.l.b16 %v1517
    %v6174 = vunpack.c.h.b16 %v1517
    %v6175 = vunpack.c.l.b16 %v1518
    %v6176 = vunpack.c.h.b16 %v1518
    %v6177 = vunpack.c.l.b16 %v1519
    %v6178 = vunpack.c.h.b16 %v1519
    %v6179 = vunpack.c.l.b16 %v1520
    %v6180 = vunpack.c.h.b16 %v1520
    %v6181 = vunpack.c.l.b16 %v1521
    %v6182 = vunpack.c.h.b16 %v1521
    %v6183 = vunpack.c.l.b16 %v1522
    %v6184 = vunpack.c.h.b16 %v1522
    %v6185 = vunpack.c.l.b16 %v1523
    %v6186 = vunpack.c.h.b16 %v1523
    %v6187 = vunpack.c.l.b16 %v1524
    %v6188 = vunpack.c.h.b16 %v1524
    %v6189 = vunpack.c.l.b16 %v1525
    %v6190 = vunpack.c.h.b16 %v1525
    %v6191 = vunpack.c.l.b16 %v1526
    %v6192 = vunpack.c.h.b16 %v1526
    %v6193 = vunpack.c.l.b16 %v1527
    %v6194 = vunpack.c.h.b16 %v1527
    %v6195 = vunpack.c.l.b16 %v1528
    %v6196 = vunpack.c.h.b16 %v1528
    %v6197 = vunpack.c.l.b16 %v1529
    %v6198 = vunpack.c.h.b16 %v1529
    %v6199 = vunpack.c.l.b16 %v1530
    %v6200 = vunpack.c.h.b16 %v1530
    %v6201 = vunpack.c.l.b16 %v1531
    %v6202 = vunpack.c.h.b16 %v1531
    %v6203 = vunpack.c.l.b16 %v1532
    %v6204 = vunpack.c.h.b16 %v1532
    %v6205 = vunpack.c.l.b16 %v1533
    %v6206 = vunpack.c.h.b16 %v1533
    %v6207 = vunpack.c.l.b16 %v1534
    %v6208 = vunpack.c.h.b16 %v1534
    %v6209 = vunpack.c.l.b16 %v1535
    %v6210 = vunpack.c.h.b16 %v1535
    %v6211 = vunpack.c.l.b16 %v1536
    %v6212 = vunpack.c.h.b16 %v1536
    %v6213 = vunpack.c.l.b16 %v1537
    %v6214 = vunpack.c.h.b16 %v1537
    %v6215 = vunpack.c.l.b16 %v1538
    %v6216 = vunpack.c.h.b16 %v1538
    %v6217 = vunpack.c.l.b16 %v1539
    %v6218 = vunpack.c.h.b16 %v1539
    %v6219 = vunpack.c.l.b16 %v1540
    %v6220 = vunpack.c.h.b16 %v1540
    %v6221 = vunpack.c.l.b16 %v1541
    %v6222 = vunpack.c.h.b16 %v1541
    %v6223 = vunpack.c.l.b16 %v1542
    %v6224 = vunpack.c.h.b16 %v1542
    %v6225 = vunpack.c.l.b16 %v1543
    %v6226 = vunpack.c.h.b16 %v1543
    %v6227 = vunpack.c.l.b16 %v1544
    %v6228 = vunpack.c.h.b16 %v1544
    %v6229 = vunpack.c.l.b16 %v1545
    %v6230 = vunpack.c.h.b16 %v1545
    %v6231 = vunpack.c.l.b16 %v1546
    %v6232 = vunpack.c.h.b16 %v1546
    %v6233 = vunpack.c.l.b16 %v1547
    %v6234 = vunpack.c.h.b16 %v1547
    %v6235 = vunpack.c.l.b16 %v1548
    %v6236 = vunpack.c.h.b16 %v1548
    %v6237 = vunpack.c.l.b16 %v1549
    %v6238 = vunpack.c.h.b16 %v1549
    %v6239 = vunpack.c.l.b16 %v1550
    %v6240 = vunpack.c.h.b16 %v1550
    %v6241 = vunpack.c.l.b16 %v1551
    %v6242 = vunpack.c.h.b16 %v1551
    %v6243 = vunpack.c.l.b16 %v1552
    %v6244 = vunpack.c.h.b16 %v1552
    %v6245 = vunpack.c.l.b16 %v1553
    %v6246 = vunpack.c.h.b16 %v1553
    %v6247 = vunpack.c.l.b16 %v1554
    %v6248 = vunpack.c.h.b16 %v1554
    %v6249 = vunpack.c.l.b16 %v1555
    %v6250 = vunpack.c.h.b16 %v1555
    %v6251 = vunpack.c.l.b16 %v1556
    %v6252 = vunpack.c.h.b16 %v1556
    %v6253 = vunpack.c.l.b16 %v1557
    %v6254 = vunpack.c.h.b16 %v1557
    %v6255 = vunpack.c.l.b16 %v1558
    %v6256 = vunpack.c.h.b16 %v1558
    %v6257 = vunpack.c.l.b16 %v1559
    %v6258 = vunpack.c.h.b16 %v1559
    %v6259 = vunpack.c.l.b16 %v1560
    %v6260 = vunpack.c.h.b16 %v1560
    %v6261 = vunpack.c.l.b16 %v1561
    %v6262 = vunpack.c.h.b16 %v1561
    %v6263 = vunpack.c.l.b16 %v1562
    %v6264 = vunpack.c.h.b16 %v1562
    %v6265 = vunpack.c.l.b16 %v1563
    %v6266 = vunpack.c.h.b16 %v1563
    %v6267 = vunpack.c.l.b16 %v1564
    %v6268 = vunpack.c.h.b16 %v1564
    %v6269 = vunpack.c.l.b16 %v1565
    %v6270 = vunpack.c.h.b16 %v1565
    %v6271 = vunpack.c.l.b16 %v1566
    %v6272 = vunpack.c.h.b16 %v1566
    %v6273 = vunpack.c.l.b16 %v1567
    %v6274 = vunpack.c.h.b16 %v1567
    %v6275 = vunpack.c.l.b16 %v1568
    %v6276 = vunpack.c.h.b16 %v1568
    %v6277 = vunpack.c.l.b16 %v1569
    %v6278 = vunpack.c.h.b16 %v1569
    %v6279 = vunpack.c.l.b16 %v1570
    %v6280 = vunpack.c.h.b16 %v1570
    %v6281 = vunpack.c.l.b16 %v1571
    %v6282 = vunpack.c.h.b16 %v1571
    %v6283 = vunpack.c.l.b16 %v1572
    %v6284 = vunpack.c.h.b16 %v1572
    %v6285 = vunpack.c.l.b16 %v1573
    %v6286 = vunpack.c.h.b16 %v1573
    %v6287 = vunpack.c.l.b16 %v1574
    %v6288 = vunpack.c.h.b16 %v1574
    %v6289 = vunpack.c.l.b16 %v1575
    %v6290 = vunpack.c.h.b16 %v1575
    %v6291 = vunpack.c.l.b16 %v1576
    %v6292 = vunpack.c.h.b16 %v1576
    %v6293 = vunpack.c.l.b16 %v1577
    %v6294 = vunpack.c.h.b16 %v1577
    %v6295 = vunpack.c.l.b16 %v1578
    %v6296 = vunpack.c.h.b16 %v1578
    %v6297 = vunpack.c.l.b16 %v1579
    %v6298 = vunpack.c.h.b16 %v1579
    %v6299 = vunpack.c.l.b16 %v1580
    %v6300 = vunpack.c.h.b16 %v1580
    %v6301 = vunpack.c.l.b16 %v1581
    %v6302 = vunpack.c.h.b16 %v1581
    %v6303 = vunpack.c.l.b16 %v1582
    %v6304 = vunpack.c.h.b16 %v1582
    %v6305 = vunpack.c.l.b16 %v1583
    %v6306 = vunpack.c.h.b16 %v1583
    %v6307 = vunpack.c.l.b16 %v1584
    %v6308 = vunpack.c.h.b16 %v1584
    %v6309 = vunpack.c.l.b16 %v1585
    %v6310 = vunpack.c.h.b16 %v1585
    %v6311 = vunpack.c.l.b16 %v1586
    %v6312 = vunpack.c.h.b16 %v1586
    %v6313 = vunpack.c.l.b16 %v1587
    %v6314 = vunpack.c.h.b16 %v1587
    %v6315 = vunpack.c.l.b16 %v1588
    %v6316 = vunpack.c.h.b16 %v1588
    %v6317 = vunpack.c.l.b16 %v1589
    %v6318 = vunpack.c.h.b16 %v1589
    %v6319 = vunpack.c.l.b16 %v1590
    %v6320 = vunpack.c.h.b16 %v1590
    %v6321 = vunpack.c.l.b16 %v1591
    %v6322 = vunpack.c.h.b16 %v1591
    %v6323 = vunpack.c.l.b16 %v1592
    %v6324 = vunpack.c.h.b16 %v1592
    %v6325 = vunpack.c.l.b16 %v1593
    %v6326 = vunpack.c.h.b16 %v1593
    %v6327 = vunpack.c.l.b16 %v1594
    %v6328 = vunpack.c.h.b16 %v1594
    %v6329 = vunpack.c.l.b16 %v1595
    %v6330 = vunpack.c.h.b16 %v1595
    %v6331 = vunpack.c.l.b16 %v1596
    %v6332 = vunpack.c.h.b16 %v1596
    %v6333 = vunpack.c.l.b16 %v1597
    %v6334 = vunpack.c.h.b16 %v1597
    %v6335 = vunpack.c.l.b16 %v1598
    %v6336 = vunpack.c.h.b16 %v1598
    %v6337 = vunpack.c.l.b16 %v1599
    %v6338 = vunpack.c.h.b16 %v1599
    %v6339 = vunpack.c.l.b16 %v1600
    %v6340 = vunpack.c.h.b16 %v1600
    %v6341 = vunpack.c.l.b16 %v1601
    %v6342 = vunpack.c.h.b16 %v1601
    %v6343 = vunpack.c.l.b16 %v1602
    %v6344 = vunpack.c.h.b16 %v1602
    %v6345 = vunpack.c.l.b16 %v1603
    %v6346 = vunpack.c.h.b16 %v1603
    %v6347 = vunpack.c.l.b16 %v1604
    %v6348 = vunpack.c.h.b16 %v1604
    %v6349 = vunpack.c.l.b16 %v1605
    %v6350 = vunpack.c.h.b16 %v1605
    %v6351 = vunpack.c.l.b16 %v1606
    %v6352 = vunpack.c.h.b16 %v1606
    %v6353 = vunpack.c.l.b16 %v1607
    %v6354 = vunpack.c.h.b16 %v1607
    %v6355 = vunpack.c.l.b16 %v1608
    %v6356 = vunpack.c.h.b16 %v1608
    %v6357 = vunpack.c.l.b16 %v1609
    %v6358 = vunpack.c.h.b16 %v1609
    %v6359 = vunpack.c.l.b16 %v1610
    %v6360 = vunpack.c.h.b16 %v1610
    %v6361 = vunpack.c.l.b16 %v1611
    %v6362 = vunpack.c.h.b16 %v1611
    %v6363 = vunpack.c.l.b16 %v1612
    %v6364 = vunpack.c.h.b16 %v1612
    %v6365 = vunpack.c.l.b16 %v1613
    %v6366 = vunpack.c.h.b16 %v1613
    %v6367 = vunpack.c.l.b16 %v1614
    %v6368 = vunpack.c.h.b16 %v1614
    %v6369 = vunpack.c.l.b16 %v1615
    %v6370 = vunpack.c.h.b16 %v1615
    %v6371 = vunpack.c.l.b16 %v1616
    %v6372 = vunpack.c.h.b16 %v1616
    %v6373 = vunpack.c.l.b16 %v1617
    %v6374 = vunpack.c.h.b16 %v1617
    %v6375 = vunpack.c.l.b16 %v1618
    %v6376 = vunpack.c.h.b16 %v1618
    %v6377 = vunpack.c.l.b16 %v1619
    %v6378 = vunpack.c.h.b16 %v1619
    %v6379 = vunpack.c.l.b16 %v1620
    %v6380 = vunpack.c.h.b16 %v1620
    %v6381 = vunpack.c.l.b16 %v1621
    %v6382 = vunpack.c.h.b16 %v1621
    %v6383 = vunpack.c.l.b16 %v1622
    %v6384 = vunpack.c.h.b16 %v1622
    %v6385 = vunpack.c.l.b16 %v1623
    %v6386 = vunpack.c.h.b16 %v1623
    %v6387 = vunpack.c.l.b16 %v1624
    %v6388 = vunpack.c.h.b16 %v1624
    %v6389 = vunpack.c.l.b16 %v1625
    %v6390 = vunpack.c.h.b16 %v1625
    %v6391 = vunpack.c.l.b16 %v1626
    %v6392 = vunpack.c.h.b16 %v1626
    %v6393 = vunpack.c.l.b16 %v1627
    %v6394 = vunpack.c.h.b16 %v1627
    %v6395 = vunpack.c.l.b16 %v1628
    %v6396 = vunpack.c.h.b16 %v1628
    %v6397 = vunpack.c.l.b16 %v1629
    %v6398 = vunpack.c.h.b16 %v1629
    %v6399 = vunpack.c.l.b16 %v1630
    %v6400 = vunpack.c.h.b16 %v1630
    %v6401 = vpack.c.b16 %v3337, %v3329
    %v6402 = vpack.c.b16 %v3338, %v3330
    %v6403 = vpack.c.b16 %v3339, %v3331
    %v6404 = vpack.c.b16 %v3340, %v3332
    %v6405 = vpack.c.b16 %v3341, %v3333
    %v6406 = vpack.c.b16 %v3342, %v3334
    %v6407 = vpack.c.b16 %v3343, %v3335
    %v6408 = vpack.c.b16 %v3344, %v3336
    %v6409 = vpack.c.b16 %v3353, %v3345
    %v6410 = vpack.c.b16 %v3354, %v3346
    %v6411 = vpack.c.b16 %v3355, %v3347
    %v6412 = vpack.c.b16 %v3356, %v3348
    %v6413 = vpack.c.b16 %v3357, %v3349
    %v6414 = vpack.c.b16 %v3358, %v3350
    %v6415 = vpack.c.b16 %v3359, %v3351
    %v6416 = vpack.c.b16 %v3360, %v3352
    %v6417 = vpack.c.b16 %v3369, %v3361
    %v6418 = vpack.c.b16 %v3370, %v3362
    %v6419 = vpack.c.b16 %v3371, %v3363
    %v6420 = vpack.c.b16 %v3372, %v3364
    %v6421 = vpack.c.b16 %v3373, %v3365
    %v6422 = vpack.c.b16 %v3374, %v3366
    %v6423 = vpack.c.b16 %v3375, %v3367
    %v6424 = vpack.c.b16 %v3376, %v3368
    %v6425 = vpack.c.b16 %v3385, %v3377
    %v6426 = vpack.c.b16 %v3386, %v3378
    %v6427 = vpack.c.b16 %v3387, %v3379
    %v6428 = vpack.c.b16 %v3388, %v3380
    %v6429 = vpack.c.b16 %v3389, %v3381
    %v6430 = vpack.c.b16 %v3390, %v3382
    %v6431 = vpack.c.b16 %v3391, %v3383
    %v6432 = vpack.c.b16 %v3392, %v3384
    %v6433 = vpack.c.b16 %v3401, %v3393
    %v6434 = vpack.c.b16 %v3402, %v3394
    %v6435 = vpack.c.b16 %v3403, %v3395
    %v6436 = vpack.c.b16 %v3404, %v3396
    %v6437 = vpack.c.b16 %v3405, %v3397
    %v6438 = vpack.c.b16 %v3406, %v3398
    %v6439 = vpack.c.b16 %v3407, %v3399
    %v6440 = vpack.c.b16 %v3408, %v3400
    %v6441 = vpack.c.b16 %v3417, %v3409
    %v6442 = vpack.c.b16 %v3418, %v3410
    %v6443 = vpack.c.b16 %v3419, %v3411
    %v6444 = vpack.c.b16 %v3420, %v3412
    %v6445 = vpack.c.b16 %v3421, %v3413
    %v6446 = vpack.c.b16 %v3422, %v3414
    %v6447 = vpack.c.b16 %v3423, %v3415
    %v6448 = vpack.c.b16 %v3424, %v3416
    %v6449 = vpack.c.b16 %v3433, %v3425
    %v6450 = vpack.c.b16 %v3434, %v3426
    %v6451 = vpack.c.b16 %v3435, %v3427
    %v6452 = vpack.c.b16 %v3436, %v3428
    %v6453 = vpack.c.b16 %v3437, %v3429
    %v6454 = vpack.c.b16 %v3438, %v3430
    %v6455 = vpack.c.b16 %v3439, %v3431
    %v6456 = vpack.c.b16 %v3440, %v3432
    %v6457 = vpack.c.b16 %v3449, %v3441
    %v6458 = vpack.c.b16 %v3450, %v3442
    %v6459 = vpack.c.b16 %v3451, %v3443
    %v6460 = vpack.c.b16 %v3452, %v3444
    %v6461 = vpack.c.b16 %v3453, %v3445
    %v6462 = vpack.c.b16 %v3454, %v3446
    %v6463 = vpack.c.b16 %v3455, %v3447
    %v6464 = vpack.c.b16 %v3456, %v3448
    %v6465 = vpack.c.b16 %v3465, %v3457
    %v6466 = vpack.c.b16 %v3466, %v3458
    %v6467 = vpack.c.b16 %v3467, %v3459
    %v6468 = vpack.c.b16 %v3468, %v3460
    %v6469 = vpack.c.b16 %v3469, %v3461
    %v6470 = vpack.c.b16 %v3470, %v3462
    %v6471 = vpack.c.b16 %v3471, %v3463
    %v6472 = vpack.c.b16 %v3472, %v3464
    %v6473 = vpack.c.b16 %v3481, %v3473
    %v6474 = vpack.c.b16 %v3482, %v3474
    %v6475 = vpack.c.b16 %v3483, %v3475
    %v6476 = vpack.c.b16 %v3484, %v3476
    %v6477 = vpack.c.b16 %v3485, %v3477
    %v6478 = vpack.c.b16 %v3486, %v3478
    %v6479 = vpack.c.b16 %v3487, %v3479
    %v6480 = vpack.c.b16 %v3488, %v3480
    %v6481 = vpack.c.b16 %v3497, %v3489
    %v6482 = vpack.c.b16 %v3498, %v3490
    %v6483 = vpack.c.b16 %v3499, %v3491
    %v6484 = vpack.c.b16 %v3500, %v3492
    %v6485 = vpack.c.b16 %v3501, %v3493
    %v6486 = vpack.c.b16 %v3502, %v3494
    %v6487 = vpack.c.b16 %v3503, %v3495
    %v6488 = vpack.c.b16 %v3504, %v3496
    %v6489 = vpack.c.b16 %v3513, %v3505
    %v6490 = vpack.c.b16 %v3514, %v3506
    %v6491 = vpack.c.b16 %v3515, %v3507
    %v6492 = vpack.c.b16 %v3516, %v3508
    %v6493 = vpack.c.b16 %v3517, %v3509
    %v6494 = vpack.c.b16 %v3518, %v3510
    %v6495 = vpack.c.b16 %v3519, %v3511
    %v6496 = vpack.c.b16 %v3520, %v3512
    %v6497 = vpack.c.b16 %v3529, %v3521
    %v6498 = vpack.c.b16 %v3530, %v3522
    %v6499 = vpack.c.b16 %v3531, %v3523
    %v6500 = vpack.c.b16 %v3532, %v3524
    %v6501 = vpack.c.b16 %v3533, %v3525
    %v6502 = vpack.c.b16 %v3534, %v3526
    %v6503 = vpack.c.b16 %v3535, %v3527
    %v6504 = vpack.c.b16 %v3536, %v3528
    %v6505 = vpack.c.b16 %v3545, %v3537
    %v6506 = vpack.c.b16 %v3546, %v3538
    %v6507 = vpack.c.b16 %v3547, %v3539
    %v6508 = vpack.c.b16 %v3548, %v3540
    %v6509 = vpack.c.b16 %v3549, %v3541
    %v6510 = vpack.c.b16 %v3550, %v3542
    %v6511 = vpack.c.b16 %v3551, %v3543
    %v6512 = vpack.c.b16 %v3552, %v3544
    %v6513 = vpack.c.b16 %v3561, %v3553
    %v6514 = vpack.c.b16 %v3562, %v3554
    %v6515 = vpack.c.b16 %v3563, %v3555
    %v6516 = vpack.c.b16 %v3564, %v3556
    %v6517 = vpack.c.b16 %v3565, %v3557
    %v6518 = vpack.c.b16 %v3566, %v3558
    %v6519 = vpack.c.b16 %v3567, %v3559
    %v6520 = vpack.c.b16 %v3568, %v3560
    %v6521 = vpack.c.b16 %v3577, %v3569
    %v6522 = vpack.c.b16 %v3578, %v3570
    %v6523 = vpack.c.b16 %v3579, %v3571
    %v6524 = vpack.c.b16 %v3580, %v3572
    %v6525 = vpack.c.b16 %v3581, %v3573
    %v6526 = vpack.c.b16 %v3582, %v3574
    %v6527 = vpack.c.b16 %v3583, %v3575
    %v6528 = vpack.c.b16 %v3584, %v3576
    %v6529 = vpack.c.b16 %v3593, %v3585
    %v6530 = vpack.c.b16 %v3594, %v3586
    %v6531 = vpack.c.b16 %v3595, %v3587
    %v6532 = vpack.c.b16 %v3596, %v3588
    %v6533 = vpack.c.b16 %v3597, %v3589
    %v6534 = vpack.c.b16 %v3598, %v3590
    %v6535 = vpack.c.b16 %v3599, %v3591
    %v6536 = vpack.c.b16 %v3600, %v3592
    %v6537 = vpack.c.b16 %v3609, %v3601
    %v6538 = vpack.c.b16 %v3610, %v3602
    %v6539 = vpack.c.b16 %v3611, %v3603
    %v6540 = vpack.c.b16 %v3612, %v3604
    %v6541 = vpack.c.b16 %v3613, %v3605
    %v6542 = vpack.c.b16 %v3614, %v3606
    %v6543 = vpack.c.b16 %v3615, %v3607
    %v6544 = vpack.c.b16 %v3616, %v3608
    %v6545 = vpack.c.b16 %v3625, %v3617
    %v6546 = vpack.c.b16 %v3626, %v3618
    %v6547 = vpack.c.b16 %v3627, %v3619
    %v6548 = vpack.c.b16 %v3628, %v3620
    %v6549 = vpack.c.b16 %v3629, %v3621
    %v6550 = vpack.c.b16 %v3630, %v3622
    %v6551 = vpack.c.b16 %v3631, %v3623
    %v6552 = vpack.c.b16 %v3632, %v3624
    %v6553 = vpack.c.b16 %v3641, %v3633
    %v6554 = vpack.c.b16 %v3642, %v3634
    %v6555 = vpack.c.b16 %v3643, %v3635
    %v6556 = vpack.c.b16 %v3644, %v3636
    %v6557 = vpack.c.b16 %v3645, %v3637
    %v6558 = vpack.c.b16 %v3646, %v3638
    %v6559 = vpack.c.b16 %v3647, %v3639
    %v6560 = vpack.c.b16 %v3648, %v3640
    %v6561 = vpack.c.b16 %v3657, %v3649
    %v6562 = vpack.c.b16 %v3658, %v3650
    %v6563 = vpack.c.b16 %v3659, %v3651
    %v6564 = vpack.c.b16 %v3660, %v3652
    %v6565 = vpack.c.b16 %v3661, %v3653
    %v6566 = vpack.c.b16 %v3662, %v3654
    %v6567 = vpack.c.b16 %v3663, %v3655
    %v6568 = vpack.c.b16 %v3664, %v3656
    %v6569 = vpack.c.b16 %v3673, %v3665
    %v6570 = vpack.c.b16 %v3674, %v3666
    %v6571 = vpack.c.b16 %v3675, %v3667
    %v6572 = vpack.c.b16 %v3676, %v3668
    %v6573 = vpack.c.b16 %v3677, %v3669
    %v6574 = vpack.c.b16 %v3678, %v3670
    %v6575 = vpack.c.b16 %v3679, %v3671
    %v6576 = vpack.c.b16 %v3680, %v3672
    %v6577 = vpack.c.b16 %v3689, %v3681
    %v6578 = vpack.c.b16 %v3690, %v3682
    %v6579 = vpack.c.b16 %v3691, %v3683
    %v6580 = vpack.c.b16 %v3692, %v3684
    %v6581 = vpack.c.b16 %v3693, %v3685
    %v6582 = vpack.c.b16 %v3694, %v3686
    %v6583 = vpack.c.b16 %v3695, %v3687
    %v6584 = vpack.c.b16 %v3696, %v3688
    %v6585 = vpack.c.b16 %v3705, %v3697
    %v6586 = vpack.c.b16 %v3706, %v3698
    %v6587 = vpack.c.b16 %v3707, %v3699
    %v6588 = vpack.c.b16 %v3708, %v3700
    %v6589 = vpack.c.b16 %v3709, %v3701
    %v6590 = vpack.c.b16 %v3710, %v3702
    %v6591 = vpack.c.b16 %v3711, %v3703
    %v6592 = vpack.c.b16 %v3712, %v3704
    %v6593 = vpack.c.b16 %v3721, %v3713
    %v6594 = vpack.c.b16 %v3722, %v3714
    %v6595 = vpack.c.b16 %v3723, %v3715
    %v6596 = vpack.c.b16 %v3724, %v3716
    %v6597 = vpack.c.b16 %v3725, %v3717
    %v6598 = vpack.c.b16 %v3726, %v3718
    %v6599 = vpack.c.b16 %v3727, %v3719
    %v6600 = vpack.c.b16 %v3728, %v3720
    %v6601 = vpack.c.b16 %v3737, %v3729
    %v6602 = vpack.c.b16 %v3738, %v3730
    %v6603 = vpack.c.b16 %v3739, %v3731
    %v6604 = vpack.c.b16 %v3740, %v3732
    %v6605 = vpack.c.b16 %v3741, %v3733
    %v6606 = vpack.c.b16 %v3742, %v3734
    %v6607 = vpack.c.b16 %v3743, %v3735
    %v6608 = vpack.c.b16 %v3744, %v3736
    %v6609 = vpack.c.b16 %v3753, %v3745
    %v6610 = vpack.c.b16 %v3754, %v3746
    %v6611 = vpack.c.b16 %v3755, %v3747
    %v6612 = vpack.c.b16 %v3756, %v3748
    %v6613 = vpack.c.b16 %v3757, %v3749
    %v6614 = vpack.c.b16 %v3758, %v3750
    %v6615 = vpack.c.b16 %v3759, %v3751
    %v6616 = vpack.c.b16 %v3760, %v3752
    %v6617 = vpack.c.b16 %v3769, %v3761
    %v6618 = vpack.c.b16 %v3770, %v3762
    %v6619 = vpack.c.b16 %v3771, %v3763
    %v6620 = vpack.c.b16 %v3772, %v3764
    %v6621 = vpack.c.b16 %v3773, %v3765
    %v6622 = vpack.c.b16 %v3774, %v3766
    %v6623 = vpack.c.b16 %v3775, %v3767
    %v6624 = vpack.c.b16 %v3776, %v3768
    %v6625 = vpack.c.b16 %v3785, %v3777
    %v6626 = vpack.c.b16 %v3786, %v3778
    %v6627 = vpack.c.b16 %v3787, %v3779
    %v6628 = vpack.c.b16 %v3788, %v3780
    %v6629 = vpack.c.b16 %v3789, %v3781
    %v6630 = vpack.c.b16 %v3790, %v3782
    %v6631 = vpack.c.b16 %v3791, %v3783
    %v6632 = vpack.c.b16 %v3792, %v3784
    %v6633 = vpack.c.b16 %v3801, %v3793
    %v6634 = vpack.c.b16 %v3802, %v3794
    %v6635 = vpack.c.b16 %v3803, %v3795
    %v6636 = vpack.c.b16 %v3804, %v3796
    %v6637 = vpack.c.b16 %v3805, %v3797
    %v6638 = vpack.c.b16 %v3806, %v3798
    %v6639 = vpack.c.b16 %v3807, %v3799
    %v6640 = vpack.c.b16 %v3808, %v3800
    %v6641 = vpack.c.b16 %v3817, %v3809
    %v6642 = vpack.c.b16 %v3818, %v3810
    %v6643 = vpack.c.b16 %v3819, %v3811
    %v6644 = vpack.c.b16 %v3820, %v3812
    %v6645 = vpack.c.b16 %v3821, %v3813
    %v6646 = vpack.c.b16 %v3822, %v3814
    %v6647 = vpack.c.b16 %v3823, %v3815
    %v6648 = vpack.c.b16 %v3824, %v3816
    %v6649 = vpack.c.b16 %v3833, %v3825
    %v6650 = vpack.c.b16 %v3834, %v3826
    %v6651 = vpack.c.b16 %v3835, %v3827
    %v6652 = vpack.c.b16 %v3836, %v3828
    %v6653 = vpack.c.b16 %v3837, %v3829
    %v6654 = vpack.c.b16 %v3838, %v3830
    %v6655 = vpack.c.b16 %v3839, %v3831
    %v6656 = vpack.c.b16 %v3840, %v3832
    %v6657 = vpack.c.b16 %v3849, %v3841
    %v6658 = vpack.c.b16 %v3850, %v3842
    %v6659 = vpack.c.b16 %v3851, %v3843
    %v6660 = vpack.c.b16 %v3852, %v3844
    %v6661 = vpack.c.b16 %v3853, %v3845
    %v6662 = vpack.c.b16 %v3854, %v3846
    %v6663 = vpack.c.b16 %v3855, %v3847
    %v6664 = vpack.c.b16 %v3856, %v3848
    %v6665 = vpack.c.b16 %v3865, %v3857
    %v6666 = vpack.c.b16 %v3866, %v3858
    %v6667 = vpack.c.b16 %v3867, %v3859
    %v6668 = vpack.c.b16 %v3868, %v3860
    %v6669 = vpack.c.b16 %v3869, %v3861
    %v6670 = vpack.c.b16 %v3870, %v3862
    %v6671 = vpack.c.b16 %v3871, %v3863
    %v6672 = vpack.c.b16 %v3872, %v3864
    %v6673 = vpack.c.b16 %v3881, %v3873
    %v6674 = vpack.c.b16 %v3882, %v3874
    %v6675 = vpack.c.b16 %v3883, %v3875
    %v6676 = vpack.c.b16 %v3884, %v3876
    %v6677 = vpack.c.b16 %v3885, %v3877
    %v6678 = vpack.c.b16 %v3886, %v3878
    %v6679 = vpack.c.b16 %v3887, %v3879
    %v6680 = vpack.c.b16 %v3888, %v3880
    %v6681 = vpack.c.b16 %v3897, %v3889
    %v6682 = vpack.c.b16 %v3898, %v3890
    %v6683 = vpack.c.b16 %v3899, %v3891
    %v6684 = vpack.c.b16 %v3900, %v3892
    %v6685 = vpack.c.b16 %v3901, %v3893
    %v6686 = vpack.c.b16 %v3902, %v3894
    %v6687 = vpack.c.b16 %v3903, %v3895
    %v6688 = vpack.c.b16 %v3904, %v3896
    %v6689 = vpack.c.b16 %v3913, %v3905
    %v6690 = vpack.c.b16 %v3914, %v3906
    %v6691 = vpack.c.b16 %v3915, %v3907
    %v6692 = vpack.c.b16 %v3916, %v3908
    %v6693 = vpack.c.b16 %v3917, %v3909
    %v6694 = vpack.c.b16 %v3918, %v3910
    %v6695 = vpack.c.b16 %v3919, %v3911
    %v6696 = vpack.c.b16 %v3920, %v3912
    %v6697 = vpack.c.b16 %v3929, %v3921
    %v6698 = vpack.c.b16 %v3930, %v3922
    %v6699 = vpack.c.b16 %v3931, %v3923
    %v6700 = vpack.c.b16 %v3932, %v3924
    %v6701 = vpack.c.b16 %v3933, %v3925
    %v6702 = vpack.c.b16 %v3934, %v3926
    %v6703 = vpack.c.b16 %v3935, %v3927
    %v6704 = vpack.c.b16 %v3936, %v3928
    %v6705 = vpack.c.b16 %v3945, %v3937
    %v6706 = vpack.c.b16 %v3946, %v3938
    %v6707 = vpack.c.b16 %v3947, %v3939
    %v6708 = vpack.c.b16 %v3948, %v3940
    %v6709 = vpack.c.b16 %v3949, %v3941
    %v6710 = vpack.c.b16 %v3950, %v3942
    %v6711 = vpack.c.b16 %v3951, %v3943
    %v6712 = vpack.c.b16 %v3952, %v3944
    %v6713 = vpack.c.b16 %v3961, %v3953
    %v6714 = vpack.c.b16 %v3962, %v3954
    %v6715 = vpack.c.b16 %v3963, %v3955
    %v6716 = vpack.c.b16 %v3964, %v3956
    %v6717 = vpack.c.b16 %v3965, %v3957
    %v6718 = vpack.c.b16 %v3966, %v3958
    %v6719 = vpack.c.b16 %v3967, %v3959
    %v6720 = vpack.c.b16 %v3968, %v3960
    %v6721 = vpack.c.b16 %v3977, %v3969
    %v6722 = vpack.c.b16 %v3978, %v3970
    %v6723 = vpack.c.b16 %v3979, %v3971
    %v6724 = vpack.c.b16 %v3980, %v3972
    %v6725 = vpack.c.b16 %v3981, %v3973
    %v6726 = vpack.c.b16 %v3982, %v3974
    %v6727 = vpack.c.b16 %v3983, %v3975
    %v6728 = vpack.c.b16 %v3984, %v3976
    %v6729 = vpack.c.b16 %v3993, %v3985
    %v6730 = vpack.c.b16 %v3994, %v3986
    %v6731 = vpack.c.b16 %v3995, %v3987
    %v6732 = vpack.c.b16 %v3996, %v3988
    %v6733 = vpack.c.b16 %v3997, %v3989
    %v6734 = vpack.c.b16 %v3998, %v3990
    %v6735 = vpack.c.b16 %v3999, %v3991
    %v6736 = vpack.c.b16 %v4000, %v3992
    %v6737 = vpack.c.b16 %v4009, %v4001
    %v6738 = vpack.c.b16 %v4010, %v4002
    %v6739 = vpack.c.b16 %v4011, %v4003
    %v6740 = vpack.c.b16 %v4012, %v4004
    %v6741 = vpack.c.b16 %v4013, %v4005
    %v6742 = vpack.c.b16 %v4014, %v4006
    %v6743 = vpack.c.b16 %v4015, %v4007
    %v6744 = vpack.c.b16 %v4016, %v4008
    %v6745 = vpack.c.b16 %v4025, %v4017
    %v6746 = vpack.c.b16 %v4026, %v4018
    %v6747 = vpack.c.b16 %v4027, %v4019
    %v6748 = vpack.c.b16 %v4028, %v4020
    %v6749 = vpack.c.b16 %v4029, %v4021
    %v6750 = vpack.c.b16 %v4030, %v4022
    %v6751 = vpack.c.b16 %v4031, %v4023
    %v6752 = vpack.c.b16 %v4032, %v4024
    %v6753 = vpack.c.b16 %v4041, %v4033
    %v6754 = vpack.c.b16 %v4042, %v4034
    %v6755 = vpack.c.b16 %v4043, %v4035
    %v6756 = vpack.c.b16 %v4044, %v4036
    %v6757 = vpack.c.b16 %v4045, %v4037
    %v6758 = vpack.c.b16 %v4046, %v4038
    %v6759 = vpack.c.b16 %v4047, %v4039
    %v6760 = vpack.c.b16 %v4048, %v4040
    %v6761 = vpack.c.b16 %v4057, %v4049
    %v6762 = vpack.c.b16 %v4058, %v4050
    %v6763 = vpack.c.b16 %v4059, %v4051
    %v6764 = vpack.c.b16 %v4060, %v4052
    %v6765 = vpack.c.b16 %v4061, %v4053
    %v6766 = vpack.c.b16 %v4062, %v4054
    %v6767 = vpack.c.b16 %v4063, %v4055
    %v6768 = vpack.c.b16 %v4064, %v4056
    %v6769 = vpack.c.b16 %v4073, %v4065
    %v6770 = vpack.c.b16 %v4074, %v4066
    %v6771 = vpack.c.b16 %v4075, %v4067
    %v6772 = vpack.c.b16 %v4076, %v4068
    %v6773 = vpack.c.b16 %v4077, %v4069
    %v6774 = vpack.c.b16 %v4078, %v4070
    %v6775 = vpack.c.b16 %v4079, %v4071
    %v6776 = vpack.c.b16 %v4080, %v4072
    %v6777 = vpack.c.b16 %v4089, %v4081
    %v6778 = vpack.c.b16 %v4090, %v4082
    %v6779 = vpack.c.b16 %v4091, %v4083
    %v6780 = vpack.c.b16 %v4092, %v4084
    %v6781 = vpack.c.b16 %v4093, %v4085
    %v6782 = vpack.c.b16 %v4094, %v4086
    %v6783 = vpack.c.b16 %v4095, %v4087
    %v6784 = vpack.c.b16 %v4096, %v4088
    %v6785 = vpack.c.b16 %v4105, %v4097
    %v6786 = vpack.c.b16 %v4106, %v4098
    %v6787 = vpack.c.b16 %v4107, %v4099
    %v6788 = vpack.c.b16 %v4108, %v4100
    %v6789 = vpack.c.b16 %v4109, %v4101
    %v6790 = vpack.c.b16 %v4110, %v4102
    %v6791 = vpack.c.b16 %v4111, %v4103
    %v6792 = vpack.c.b16 %v4112, %v4104
    %v6793 = vpack.c.b16 %v4121, %v4113
    %v6794 = vpack.c.b16 %v4122, %v4114
    %v6795 = vpack.c.b16 %v4123, %v4115
    %v6796 = vpack.c.b16 %v4124, %v4116
    %v6797 = vpack.c.b16 %v4125, %v4117
    %v6798 = vpack.c.b16 %v4126, %v4118
    %v6799 = vpack.c.b16 %v4127, %v4119
    %v6800 = vpack.c.b16 %v4128, %v4120
    %v6801 = vpack.c.b16 %v4137, %v4129
    %v6802 = vpack.c.b16 %v4138, %v4130
    %v6803 = vpack.c.b16 %v4139, %v4131
    %v6804 = vpack.c.b16 %v4140, %v4132
    %v6805 = vpack.c.b16 %v4141, %v4133
    %v6806 = vpack.c.b16 %v4142, %v4134
    %v6807 = vpack.c.b16 %v4143, %v4135
    %v6808 = vpack.c.b16 %v4144, %v4136
    %v6809 = vpack.c.b16 %v4153, %v4145
    %v6810 = vpack.c.b16 %v4154, %v4146
    %v6811 = vpack.c.b16 %v4155, %v4147
    %v6812 = vpack.c.b16 %v4156, %v4148
    %v6813 = vpack.c.b16 %v4157, %v4149
    %v6814 = vpack.c.b16 %v4158, %v4150
    %v6815 = vpack.c.b16 %v4159, %v4151
    %v6816 = vpack.c.b16 %v4160, %v4152
    %v6817 = vpack.c.b16 %v4169, %v4161
    %v6818 = vpack.c.b16 %v4170, %v4162
    %v6819 = vpack.c.b16 %v4171, %v4163
    %v6820 = vpack.c.b16 %v4172, %v4164
    %v6821 = vpack.c.b16 %v4173, %v4165
    %v6822 = vpack.c.b16 %v4174, %v4166
    %v6823 = vpack.c.b16 %v4175, %v4167
    %v6824 = vpack.c.b16 %v4176, %v4168
    %v6825 = vpack.c.b16 %v4185, %v4177
    %v6826 = vpack.c.b16 %v4186, %v4178
    %v6827 = vpack.c.b16 %v4187, %v4179
    %v6828 = vpack.c.b16 %v4188, %v4180
    %v6829 = vpack.c.b16 %v4189, %v4181
    %v6830 = vpack.c.b16 %v4190, %v4182
    %v6831 = vpack.c.b16 %v4191, %v4183
    %v6832 = vpack.c.b16 %v4192, %v4184
    %v6833 = vpack.c.b16 %v4201, %v4193
    %v6834 = vpack.c.b16 %v4202, %v4194
    %v6835 = vpack.c.b16 %v4203, %v4195
    %v6836 = vpack.c.b16 %v4204, %v4196
    %v6837 = vpack.c.b16 %v4205, %v4197
    %v6838 = vpack.c.b16 %v4206, %v4198
    %v6839 = vpack.c.b16 %v4207, %v4199
    %v6840 = vpack.c.b16 %v4208, %v4200
    %v6841 = vpack.c.b16 %v4217, %v4209
    %v6842 = vpack.c.b16 %v4218, %v4210
    %v6843 = vpack.c.b16 %v4219, %v4211
    %v6844 = vpack.c.b16 %v4220, %v4212
    %v6845 = vpack.c.b16 %v4221, %v4213
    %v6846 = vpack.c.b16 %v4222, %v4214
    %v6847 = vpack.c.b16 %v4223, %v4215
    %v6848 = vpack.c.b16 %v4224, %v4216
    %v6849 = vpack.c.b16 %v4233, %v4225
    %v6850 = vpack.c.b16 %v4234, %v4226
    %v6851 = vpack.c.b16 %v4235, %v4227
    %v6852 = vpack.c.b16 %v4236, %v4228
    %v6853 = vpack.c.b16 %v4237, %v4229
    %v6854 = vpack.c.b16 %v4238, %v4230
    %v6855 = vpack.c.b16 %v4239, %v4231
    %v6856 = vpack.c.b16 %v4240, %v4232
    %v6857 = vpack.c.b16 %v4249, %v4241
    %v6858 = vpack.c.b16 %v4250, %v4242
    %v6859 = vpack.c.b16 %v4251, %v4243
    %v6860 = vpack.c.b16 %v4252, %v4244
    %v6861 = vpack.c.b16 %v4253, %v4245
    %v6862 = vpack.c.b16 %v4254, %v4246
    %v6863 = vpack.c.b16 %v4255, %v4247
    %v6864 = vpack.c.b16 %v4256, %v4248
    %v6865 = vpack.c.b16 %v4265, %v4257
    %v6866 = vpack.c.b16 %v4266, %v4258
    %v6867 = vpack.c.b16 %v4267, %v4259
    %v6868 = vpack.c.b16 %v4268, %v4260
    %v6869 = vpack.c.b16 %v4269, %v4261
    %v6870 = vpack.c.b16 %v4270, %v4262
    %v6871 = vpack.c.b16 %v4271, %v4263
    %v6872 = vpack.c.b16 %v4272, %v4264
    %v6873 = vpack.c.b16 %v4281, %v4273
    %v6874 = vpack.c.b16 %v4282, %v4274
    %v6875 = vpack.c.b16 %v4283, %v4275
    %v6876 = vpack.c.b16 %v4284, %v4276
    %v6877 = vpack.c.b16 %v4285, %v4277
    %v6878 = vpack.c.b16 %v4286, %v4278
    %v6879 = vpack.c.b16 %v4287, %v4279
    %v6880 = vpack.c.b16 %v4288, %v4280
    %v6881 = vpack.c.b16 %v4297, %v4289
    %v6882 = vpack.c.b16 %v4298, %v4290
    %v6883 = vpack.c.b16 %v4299, %v4291
    %v6884 = vpack.c.b16 %v4300, %v4292
    %v6885 = vpack.c.b16 %v4301, %v4293
    %v6886 = vpack.c.b16 %v4302, %v4294
    %v6887 = vpack.c.b16 %v4303, %v4295
    %v6888 = vpack.c.b16 %v4304, %v4296
    %v6889 = vpack.c.b16 %v4313, %v4305
    %v6890 = vpack.c.b16 %v4314, %v4306
    %v6891 = vpack.c.b16 %v4315, %v4307
    %v6892 = vpack.c.b16 %v4316, %v4308
    %v6893 = vpack.c.b16 %v4317, %v4309
    %v6894 = vpack.c.b16 %v4318, %v4310
    %v6895 = vpack.c.b16 %v4319, %v4311
    %v6896 = vpack.c.b16 %v4320, %v4312
    %v6897 = vpack.c.b16 %v4329, %v4321
    %v6898 = vpack.c.b16 %v4330, %v4322
    %v6899 = vpack.c.b16 %v4331, %v4323
    %v6900 = vpack.c.b16 %v4332, %v4324
    %v6901 = vpack.c.b16 %v4333, %v4325
    %v6902 = vpack.c.b16 %v4334, %v4326
    %v6903 = vpack.c.b16 %v4335, %v4327
    %v6904 = vpack.c.b16 %v4336, %v4328
    %v6905 = vpack.c.b16 %v4345, %v4337
    %v6906 = vpack.c.b16 %v4346, %v4338
    %v6907 = vpack.c.b16 %v4347, %v4339
    %v6908 = vpack.c.b16 %v4348, %v4340
    %v6909 = vpack.c.b16 %v4349, %v4341
    %v6910 = vpack.c.b16 %v4350, %v4342
    %v6911 = vpack.c.b16 %v4351, %v4343
    %v6912 = vpack.c.b16 %v4352, %v4344
    %v6913 = vpack.c.b16 %v4361, %v4353
    %v6914 = vpack.c.b16 %v4362, %v4354
    %v6915 = vpack.c.b16 %v4363, %v4355
    %v6916 = vpack.c.b16 %v4364, %v4356
    %v6917 = vpack.c.b16 %v4365, %v4357
    %v6918 = vpack.c.b16 %v4366, %v4358
    %v6919 = vpack.c.b16 %v4367, %v4359
    %v6920 = vpack.c.b16 %v4368, %v4360
    %v6921 = vpack.c.b16 %v4377, %v4369
    %v6922 = vpack.c.b16 %v4378, %v4370
    %v6923 = vpack.c.b16 %v4379, %v4371
    %v6924 = vpack.c.b16 %v4380, %v4372
    %v6925 = vpack.c.b16 %v4381, %v4373
    %v6926 = vpack.c.b16 %v4382, %v4374
    %v6927 = vpack.c.b16 %v4383, %v4375
    %v6928 = vpack.c.b16 %v4384, %v4376
    %v6929 = vpack.c.b16 %v4393, %v4385
    %v6930 = vpack.c.b16 %v4394, %v4386
    %v6931 = vpack.c.b16 %v4395, %v4387
    %v6932 = vpack.c.b16 %v4396, %v4388
    %v6933 = vpack.c.b16 %v4397, %v4389
    %v6934 = vpack.c.b16 %v4398, %v4390
    %v6935 = vpack.c.b16 %v4399, %v4391
    %v6936 = vpack.c.b16 %v4400, %v4392
    %v6937 = vpack.c.b16 %v4409, %v4401
    %v6938 = vpack.c.b16 %v4410, %v4402
    %v6939 = vpack.c.b16 %v4411, %v4403
    %v6940 = vpack.c.b16 %v4412, %v4404
    %v6941 = vpack.c.b16 %v4413, %v4405
    %v6942 = vpack.c.b16 %v4414, %v4406
    %v6943 = vpack.c.b16 %v4415, %v4407
    %v6944 = vpack.c.b16 %v4416, %v4408
    %v6945 = vpack.c.b16 %v4425, %v4417
    %v6946 = vpack.c.b16 %v4426, %v4418
    %v6947 = vpack.c.b16 %v4427, %v4419
    %v6948 = vpack.c.b16 %v4428, %v4420
    %v6949 = vpack.c.b16 %v4429, %v4421
    %v6950 = vpack.c.b16 %v4430, %v4422
    %v6951 = vpack.c.b16 %v4431, %v4423
    %v6952 = vpack.c.b16 %v4432, %v4424
    %v6953 = vpack.c.b16 %v4441, %v4433
    %v6954 = vpack.c.b16 %v4442, %v4434
    %v6955 = vpack.c.b16 %v4443, %v4435
    %v6956 = vpack.c.b16 %v4444, %v4436
    %v6957 = vpack.c.b16 %v4445, %v4437
    %v6958 = vpack.c.b16 %v4446, %v4438
    %v6959 = vpack.c.b16 %v4447, %v4439
    %v6960 = vpack.c.b16 %v4448, %v4440
    %v6961 = vpack.c.b16 %v4457, %v4449
    %v6962 = vpack.c.b16 %v4458, %v4450
    %v6963 = vpack.c.b16 %v4459, %v4451
    %v6964 = vpack.c.b16 %v4460, %v4452
    %v6965 = vpack.c.b16 %v4461, %v4453
    %v6966 = vpack.c.b16 %v4462, %v4454
    %v6967 = vpack.c.b16 %v4463, %v4455
    %v6968 = vpack.c.b16 %v4464, %v4456
    %v6969 = vpack.c.b16 %v4473, %v4465
    %v6970 = vpack.c.b16 %v4474, %v4466
    %v6971 = vpack.c.b16 %v4475, %v4467
    %v6972 = vpack.c.b16 %v4476, %v4468
    %v6973 = vpack.c.b16 %v4477, %v4469
    %v6974 = vpack.c.b16 %v4478, %v4470
    %v6975 = vpack.c.b16 %v4479, %v4471
    %v6976 = vpack.c.b16 %v4480, %v4472
    %v6977 = vpack.c.b16 %v4489, %v4481
    %v6978 = vpack.c.b16 %v4490, %v4482
    %v6979 = vpack.c.b16 %v4491, %v4483
    %v6980 = vpack.c.b16 %v4492, %v4484
    %v6981 = vpack.c.b16 %v4493, %v4485
    %v6982 = vpack.c.b16 %v4494, %v4486
    %v6983 = vpack.c.b16 %v4495, %v4487
    %v6984 = vpack.c.b16 %v4496, %v4488
    %v6985 = vpack.c.b16 %v4505, %v4497
    %v6986 = vpack.c.b16 %v4506, %v4498
    %v6987 = vpack.c.b16 %v4507, %v4499
    %v6988 = vpack.c.b16 %v4508, %v4500
    %v6989 = vpack.c.b16 %v4509, %v4501
    %v6990 = vpack.c.b16 %v4510, %v4502
    %v6991 = vpack.c.b16 %v4511, %v4503
    %v6992 = vpack.c.b16 %v4512, %v4504
    %v6993 = vpack.c.b16 %v4521, %v4513
    %v6994 = vpack.c.b16 %v4522, %v4514
    %v6995 = vpack.c.b16 %v4523, %v4515
    %v6996 = vpack.c.b16 %v4524, %v4516
    %v6997 = vpack.c.b16 %v4525, %v4517
    %v6998 = vpack.c.b16 %v4526, %v4518
    %v6999 = vpack.c.b16 %v4527, %v4519
    %v7000 = vpack.c.b16 %v4528, %v4520
    %v7001 = vpack.c.b16 %v4537, %v4529
    %v7002 = vpack.c.b16 %v4538, %v4530
    %v7003 = vpack.c.b16 %v4539, %v4531
    %v7004 = vpack.c.b16 %v4540, %v4532
    %v7005 = vpack.c.b16 %v4541, %v4533
    %v7006 = vpack.c.b16 %v4542, %v4534
    %v7007 = vpack.c.b16 %v4543, %v4535
    %v7008 = vpack.c.b16 %v4544, %v4536
    %v7009 = vpack.c.b16 %v4553, %v4545
    %v7010 = vpack.c.b16 %v4554, %v4546
    %v7011 = vpack.c.b16 %v4555, %v4547
    %v7012 = vpack.c.b16 %v4556, %v4548
    %v7013 = vpack.c.b16 %v4557, %v4549
    %v7014 = vpack.c.b16 %v4558, %v4550
    %v7015 = vpack.c.b16 %v4559, %v4551
    %v7016 = vpack.c.b16 %v4560, %v4552
    %v7017 = vpack.c.b16 %v4569, %v4561
    %v7018 = vpack.c.b16 %v4570, %v4562
    %v7019 = vpack.c.b16 %v4571, %v4563
    %v7020 = vpack.c.b16 %v4572, %v4564
    %v7021 = vpack.c.b16 %v4573, %v4565
    %v7022 = vpack.c.b16 %v4574, %v4566
    %v7023 = vpack.c.b16 %v4575, %v4567
    %v7024 = vpack.c.b16 %v4576, %v4568
    %v7025 = vpack.c.b16 %v4585, %v4577
    %v7026 = vpack.c.b16 %v4586, %v4578
    %v7027 = vpack.c.b16 %v4587, %v4579
    %v7028 = vpack.c.b16 %v4588, %v4580
    %v7029 = vpack.c.b16 %v4589, %v4581
    %v7030 = vpack.c.b16 %v4590, %v4582
    %v7031 = vpack.c.b16 %v4591, %v4583
    %v7032 = vpack.c.b16 %v4592, %v4584
    %v7033 = vpack.c.b16 %v4601, %v4593
    %v7034 = vpack.c.b16 %v4602, %v4594
    %v7035 = vpack.c.b16 %v4603, %v4595
    %v7036 = vpack.c.b16 %v4604, %v4596
    %v7037 = vpack.c.b16 %v4605, %v4597
    %v7038 = vpack.c.b16 %v4606, %v4598
    %v7039 = vpack.c.b16 %v4607, %v4599
    %v7040 = vpack.c.b16 %v4608, %v4600
    %v7041 = vpack.c.b16 %v4617, %v4609
    %v7042 = vpack.c.b16 %v4618, %v4610
    %v7043 = vpack.c.b16 %v4619, %v4611
    %v7044 = vpack.c.b16 %v4620, %v4612
    %v7045 = vpack.c.b16 %v4621, %v4613
    %v7046 = vpack.c.b16 %v4622, %v4614
    %v7047 = vpack.c.b16 %v4623, %v4615
    %v7048 = vpack.c.b16 %v4624, %v4616
    %v7049 = vpack.c.b16 %v4633, %v4625
    %v7050 = vpack.c.b16 %v4634, %v4626
    %v7051 = vpack.c.b16 %v4635, %v4627
    %v7052 = vpack.c.b16 %v4636, %v4628
    %v7053 = vpack.c.b16 %v4637, %v4629
    %v7054 = vpack.c.b16 %v4638, %v4630
    %v7055 = vpack.c.b16 %v4639, %v4631
    %v7056 = vpack.c.b16 %v4640, %v4632
    %v7057 = vpack.c.b16 %v4649, %v4641
    %v7058 = vpack.c.b16 %v4650, %v4642
    %v7059 = vpack.c.b16 %v4651, %v4643
    %v7060 = vpack.c.b16 %v4652, %v4644
    %v7061 = vpack.c.b16 %v4653, %v4645
    %v7062 = vpack.c.b16 %v4654, %v4646
    %v7063 = vpack.c.b16 %v4655, %v4647
    %v7064 = vpack.c.b16 %v4656, %v4648
    %v7065 = vpack.c.b16 %v4665, %v4657
    %v7066 = vpack.c.b16 %v4666, %v4658
    %v7067 = vpack.c.b16 %v4667, %v4659
    %v7068 = vpack.c.b16 %v4668, %v4660
    %v7069 = vpack.c.b16 %v4669, %v4661
    %v7070 = vpack.c.b16 %v4670, %v4662
    %v7071 = vpack.c.b16 %v4671, %v4663
    %v7072 = vpack.c.b16 %v4672, %v4664
    %v7073 = vpack.c.b16 %v4681, %v4673
    %v7074 = vpack.c.b16 %v4682, %v4674
    %v7075 = vpack.c.b16 %v4683, %v4675
    %v7076 = vpack.c.b16 %v4684, %v4676
    %v7077 = vpack.c.b16 %v4685, %v4677
    %v7078 = vpack.c.b16 %v4686, %v4678
    %v7079 = vpack.c.b16 %v4687, %v4679
    %v7080 = vpack.c.b16 %v4688, %v4680
    %v7081 = vpack.c.b16 %v4697, %v4689
    %v7082 = vpack.c.b16 %v4698, %v4690
    %v7083 = vpack.c.b16 %v4699, %v4691
    %v7084 = vpack.c.b16 %v4700, %v4692
    %v7085 = vpack.c.b16 %v4701, %v4693
    %v7086 = vpack.c.b16 %v4702, %v4694
    %v7087 = vpack.c.b16 %v4703, %v4695
    %v7088 = vpack.c.b16 %v4704, %v4696
    %v7089 = vpack.c.b16 %v4713, %v4705
    %v7090 = vpack.c.b16 %v4714, %v4706
    %v7091 = vpack.c.b16 %v4715, %v4707
    %v7092 = vpack.c.b16 %v4716, %v4708
    %v7093 = vpack.c.b16 %v4717, %v4709
    %v7094 = vpack.c.b16 %v4718, %v4710
    %v7095 = vpack.c.b16 %v4719, %v4711
    %v7096 = vpack.c.b16 %v4720, %v4712
    %v7097 = vpack.c.b16 %v4729, %v4721
    %v7098 = vpack.c.b16 %v4730, %v4722
    %v7099 = vpack.c.b16 %v4731, %v4723
    %v7100 = vpack.c.b16 %v4732, %v4724
    %v7101 = vpack.c.b16 %v4733, %v4725
    %v7102 = vpack.c.b16 %v4734, %v4726
    %v7103 = vpack.c.b16 %v4735, %v4727
    %v7104 = vpack.c.b16 %v4736, %v4728
    %v7105 = vpack.c.b16 %v4745, %v4737
    %v7106 = vpack.c.b16 %v4746, %v4738
    %v7107 = vpack.c.b16 %v4747, %v4739
    %v7108 = vpack.c.b16 %v4748, %v4740
    %v7109 = vpack.c.b16 %v4749, %v4741
    %v7110 = vpack.c.b16 %v4750, %v4742
    %v7111 = vpack.c.b16 %v4751, %v4743
    %v7112 = vpack.c.b16 %v4752, %v4744
    %v7113 = vpack.c.b16 %v4761, %v4753
    %v7114 = vpack.c.b16 %v4762, %v4754
    %v7115 = vpack.c.b16 %v4763, %v4755
    %v7116 = vpack.c.b16 %v4764, %v4756
    %v7117 = vpack.c.b16 %v4765, %v4757
    %v7118 = vpack.c.b16 %v4766, %v4758
    %v7119 = vpack.c.b16 %v4767, %v4759
    %v7120 = vpack.c.b16 %v4768, %v4760
    %v7121 = vpack.c.b16 %v4777, %v4769
    %v7122 = vpack.c.b16 %v4778, %v4770
    %v7123 = vpack.c.b16 %v4779, %v4771
    %v7124 = vpack.c.b16 %v4780, %v4772
    %v7125 = vpack.c.b16 %v4781, %v4773
    %v7126 = vpack.c.b16 %v4782, %v4774
    %v7127 = vpack.c.b16 %v4783, %v4775
    %v7128 = vpack.c.b16 %v4784, %v4776
    %v7129 = vpack.c.b16 %v4793, %v4785
    %v7130 = vpack.c.b16 %v4794, %v4786
    %v7131 = vpack.c.b16 %v4795, %v4787
    %v7132 = vpack.c.b16 %v4796, %v4788
    %v7133 = vpack.c.b16 %v4797, %v4789
    %v7134 = vpack.c.b16 %v4798, %v4790
    %v7135 = vpack.c.b16 %v4799, %v4791
    %v7136 = vpack.c.b16 %v4800, %v4792
    %v7137 = vpack.c.b16 %v4809, %v4801
    %v7138 = vpack.c.b16 %v4810, %v4802
    %v7139 = vpack.c.b16 %v4811, %v4803
    %v7140 = vpack.c.b16 %v4812, %v4804
    %v7141 = vpack.c.b16 %v4813, %v4805
    %v7142 = vpack.c.b16 %v4814, %v4806
    %v7143 = vpack.c.b16 %v4815, %v4807
    %v7144 = vpack.c.b16 %v4816, %v4808
    %v7145 = vpack.c.b16 %v4825, %v4817
    %v7146 = vpack.c.b16 %v4826, %v4818
    %v7147 = vpack.c.b16 %v4827, %v4819
    %v7148 = vpack.c.b16 %v4828, %v4820
    %v7149 = vpack.c.b16 %v4829, %v4821
    %v7150 = vpack.c.b16 %v4830, %v4822
    %v7151 = vpack.c.b16 %v4831, %v4823
    %v7152 = vpack.c.b16 %v4832, %v4824
    %v7153 = vpack.c.b16 %v4841, %v4833
    %v7154 = vpack.c.b16 %v4842, %v4834
    %v7155 = vpack.c.b16 %v4843, %v4835
    %v7156 = vpack.c.b16 %v4844, %v4836
    %v7157 = vpack.c.b16 %v4845, %v4837
    %v7158 = vpack.c.b16 %v4846, %v4838
    %v7159 = vpack.c.b16 %v4847, %v4839
    %v7160 = vpack.c.b16 %v4848, %v4840
    %v7161 = vpack.c.b16 %v4857, %v4849
    %v7162 = vpack.c.b16 %v4858, %v4850
    %v7163 = vpack.c.b16 %v4859, %v4851
    %v7164 = vpack.c.b16 %v4860, %v4852
    %v7165 = vpack.c.b16 %v4861, %v4853
    %v7166 = vpack.c.b16 %v4862, %v4854
    %v7167 = vpack.c.b16 %v4863, %v4855
    %v7168 = vpack.c.b16 %v4864, %v4856
    %v7169 = vpack.c.b16 %v4873, %v4865
    %v7170 = vpack.c.b16 %v4874, %v4866
    %v7171 = vpack.c.b16 %v4875, %v4867
    %v7172 = vpack.c.b16 %v4876, %v4868
    %v7173 = vpack.c.b16 %v4877, %v4869
    %v7174 = vpack.c.b16 %v4878, %v4870
    %v7175 = vpack.c.b16 %v4879, %v4871
    %v7176 = vpack.c.b16 %v4880, %v4872
    %v7177 = vpack.c.b16 %v4889, %v4881
    %v7178 = vpack.c.b16 %v4890, %v4882
    %v7179 = vpack.c.b16 %v4891, %v4883
    %v7180 = vpack.c.b16 %v4892, %v4884
    %v7181 = vpack.c.b16 %v4893, %v4885
    %v7182 = vpack.c.b16 %v4894, %v4886
    %v7183 = vpack.c.b16 %v4895, %v4887
    %v7184 = vpack.c.b16 %v4896, %v4888
    %v7185 = vpack.c.b16 %v4905, %v4897
    %v7186 = vpack.c.b16 %v4906, %v4898
    %v7187 = vpack.c.b16 %v4907, %v4899
    %v7188 = vpack.c.b16 %v4908, %v4900
    %v7189 = vpack.c.b16 %v4909, %v4901
    %v7190 = vpack.c.b16 %v4910, %v4902
    %v7191 = vpack.c.b16 %v4911, %v4903
    %v7192 = vpack.c.b16 %v4912, %v4904
    %v7193 = vpack.c.b16 %v4921, %v4913
    %v7194 = vpack.c.b16 %v4922, %v4914
    %v7195 = vpack.c.b16 %v4923, %v4915
    %v7196 = vpack.c.b16 %v4924, %v4916
    %v7197 = vpack.c.b16 %v4925, %v4917
    %v7198 = vpack.c.b16 %v4926, %v4918
    %v7199 = vpack.c.b16 %v4927, %v4919
    %v7200 = vpack.c.b16 %v4928, %v4920
    %v7201 = vpack.c.b16 %v4937, %v4929
    %v7202 = vpack.c.b16 %v4938, %v4930
    %v7203 = vpack.c.b16 %v4939, %v4931
    %v7204 = vpack.c.b16 %v4940, %v4932
    %v7205 = vpack.c.b16 %v4941, %v4933
    %v7206 = vpack.c.b16 %v4942, %v4934
    %v7207 = vpack.c.b16 %v4943, %v4935
    %v7208 = vpack.c.b16 %v4944, %v4936
    %v7209 = vpack.c.b16 %v4953, %v4945
    %v7210 = vpack.c.b16 %v4954, %v4946
    %v7211 = vpack.c.b16 %v4955, %v4947
    %v7212 = vpack.c.b16 %v4956, %v4948
    %v7213 = vpack.c.b16 %v4957, %v4949
    %v7214 = vpack.c.b16 %v4958, %v4950
    %v7215 = vpack.c.b16 %v4959, %v4951
    %v7216 = vpack.c.b16 %v4960, %v4952
    %v7217 = vpack.c.b16 %v4969, %v4961
    %v7218 = vpack.c.b16 %v4970, %v4962
    %v7219 = vpack.c.b16 %v4971, %v4963
    %v7220 = vpack.c.b16 %v4972, %v4964
    %v7221 = vpack.c.b16 %v4973, %v4965
    %v7222 = vpack.c.b16 %v4974, %v4966
    %v7223 = vpack.c.b16 %v4975, %v4967
    %v7224 = vpack.c.b16 %v4976, %v4968
    %v7225 = vpack.c.b16 %v4985, %v4977
    %v7226 = vpack.c.b16 %v4986, %v4978
    %v7227 = vpack.c.b16 %v4987, %v4979
    %v7228 = vpack.c.b16 %v4988, %v4980
    %v7229 = vpack.c.b16 %v4989, %v4981
    %v7230 = vpack.c.b16 %v4990, %v4982
    %v7231 = vpack.c.b16 %v4991, %v4983
    %v7232 = vpack.c.b16 %v4992, %v4984
    %v7233 = vpack.c.b16 %v5001, %v4993
    %v7234 = vpack.c.b16 %v5002, %v4994
    %v7235 = vpack.c.b16 %v5003, %v4995
    %v7236 = vpack.c.b16 %v5004, %v4996
    %v7237 = vpack.c.b16 %v5005, %v4997
    %v7238 = vpack.c.b16 %v5006, %v4998
    %v7239 = vpack.c.b16 %v5007, %v4999
    %v7240 = vpack.c.b16 %v5008, %v5000
    %v7241 = vpack.c.b16 %v5017, %v5009
    %v7242 = vpack.c.b16 %v5018, %v5010
    %v7243 = vpack.c.b16 %v5019, %v5011
    %v7244 = vpack.c.b16 %v5020, %v5012
    %v7245 = vpack.c.b16 %v5021, %v5013
    %v7246 = vpack.c.b16 %v5022, %v5014
    %v7247 = vpack.c.b16 %v5023, %v5015
    %v7248 = vpack.c.b16 %v5024, %v5016
    %v7249 = vpack.c.b16 %v5033, %v5025
    %v7250 = vpack.c.b16 %v5034, %v5026
    %v7251 = vpack.c.b16 %v5035, %v5027
    %v7252 = vpack.c.b16 %v5036, %v5028
    %v7253 = vpack.c.b16 %v5037, %v5029
    %v7254 = vpack.c.b16 %v5038, %v5030
    %v7255 = vpack.c.b16 %v5039, %v5031
    %v7256 = vpack.c.b16 %v5040, %v5032
    %v7257 = vpack.c.b16 %v5049, %v5041
    %v7258 = vpack.c.b16 %v5050, %v5042
    %v7259 = vpack.c.b16 %v5051, %v5043
    %v7260 = vpack.c.b16 %v5052, %v5044
    %v7261 = vpack.c.b16 %v5053, %v5045
    %v7262 = vpack.c.b16 %v5054, %v5046
    %v7263 = vpack.c.b16 %v5055, %v5047
    %v7264 = vpack.c.b16 %v5056, %v5048
    %v7265 = vpack.c.b16 %v5065, %v5057
    %v7266 = vpack.c.b16 %v5066, %v5058
    %v7267 = vpack.c.b16 %v5067, %v5059
    %v7268 = vpack.c.b16 %v5068, %v5060
    %v7269 = vpack.c.b16 %v5069, %v5061
    %v7270 = vpack.c.b16 %v5070, %v5062
    %v7271 = vpack.c.b16 %v5071, %v5063
    %v7272 = vpack.c.b16 %v5072, %v5064
    %v7273 = vpack.c.b16 %v5081, %v5073
    %v7274 = vpack.c.b16 %v5082, %v5074
    %v7275 = vpack.c.b16 %v5083, %v5075
    %v7276 = vpack.c.b16 %v5084, %v5076
    %v7277 = vpack.c.b16 %v5085, %v5077
    %v7278 = vpack.c.b16 %v5086, %v5078
    %v7279 = vpack.c.b16 %v5087, %v5079
    %v7280 = vpack.c.b16 %v5088, %v5080
    %v7281 = vpack.c.b16 %v5097, %v5089
    %v7282 = vpack.c.b16 %v5098, %v5090
    %v7283 = vpack.c.b16 %v5099, %v5091
    %v7284 = vpack.c.b16 %v5100, %v5092
    %v7285 = vpack.c.b16 %v5101, %v5093
    %v7286 = vpack.c.b16 %v5102, %v5094
    %v7287 = vpack.c.b16 %v5103, %v5095
    %v7288 = vpack.c.b16 %v5104, %v5096
    %v7289 = vpack.c.b16 %v5113, %v5105
    %v7290 = vpack.c.b16 %v5114, %v5106
    %v7291 = vpack.c.b16 %v5115, %v5107
    %v7292 = vpack.c.b16 %v5116, %v5108
    %v7293 = vpack.c.b16 %v5117, %v5109
    %v7294 = vpack.c.b16 %v5118, %v5110
    %v7295 = vpack.c.b16 %v5119, %v5111
    %v7296 = vpack.c.b16 %v5120, %v5112
    %v7297 = vpack.c.b16 %v5129, %v5121
    %v7298 = vpack.c.b16 %v5130, %v5122
    %v7299 = vpack.c.b16 %v5131, %v5123
    %v7300 = vpack.c.b16 %v5132, %v5124
    %v7301 = vpack.c.b16 %v5133, %v5125
    %v7302 = vpack.c.b16 %v5134, %v5126
    %v7303 = vpack.c.b16 %v5135, %v5127
    %v7304 = vpack.c.b16 %v5136, %v5128
    %v7305 = vpack.c.b16 %v5145, %v5137
    %v7306 = vpack.c.b16 %v5146, %v5138
    %v7307 = vpack.c.b16 %v5147, %v5139
    %v7308 = vpack.c.b16 %v5148, %v5140
    %v7309 = vpack.c.b16 %v5149, %v5141
    %v7310 = vpack.c.b16 %v5150, %v5142
    %v7311 = vpack.c.b16 %v5151, %v5143
    %v7312 = vpack.c.b16 %v5152, %v5144
    %v7313 = vpack.c.b16 %v5161, %v5153
    %v7314 = vpack.c.b16 %v5162, %v5154
    %v7315 = vpack.c.b16 %v5163, %v5155
    %v7316 = vpack.c.b16 %v5164, %v5156
    %v7317 = vpack.c.b16 %v5165, %v5157
    %v7318 = vpack.c.b16 %v5166, %v5158
    %v7319 = vpack.c.b16 %v5167, %v5159
    %v7320 = vpack.c.b16 %v5168, %v5160
    %v7321 = vpack.c.b16 %v5177, %v5169
    %v7322 = vpack.c.b16 %v5178, %v5170
    %v7323 = vpack.c.b16 %v5179, %v5171
    %v7324 = vpack.c.b16 %v5180, %v5172
    %v7325 = vpack.c.b16 %v5181, %v5173
    %v7326 = vpack.c.b16 %v5182, %v5174
    %v7327 = vpack.c.b16 %v5183, %v5175
    %v7328 = vpack.c.b16 %v5184, %v5176
    %v7329 = vpack.c.b16 %v5193, %v5185
    %v7330 = vpack.c.b16 %v5194, %v5186
    %v7331 = vpack.c.b16 %v5195, %v5187
    %v7332 = vpack.c.b16 %v5196, %v5188
    %v7333 = vpack.c.b16 %v5197, %v5189
    %v7334 = vpack.c.b16 %v5198, %v5190
    %v7335 = vpack.c.b16 %v5199, %v5191
    %v7336 = vpack.c.b16 %v5200, %v5192
    %v7337 = vpack.c.b16 %v5209, %v5201
    %v7338 = vpack.c.b16 %v5210, %v5202
    %v7339 = vpack.c.b16 %v5211, %v5203
    %v7340 = vpack.c.b16 %v5212, %v5204
    %v7341 = vpack.c.b16 %v5213, %v5205
    %v7342 = vpack.c.b16 %v5214, %v5206
    %v7343 = vpack.c.b16 %v5215, %v5207
    %v7344 = vpack.c.b16 %v5216, %v5208
    %v7345 = vpack.c.b16 %v5225, %v5217
    %v7346 = vpack.c.b16 %v5226, %v5218
    %v7347 = vpack.c.b16 %v5227, %v5219
    %v7348 = vpack.c.b16 %v5228, %v5220
    %v7349 = vpack.c.b16 %v5229, %v5221
    %v7350 = vpack.c.b16 %v5230, %v5222
    %v7351 = vpack.c.b16 %v5231, %v5223
    %v7352 = vpack.c.b16 %v5232, %v5224
    %v7353 = vpack.c.b16 %v5241, %v5233
    %v7354 = vpack.c.b16 %v5242, %v5234
    %v7355 = vpack.c.b16 %v5243, %v5235
    %v7356 = vpack.c.b16 %v5244, %v5236
    %v7357 = vpack.c.b16 %v5245, %v5237
    %v7358 = vpack.c.b16 %v5246, %v5238
    %v7359 = vpack.c.b16 %v5247, %v5239
    %v7360 = vpack.c.b16 %v5248, %v5240
    %v7361 = vpack.c.b16 %v5257, %v5249
    %v7362 = vpack.c.b16 %v5258, %v5250
    %v7363 = vpack.c.b16 %v5259, %v5251
    %v7364 = vpack.c.b16 %v5260, %v5252
    %v7365 = vpack.c.b16 %v5261, %v5253
    %v7366 = vpack.c.b16 %v5262, %v5254
    %v7367 = vpack.c.b16 %v5263, %v5255
    %v7368 = vpack.c.b16 %v5264, %v5256
    %v7369 = vpack.c.b16 %v5273, %v5265
    %v7370 = vpack.c.b16 %v5274, %v5266
    %v7371 = vpack.c.b16 %v5275, %v5267
    %v7372 = vpack.c.b16 %v5276, %v5268
    %v7373 = vpack.c.b16 %v5277, %v5269
    %v7374 = vpack.c.b16 %v5278, %v5270
    %v7375 = vpack.c.b16 %v5279, %v5271
    %v7376 = vpack.c.b16 %v5280, %v5272
    %v7377 = vpack.c.b16 %v5289, %v5281
    %v7378 = vpack.c.b16 %v5290, %v5282
    %v7379 = vpack.c.b16 %v5291, %v5283
    %v7380 = vpack.c.b16 %v5292, %v5284
    %v7381 = vpack.c.b16 %v5293, %v5285
    %v7382 = vpack.c.b16 %v5294, %v5286
    %v7383 = vpack.c.b16 %v5295, %v5287
    %v7384 = vpack.c.b16 %v5296, %v5288
    %v7385 = vpack.c.b16 %v5305, %v5297
    %v7386 = vpack.c.b16 %v5306, %v5298
    %v7387 = vpack.c.b16 %v5307, %v5299
    %v7388 = vpack.c.b16 %v5308, %v5300
    %v7389 = vpack.c.b16 %v5309, %v5301
    %v7390 = vpack.c.b16 %v5310, %v5302
    %v7391 = vpack.c.b16 %v5311, %v5303
    %v7392 = vpack.c.b16 %v5312, %v5304
    %v7393 = vpack.c.b16 %v5321, %v5313
    %v7394 = vpack.c.b16 %v5322, %v5314
    %v7395 = vpack.c.b16 %v5323, %v5315
    %v7396 = vpack.c.b16 %v5324, %v5316
    %v7397 = vpack.c.b16 %v5325, %v5317
    %v7398 = vpack.c.b16 %v5326, %v5318
    %v7399 = vpack.c.b16 %v5327, %v5319
    %v7400 = vpack.c.b16 %v5328, %v5320
    %v7401 = vpack.c.b16 %v5337, %v5329
    %v7402 = vpack.c.b16 %v5338, %v5330
    %v7403 = vpack.c.b16 %v5339, %v5331
    %v7404 = vpack.c.b16 %v5340, %v5332
    %v7405 = vpack.c.b16 %v5341, %v5333
    %v7406 = vpack.c.b16 %v5342, %v5334
    %v7407 = vpack.c.b16 %v5343, %v5335
    %v7408 = vpack.c.b16 %v5344, %v5336
    %v7409 = vpack.c.b16 %v5353, %v5345
    %v7410 = vpack.c.b16 %v5354, %v5346
    %v7411 = vpack.c.b16 %v5355, %v5347
    %v7412 = vpack.c.b16 %v5356, %v5348
    %v7413 = vpack.c.b16 %v5357, %v5349
    %v7414 = vpack.c.b16 %v5358, %v5350
    %v7415 = vpack.c.b16 %v5359, %v5351
    %v7416 = vpack.c.b16 %v5360, %v5352
    %v7417 = vpack.c.b16 %v5369, %v5361
    %v7418 = vpack.c.b16 %v5370, %v5362
    %v7419 = vpack.c.b16 %v5371, %v5363
    %v7420 = vpack.c.b16 %v5372, %v5364
    %v7421 = vpack.c.b16 %v5373, %v5365
    %v7422 = vpack.c.b16 %v5374, %v5366
    %v7423 = vpack.c.b16 %v5375, %v5367
    %v7424 = vpack.c.b16 %v5376, %v5368
    %v7425 = vpack.c.b16 %v5385, %v5377
    %v7426 = vpack.c.b16 %v5386, %v5378
    %v7427 = vpack.c.b16 %v5387, %v5379
    %v7428 = vpack.c.b16 %v5388, %v5380
    %v7429 = vpack.c.b16 %v5389, %v5381
    %v7430 = vpack.c.b16 %v5390, %v5382
    %v7431 = vpack.c.b16 %v5391, %v5383
    %v7432 = vpack.c.b16 %v5392, %v5384
    %v7433 = vpack.c.b16 %v5401, %v5393
    %v7434 = vpack.c.b16 %v5402, %v5394
    %v7435 = vpack.c.b16 %v5403, %v5395
    %v7436 = vpack.c.b16 %v5404, %v5396
    %v7437 = vpack.c.b16 %v5405, %v5397
    %v7438 = vpack.c.b16 %v5406, %v5398
    %v7439 = vpack.c.b16 %v5407, %v5399
    %v7440 = vpack.c.b16 %v5408, %v5400
    %v7441 = vpack.c.b16 %v5417, %v5409
    %v7442 = vpack.c.b16 %v5418, %v5410
    %v7443 = vpack.c.b16 %v5419, %v5411
    %v7444 = vpack.c.b16 %v5420, %v5412
    %v7445 = vpack.c.b16 %v5421, %v5413
    %v7446 = vpack.c.b16 %v5422, %v5414
    %v7447 = vpack.c.b16 %v5423, %v5415
    %v7448 = vpack.c.b16 %v5424, %v5416
    %v7449 = vpack.c.b16 %v5433, %v5425
    %v7450 = vpack.c.b16 %v5434, %v5426
    %v7451 = vpack.c.b16 %v5435, %v5427
    %v7452 = vpack.c.b16 %v5436, %v5428
    %v7453 = vpack.c.b16 %v5437, %v5429
    %v7454 = vpack.c.b16 %v5438, %v5430
    %v7455 = vpack.c.b16 %v5439, %v5431
    %v7456 = vpack.c.b16 %v5440, %v5432
    %v7457 = vpack.c.b16 %v5449, %v5441
    %v7458 = vpack.c.b16 %v5450, %v5442
    %v7459 = vpack.c.b16 %v5451, %v5443
    %v7460 = vpack.c.b16 %v5452, %v5444
    %v7461 = vpack.c.b16 %v5453, %v5445
    %v7462 = vpack.c.b16 %v5454, %v5446
    %v7463 = vpack.c.b16 %v5455, %v5447
    %v7464 = vpack.c.b16 %v5456, %v5448
    %v7465 = vpack.c.b16 %v5465, %v5457
    %v7466 = vpack.c.b16 %v5466, %v5458
    %v7467 = vpack.c.b16 %v5467, %v5459
    %v7468 = vpack.c.b16 %v5468, %v5460
    %v7469 = vpack.c.b16 %v5469, %v5461
    %v7470 = vpack.c.b16 %v5470, %v5462
    %v7471 = vpack.c.b16 %v5471, %v5463
    %v7472 = vpack.c.b16 %v5472, %v5464
    %v7473 = vpack.c.b16 %v5481, %v5473
    %v7474 = vpack.c.b16 %v5482, %v5474
    %v7475 = vpack.c.b16 %v5483, %v5475
    %v7476 = vpack.c.b16 %v5484, %v5476
    %v7477 = vpack.c.b16 %v5485, %v5477
    %v7478 = vpack.c.b16 %v5486, %v5478
    %v7479 = vpack.c.b16 %v5487, %v5479
    %v7480 = vpack.c.b16 %v5488, %v5480
    %v7481 = vpack.c.b16 %v5497, %v5489
    %v7482 = vpack.c.b16 %v5498, %v5490
    %v7483 = vpack.c.b16 %v5499, %v5491
    %v7484 = vpack.c.b16 %v5500, %v5492
    %v7485 = vpack.c.b16 %v5501, %v5493
    %v7486 = vpack.c.b16 %v5502, %v5494
    %v7487 = vpack.c.b16 %v5503, %v5495
    %v7488 = vpack.c.b16 %v5504, %v5496
    %v7489 = vpack.c.b16 %v5513, %v5505
    %v7490 = vpack.c.b16 %v5514, %v5506
    %v7491 = vpack.c.b16 %v5515, %v5507
    %v7492 = vpack.c.b16 %v5516, %v5508
    %v7493 = vpack.c.b16 %v5517, %v5509
    %v7494 = vpack.c.b16 %v5518, %v5510
    %v7495 = vpack.c.b16 %v5519, %v5511
    %v7496 = vpack.c.b16 %v5520, %v5512
    %v7497 = vpack.c.b16 %v5529, %v5521
    %v7498 = vpack.c.b16 %v5530, %v5522
    %v7499 = vpack.c.b16 %v5531, %v5523
    %v7500 = vpack.c.b16 %v5532, %v5524
    %v7501 = vpack.c.b16 %v5533, %v5525
    %v7502 = vpack.c.b16 %v5534, %v5526
    %v7503 = vpack.c.b16 %v5535, %v5527
    %v7504 = vpack.c.b16 %v5536, %v5528
    %v7505 = vpack.c.b16 %v5545, %v5537
    %v7506 = vpack.c.b16 %v5546, %v5538
    %v7507 = vpack.c.b16 %v5547, %v5539
    %v7508 = vpack.c.b16 %v5548, %v5540
    %v7509 = vpack.c.b16 %v5549, %v5541
    %v7510 = vpack.c.b16 %v5550, %v5542
    %v7511 = vpack.c.b16 %v5551, %v5543
    %v7512 = vpack.c.b16 %v5552, %v5544
    %v7513 = vpack.c.b16 %v5561, %v5553
    %v7514 = vpack.c.b16 %v5562, %v5554
    %v7515 = vpack.c.b16 %v5563, %v5555
    %v7516 = vpack.c.b16 %v5564, %v5556
    %v7517 = vpack.c.b16 %v5565, %v5557
    %v7518 = vpack.c.b16 %v5566, %v5558
    %v7519 = vpack.c.b16 %v5567, %v5559
    %v7520 = vpack.c.b16 %v5568, %v5560
    %v7521 = vpack.c.b16 %v5577, %v5569
    %v7522 = vpack.c.b16 %v5578, %v5570
    %v7523 = vpack.c.b16 %v5579, %v5571
    %v7524 = vpack.c.b16 %v5580, %v5572
    %v7525 = vpack.c.b16 %v5581, %v5573
    %v7526 = vpack.c.b16 %v5582, %v5574
    %v7527 = vpack.c.b16 %v5583, %v5575
    %v7528 = vpack.c.b16 %v5584, %v5576
    %v7529 = vpack.c.b16 %v5593, %v5585
    %v7530 = vpack.c.b16 %v5594, %v5586
    %v7531 = vpack.c.b16 %v5595, %v5587
    %v7532 = vpack.c.b16 %v5596, %v5588
    %v7533 = vpack.c.b16 %v5597, %v5589
    %v7534 = vpack.c.b16 %v5598, %v5590
    %v7535 = vpack.c.b16 %v5599, %v5591
    %v7536 = vpack.c.b16 %v5600, %v5592
    %v7537 = vpack.c.b16 %v5609, %v5601
    %v7538 = vpack.c.b16 %v5610, %v5602
    %v7539 = vpack.c.b16 %v5611, %v5603
    %v7540 = vpack.c.b16 %v5612, %v5604
    %v7541 = vpack.c.b16 %v5613, %v5605
    %v7542 = vpack.c.b16 %v5614, %v5606
    %v7543 = vpack.c.b16 %v5615, %v5607
    %v7544 = vpack.c.b16 %v5616, %v5608
    %v7545 = vpack.c.b16 %v5625, %v5617
    %v7546 = vpack.c.b16 %v5626, %v5618
    %v7547 = vpack.c.b16 %v5627, %v5619
    %v7548 = vpack.c.b16 %v5628, %v5620
    %v7549 = vpack.c.b16 %v5629, %v5621
    %v7550 = vpack.c.b16 %v5630, %v5622
    %v7551 = vpack.c.b16 %v5631, %v5623
    %v7552 = vpack.c.b16 %v5632, %v5624
    %v7553 = vpack.c.b16 %v5641, %v5633
    %v7554 = vpack.c.b16 %v5642, %v5634
    %v7555 = vpack.c.b16 %v5643, %v5635
    %v7556 = vpack.c.b16 %v5644, %v5636
    %v7557 = vpack.c.b16 %v5645, %v5637
    %v7558 = vpack.c.b16 %v5646, %v5638
    %v7559 = vpack.c.b16 %v5647, %v5639
    %v7560 = vpack.c.b16 %v5648, %v5640
    %v7561 = vpack.c.b16 %v5657, %v5649
    %v7562 = vpack.c.b16 %v5658, %v5650
    %v7563 = vpack.c.b16 %v5659, %v5651
    %v7564 = vpack.c.b16 %v5660, %v5652
    %v7565 = vpack.c.b16 %v5661, %v5653
    %v7566 = vpack.c.b16 %v5662, %v5654
    %v7567 = vpack.c.b16 %v5663, %v5655
    %v7568 = vpack.c.b16 %v5664, %v5656
    %v7569 = vpack.c.b16 %v5673, %v5665
    %v7570 = vpack.c.b16 %v5674, %v5666
    %v7571 = vpack.c.b16 %v5675, %v5667
    %v7572 = vpack.c.b16 %v5676, %v5668
    %v7573 = vpack.c.b16 %v5677, %v5669
    %v7574 = vpack.c.b16 %v5678, %v5670
    %v7575 = vpack.c.b16 %v5679, %v5671
    %v7576 = vpack.c.b16 %v5680, %v5672
    %v7577 = vpack.c.b16 %v5689, %v5681
    %v7578 = vpack.c.b16 %v5690, %v5682
    %v7579 = vpack.c.b16 %v5691, %v5683
    %v7580 = vpack.c.b16 %v5692, %v5684
    %v7581 = vpack.c.b16 %v5693, %v5685
    %v7582 = vpack.c.b16 %v5694, %v5686
    %v7583 = vpack.c.b16 %v5695, %v5687
    %v7584 = vpack.c.b16 %v5696, %v5688
    %v7585 = vpack.c.b16 %v5705, %v5697
    %v7586 = vpack.c.b16 %v5706, %v5698
    %v7587 = vpack.c.b16 %v5707, %v5699
    %v7588 = vpack.c.b16 %v5708, %v5700
    %v7589 = vpack.c.b16 %v5709, %v5701
    %v7590 = vpack.c.b16 %v5710, %v5702
    %v7591 = vpack.c.b16 %v5711, %v5703
    %v7592 = vpack.c.b16 %v5712, %v5704
    %v7593 = vpack.c.b16 %v5721, %v5713
    %v7594 = vpack.c.b16 %v5722, %v5714
    %v7595 = vpack.c.b16 %v5723, %v5715
    %v7596 = vpack.c.b16 %v5724, %v5716
    %v7597 = vpack.c.b16 %v5725, %v5717
    %v7598 = vpack.c.b16 %v5726, %v5718
    %v7599 = vpack.c.b16 %v5727, %v5719
    %v7600 = vpack.c.b16 %v5728, %v5720
    %v7601 = vpack.c.b16 %v5737, %v5729
    %v7602 = vpack.c.b16 %v5738, %v5730
    %v7603 = vpack.c.b16 %v5739, %v5731
    %v7604 = vpack.c.b16 %v5740, %v5732
    %v7605 = vpack.c.b16 %v5741, %v5733
    %v7606 = vpack.c.b16 %v5742, %v5734
    %v7607 = vpack.c.b16 %v5743, %v5735
    %v7608 = vpack.c.b16 %v5744, %v5736
    %v7609 = vpack.c.b16 %v5753, %v5745
    %v7610 = vpack.c.b16 %v5754, %v5746
    %v7611 = vpack.c.b16 %v5755, %v5747
    %v7612 = vpack.c.b16 %v5756, %v5748
    %v7613 = vpack.c.b16 %v5757, %v5749
    %v7614 = vpack.c.b16 %v5758, %v5750
    %v7615 = vpack.c.b16 %v5759, %v5751
    %v7616 = vpack.c.b16 %v5760, %v5752
    %v7617 = vpack.c.b16 %v5769, %v5761
    %v7618 = vpack.c.b16 %v5770, %v5762
    %v7619 = vpack.c.b16 %v5771, %v5763
    %v7620 = vpack.c.b16 %v5772, %v5764
    %v7621 = vpack.c.b16 %v5773, %v5765
    %v7622 = vpack.c.b16 %v5774, %v5766
    %v7623 = vpack.c.b16 %v5775, %v5767
    %v7624 = vpack.c.b16 %v5776, %v5768
    %v7625 = vpack.c.b16 %v5785, %v5777
    %v7626 = vpack.c.b16 %v5786, %v5778
    %v7627 = vpack.c.b16 %v5787, %v5779
    %v7628 = vpack.c.b16 %v5788, %v5780
    %v7629 = vpack.c.b16 %v5789, %v5781
    %v7630 = vpack.c.b16 %v5790, %v5782
    %v7631 = vpack.c.b16 %v5791, %v5783
    %v7632 = vpack.c.b16 %v5792, %v5784
    %v7633 = vpack.c.b16 %v5801, %v5793
    %v7634 = vpack.c.b16 %v5802, %v5794
    %v7635 = vpack.c.b16 %v5803, %v5795
    %v7636 = vpack.c.b16 %v5804, %v5796
    %v7637 = vpack.c.b16 %v5805, %v5797
    %v7638 = vpack.c.b16 %v5806, %v5798
    %v7639 = vpack.c.b16 %v5807, %v5799
    %v7640 = vpack.c.b16 %v5808, %v5800
    %v7641 = vpack.c.b16 %v5817, %v5809
    %v7642 = vpack.c.b16 %v5818, %v5810
    %v7643 = vpack.c.b16 %v5819, %v5811
    %v7644 = vpack.c.b16 %v5820, %v5812
    %v7645 = vpack.c.b16 %v5821, %v5813
    %v7646 = vpack.c.b16 %v5822, %v5814
    %v7647 = vpack.c.b16 %v5823, %v5815
    %v7648 = vpack.c.b16 %v5824, %v5816
    %v7649 = vpack.c.b16 %v5833, %v5825
    %v7650 = vpack.c.b16 %v5834, %v5826
    %v7651 = vpack.c.b16 %v5835, %v5827
    %v7652 = vpack.c.b16 %v5836, %v5828
    %v7653 = vpack.c.b16 %v5837, %v5829
    %v7654 = vpack.c.b16 %v5838, %v5830
    %v7655 = vpack.c.b16 %v5839, %v5831
    %v7656 = vpack.c.b16 %v5840, %v5832
    %v7657 = vpack.c.b16 %v5849, %v5841
    %v7658 = vpack.c.b16 %v5850, %v5842
    %v7659 = vpack.c.b16 %v5851, %v5843
    %v7660 = vpack.c.b16 %v5852, %v5844
    %v7661 = vpack.c.b16 %v5853, %v5845
    %v7662 = vpack.c.b16 %v5854, %v5846
    %v7663 = vpack.c.b16 %v5855, %v5847
    %v7664 = vpack.c.b16 %v5856, %v5848
    %v7665 = vpack.c.b16 %v5865, %v5857
    %v7666 = vpack.c.b16 %v5866, %v5858
    %v7667 = vpack.c.b16 %v5867, %v5859
    %v7668 = vpack.c.b16 %v5868, %v5860
    %v7669 = vpack.c.b16 %v5869, %v5861
    %v7670 = vpack.c.b16 %v5870, %v5862
    %v7671 = vpack.c.b16 %v5871, %v5863
    %v7672 = vpack.c.b16 %v5872, %v5864
    %v7673 = vpack.c.b16 %v5881, %v5873
    %v7674 = vpack.c.b16 %v5882, %v5874
    %v7675 = vpack.c.b16 %v5883, %v5875
    %v7676 = vpack.c.b16 %v5884, %v5876
    %v7677 = vpack.c.b16 %v5885, %v5877
    %v7678 = vpack.c.b16 %v5886, %v5878
    %v7679 = vpack.c.b16 %v5887, %v5879
    %v7680 = vpack.c.b16 %v5888, %v5880
    %v7681 = vpack.c.b16 %v5897, %v5889
    %v7682 = vpack.c.b16 %v5898, %v5890
    %v7683 = vpack.c.b16 %v5899, %v5891
    %v7684 = vpack.c.b16 %v5900, %v5892
    %v7685 = vpack.c.b16 %v5901, %v5893
    %v7686 = vpack.c.b16 %v5902, %v5894
    %v7687 = vpack.c.b16 %v5903, %v5895
    %v7688 = vpack.c.b16 %v5904, %v5896
    %v7689 = vpack.c.b16 %v5913, %v5905
    %v7690 = vpack.c.b16 %v5914, %v5906
    %v7691 = vpack.c.b16 %v5915, %v5907
    %v7692 = vpack.c.b16 %v5916, %v5908
    %v7693 = vpack.c.b16 %v5917, %v5909
    %v7694 = vpack.c.b16 %v5918, %v5910
    %v7695 = vpack.c.b16 %v5919, %v5911
    %v7696 = vpack.c.b16 %v5920, %v5912
    %v7697 = vpack.c.b16 %v5929, %v5921
    %v7698 = vpack.c.b16 %v5930, %v5922
    %v7699 = vpack.c.b16 %v5931, %v5923
    %v7700 = vpack.c.b16 %v5932, %v5924
    %v7701 = vpack.c.b16 %v5933, %v5925
    %v7702 = vpack.c.b16 %v5934, %v5926
    %v7703 = vpack.c.b16 %v5935, %v5927
    %v7704 = vpack.c.b16 %v5936, %v5928
    %v7705 = vpack.c.b16 %v5945, %v5937
    %v7706 = vpack.c.b16 %v5946, %v5938
    %v7707 = vpack.c.b16 %v5947, %v5939
    %v7708 = vpack.c.b16 %v5948, %v5940
    %v7709 = vpack.c.b16 %v5949, %v5941
    %v7710 = vpack.c.b16 %v5950, %v5942
    %v7711 = vpack.c.b16 %v5951, %v5943
    %v7712 = vpack.c.b16 %v5952, %v5944
    %v7713 = vpack.c.b16 %v5961, %v5953
    %v7714 = vpack.c.b16 %v5962, %v5954
    %v7715 = vpack.c.b16 %v5963, %v5955
    %v7716 = vpack.c.b16 %v5964, %v5956
    %v7717 = vpack.c.b16 %v5965, %v5957
    %v7718 = vpack.c.b16 %v5966, %v5958
    %v7719 = vpack.c.b16 %v5967, %v5959
    %v7720 = vpack.c.b16 %v5968, %v5960
    %v7721 = vpack.c.b16 %v5977, %v5969
    %v7722 = vpack.c.b16 %v5978, %v5970
    %v7723 = vpack.c.b16 %v5979, %v5971
    %v7724 = vpack.c.b16 %v5980, %v5972
    %v7725 = vpack.c.b16 %v5981, %v5973
    %v7726 = vpack.c.b16 %v5982, %v5974
    %v7727 = vpack.c.b16 %v5983, %v5975
    %v7728 = vpack.c.b16 %v5984, %v5976
    %v7729 = vpack.c.b16 %v5993, %v5985
    %v7730 = vpack.c.b16 %v5994, %v5986
    %v7731 = vpack.c.b16 %v5995, %v5987
    %v7732 = vpack.c.b16 %v5996, %v5988
    %v7733 = vpack.c.b16 %v5997, %v5989
    %v7734 = vpack.c.b16 %v5998, %v5990
    %v7735 = vpack.c.b16 %v5999, %v5991
    %v7736 = vpack.c.b16 %v6000, %v5992
    %v7737 = vpack.c.b16 %v6009, %v6001
    %v7738 = vpack.c.b16 %v6010, %v6002
    %v7739 = vpack.c.b16 %v6011, %v6003
    %v7740 = vpack.c.b16 %v6012, %v6004
    %v7741 = vpack.c.b16 %v6013, %v6005
    %v7742 = vpack.c.b16 %v6014, %v6006
    %v7743 = vpack.c.b16 %v6015, %v6007
    %v7744 = vpack.c.b16 %v6016, %v6008
    %v7745 = vpack.c.b16 %v6025, %v6017
    %v7746 = vpack.c.b16 %v6026, %v6018
    %v7747 = vpack.c.b16 %v6027, %v6019
    %v7748 = vpack.c.b16 %v6028, %v6020
    %v7749 = vpack.c.b16 %v6029, %v6021
    %v7750 = vpack.c.b16 %v6030, %v6022
    %v7751 = vpack.c.b16 %v6031, %v6023
    %v7752 = vpack.c.b16 %v6032, %v6024
    %v7753 = vpack.c.b16 %v6041, %v6033
    %v7754 = vpack.c.b16 %v6042, %v6034
    %v7755 = vpack.c.b16 %v6043, %v6035
    %v7756 = vpack.c.b16 %v6044, %v6036
    %v7757 = vpack.c.b16 %v6045, %v6037
    %v7758 = vpack.c.b16 %v6046, %v6038
    %v7759 = vpack.c.b16 %v6047, %v6039
    %v7760 = vpack.c.b16 %v6048, %v6040
    %v7761 = vpack.c.b16 %v6057, %v6049
    %v7762 = vpack.c.b16 %v6058, %v6050
    %v7763 = vpack.c.b16 %v6059, %v6051
    %v7764 = vpack.c.b16 %v6060, %v6052
    %v7765 = vpack.c.b16 %v6061, %v6053
    %v7766 = vpack.c.b16 %v6062, %v6054
    %v7767 = vpack.c.b16 %v6063, %v6055
    %v7768 = vpack.c.b16 %v6064, %v6056
    %v7769 = vpack.c.b16 %v6073, %v6065
    %v7770 = vpack.c.b16 %v6074, %v6066
    %v7771 = vpack.c.b16 %v6075, %v6067
    %v7772 = vpack.c.b16 %v6076, %v6068
    %v7773 = vpack.c.b16 %v6077, %v6069
    %v7774 = vpack.c.b16 %v6078, %v6070
    %v7775 = vpack.c.b16 %v6079, %v6071
    %v7776 = vpack.c.b16 %v6080, %v6072
    %v7777 = vpack.c.b16 %v6089, %v6081
    %v7778 = vpack.c.b16 %v6090, %v6082
    %v7779 = vpack.c.b16 %v6091, %v6083
    %v7780 = vpack.c.b16 %v6092, %v6084
    %v7781 = vpack.c.b16 %v6093, %v6085
    %v7782 = vpack.c.b16 %v6094, %v6086
    %v7783 = vpack.c.b16 %v6095, %v6087
    %v7784 = vpack.c.b16 %v6096, %v6088
    %v7785 = vpack.c.b16 %v6105, %v6097
    %v7786 = vpack.c.b16 %v6106, %v6098
    %v7787 = vpack.c.b16 %v6107, %v6099
    %v7788 = vpack.c.b16 %v6108, %v6100
    %v7789 = vpack.c.b16 %v6109, %v6101
    %v7790 = vpack.c.b16 %v6110, %v6102
    %v7791 = vpack.c.b16 %v6111, %v6103
    %v7792 = vpack.c.b16 %v6112, %v6104
    %v7793 = vpack.c.b16 %v6121, %v6113
    %v7794 = vpack.c.b16 %v6122, %v6114
    %v7795 = vpack.c.b16 %v6123, %v6115
    %v7796 = vpack.c.b16 %v6124, %v6116
    %v7797 = vpack.c.b16 %v6125, %v6117
    %v7798 = vpack.c.b16 %v6126, %v6118
    %v7799 = vpack.c.b16 %v6127, %v6119
    %v7800 = vpack.c.b16 %v6128, %v6120
    %v7801 = vpack.c.b16 %v6137, %v6129
    %v7802 = vpack.c.b16 %v6138, %v6130
    %v7803 = vpack.c.b16 %v6139, %v6131
    %v7804 = vpack.c.b16 %v6140, %v6132
    %v7805 = vpack.c.b16 %v6141, %v6133
    %v7806 = vpack.c.b16 %v6142, %v6134
    %v7807 = vpack.c.b16 %v6143, %v6135
    %v7808 = vpack.c.b16 %v6144, %v6136
    %v7809 = vpack.c.b16 %v6153, %v6145
    %v7810 = vpack.c.b16 %v6154, %v6146
    %v7811 = vpack.c.b16 %v6155, %v6147
    %v7812 = vpack.c.b16 %v6156, %v6148
    %v7813 = vpack.c.b16 %v6157, %v6149
    %v7814 = vpack.c.b16 %v6158, %v6150
    %v7815 = vpack.c.b16 %v6159, %v6151
    %v7816 = vpack.c.b16 %v6160, %v6152
    %v7817 = vpack.c.b16 %v6169, %v6161
    %v7818 = vpack.c.b16 %v6170, %v6162
    %v7819 = vpack.c.b16 %v6171, %v6163
    %v7820 = vpack.c.b16 %v6172, %v6164
    %v7821 = vpack.c.b16 %v6173, %v6165
    %v7822 = vpack.c.b16 %v6174, %v6166
    %v7823 = vpack.c.b16 %v6175, %v6167
    %v7824 = vpack.c.b16 %v6176, %v6168
    %v7825 = vpack.c.b16 %v6185, %v6177
    %v7826 = vpack.c.b16 %v6186, %v6178
    %v7827 = vpack.c.b16 %v6187, %v6179
    %v7828 = vpack.c.b16 %v6188, %v6180
    %v7829 = vpack.c.b16 %v6189, %v6181
    %v7830 = vpack.c.b16 %v6190, %v6182
    %v7831 = vpack.c.b16 %v6191, %v6183
    %v7832 = vpack.c.b16 %v6192, %v6184
    %v7833 = vpack.c.b16 %v6201, %v6193
    %v7834 = vpack.c.b16 %v6202, %v6194
    %v7835 = vpack.c.b16 %v6203, %v6195
    %v7836 = vpack.c.b16 %v6204, %v6196
    %v7837 = vpack.c.b16 %v6205, %v6197
    %v7838 = vpack.c.b16 %v6206, %v6198
    %v7839 = vpack.c.b16 %v6207, %v6199
    %v7840 = vpack.c.b16 %v6208, %v6200
    %v7841 = vpack.c.b16 %v6217, %v6209
    %v7842 = vpack.c.b16 %v6218, %v6210
    %v7843 = vpack.c.b16 %v6219, %v6211
    %v7844 = vpack.c.b16 %v6220, %v6212
    %v7845 = vpack.c.b16 %v6221, %v6213
    %v7846 = vpack.c.b16 %v6222, %v6214
    %v7847 = vpack.c.b16 %v6223, %v6215
    %v7848 = vpack.c.b16 %v6224, %v6216
    %v7849 = vpack.c.b16 %v6233, %v6225
    %v7850 = vpack.c.b16 %v6234, %v6226
    %v7851 = vpack.c.b16 %v6235, %v6227
    %v7852 = vpack.c.b16 %v6236, %v6228
    %v7853 = vpack.c.b16 %v6237, %v6229
    %v7854 = vpack.c.b16 %v6238, %v6230
    %v7855 = vpack.c.b16 %v6239, %v6231
    %v7856 = vpack.c.b16 %v6240, %v6232
    %v7857 = vpack.c.b16 %v6249, %v6241
    %v7858 = vpack.c.b16 %v6250, %v6242
    %v7859 = vpack.c.b16 %v6251, %v6243
    %v7860 = vpack.c.b16 %v6252, %v6244
    %v7861 = vpack.c.b16 %v6253, %v6245
    %v7862 = vpack.c.b16 %v6254, %v6246
    %v7863 = vpack.c.b16 %v6255, %v6247
    %v7864 = vpack.c.b16 %v6256, %v6248
    %v7865 = vpack.c.b16 %v6265, %v6257
    %v7866 = vpack.c.b16 %v6266, %v6258
    %v7867 = vpack.c.b16 %v6267, %v6259
    %v7868 = vpack.c.b16 %v6268, %v6260
    %v7869 = vpack.c.b16 %v6269, %v6261
    %v7870 = vpack.c.b16 %v6270, %v6262
    %v7871 = vpack.c.b16 %v6271, %v6263
    %v7872 = vpack.c.b16 %v6272, %v6264
    %v7873 = vpack.c.b16 %v6281, %v6273
    %v7874 = vpack.c.b16 %v6282, %v6274
    %v7875 = vpack.c.b16 %v6283, %v6275
    %v7876 = vpack.c.b16 %v6284, %v6276
    %v7877 = vpack.c.b16 %v6285, %v6277
    %v7878 = vpack.c.b16 %v6286, %v6278
    %v7879 = vpack.c.b16 %v6287, %v6279
    %v7880 = vpack.c.b16 %v6288, %v6280
    %v7881 = vpack.c.b16 %v6297, %v6289
    %v7882 = vpack.c.b16 %v6298, %v6290
    %v7883 = vpack.c.b16 %v6299, %v6291
    %v7884 = vpack.c.b16 %v6300, %v6292
    %v7885 = vpack.c.b16 %v6301, %v6293
    %v7886 = vpack.c.b16 %v6302, %v6294
    %v7887 = vpack.c.b16 %v6303, %v6295
    %v7888 = vpack.c.b16 %v6304, %v6296
    %v7889 = vpack.c.b16 %v6313, %v6305
    %v7890 = vpack.c.b16 %v6314, %v6306
    %v7891 = vpack.c.b16 %v6315, %v6307
    %v7892 = vpack.c.b16 %v6316, %v6308
    %v7893 = vpack.c.b16 %v6317, %v6309
    %v7894 = vpack.c.b16 %v6318, %v6310
    %v7895 = vpack.c.b16 %v6319, %v6311
    %v7896 = vpack.c.b16 %v6320, %v6312
    %v7897 = vpack.c.b16 %v6329, %v6321
    %v7898 = vpack.c.b16 %v6330, %v6322
    %v7899 = vpack.c.b16 %v6331, %v6323
    %v7900 = vpack.c.b16 %v6332, %v6324
    %v7901 = vpack.c.b16 %v6333, %v6325
    %v7902 = vpack.c.b16 %v6334, %v6326
    %v7903 = vpack.c.b16 %v6335, %v6327
    %v7904 = vpack.c.b16 %v6336, %v6328
    %v7905 = vpack.c.b16 %v6345, %v6337
    %v7906 = vpack.c.b16 %v6346, %v6338
    %v7907 = vpack.c.b16 %v6347, %v6339
    %v7908 = vpack.c.b16 %v6348, %v6340
    %v7909 = vpack.c.b16 %v6349, %v6341
    %v7910 = vpack.c.b16 %v6350, %v6342
    %v7911 = vpack.c.b16 %v6351, %v6343
    %v7912 = vpack.c.b16 %v6352, %v6344
    %v7913 = vpack.c.b16 %v6361, %v6353
    %v7914 = vpack.c.b16 %v6362, %v6354
    %v7915 = vpack.c.b16 %v6363, %v6355
    %v7916 = vpack.c.b16 %v6364, %v6356
    %v7917 = vpack.c.b16 %v6365, %v6357
    %v7918 = vpack.c.b16 %v6366, %v6358
    %v7919 = vpack.c.b16 %v6367, %v6359
    %v7920 = vpack.c.b16 %v6368, %v6360
    %v7921 = vpack.c.b16 %v6377, %v6369
    %v7922 = vpack.c.b16 %v6378, %v6370
    %v7923 = vpack.c.b16 %v6379, %v6371
    %v7924 = vpack.c.b16 %v6380, %v6372
    %v7925 = vpack.c.b16 %v6381, %v6373
    %v7926 = vpack.c.b16 %v6382, %v6374
    %v7927 = vpack.c.b16 %v6383, %v6375
    %v7928 = vpack.c.b16 %v6384, %v6376
    %v7929 = vpack.c.b16 %v6393, %v6385
    %v7930 = vpack.c.b16 %v6394, %v6386
    %v7931 = vpack.c.b16 %v6395, %v6387
    %v7932 = vpack.c.b16 %v6396, %v6388
    %v7933 = vpack.c.b16 %v6397, %v6389
    %v7934 = vpack.c.b16 %v6398, %v6390
    %v7935 = vpack.c.b16 %v6399, %v6391
    %v7936 = vpack.c.b16 %v6400, %v6392
    %9473 = vmatprep.subr.bf16.mxu0 %v6402
    %9474 = vmatpush1.bf16.msra.mxu0 %v6401
    %9475 = vmatprep.subr.bf16.mxu0 %v6410
    %9476 = vmatpush1.bf16.msra.mxu0 %v6409
    %9477 = vmatprep.subr.bf16.mxu0 %v6418
    %9478 = vmatpush1.bf16.msra.mxu0 %v6417
    %9479 = vmatprep.subr.bf16.mxu0 %v6426
    %9480 = vmatpush1.bf16.msra.mxu0 %v6425
    %9481 = vmatprep.subr.bf16.mxu0 %v6434
    %9482 = vmatpush1.bf16.msra.mxu0 %v6433
    %9483 = vmatprep.subr.bf16.mxu0 %v6442
    %9484 = vmatpush1.bf16.msra.mxu0 %v6441
    %9485 = vmatprep.subr.bf16.mxu0 %v6450
    %9486 = vmatpush1.bf16.msra.mxu0 %v6449
    %9487 = vmatprep.subr.bf16.mxu0 %v6458
    %9488 = vmatpush1.bf16.msra.mxu0 %v6457
    %9489 = vmatprep.subr.bf16.mxu0 %v6466
    %9490 = vmatpush1.bf16.msra.mxu0 %v6465
    %9491 = vmatprep.subr.bf16.mxu0 %v6474
    %9492 = vmatpush1.bf16.msra.mxu0 %v6473
    %9493 = vmatprep.subr.bf16.mxu0 %v6482
    %9494 = vmatpush1.bf16.msra.mxu0 %v6481
    %9495 = vmatprep.subr.bf16.mxu0 %v6490
    %9496 = vmatpush1.bf16.msra.mxu0 %v6489
    %9497 = vmatprep.subr.bf16.mxu0 %v6498
    %9498 = vmatpush1.bf16.msra.mxu0 %v6497
    %9499 = vmatprep.subr.bf16.mxu0 %v6506
    %9500 = vmatpush1.bf16.msra.mxu0 %v6505
    %9501 = vmatprep.subr.bf16.mxu0 %v6514
    %9502 = vmatpush1.bf16.msra.mxu0 %v6513
    %9503 = vmatprep.subr.bf16.mxu0 %v6522
    %9504 = vmatpush1.bf16.msra.mxu0 %v6521
    %9505 = vmatprep.mubr.bf16.mxu0 %v1746
    %9506 = vmatmul.mubr.bf16.gmra.mrb[0].mxu0 %v1745
    %v9507 = vpop.f32.mrb[0].mxu0
    %v9508 = vadd.f32 %v1636, %v9507
    %v9509 = vpop.f32.mrb[0].mxu0
    %v9510 = vadd.f32 %v1640, %v9509
    %v9511 = vpop.f32.mrb[0].mxu0
    %v9512 = vadd.f32 %v1636, %v9511
    %v9513 = vpop.f32.mrb[0].mxu0
    %v9514 = vadd.f32 %v1640, %v9513
    %9515 = vdwg.mxu0
    %9516 = vmatprep.subr.bf16.mxu0 %v6530
    %9517 = vmatpush1.bf16.msra.mxu0 %v6529
    %9518 = vmatprep.subr.bf16.mxu0 %v6538
    %9519 = vmatpush1.bf16.msra.mxu0 %v6537
    %9520 = vmatprep.subr.bf16.mxu0 %v6546
    %9521 = vmatpush1.bf16.msra.mxu0 %v6545
    %9522 = vmatprep.subr.bf16.mxu0 %v6554
    %9523 = vmatpush1.bf16.msra.mxu0 %v6553
    %9524 = vmatprep.subr.bf16.mxu0 %v6562
    %9525 = vmatpush1.bf16.msra.mxu0 %v6561
    %9526 = vmatprep.subr.bf16.mxu0 %v6570
    %9527 = vmatpush1.bf16.msra.mxu0 %v6569
    %9528 = vmatprep.subr.bf16.mxu0 %v6578
    %9529 = vmatpush1.bf16.msra.mxu0 %v6577
    %9530 = vmatprep.subr.bf16.mxu0 %v6586
    %9531 = vmatpush1.bf16.msra.mxu0 %v6585
    %9532 = vmatprep.subr.bf16.mxu0 %v6594
    %9533 = vmatpush1.bf16.msra.mxu0 %v6593
    %9534 = vmatprep.subr.bf16.mxu0 %v6602
    %9535 = vmatpush1.bf16.msra.mxu0 %v6601
    %9536 = vmatprep.subr.bf16.mxu0 %v6610
    %9537 = vmatpush1.bf16.msra.mxu0 %v6609
    %9538 = vmatprep.subr.bf16.mxu0 %v6618
    %9539 = vmatpush1.bf16.msra.mxu0 %v6617
    %9540 = vmatprep.subr.bf16.mxu0 %v6626
    %9541 = vmatpush1.bf16.msra.mxu0 %v6625
    %9542 = vmatprep.subr.bf16.mxu0 %v6634
    %9543 = vmatpush1.bf16.msra.mxu0 %v6633
    %9544 = vmatprep.subr.bf16.mxu0 %v6642
    %9545 = vmatpush1.bf16.msra.mxu0 %v6641
    %9546 = vmatprep.subr.bf16.mxu0 %v6650
    %9547 = vmatpush1.bf16.msra.mxu0 %v6649
    %9548 = vmatprep.mubr.bf16.mxu0 %v1748
    %9549 = vmatmul.mubr.bf16.gmra.mrb[0].mxu0 %v1747
    %v9550 = vpop.f32.mrb[0].mxu0
    %v9551 = vadd.f32 %v9508, %v9550
    %v9552 = vpop.f32.mrb[0].mxu0
    %v9553 = vadd.f32 %v9510, %v9552
    %v9554 = vpop.f32.mrb[0].mxu0
    %v9555 = vadd.f32 %v9512, %v9554
    %v9556 = vpop.f32.mrb[0].mxu0
    %v9557 = vadd.f32 %v9514, %v9556
    %9558 = vdwg.mxu0
    %9559 = vmatprep.subr.bf16.mxu0 %v6658
    %9560 = vmatpush1.bf16.msra.mxu0 %v6657
    %9561 = vmatprep.subr.bf16.mxu0 %v6666
    %9562 = vmatpush1.bf16.msra.mxu0 %v6665
    %9563 = vmatprep.subr.bf16.mxu0 %v6674
    %9564 = vmatpush1.bf16.msra.mxu0 %v6673
    %9565 = vmatprep.subr.bf16.mxu0 %v6682
    %9566 = vmatpush1.bf16.msra.mxu0 %v6681
    %9567 = vmatprep.subr.bf16.mxu0 %v6690
    %9568 = vmatpush1.bf16.msra.mxu0 %v6689
    %9569 = vmatprep.subr.bf16.mxu0 %v6698
    %9570 = vmatpush1.bf16.msra.mxu0 %v6697
    %9571 = vmatprep.subr.bf16.mxu0 %v6706
    %9572 = vmatpush1.bf16.msra.mxu0 %v6705
    %9573 = vmatprep.subr.bf16.mxu0 %v6714
    %9574 = vmatpush1.bf16.msra.mxu0 %v6713
    %9575 = vmatprep.subr.bf16.mxu0 %v6722
    %9576 = vmatpush1.bf16.msra.mxu0 %v6721
    %9577 = vmatprep.subr.bf16.mxu0 %v6730
    %9578 = vmatpush1.bf16.msra.mxu0 %v6729
    %9579 = vmatprep.subr.bf16.mxu0 %v6738
    %9580 = vmatpush1.bf16.msra.mxu0 %v6737
    %9581 = vmatprep.subr.bf16.mxu0 %v6746
    %9582 = vmatpush1.bf16.msra.mxu0 %v6745
    %9583 = vmatprep.subr.bf16.mxu0 %v6754
    %9584 = vmatpush1.bf16.msra.mxu0 %v6753
    %9585 = vmatprep.subr.bf16.mxu0 %v6762
    %9586 = vmatpush1.bf16.msra.mxu0 %v6761
    %9587 = vmatprep.subr.bf16.mxu0 %v6770
    %9588 = vmatpush1.bf16.msra.mxu0 %v6769
    %9589 = vmatprep.subr.bf16.mxu0 %v6778
    %9590 = vmatpush1.bf16.msra.mxu0 %v6777
    %9591 = vmatprep.mubr.bf16.mxu0 %v1750
    %9592 = vmatmul.mubr.bf16.gmra.mrb[0].mxu0 %v1749
    %v9593 = vpop.f32.mrb[0].mxu0
    %v9594 = vadd.f32 %v9551, %v9593
    %v9595 = vpop.f32.mrb[0].mxu0
    %v9596 = vadd.f32 %v9553, %v9595
    %v9597 = vpop.f32.mrb[0].mxu0
    %v9598 = vadd.f32 %v9555, %v9597
    %v9599 = vpop.f32.mrb[0].mxu0
    %v9600 = vadd.f32 %v9557, %v9599
    %9601 = vdwg.mxu0
    %9602 = vmatprep.subr.bf16.mxu0 %v6786
    %9603 = vmatpush1.bf16.msra.mxu0 %v6785
    %9604 = vmatprep.subr.bf16.mxu0 %v6794
    %9605 = vmatpush1.bf16.msra.mxu0 %v6793
    %9606 = vmatprep.subr.bf16.mxu0 %v6802
    %9607 = vmatpush1.bf16.msra.mxu0 %v6801
    %9608 = vmatprep.subr.bf16.mxu0 %v6810
    %9609 = vmatpush1.bf16.msra.mxu0 %v6809
    %9610 = vmatprep.subr.bf16.mxu0 %v6818
    %9611 = vmatpush1.bf16.msra.mxu0 %v6817
    %9612 = vmatprep.subr.bf16.mxu0 %v6826
    %9613 = vmatpush1.bf16.msra.mxu0 %v6825
    %9614 = vmatprep.subr.bf16.mxu0 %v6834
    %9615 = vmatpush1.bf16.msra.mxu0 %v6833
    %9616 = vmatprep.subr.bf16.mxu0 %v6842
    %9617 = vmatpush1.bf16.msra.mxu0 %v6841
    %9618 = vmatprep.subr.bf16.mxu0 %v6850
    %9619 = vmatpush1.bf16.msra.mxu0 %v6849
    %9620 = vmatprep.subr.bf16.mxu0 %v6858
    %9621 = vmatpush1.bf16.msra.mxu0 %v6857
    %9622 = vmatprep.subr.bf16.mxu0 %v6866
    %9623 = vmatpush1.bf16.msra.mxu0 %v6865
    %9624 = vmatprep.subr.bf16.mxu0 %v6874
    %9625 = vmatpush1.bf16.msra.mxu0 %v6873
    %9626 = vmatprep.subr.bf16.mxu0 %v6882
    %9627 = vmatpush1.bf16.msra.mxu0 %v6881
    %9628 = vmatprep.subr.bf16.mxu0 %v6890
    %9629 = vmatpush1.bf16.msra.mxu0 %v6889
    %9630 = vmatprep.subr.bf16.mxu0 %v6898
    %9631 = vmatpush1.bf16.msra.mxu0 %v6897
    %9632 = vmatprep.subr.bf16.mxu0 %v6906
    %9633 = vmatpush1.bf16.msra.mxu0 %v6905
    %9634 = vmatprep.mubr.bf16.mxu0 %v1752
    %9635 = vmatmul.mubr.bf16.gmra.mrb[0].mxu0 %v1751
    %v9636 = vpop.f32.mrb[0].mxu0
    %v9637 = vadd.f32 %v9594, %v9636
    %v9638 = vpop.f32.mrb[0].mxu0
    %v9639 = vadd.f32 %v9596, %v9638
    %v9640 = vpop.f32.mrb[0].mxu0
    %v9641 = vadd.f32 %v9598, %v9640
    %v9642 = vpop.f32.mrb[0].mxu0
    %v9643 = vadd.f32 %v9600, %v9642
    %9644 = vdwg.mxu0
    %9645 = vmatprep.subr.bf16.mxu0 %v6914
    %9646 = vmatpush1.bf16.msra.mxu0 %v6913
    %9647 = vmatprep.subr.bf16.mxu0 %v6922
    %9648 = vmatpush1.bf16.msra.mxu0 %v6921
    %9649 = vmatprep.subr.bf16.mxu0 %v6930
    %9650 = vmatpush1.bf16.msra.mxu0 %v6929
    %9651 = vmatprep.subr.bf16.mxu0 %v6938
    %9652 = vmatpush1.bf16.msra.mxu0 %v6937
    %9653 = vmatprep.subr.bf16.mxu0 %v6946
    %9654 = vmatpush1.bf16.msra.mxu0 %v6945
    %9655 = vmatprep.subr.bf16.mxu0 %v6954
    %9656 = vmatpush1.bf16.msra.mxu0 %v6953
    %9657 = vmatprep.subr.bf16.mxu0 %v6962
    %9658 = vmatpush1.bf16.msra.mxu0 %v6961
    %9659 = vmatprep.subr.bf16.mxu0 %v6970
    %9660 = vmatpush1.bf16.msra.mxu0 %v6969
    %9661 = vmatprep.subr.bf16.mxu0 %v6978
    %9662 = vmatpush1.bf16.msra.mxu0 %v6977
    %9663 = vmatprep.subr.bf16.mxu0 %v6986
    %9664 = vmatpush1.bf16.msra.mxu0 %v6985
    %9665 = vmatprep.subr.bf16.mxu0 %v6994
    %9666 = vmatpush1.bf16.msra.mxu0 %v6993
    %9667 = vmatprep.subr.bf16.mxu0 %v7002
    %9668 = vmatpush1.bf16.msra.mxu0 %v7001
    %9669 = vmatprep.subr.bf16.mxu0 %v7010
    %9670 = vmatpush1.bf16.msra.mxu0 %v7009
    %9671 = vmatprep.subr.bf16.mxu0 %v7018
    %9672 = vmatpush1.bf16.msra.mxu0 %v7017
    %9673 = vmatprep.subr.bf16.mxu0 %v7026
    %9674 = vmatpush1.bf16.msra.mxu0 %v7025
    %9675 = vmatprep.subr.bf16.mxu0 %v7034
    %9676 = vmatpush1.bf16.msra.mxu0 %v7033
    %9677 = vmatprep.mubr.bf16.mxu0 %v1754
    %9678 = vmatmul.mubr.bf16.gmra.mrb[0].mxu0 %v1753
    %v9679 = vpop.f32.mrb[0].mxu0
    %v9680 = vadd.f32 %v9637, %v9679
    %v9681 = vpop.f32.mrb[0].mxu0
    %v9682 = vadd.f32 %v9639, %v9681
    %v9683 = vpop.f32.mrb[0].mxu0
    %v9684 = vadd.f32 %v9641, %v9683
    %v9685 = vpop.f32.mrb[0].mxu0
    %v9686 = vadd.f32 %v9643, %v9685
    %9687 = vdwg.mxu0
    %9688 = vmatprep.subr.bf16.mxu0 %v7042
    %9689 = vmatpush1.bf16.msra.mxu0 %v7041
    %9690 = vmatprep.subr.bf16.mxu0 %v7050
    %9691 = vmatpush1.bf16.msra.mxu0 %v7049
    %9692 = vmatprep.subr.bf16.mxu0 %v7058
    %9693 = vmatpush1.bf16.msra.mxu0 %v7057
    %9694 = vmatprep.subr.bf16.mxu0 %v7066
    %9695 = vmatpush1.bf16.msra.mxu0 %v7065
    %9696 = vmatprep.subr.bf16.mxu0 %v7074
    %9697 = vmatpush1.bf16.msra.mxu0 %v7073
    %9698 = vmatprep.subr.bf16.mxu0 %v7082
    %9699 = vmatpush1.bf16.msra.mxu0 %v7081
    %9700 = vmatprep.subr.bf16.mxu0 %v7090
    %9701 = vmatpush1.bf16.msra.mxu0 %v7089
    %9702 = vmatprep.subr.bf16.mxu0 %v7098
    %9703 = vmatpush1.bf16.msra.mxu0 %v7097
    %9704 = vmatprep.subr.bf16.mxu0 %v7106
    %9705 = vmatpush1.bf16.msra.mxu0 %v7105
    %9706 = vmatprep.subr.bf16.mxu0 %v7114
    %9707 = vmatpush1.bf16.msra.mxu0 %v7113
    %9708 = vmatprep.subr.bf16.mxu0 %v7122
    %9709 = vmatpush1.bf16.msra.mxu0 %v7121
    %9710 = vmatprep.subr.bf16.mxu0 %v7130
    %9711 = vmatpush1.bf16.msra.mxu0 %v7129
    %9712 = vmatprep.subr.bf16.mxu0 %v7138
    %9713 = vmatpush1.bf16.msra.mxu0 %v7137
    %9714 = vmatprep.subr.bf16.mxu0 %v7146
    %9715 = vmatpush1.bf16.msra.mxu0 %v7145
    %9716 = vmatprep.subr.bf16.mxu0 %v7154
    %9717 = vmatpush1.bf16.msra.mxu0 %v7153
    %9718 = vmatprep.subr.bf16.mxu0 %v7162
    %9719 = vmatpush1.bf16.msra.mxu0 %v7161
    %9720 = vmatprep.mubr.bf16.mxu0 %v1756
    %9721 = vmatmul.mubr.bf16.gmra.mrb[0].mxu0 %v1755
    %v9722 = vpop.f32.mrb[0].mxu0
    %v9723 = vadd.f32 %v9680, %v9722
    %v9724 = vpop.f32.mrb[0].mxu0
    %v9725 = vadd.f32 %v9682, %v9724
    %v9726 = vpop.f32.mrb[0].mxu0
    %v9727 = vadd.f32 %v9684, %v9726
    %v9728 = vpop.f32.mrb[0].mxu0
    %v9729 = vadd.f32 %v9686, %v9728
    %9730 = vdwg.mxu0
    %9731 = vmatprep.subr.bf16.mxu0 %v7170
    %9732 = vmatpush1.bf16.msra.mxu0 %v7169
    %9733 = vmatprep.subr.bf16.mxu0 %v7178
    %9734 = vmatpush1.bf16.msra.mxu0 %v7177
    %9735 = vmatprep.subr.bf16.mxu0 %v7186
    %9736 = vmatpush1.bf16.msra.mxu0 %v7185
    %9737 = vmatprep.subr.bf16.mxu0 %v7194
    %9738 = vmatpush1.bf16.msra.mxu0 %v7193
    %9739 = vmatprep.subr.bf16.mxu0 %v7202
    %9740 = vmatpush1.bf16.msra.mxu0 %v7201
    %9741 = vmatprep.subr.bf16.mxu0 %v7210
    %9742 = vmatpush1.bf16.msra.mxu0 %v7209
    %9743 = vmatprep.subr.bf16.mxu0 %v7218
    %9744 = vmatpush1.bf16.msra.mxu0 %v7217
    %9745 = vmatprep.subr.bf16.mxu0 %v7226
    %9746 = vmatpush1.bf16.msra.mxu0 %v7225
    %9747 = vmatprep.subr.bf16.mxu0 %v7234
    %9748 = vmatpush1.bf16.msra.mxu0 %v7233
    %9749 = vmatprep.subr.bf16.mxu0 %v7242
    %9750 = vmatpush1.bf16.msra.mxu0 %v7241
    %9751 = vmatprep.subr.bf16.mxu0 %v7250
    %9752 = vmatpush1.bf16.msra.mxu0 %v7249
    %9753 = vmatprep.subr.bf16.mxu0 %v7258
    %9754 = vmatpush1.bf16.msra.mxu0 %v7257
    %9755 = vmatprep.subr.bf16.mxu0 %v7266
    %9756 = vmatpush1.bf16.msra.mxu0 %v7265
    %9757 = vmatprep.subr.bf16.mxu0 %v7274
    %9758 = vmatpush1.bf16.msra.mxu0 %v7273
    %9759 = vmatprep.subr.bf16.mxu0 %v7282
    %9760 = vmatpush1.bf16.msra.mxu0 %v7281
    %9761 = vmatprep.subr.bf16.mxu0 %v7290
    %9762 = vmatpush1.bf16.msra.mxu0 %v7289
    %9763 = vmatprep.mubr.bf16.mxu0 %v1758
    %9764 = vmatmul.mubr.bf16.gmra.mrb[0].mxu0 %v1757
    %v9765 = vpop.f32.mrb[0].mxu0
    %v9766 = vadd.f32 %v9723, %v9765
    %v9767 = vpop.f32.mrb[0].mxu0
    %v9768 = vadd.f32 %v9725, %v9767
    %v9769 = vpop.f32.mrb[0].mxu0
    %v9770 = vadd.f32 %v9727, %v9769
    %v9771 = vpop.f32.mrb[0].mxu0
    %v9772 = vadd.f32 %v9729, %v9771
    %9773 = vdwg.mxu0
    %9774 = vmatprep.subr.bf16.mxu0 %v7298
    %9775 = vmatpush1.bf16.msra.mxu0 %v7297
    %9776 = vmatprep.subr.bf16.mxu0 %v7306
    %9777 = vmatpush1.bf16.msra.mxu0 %v7305
    %9778 = vmatprep.subr.bf16.mxu0 %v7314
    %9779 = vmatpush1.bf16.msra.mxu0 %v7313
    %9780 = vmatprep.subr.bf16.mxu0 %v7322
    %9781 = vmatpush1.bf16.msra.mxu0 %v7321
    %9782 = vmatprep.subr.bf16.mxu0 %v7330
    %9783 = vmatpush1.bf16.msra.mxu0 %v7329
    %9784 = vmatprep.subr.bf16.mxu0 %v7338
    %9785 = vmatpush1.bf16.msra.mxu0 %v7337
    %9786 = vmatprep.subr.bf16.mxu0 %v7346
    %9787 = vmatpush1.bf16.msra.mxu0 %v7345
    %9788 = vmatprep.subr.bf16.mxu0 %v7354
    %9789 = vmatpush1.bf16.msra.mxu0 %v7353
    %9790 = vmatprep.subr.bf16.mxu0 %v7362
    %9791 = vmatpush1.bf16.msra.mxu0 %v7361
    %9792 = vmatprep.subr.bf16.mxu0 %v7370
    %9793 = vmatpush1.bf16.msra.mxu0 %v7369
    %9794 = vmatprep.subr.bf16.mxu0 %v7378
    %9795 = vmatpush1.bf16.msra.mxu0 %v7377
    %9796 = vmatprep.subr.bf16.mxu0 %v7386
    %9797 = vmatpush1.bf16.msra.mxu0 %v7385
    %9798 = vmatprep.subr.bf16.mxu0 %v7394
    %9799 = vmatpush1.bf16.msra.mxu0 %v7393
    %9800 = vmatprep.subr.bf16.mxu0 %v7402
    %9801 = vmatpush1.bf16.msra.mxu0 %v7401
    %9802 = vmatprep.subr.bf16.mxu0 %v7410
    %9803 = vmatpush1.bf16.msra.mxu0 %v7409
    %9804 = vmatprep.subr.bf16.mxu0 %v7418
    %9805 = vmatpush1.bf16.msra.mxu0 %v7417
    %9806 = vmatprep.mubr.bf16.mxu0 %v1760
    %9807 = vmatmul.mubr.bf16.gmra.mrb[0].mxu0 %v1759
    %v9808 = vpop.f32.mrb[0].mxu0
    %v9809 = vadd.f32 %v9766, %v9808
    %v9810 = vpop.f32.mrb[0].mxu0
    %v9811 = vadd.f32 %v9768, %v9810
    %v9812 = vpop.f32.mrb[0].mxu0
    %v9813 = vadd.f32 %v9770, %v9812
    %v9814 = vpop.f32.mrb[0].mxu0
    %v9815 = vadd.f32 %v9772, %v9814
    %9816 = vdwg.mxu0
    %9817 = vmatprep.subr.bf16.mxu0 %v7426
    %9818 = vmatpush1.bf16.msra.mxu0 %v7425
    %9819 = vmatprep.subr.bf16.mxu0 %v7434
    %9820 = vmatpush1.bf16.msra.mxu0 %v7433
    %9821 = vmatprep.subr.bf16.mxu0 %v7442
    %9822 = vmatpush1.bf16.msra.mxu0 %v7441
    %9823 = vmatprep.subr.bf16.mxu0 %v7450
    %9824 = vmatpush1.bf16.msra.mxu0 %v7449
    %9825 = vmatprep.subr.bf16.mxu0 %v7458
    %9826 = vmatpush1.bf16.msra.mxu0 %v7457
    %9827 = vmatprep.subr.bf16.mxu0 %v7466
    %9828 = vmatpush1.bf16.msra.mxu0 %v7465
    %9829 = vmatprep.subr.bf16.mxu0 %v7474
    %9830 = vmatpush1.bf16.msra.mxu0 %v7473
    %9831 = vmatprep.subr.bf16.mxu0 %v7482
    %9832 = vmatpush1.bf16.msra.mxu0 %v7481
    %9833 = vmatprep.subr.bf16.mxu0 %v7490
    %9834 = vmatpush1.bf16.msra.mxu0 %v7489
    %9835 = vmatprep.subr.bf16.mxu0 %v7498
    %9836 = vmatpush1.bf16.msra.mxu0 %v7497
    %9837 = vmatprep.subr.bf16.mxu0 %v7506
    %9838 = vmatpush1.bf16.msra.mxu0 %v7505
    %9839 = vmatprep.subr.bf16.mxu0 %v7514
    %9840 = vmatpush1.bf16.msra.mxu0 %v7513
    %9841 = vmatprep.subr.bf16.mxu0 %v7522
    %9842 = vmatpush1.bf16.msra.mxu0 %v7521
    %9843 = vmatprep.subr.bf16.mxu0 %v7530
    %9844 = vmatpush1.bf16.msra.mxu0 %v7529
    %9845 = vmatprep.subr.bf16.mxu0 %v7538
    %9846 = vmatpush1.bf16.msra.mxu0 %v7537
    %9847 = vmatprep.subr.bf16.mxu0 %v7546
    %9848 = vmatpush1.bf16.msra.mxu0 %v7545
    %9849 = vmatprep.mubr.bf16.mxu0 %v1762
    %9850 = vmatmul.mubr.bf16.gmra.mrb[0].mxu0 %v1761
    %v9851 = vpop.f32.mrb[0].mxu0
    %v9852 = vadd.f32 %v9809, %v9851
    %v9853 = vpop.f32.mrb[0].mxu0
    %v9854 = vadd.f32 %v9811, %v9853
    %v9855 = vpop.f32.mrb[0].mxu0
    %v9856 = vadd.f32 %v9813, %v9855
    %v9857 = vpop.f32.mrb[0].mxu0
    %v9858 = vadd.f32 %v9815, %v9857
    %9859 = vdwg.mxu0
    %9860 = vmatprep.subr.bf16.mxu0 %v7554
    %9861 = vmatpush1.bf16.msra.mxu0 %v7553
    %9862 = vmatprep.subr.bf16.mxu0 %v7562
    %9863 = vmatpush1.bf16.msra.mxu0 %v7561
    %9864 = vmatprep.subr.bf16.mxu0 %v7570
    %9865 = vmatpush1.bf16.msra.mxu0 %v7569
    %9866 = vmatprep.subr.bf16.mxu0 %v7578
    %9867 = vmatpush1.bf16.msra.mxu0 %v7577
    %9868 = vmatprep.subr.bf16.mxu0 %v7586
    %9869 = vmatpush1.bf16.msra.mxu0 %v7585
    %9870 = vmatprep.subr.bf16.mxu0 %v7594
    %9871 = vmatpush1.bf16.msra.mxu0 %v7593
    %9872 = vmatprep.subr.bf16.mxu0 %v7602
    %9873 = vmatpush1.bf16.msra.mxu0 %v7601
    %9874 = vmatprep.subr.bf16.mxu0 %v7610
    %9875 = vmatpush1.bf16.msra.mxu0 %v7609
    %9876 = vmatprep.subr.bf16.mxu0 %v7618
    %9877 = vmatpush1.bf16.msra.mxu0 %v7617
    %9878 = vmatprep.subr.bf16.mxu0 %v7626
    %9879 = vmatpush1.bf16.msra.mxu0 %v7625
    %9880 = vmatprep.subr.bf16.mxu0 %v7634
    %9881 = vmatpush1.bf16.msra.mxu0 %v7633
    %9882 = vmatprep.subr.bf16.mxu0 %v7642
    %9883 = vmatpush1.bf16.msra.mxu0 %v7641
    %9884 = vmatprep.subr.bf16.mxu0 %v7650
    %9885 = vmatpush1.bf16.msra.mxu0 %v7649
    %9886 = vmatprep.subr.bf16.mxu0 %v7658
    %9887 = vmatpush1.bf16.msra.mxu0 %v7657
    %9888 = vmatprep.subr.bf16.mxu0 %v7666
    %9889 = vmatpush1.bf16.msra.mxu0 %v7665
    %9890 = vmatprep.subr.bf16.mxu0 %v7674
    %9891 = vmatpush1.bf16.msra.mxu0 %v7673
    %9892 = vmatprep.mubr.bf16.mxu0 %v1764
    %9893 = vmatmul.mubr.bf16.gmra.mrb[0].mxu0 %v1763
    %v9894 = vpop.f32.mrb[0].mxu0
    %v9895 = vadd.f32 %v9852, %v9894
    %v9896 = vpop.f32.mrb[0].mxu0
    %v9897 = vadd.f32 %v9854, %v9896
    %v9898 = vpop.f32.mrb[0].mxu0
    %v9899 = vadd.f32 %v9856, %v9898
    %v9900 = vpop.f32.mrb[0].mxu0
    %v9901 = vadd.f32 %v9858, %v9900
    %9902 = vdwg.mxu0
    %9903 = vmatprep.subr.bf16.mxu0 %v7682
    %9904 = vmatpush1.bf16.msra.mxu0 %v7681
    %9905 = vmatprep.subr.bf16.mxu0 %v7690
    %9906 = vmatpush1.bf16.msra.mxu0 %v7689
    %9907 = vmatprep.subr.bf16.mxu0 %v7698
    %9908 = vmatpush1.bf16.msra.mxu0 %v7697
    %9909 = vmatprep.subr.bf16.mxu0 %v7706
    %9910 = vmatpush1.bf16.msra.mxu0 %v7705
    %9911 = vmatprep.subr.bf16.mxu0 %v7714
    %9912 = vmatpush1.bf16.msra.mxu0 %v7713
    %9913 = vmatprep.subr.bf16.mxu0 %v7722
    %9914 = vmatpush1.bf16.msra.mxu0 %v7721
    %9915 = vmatprep.subr.bf16.mxu0 %v7730
    %9916 = vmatpush1.bf16.msra.mxu0 %v7729
    %9917 = vmatprep.subr.bf16.mxu0 %v7738
    %9918 = vmatpush1.bf16.msra.mxu0 %v7737
    %9919 = vmatprep.subr.bf16.mxu0 %v7746
    %9920 = vmatpush1.bf16.msra.mxu0 %v7745
    %9921 = vmatprep.subr.bf16.mxu0 %v7754
    %9922 = vmatpush1.bf16.msra.mxu0 %v7753
    %9923 = vmatprep.subr.bf16.mxu0 %v7762
    %9924 = vmatpush1.bf16.msra.mxu0 %v7761
    %9925 = vmatprep.subr.bf16.mxu0 %v7770
    %9926 = vmatpush1.bf16.msra.mxu0 %v7769
    %9927 = vmatprep.subr.bf16.mxu0 %v7778
    %9928 = vmatpush1.bf16.msra.mxu0 %v7777
    %9929 = vmatprep.subr.bf16.mxu0 %v7786
    %9930 = vmatpush1.bf16.msra.mxu0 %v7785
    %9931 = vmatprep.subr.bf16.mxu0 %v7794
    %9932 = vmatpush1.bf16.msra.mxu0 %v7793
    %9933 = vmatprep.subr.bf16.mxu0 %v7802
    %9934 = vmatpush1.bf16.msra.mxu0 %v7801
    %9935 = vmatprep.mubr.bf16.mxu0 %v1766
    %9936 = vmatmul.mubr.bf16.gmra.mrb[0].mxu0 %v1765
    %v9937 = vpop.f32.mrb[0].mxu0
    %v9938 = vadd.f32 %v9895, %v9937
    %v9939 = vpop.f32.mrb[0].mxu0
    %v9940 = vadd.f32 %v9897, %v9939
    %v9941 = vpop.f32.mrb[0].mxu0
    %v9942 = vadd.f32 %v9899, %v9941
    %v9943 = vpop.f32.mrb[0].mxu0
    %v9944 = vadd.f32 %v9901, %v9943
    %9945 = vdwg.mxu0
    %9946 = vmatprep.subr.bf16.mxu0 %v7810
    %9947 = vmatpush1.bf16.msra.mxu0 %v7809
    %9948 = vmatprep.subr.bf16.mxu0 %v7818
    %9949 = vmatpush1.bf16.msra.mxu0 %v7817
    %9950 = vmatprep.subr.bf16.mxu0 %v7826
    %9951 = vmatpush1.bf16.msra.mxu0 %v7825
    %9952 = vmatprep.subr.bf16.mxu0 %v7834
    %9953 = vmatpush1.bf16.msra.mxu0 %v7833
    %9954 = vmatprep.subr.bf16.mxu0 %v7842
    %9955 = vmatpush1.bf16.msra.mxu0 %v7841
    %9956 = vmatprep.subr.bf16.mxu0 %v7850
    %9957 = vmatpush1.bf16.msra.mxu0 %v7849
    %9958 = vmatprep.subr.bf16.mxu0 %v7858
    %9959 = vmatpush1.bf16.msra.mxu0 %v7857
    %9960 = vmatprep.subr.bf16.mxu0 %v7866
    %9961 = vmatpush1.bf16.msra.mxu0 %v7865
    %9962 = vmatprep.subr.bf16.mxu0 %v7874
    %9963 = vmatpush1.bf16.msra.mxu0 %v7873
    %9964 = vmatprep.subr.bf16.mxu0 %v7882
    %9965 = vmatpush1.bf16.msra.mxu0 %v7881
    %9966 = vmatprep.subr.bf16.mxu0 %v7890
    %9967 = vmatpush1.bf16.msra.mxu0 %v7889
    %9968 = vmatprep.subr.bf16.mxu0 %v7898
    %9969 = vmatpush1.bf16.msra.mxu0 %v7897
    %9970 = vmatprep.subr.bf16.mxu0 %v7906
    %9971 = vmatpush1.bf16.msra.mxu0 %v7905
    %9972 = vmatprep.subr.bf16.mxu0 %v7914
    %9973 = vmatpush1.bf16.msra.mxu0 %v7913
    %9974 = vmatprep.subr.bf16.mxu0 %v7922
    %9975 = vmatpush1.bf16.msra.mxu0 %v7921
    %9976 = vmatprep.subr.bf16.mxu0 %v7930
    %9977 = vmatpush1.bf16.msra.mxu0 %v7929
    %9978 = vmatprep.mubr.bf16.mxu0 %v1768
    %9979 = vmatmul.mubr.bf16.gmra.mrb[0].mxu0 %v1767
    %v9980 = vpop.f32.mrb[0].mxu0
    %v9981 = vadd.f32 %v9938, %v9980
    %v9982 = vpop.f32.mrb[0].mxu0
    %v9983 = vadd.f32 %v9940, %v9982
    %v9984 = vpop.f32.mrb[0].mxu0
    %v9985 = vadd.f32 %v9942, %v9984
    %v9986 = vpop.f32.mrb[0].mxu0
    %v9987 = vadd.f32 %v9944, %v9986
    %9988 = vdwg.mxu0
    %9989 = vmatprep.subr.bf16.mxu0 %v6404
    %9990 = vmatpush1.bf16.msra.mxu0 %v6403
    %9991 = vmatprep.subr.bf16.mxu0 %v6412
    %9992 = vmatpush1.bf16.msra.mxu0 %v6411
    %9993 = vmatprep.subr.bf16.mxu0 %v6420
    %9994 = vmatpush1.bf16.msra.mxu0 %v6419
    %9995 = vmatprep.subr.bf16.mxu0 %v6428
    %9996 = vmatpush1.bf16.msra.mxu0 %v6427
    %9997 = vmatprep.subr.bf16.mxu0 %v6436
    %9998 = vmatpush1.bf16.msra.mxu0 %v6435
    %9999 = vmatprep.subr.bf16.mxu0 %v6444
    %10000 = vmatpush1.bf16.msra.mxu0 %v6443
    %10001 = vmatprep.subr.bf16.mxu0 %v6452
    %10002 = vmatpush1.bf16.msra.mxu0 %v6451
    %10003 = vmatprep.subr.bf16.mxu0 %v6460
    %10004 = vmatpush1.bf16.msra.mxu0 %v6459
    %10005 = vmatprep.subr.bf16.mxu0 %v6468
    %10006 = vmatpush1.bf16.msra.mxu0 %v6467
    %10007 = vmatprep.subr.bf16.mxu0 %v6476
    %10008 = vmatpush1.bf16.msra.mxu0 %v6475
    %10009 = vmatprep.subr.bf16.mxu0 %v6484
    %10010 = vmatpush1.bf16.msra.mxu0 %v6483
    %10011 = vmatprep.subr.bf16.mxu0 %v6492
    %10012 = vmatpush1.bf16.msra.mxu0 %v6491
    %10013 = vmatprep.subr.bf16.mxu0 %v6500
    %10014 = vmatpush1.bf16.msra.mxu0 %v6499
    %10015 = vmatprep.subr.bf16.mxu0 %v6508
    %10016 = vmatpush1.bf16.msra.mxu0 %v6507
    %10017 = vmatprep.subr.bf16.mxu0 %v6516
    %10018 = vmatpush1.bf16.msra.mxu0 %v6515
    %10019 = vmatprep.subr.bf16.mxu0 %v6524
    %10020 = vmatpush1.bf16.msra.mxu0 %v6523
    %10021 = vmatprep.mubr.bf16.mxu0 %v1746
    %10022 = vmatmul.mubr.bf16.gmra.mrb[0].mxu0 %v1745
    %v10023 = vpop.f32.mrb[0].mxu0
    %v10024 = vadd.f32 %v1644, %v10023
    %v10025 = vpop.f32.mrb[0].mxu0
    %v10026 = vadd.f32 %v1648, %v10025
    %v10027 = vpop.f32.mrb[0].mxu0
    %v10028 = vadd.f32 %v1644, %v10027
    %v10029 = vpop.f32.mrb[0].mxu0
    %v10030 = vadd.f32 %v1648, %v10029
    %10031 = vdwg.mxu0
    %10032 = vmatprep.subr.bf16.mxu0 %v6532
    %10033 = vmatpush1.bf16.msra.mxu0 %v6531
    %10034 = vmatprep.subr.bf16.mxu0 %v6540
    %10035 = vmatpush1.bf16.msra.mxu0 %v6539
    %10036 = vmatprep.subr.bf16.mxu0 %v6548
    %10037 = vmatpush1.bf16.msra.mxu0 %v6547
    %10038 = vmatprep.subr.bf16.mxu0 %v6556
    %10039 = vmatpush1.bf16.msra.mxu0 %v6555
    %10040 = vmatprep.subr.bf16.mxu0 %v6564
    %10041 = vmatpush1.bf16.msra.mxu0 %v6563
    %10042 = vmatprep.subr.bf16.mxu0 %v6572
    %10043 = vmatpush1.bf16.msra.mxu0 %v6571
    %10044 = vmatprep.subr.bf16.mxu0 %v6580
    %10045 = vmatpush1.bf16.msra.mxu0 %v6579
    %10046 = vmatprep.subr.bf16.mxu0 %v6588
    %10047 = vmatpush1.bf16.msra.mxu0 %v6587
    %10048 = vmatprep.subr.bf16.mxu0 %v6596
    %10049 = vmatpush1.bf16.msra.mxu0 %v6595
    %10050 = vmatprep.subr.bf16.mxu0 %v6604
    %10051 = vmatpush1.bf16.msra.mxu0 %v6603
    %10052 = vmatprep.subr.bf16.mxu0 %v6612
    %10053 = vmatpush1.bf16.msra.mxu0 %v6611
    %10054 = vmatprep.subr.bf16.mxu0 %v6620
    %10055 = vmatpush1.bf16.msra.mxu0 %v6619
    %10056 = vmatprep.subr.bf16.mxu0 %v6628
    %10057 = vmatpush1.bf16.msra.mxu0 %v6627
    %10058 = vmatprep.subr.bf16.mxu0 %v6636
    %10059 = vmatpush1.bf16.msra.mxu0 %v6635
    %10060 = vmatprep.subr.bf16.mxu0 %v6644
    %10061 = vmatpush1.bf16.msra.mxu0 %v6643
    %10062 = vmatprep.subr.bf16.mxu0 %v6652
    %10063 = vmatpush1.bf16.msra.mxu0 %v6651
    %10064 = vmatprep.mubr.bf16.mxu0 %v1748
    %10065 = vmatmul.mubr.bf16.gmra.mrb[0].mxu0 %v1747
    %v10066 = vpop.f32.mrb[0].mxu0
    %v10067 = vadd.f32 %v10024, %v10066
    %v10068 = vpop.f32.mrb[0].mxu0
    %v10069 = vadd.f32 %v10026, %v10068
    %v10070 = vpop.f32.mrb[0].mxu0
    %v10071 = vadd.f32 %v10028, %v10070
    %v10072 = vpop.f32.mrb[0].mxu0
    %v10073 = vadd.f32 %v10030, %v10072
    %10074 = vdwg.mxu0
    %10075 = vmatprep.subr.bf16.mxu0 %v6660
    %10076 = vmatpush1.bf16.msra.mxu0 %v6659
    %10077 = vmatprep.subr.bf16.mxu0 %v6668
    %10078 = vmatpush1.bf16.msra.mxu0 %v6667
    %10079 = vmatprep.subr.bf16.mxu0 %v6676
    %10080 = vmatpush1.bf16.msra.mxu0 %v6675
    %10081 = vmatprep.subr.bf16.mxu0 %v6684
    %10082 = vmatpush1.bf16.msra.mxu0 %v6683
    %10083 = vmatprep.subr.bf16.mxu0 %v6692
    %10084 = vmatpush1.bf16.msra.mxu0 %v6691
    %10085 = vmatprep.subr.bf16.mxu0 %v6700
    %10086 = vmatpush1.bf16.msra.mxu0 %v6699
    %10087 = vmatprep.subr.bf16.mxu0 %v6708
    %10088 = vmatpush1.bf16.msra.mxu0 %v6707
    %10089 = vmatprep.subr.bf16.mxu0 %v6716
    %10090 = vmatpush1.bf16.msra.mxu0 %v6715
    %10091 = vmatprep.subr.bf16.mxu0 %v6724
    %10092 = vmatpush1.bf16.msra.mxu0 %v6723
    %10093 = vmatprep.subr.bf16.mxu0 %v6732
    %10094 = vmatpush1.bf16.msra.mxu0 %v6731
    %10095 = vmatprep.subr.bf16.mxu0 %v6740
    %10096 = vmatpush1.bf16.msra.mxu0 %v6739
    %10097 = vmatprep.subr.bf16.mxu0 %v6748
    %10098 = vmatpush1.bf16.msra.mxu0 %v6747
    %10099 = vmatprep.subr.bf16.mxu0 %v6756
    %10100 = vmatpush1.bf16.msra.mxu0 %v6755
    %10101 = vmatprep.subr.bf16.mxu0 %v6764
    %10102 = vmatpush1.bf16.msra.mxu0 %v6763
    %10103 = vmatprep.subr.bf16.mxu0 %v6772
    %10104 = vmatpush1.bf16.msra.mxu0 %v6771
    %10105 = vmatprep.subr.bf16.mxu0 %v6780
    %10106 = vmatpush1.bf16.msra.mxu0 %v6779
    %10107 = vmatprep.mubr.bf16.mxu0 %v1750
    %10108 = vmatmul.mubr.bf16.gmra.mrb[0].mxu0 %v1749
    %v10109 = vpop.f32.mrb[0].mxu0
    %v10110 = vadd.f32 %v10067, %v10109
    %v10111 = vpop.f32.mrb[0].mxu0
    %v10112 = vadd.f32 %v10069, %v10111
    %v10113 = vpop.f32.mrb[0].mxu0
    %v10114 = vadd.f32 %v10071, %v10113
    %v10115 = vpop.f32.mrb[0].mxu0
    %v10116 = vadd.f32 %v10073, %v10115
    %10117 = vdwg.mxu0
    %10118 = vmatprep.subr.bf16.mxu0 %v6788
    %10119 = vmatpush1.bf16.msra.mxu0 %v6787
    %10120 = vmatprep.subr.bf16.mxu0 %v6796
    %10121 = vmatpush1.bf16.msra.mxu0 %v6795
    %10122 = vmatprep.subr.bf16.mxu0 %v6804
    %10123 = vmatpush1.bf16.msra.mxu0 %v6803
    %10124 = vmatprep.subr.bf16.mxu0 %v6812
    %10125 = vmatpush1.bf16.msra.mxu0 %v6811
    %10126 = vmatprep.subr.bf16.mxu0 %v6820
    %10127 = vmatpush1.bf16.msra.mxu0 %v6819
    %10128 = vmatprep.subr.bf16.mxu0 %v6828
    %10129 = vmatpush1.bf16.msra.mxu0 %v6827
    %10130 = vmatprep.subr.bf16.mxu0 %v6836
    %10131 = vmatpush1.bf16.msra.mxu0 %v6835
    %10132 = vmatprep.subr.bf16.mxu0 %v6844
    %10133 = vmatpush1.bf16.msra.mxu0 %v6843
    %10134 = vmatprep.subr.bf16.mxu0 %v6852
    %10135 = vmatpush1.bf16.msra.mxu0 %v6851
    %10136 = vmatprep.subr.bf16.mxu0 %v6860
    %10137 = vmatpush1.bf16.msra.mxu0 %v6859
    %10138 = vmatprep.subr.bf16.mxu0 %v6868
    %10139 = vmatpush1.bf16.msra.mxu0 %v6867
    %10140 = vmatprep.subr.bf16.mxu0 %v6876
    %10141 = vmatpush1.bf16.msra.mxu0 %v6875
    %10142 = vmatprep.subr.bf16.mxu0 %v6884
    %10143 = vmatpush1.bf16.msra.mxu0 %v6883
    %10144 = vmatprep.subr.bf16.mxu0 %v6892
    %10145 = vmatpush1.bf16.msra.mxu0 %v6891
    %10146 = vmatprep.subr.bf16.mxu0 %v6900
    %10147 = vmatpush1.bf16.msra.mxu0 %v6899
    %10148 = vmatprep.subr.bf16.mxu0 %v6908
    %10149 = vmatpush1.bf16.msra.mxu0 %v6907
    %10150 = vmatprep.mubr.bf16.mxu0 %v1752
    %10151 = vmatmul.mubr.bf16.gmra.mrb[0].mxu0 %v1751
    %v10152 = vpop.f32.mrb[0].mxu0
    %v10153 = vadd.f32 %v10110, %v10152
    %v10154 = vpop.f32.mrb[0].mxu0
    %v10155 = vadd.f32 %v10112, %v10154
    %v10156 = vpop.f32.mrb[0].mxu0
    %v10157 = vadd.f32 %v10114, %v10156
    %v10158 = vpop.f32.mrb[0].mxu0
    %v10159 = vadd.f32 %v10116, %v10158
    %10160 = vdwg.mxu0
    %10161 = vmatprep.subr.bf16.mxu0 %v6916
    %10162 = vmatpush1.bf16.msra.mxu0 %v6915
    %10163 = vmatprep.subr.bf16.mxu0 %v6924
    %10164 = vmatpush1.bf16.msra.mxu0 %v6923
    %10165 = vmatprep.subr.bf16.mxu0 %v6932
    %10166 = vmatpush1.bf16.msra.mxu0 %v6931
    %10167 = vmatprep.subr.bf16.mxu0 %v6940
    %10168 = vmatpush1.bf16.msra.mxu0 %v6939
    %10169 = vmatprep.subr.bf16.mxu0 %v6948
    %10170 = vmatpush1.bf16.msra.mxu0 %v6947
    %10171 = vmatprep.subr.bf16.mxu0 %v6956
    %10172 = vmatpush1.bf16.msra.mxu0 %v6955
    %10173 = vmatprep.subr.bf16.mxu0 %v6964
    %10174 = vmatpush1.bf16.msra.mxu0 %v6963
    %10175 = vmatprep.subr.bf16.mxu0 %v6972
    %10176 = vmatpush1.bf16.msra.mxu0 %v6971
    %10177 = vmatprep.subr.bf16.mxu0 %v6980
    %10178 = vmatpush1.bf16.msra.mxu0 %v6979
    %10179 = vmatprep.subr.bf16.mxu0 %v6988
    %10180 = vmatpush1.bf16.msra.mxu0 %v6987
    %10181 = vmatprep.subr.bf16.mxu0 %v6996
    %10182 = vmatpush1.bf16.msra.mxu0 %v6995
    %10183 = vmatprep.subr.bf16.mxu0 %v7004
    %10184 = vmatpush1.bf16.msra.mxu0 %v7003
    %10185 = vmatprep.subr.bf16.mxu0 %v7012
    %10186 = vmatpush1.bf16.msra.mxu0 %v7011
    %10187 = vmatprep.subr.bf16.mxu0 %v7020
    %10188 = vmatpush1.bf16.msra.mxu0 %v7019
    %10189 = vmatprep.subr.bf16.mxu0 %v7028
    %10190 = vmatpush1.bf16.msra.mxu0 %v7027
    %10191 = vmatprep.subr.bf16.mxu0 %v7036
    %10192 = vmatpush1.bf16.msra.mxu0 %v7035
    %10193 = vmatprep.mubr.bf16.mxu0 %v1754
    %10194 = vmatmul.mubr.bf16.gmra.mrb[0].mxu0 %v1753
    %v10195 = vpop.f32.mrb[0].mxu0
    %v10196 = vadd.f32 %v10153, %v10195
    %v10197 = vpop.f32.mrb[0].mxu0
    %v10198 = vadd.f32 %v10155, %v10197
    %v10199 = vpop.f32.mrb[0].mxu0
    %v10200 = vadd.f32 %v10157, %v10199
    %v10201 = vpop.f32.mrb[0].mxu0
    %v10202 = vadd.f32 %v10159, %v10201
    %10203 = vdwg.mxu0
    %10204 = vmatprep.subr.bf16.mxu0 %v7044
    %10205 = vmatpush1.bf16.msra.mxu0 %v7043
    %10206 = vmatprep.subr.bf16.mxu0 %v7052
    %10207 = vmatpush1.bf16.msra.mxu0 %v7051
    %10208 = vmatprep.subr.bf16.mxu0 %v7060
    %10209 = vmatpush1.bf16.msra.mxu0 %v7059
    %10210 = vmatprep.subr.bf16.mxu0 %v7068
    %10211 = vmatpush1.bf16.msra.mxu0 %v7067
    %10212 = vmatprep.subr.bf16.mxu0 %v7076
    %10213 = vmatpush1.bf16.msra.mxu0 %v7075
    %10214 = vmatprep.subr.bf16.mxu0 %v7084
    %10215 = vmatpush1.bf16.msra.mxu0 %v7083
    %10216 = vmatprep.subr.bf16.mxu0 %v7092
    %10217 = vmatpush1.bf16.msra.mxu0 %v7091
    %10218 = vmatprep.subr.bf16.mxu0 %v7100
    %10219 = vmatpush1.bf16.msra.mxu0 %v7099
    %10220 = vmatprep.subr.bf16.mxu0 %v7108
    %10221 = vmatpush1.bf16.msra.mxu0 %v7107
    %10222 = vmatprep.subr.bf16.mxu0 %v7116
    %10223 = vmatpush1.bf16.msra.mxu0 %v7115
    %10224 = vmatprep.subr.bf16.mxu0 %v7124
    %10225 = vmatpush1.bf16.msra.mxu0 %v7123
    %10226 = vmatprep.subr.bf16.mxu0 %v7132
    %10227 = vmatpush1.bf16.msra.mxu0 %v7131
    %10228 = vmatprep.subr.bf16.mxu0 %v7140
    %10229 = vmatpush1.bf16.msra.mxu0 %v7139
    %10230 = vmatprep.subr.bf16.mxu0 %v7148
    %10231 = vmatpush1.bf16.msra.mxu0 %v7147
    %10232 = vmatprep.subr.bf16.mxu0 %v7156
    %10233 = vmatpush1.bf16.msra.mxu0 %v7155
    %10234 = vmatprep.subr.bf16.mxu0 %v7164
    %10235 = vmatpush1.bf16.msra.mxu0 %v7163
    %10236 = vmatprep.mubr.bf16.mxu0 %v1756
    %10237 = vmatmul.mubr.bf16.gmra.mrb[0].mxu0 %v1755
    %v10238 = vpop.f32.mrb[0].mxu0
    %v10239 = vadd.f32 %v10196, %v10238
    %v10240 = vpop.f32.mrb[0].mxu0
    %v10241 = vadd.f32 %v10198, %v10240
    %v10242 = vpop.f32.mrb[0].mxu0
    %v10243 = vadd.f32 %v10200, %v10242
    %v10244 = vpop.f32.mrb[0].mxu0
    %v10245 = vadd.f32 %v10202, %v10244
    %10246 = vdwg.mxu0
    %10247 = vmatprep.subr.bf16.mxu0 %v7172
    %10248 = vmatpush1.bf16.msra.mxu0 %v7171
    %10249 = vmatprep.subr.bf16.mxu0 %v7180
    %10250 = vmatpush1.bf16.msra.mxu0 %v7179
    %10251 = vmatprep.subr.bf16.mxu0 %v7188
    %10252 = vmatpush1.bf16.msra.mxu0 %v7187
    %10253 = vmatprep.subr.bf16.mxu0 %v7196
    %10254 = vmatpush1.bf16.msra.mxu0 %v7195
    %10255 = vmatprep.subr.bf16.mxu0 %v7204
    %10256 = vmatpush1.bf16.msra.mxu0 %v7203
    %10257 = vmatprep.subr.bf16.mxu0 %v7212
    %10258 = vmatpush1.bf16.msra.mxu0 %v7211
    %10259 = vmatprep.subr.bf16.mxu0 %v7220
    %10260 = vmatpush1.bf16.msra.mxu0 %v7219
    %10261 = vmatprep.subr.bf16.mxu0 %v7228
    %10262 = vmatpush1.bf16.msra.mxu0 %v7227
    %10263 = vmatprep.subr.bf16.mxu0 %v7236
    %10264 = vmatpush1.bf16.msra.mxu0 %v7235
    %10265 = vmatprep.subr.bf16.mxu0 %v7244
    %10266 = vmatpush1.bf16.msra.mxu0 %v7243
    %10267 = vmatprep.subr.bf16.mxu0 %v7252
    %10268 = vmatpush1.bf16.msra.mxu0 %v7251
    %10269 = vmatprep.subr.bf16.mxu0 %v7260
    %10270 = vmatpush1.bf16.msra.mxu0 %v7259
    %10271 = vmatprep.subr.bf16.mxu0 %v7268
    %10272 = vmatpush1.bf16.msra.mxu0 %v7267
    %10273 = vmatprep.subr.bf16.mxu0 %v7276
    %10274 = vmatpush1.bf16.msra.mxu0 %v7275
    %10275 = vmatprep.subr.bf16.mxu0 %v7284
    %10276 = vmatpush1.bf16.msra.mxu0 %v7283
    %10277 = vmatprep.subr.bf16.mxu0 %v7292
    %10278 = vmatpush1.bf16.msra.mxu0 %v7291
    %10279 = vmatprep.mubr.bf16.mxu0 %v1758
    %10280 = vmatmul.mubr.bf16.gmra.mrb[0].mxu0 %v1757
    %v10281 = vpop.f32.mrb[0].mxu0
    %v10282 = vadd.f32 %v10239, %v10281
    %v10283 = vpop.f32.mrb[0].mxu0
    %v10284 = vadd.f32 %v10241, %v10283
    %v10285 = vpop.f32.mrb[0].mxu0
    %v10286 = vadd.f32 %v10243, %v10285
    %v10287 = vpop.f32.mrb[0].mxu0
    %v10288 = vadd.f32 %v10245, %v10287
    %10289 = vdwg.mxu0
    %10290 = vmatprep.subr.bf16.mxu0 %v7300
    %10291 = vmatpush1.bf16.msra.mxu0 %v7299
    %10292 = vmatprep.subr.bf16.mxu0 %v7308
    %10293 = vmatpush1.bf16.msra.mxu0 %v7307
    %10294 = vmatprep.subr.bf16.mxu0 %v7316
    %10295 = vmatpush1.bf16.msra.mxu0 %v7315
    %10296 = vmatprep.subr.bf16.mxu0 %v7324
    %10297 = vmatpush1.bf16.msra.mxu0 %v7323
    %10298 = vmatprep.subr.bf16.mxu0 %v7332
    %10299 = vmatpush1.bf16.msra.mxu0 %v7331
    %10300 = vmatprep.subr.bf16.mxu0 %v7340
    %10301 = vmatpush1.bf16.msra.mxu0 %v7339
    %10302 = vmatprep.subr.bf16.mxu0 %v7348
    %10303 = vmatpush1.bf16.msra.mxu0 %v7347
    %10304 = vmatprep.subr.bf16.mxu0 %v7356
    %10305 = vmatpush1.bf16.msra.mxu0 %v7355
    %10306 = vmatprep.subr.bf16.mxu0 %v7364
    %10307 = vmatpush1.bf16.msra.mxu0 %v7363
    %10308 = vmatprep.subr.bf16.mxu0 %v7372
    %10309 = vmatpush1.bf16.msra.mxu0 %v7371
    %10310 = vmatprep.subr.bf16.mxu0 %v7380
    %10311 = vmatpush1.bf16.msra.mxu0 %v7379
    %10312 = vmatprep.subr.bf16.mxu0 %v7388
    %10313 = vmatpush1.bf16.msra.mxu0 %v7387
    %10314 = vmatprep.subr.bf16.mxu0 %v7396
    %10315 = vmatpush1.bf16.msra.mxu0 %v7395
    %10316 = vmatprep.subr.bf16.mxu0 %v7404
    %10317 = vmatpush1.bf16.msra.mxu0 %v7403
    %10318 = vmatprep.subr.bf16.mxu0 %v7412
    %10319 = vmatpush1.bf16.msra.mxu0 %v7411
    %10320 = vmatprep.subr.bf16.mxu0 %v7420
    %10321 = vmatpush1.bf16.msra.mxu0 %v7419
    %10322 = vmatprep.mubr.bf16.mxu0 %v1760
    %10323 = vmatmul.mubr.bf16.gmra.mrb[0].mxu0 %v1759
    %v10324 = vpop.f32.mrb[0].mxu0
    %v10325 = vadd.f32 %v10282, %v10324
    %v10326 = vpop.f32.mrb[0].mxu0
    %v10327 = vadd.f32 %v10284, %v10326
    %v10328 = vpop.f32.mrb[0].mxu0
    %v10329 = vadd.f32 %v10286, %v10328
    %v10330 = vpop.f32.mrb[0].mxu0
    %v10331 = vadd.f32 %v10288, %v10330
    %10332 = vdwg.mxu0
    %10333 = vmatprep.subr.bf16.mxu0 %v7428
    %10334 = vmatpush1.bf16.msra.mxu0 %v7427
    %10335 = vmatprep.subr.bf16.mxu0 %v7436
    %10336 = vmatpush1.bf16.msra.mxu0 %v7435
    %10337 = vmatprep.subr.bf16.mxu0 %v7444
    %10338 = vmatpush1.bf16.msra.mxu0 %v7443
    %10339 = vmatprep.subr.bf16.mxu0 %v7452
    %10340 = vmatpush1.bf16.msra.mxu0 %v7451
    %10341 = vmatprep.subr.bf16.mxu0 %v7460
    %10342 = vmatpush1.bf16.msra.mxu0 %v7459
    %10343 = vmatprep.subr.bf16.mxu0 %v7468
    %10344 = vmatpush1.bf16.msra.mxu0 %v7467
    %10345 = vmatprep.subr.bf16.mxu0 %v7476
    %10346 = vmatpush1.bf16.msra.mxu0 %v7475
    %10347 = vmatprep.subr.bf16.mxu0 %v7484
    %10348 = vmatpush1.bf16.msra.mxu0 %v7483
    %10349 = vmatprep.subr.bf16.mxu0 %v7492
    %10350 = vmatpush1.bf16.msra.mxu0 %v7491
    %10351 = vmatprep.subr.bf16.mxu0 %v7500
    %10352 = vmatpush1.bf16.msra.mxu0 %v7499
    %10353 = vmatprep.subr.bf16.mxu0 %v7508
    %10354 = vmatpush1.bf16.msra.mxu0 %v7507
    %10355 = vmatprep.subr.bf16.mxu0 %v7516
    %10356 = vmatpush1.bf16.msra.mxu0 %v7515
    %10357 = vmatprep.subr.bf16.mxu0 %v7524
    %10358 = vmatpush1.bf16.msra.mxu0 %v7523
    %10359 = vmatprep.subr.bf16.mxu0 %v7532
    %10360 = vmatpush1.bf16.msra.mxu0 %v7531
    %10361 = vmatprep.subr.bf16.mxu0 %v7540
    %10362 = vmatpush1.bf16.msra.mxu0 %v7539
    %10363 = vmatprep.subr.bf16.mxu0 %v7548
    %10364 = vmatpush1.bf16.msra.mxu0 %v7547
    %10365 = vmatprep.mubr.bf16.mxu0 %v1762
    %10366 = vmatmul.mubr.bf16.gmra.mrb[0].mxu0 %v1761
    %v10367 = vpop.f32.mrb[0].mxu0
    %v10368 = vadd.f32 %v10325, %v10367
    %v10369 = vpop.f32.mrb[0].mxu0
    %v10370 = vadd.f32 %v10327, %v10369
    %v10371 = vpop.f32.mrb[0].mxu0
    %v10372 = vadd.f32 %v10329, %v10371
    %v10373 = vpop.f32.mrb[0].mxu0
    %v10374 = vadd.f32 %v10331, %v10373
    %10375 = vdwg.mxu0
    %10376 = vmatprep.subr.bf16.mxu0 %v7556
    %10377 = vmatpush1.bf16.msra.mxu0 %v7555
    %10378 = vmatprep.subr.bf16.mxu0 %v7564
    %10379 = vmatpush1.bf16.msra.mxu0 %v7563
    %10380 = vmatprep.subr.bf16.mxu0 %v7572
    %10381 = vmatpush1.bf16.msra.mxu0 %v7571
    %10382 = vmatprep.subr.bf16.mxu0 %v7580
    %10383 = vmatpush1.bf16.msra.mxu0 %v7579
    %10384 = vmatprep.subr.bf16.mxu0 %v7588
    %10385 = vmatpush1.bf16.msra.mxu0 %v7587
    %10386 = vmatprep.subr.bf16.mxu0 %v7596
    %10387 = vmatpush1.bf16.msra.mxu0 %v7595
    %10388 = vmatprep.subr.bf16.mxu0 %v7604
    %10389 = vmatpush1.bf16.msra.mxu0 %v7603
    %10390 = vmatprep.subr.bf16.mxu0 %v7612
    %10391 = vmatpush1.bf16.msra.mxu0 %v7611
    %10392 = vmatprep.subr.bf16.mxu0 %v7620
    %10393 = vmatpush1.bf16.msra.mxu0 %v7619
    %10394 = vmatprep.subr.bf16.mxu0 %v7628
    %10395 = vmatpush1.bf16.msra.mxu0 %v7627
    %10396 = vmatprep.subr.bf16.mxu0 %v7636
    %10397 = vmatpush1.bf16.msra.mxu0 %v7635
    %10398 = vmatprep.subr.bf16.mxu0 %v7644
    %10399 = vmatpush1.bf16.msra.mxu0 %v7643
    %10400 = vmatprep.subr.bf16.mxu0 %v7652
    %10401 = vmatpush1.bf16.msra.mxu0 %v7651
    %10402 = vmatprep.subr.bf16.mxu0 %v7660
    %10403 = vmatpush1.bf16.msra.mxu0 %v7659
    %10404 = vmatprep.subr.bf16.mxu0 %v7668
    %10405 = vmatpush1.bf16.msra.mxu0 %v7667
    %10406 = vmatprep.subr.bf16.mxu0 %v7676
    %10407 = vmatpush1.bf16.msra.mxu0 %v7675
    %10408 = vmatprep.mubr.bf16.mxu0 %v1764
    %10409 = vmatmul.mubr.bf16.gmra.mrb[0].mxu0 %v1763
    %v10410 = vpop.f32.mrb[0].mxu0
    %v10411 = vadd.f32 %v10368, %v10410
    %v10412 = vpop.f32.mrb[0].mxu0
    %v10413 = vadd.f32 %v10370, %v10412
    %v10414 = vpop.f32.mrb[0].mxu0
    %v10415 = vadd.f32 %v10372, %v10414
    %v10416 = vpop.f32.mrb[0].mxu0
    %v10417 = vadd.f32 %v10374, %v10416
    %10418 = vdwg.mxu0
    %10419 = vmatprep.subr.bf16.mxu0 %v7684
    %10420 = vmatpush1.bf16.msra.mxu0 %v7683
    %10421 = vmatprep.subr.bf16.mxu0 %v7692
    %10422 = vmatpush1.bf16.msra.mxu0 %v7691
    %10423 = vmatprep.subr.bf16.mxu0 %v7700
    %10424 = vmatpush1.bf16.msra.mxu0 %v7699
    %10425 = vmatprep.subr.bf16.mxu0 %v7708
    %10426 = vmatpush1.bf16.msra.mxu0 %v7707
    %10427 = vmatprep.subr.bf16.mxu0 %v7716
    %10428 = vmatpush1.bf16.msra.mxu0 %v7715
    %10429 = vmatprep.subr.bf16.mxu0 %v7724
    %10430 = vmatpush1.bf16.msra.mxu0 %v7723
    %10431 = vmatprep.subr.bf16.mxu0 %v7732
    %10432 = vmatpush1.bf16.msra.mxu0 %v7731
    %10433 = vmatprep.subr.bf16.mxu0 %v7740
    %10434 = vmatpush1.bf16.msra.mxu0 %v7739
    %10435 = vmatprep.subr.bf16.mxu0 %v7748
    %10436 = vmatpush1.bf16.msra.mxu0 %v7747
    %10437 = vmatprep.subr.bf16.mxu0 %v7756
    %10438 = vmatpush1.bf16.msra.mxu0 %v7755
    %10439 = vmatprep.subr.bf16.mxu0 %v7764
    %10440 = vmatpush1.bf16.msra.mxu0 %v7763
    %10441 = vmatprep.subr.bf16.mxu0 %v7772
    %10442 = vmatpush1.bf16.msra.mxu0 %v7771
    %10443 = vmatprep.subr.bf16.mxu0 %v7780
    %10444 = vmatpush1.bf16.msra.mxu0 %v7779
    %10445 = vmatprep.subr.bf16.mxu0 %v7788
    %10446 = vmatpush1.bf16.msra.mxu0 %v7787
    %10447 = vmatprep.subr.bf16.mxu0 %v7796
    %10448 = vmatpush1.bf16.msra.mxu0 %v7795
    %10449 = vmatprep.subr.bf16.mxu0 %v7804
    %10450 = vmatpush1.bf16.msra.mxu0 %v7803
    %10451 = vmatprep.mubr.bf16.mxu0 %v1766
    %10452 = vmatmul.mubr.bf16.gmra.mrb[0].mxu0 %v1765
    %v10453 = vpop.f32.mrb[0].mxu0
    %v10454 = vadd.f32 %v10411, %v10453
    %v10455 = vpop.f32.mrb[0].mxu0
    %v10456 = vadd.f32 %v10413, %v10455
    %v10457 = vpop.f32.mrb[0].mxu0
    %v10458 = vadd.f32 %v10415, %v10457
    %v10459 = vpop.f32.mrb[0].mxu0
    %v10460 = vadd.f32 %v10417, %v10459
    %10461 = vdwg.mxu0
    %10462 = vmatprep.subr.bf16.mxu0 %v7812
    %10463 = vmatpush1.bf16.msra.mxu0 %v7811
    %10464 = vmatprep.subr.bf16.mxu0 %v7820
    %10465 = vmatpush1.bf16.msra.mxu0 %v7819
    %10466 = vmatprep.subr.bf16.mxu0 %v7828
    %10467 = vmatpush1.bf16.msra.mxu0 %v7827
    %10468 = vmatprep.subr.bf16.mxu0 %v7836
    %10469 = vmatpush1.bf16.msra.mxu0 %v7835
    %10470 = vmatprep.subr.bf16.mxu0 %v7844
    %10471 = vmatpush1.bf16.msra.mxu0 %v7843
    %10472 = vmatprep.subr.bf16.mxu0 %v7852
    %10473 = vmatpush1.bf16.msra.mxu0 %v7851
    %10474 = vmatprep.subr.bf16.mxu0 %v7860
    %10475 = vmatpush1.bf16.msra.mxu0 %v7859
    %10476 = vmatprep.subr.bf16.mxu0 %v7868
    %10477 = vmatpush1.bf16.msra.mxu0 %v7867
    %10478 = vmatprep.subr.bf16.mxu0 %v7876
    %10479 = vmatpush1.bf16.msra.mxu0 %v7875
    %10480 = vmatprep.subr.bf16.mxu0 %v7884
    %10481 = vmatpush1.bf16.msra.mxu0 %v7883
    %10482 = vmatprep.subr.bf16.mxu0 %v7892
    %10483 = vmatpush1.bf16.msra.mxu0 %v7891
    %10484 = vmatprep.subr.bf16.mxu0 %v7900
    %10485 = vmatpush1.bf16.msra.mxu0 %v7899
    %10486 = vmatprep.subr.bf16.mxu0 %v7908
    %10487 = vmatpush1.bf16.msra.mxu0 %v7907
    %10488 = vmatprep.subr.bf16.mxu0 %v7916
    %10489 = vmatpush1.bf16.msra.mxu0 %v7915
    %10490 = vmatprep.subr.bf16.mxu0 %v7924
    %10491 = vmatpush1.bf16.msra.mxu0 %v7923
    %10492 = vmatprep.subr.bf16.mxu0 %v7932
    %10493 = vmatpush1.bf16.msra.mxu0 %v7931
    %10494 = vmatprep.mubr.bf16.mxu0 %v1768
    %10495 = vmatmul.mubr.bf16.gmra.mrb[0].mxu0 %v1767
    %v10496 = vpop.f32.mrb[0].mxu0
    %v10497 = vadd.f32 %v10454, %v10496
    %v10498 = vpop.f32.mrb[0].mxu0
    %v10499 = vadd.f32 %v10456, %v10498
    %v10500 = vpop.f32.mrb[0].mxu0
    %v10501 = vadd.f32 %v10458, %v10500
    %v10502 = vpop.f32.mrb[0].mxu0
    %v10503 = vadd.f32 %v10460, %v10502
    %10504 = vdwg.mxu0
    %10505 = vmatprep.subr.bf16.mxu0 %v6406
    %10506 = vmatpush1.bf16.msra.mxu0 %v6405
    %10507 = vmatprep.subr.bf16.mxu0 %v6414
    %10508 = vmatpush1.bf16.msra.mxu0 %v6413
    %10509 = vmatprep.subr.bf16.mxu0 %v6422
    %10510 = vmatpush1.bf16.msra.mxu0 %v6421
    %10511 = vmatprep.subr.bf16.mxu0 %v6430
    %10512 = vmatpush1.bf16.msra.mxu0 %v6429
    %10513 = vmatprep.subr.bf16.mxu0 %v6438
    %10514 = vmatpush1.bf16.msra.mxu0 %v6437
    %10515 = vmatprep.subr.bf16.mxu0 %v6446
    %10516 = vmatpush1.bf16.msra.mxu0 %v6445
    %10517 = vmatprep.subr.bf16.mxu0 %v6454
    %10518 = vmatpush1.bf16.msra.mxu0 %v6453
    %10519 = vmatprep.subr.bf16.mxu0 %v6462
    %10520 = vmatpush1.bf16.msra.mxu0 %v6461
    %10521 = vmatprep.subr.bf16.mxu0 %v6470
    %10522 = vmatpush1.bf16.msra.mxu0 %v6469
    %10523 = vmatprep.subr.bf16.mxu0 %v6478
    %10524 = vmatpush1.bf16.msra.mxu0 %v6477
    %10525 = vmatprep.subr.bf16.mxu0 %v6486
    %10526 = vmatpush1.bf16.msra.mxu0 %v6485
    %10527 = vmatprep.subr.bf16.mxu0 %v6494
    %10528 = vmatpush1.bf16.msra.mxu0 %v6493
    %10529 = vmatprep.subr.bf16.mxu0 %v6502
    %10530 = vmatpush1.bf16.msra.mxu0 %v6501
    %10531 = vmatprep.subr.bf16.mxu0 %v6510
    %10532 = vmatpush1.bf16.msra.mxu0 %v6509
    %10533 = vmatprep.subr.bf16.mxu0 %v6518
    %10534 = vmatpush1.bf16.msra.mxu0 %v6517
    %10535 = vmatprep.subr.bf16.mxu0 %v6526
    %10536 = vmatpush1.bf16.msra.mxu0 %v6525
    %10537 = vmatprep.mubr.bf16.mxu0 %v1746
    %10538 = vmatmul.mubr.bf16.gmra.mrb[0].mxu0 %v1745
    %v10539 = vpop.f32.mrb[0].mxu0
    %v10540 = vadd.f32 %v1652, %v10539
    %v10541 = vpop.f32.mrb[0].mxu0
    %v10542 = vadd.f32 %v1656, %v10541
    %v10543 = vpop.f32.mrb[0].mxu0
    %v10544 = vadd.f32 %v1652, %v10543
    %v10545 = vpop.f32.mrb[0].mxu0
    %v10546 = vadd.f32 %v1656, %v10545
    %10547 = vdwg.mxu0
    %10548 = vmatprep.subr.bf16.mxu0 %v6534
    %10549 = vmatpush1.bf16.msra.mxu0 %v6533
    %10550 = vmatprep.subr.bf16.mxu0 %v6542
    %10551 = vmatpush1.bf16.msra.mxu0 %v6541
    %10552 = vmatprep.subr.bf16.mxu0 %v6550
    %10553 = vmatpush1.bf16.msra.mxu0 %v6549
    %10554 = vmatprep.subr.bf16.mxu0 %v6558
    %10555 = vmatpush1.bf16.msra.mxu0 %v6557
    %10556 = vmatprep.subr.bf16.mxu0 %v6566
    %10557 = vmatpush1.bf16.msra.mxu0 %v6565
    %10558 = vmatprep.subr.bf16.mxu0 %v6574
    %10559 = vmatpush1.bf16.msra.mxu0 %v6573
    %10560 = vmatprep.subr.bf16.mxu0 %v6582
    %10561 = vmatpush1.bf16.msra.mxu0 %v6581
    %10562 = vmatprep.subr.bf16.mxu0 %v6590
    %10563 = vmatpush1.bf16.msra.mxu0 %v6589
    %10564 = vmatprep.subr.bf16.mxu0 %v6598
    %10565 = vmatpush1.bf16.msra.mxu0 %v6597
    %10566 = vmatprep.subr.bf16.mxu0 %v6606
    %10567 = vmatpush1.bf16.msra.mxu0 %v6605
    %10568 = vmatprep.subr.bf16.mxu0 %v6614
    %10569 = vmatpush1.bf16.msra.mxu0 %v6613
    %10570 = vmatprep.subr.bf16.mxu0 %v6622
    %10571 = vmatpush1.bf16.msra.mxu0 %v6621
    %10572 = vmatprep.subr.bf16.mxu0 %v6630
    %10573 = vmatpush1.bf16.msra.mxu0 %v6629
    %10574 = vmatprep.subr.bf16.mxu0 %v6638
    %10575 = vmatpush1.bf16.msra.mxu0 %v6637
    %10576 = vmatprep.subr.bf16.mxu0 %v6646
    %10577 = vmatpush1.bf16.msra.mxu0 %v6645
    %10578 = vmatprep.subr.bf16.mxu0 %v6654
    %10579 = vmatpush1.bf16.msra.mxu0 %v6653
    %10580 = vmatprep.mubr.bf16.mxu0 %v1748
    %10581 = vmatmul.mubr.bf16.gmra.mrb[0].mxu0 %v1747
    %v10582 = vpop.f32.mrb[0].mxu0
    %v10583 = vadd.f32 %v10540, %v10582
    %v10584 = vpop.f32.mrb[0].mxu0
    %v10585 = vadd.f32 %v10542, %v10584
    %v10586 = vpop.f32.mrb[0].mxu0
    %v10587 = vadd.f32 %v10544, %v10586
    %v10588 = vpop.f32.mrb[0].mxu0
    %v10589 = vadd.f32 %v10546, %v10588
    %10590 = vdwg.mxu0
    %10591 = vmatprep.subr.bf16.mxu0 %v6662
    %10592 = vmatpush1.bf16.msra.mxu0 %v6661
    %10593 = vmatprep.subr.bf16.mxu0 %v6670
    %10594 = vmatpush1.bf16.msra.mxu0 %v6669
    %10595 = vmatprep.subr.bf16.mxu0 %v6678
    %10596 = vmatpush1.bf16.msra.mxu0 %v6677
    %10597 = vmatprep.subr.bf16.mxu0 %v6686
    %10598 = vmatpush1.bf16.msra.mxu0 %v6685
    %10599 = vmatprep.subr.bf16.mxu0 %v6694
    %10600 = vmatpush1.bf16.msra.mxu0 %v6693
    %10601 = vmatprep.subr.bf16.mxu0 %v6702
    %10602 = vmatpush1.bf16.msra.mxu0 %v6701
    %10603 = vmatprep.subr.bf16.mxu0 %v6710
    %10604 = vmatpush1.bf16.msra.mxu0 %v6709
    %10605 = vmatprep.subr.bf16.mxu0 %v6718
    %10606 = vmatpush1.bf16.msra.mxu0 %v6717
    %10607 = vmatprep.subr.bf16.mxu0 %v6726
    %10608 = vmatpush1.bf16.msra.mxu0 %v6725
    %10609 = vmatprep.subr.bf16.mxu0 %v6734
    %10610 = vmatpush1.bf16.msra.mxu0 %v6733
    %10611 = vmatprep.subr.bf16.mxu0 %v6742
    %10612 = vmatpush1.bf16.msra.mxu0 %v6741
    %10613 = vmatprep.subr.bf16.mxu0 %v6750
    %10614 = vmatpush1.bf16.msra.mxu0 %v6749
    %10615 = vmatprep.subr.bf16.mxu0 %v6758
    %10616 = vmatpush1.bf16.msra.mxu0 %v6757
    %10617 = vmatprep.subr.bf16.mxu0 %v6766
    %10618 = vmatpush1.bf16.msra.mxu0 %v6765
    %10619 = vmatprep.subr.bf16.mxu0 %v6774
    %10620 = vmatpush1.bf16.msra.mxu0 %v6773
    %10621 = vmatprep.subr.bf16.mxu0 %v6782
    %10622 = vmatpush1.bf16.msra.mxu0 %v6781
    %10623 = vmatprep.mubr.bf16.mxu0 %v1750
    %10624 = vmatmul.mubr.bf16.gmra.mrb[0].mxu0 %v1749
    %v10625 = vpop.f32.mrb[0].mxu0
    %v10626 = vadd.f32 %v10583, %v10625
    %v10627 = vpop.f32.mrb[0].mxu0
    %v10628 = vadd.f32 %v10585, %v10627
    %v10629 = vpop.f32.mrb[0].mxu0
    %v10630 = vadd.f32 %v10587, %v10629
    %v10631 = vpop.f32.mrb[0].mxu0
    %v10632 = vadd.f32 %v10589, %v10631
    %10633 = vdwg.mxu0
    %10634 = vmatprep.subr.bf16.mxu0 %v6790
    %10635 = vmatpush1.bf16.msra.mxu0 %v6789
    %10636 = vmatprep.subr.bf16.mxu0 %v6798
    %10637 = vmatpush1.bf16.msra.mxu0 %v6797
    %10638 = vmatprep.subr.bf16.mxu0 %v6806
    %10639 = vmatpush1.bf16.msra.mxu0 %v6805
    %10640 = vmatprep.subr.bf16.mxu0 %v6814
    %10641 = vmatpush1.bf16.msra.mxu0 %v6813
    %10642 = vmatprep.subr.bf16.mxu0 %v6822
    %10643 = vmatpush1.bf16.msra.mxu0 %v6821
    %10644 = vmatprep.subr.bf16.mxu0 %v6830
    %10645 = vmatpush1.bf16.msra.mxu0 %v6829
    %10646 = vmatprep.subr.bf16.mxu0 %v6838
    %10647 = vmatpush1.bf16.msra.mxu0 %v6837
    %10648 = vmatprep.subr.bf16.mxu0 %v6846
    %10649 = vmatpush1.bf16.msra.mxu0 %v6845
    %10650 = vmatprep.subr.bf16.mxu0 %v6854
    %10651 = vmatpush1.bf16.msra.mxu0 %v6853
    %10652 = vmatprep.subr.bf16.mxu0 %v6862
    %10653 = vmatpush1.bf16.msra.mxu0 %v6861
    %10654 = vmatprep.subr.bf16.mxu0 %v6870
    %10655 = vmatpush1.bf16.msra.mxu0 %v6869
    %10656 = vmatprep.subr.bf16.mxu0 %v6878
    %10657 = vmatpush1.bf16.msra.mxu0 %v6877
    %10658 = vmatprep.subr.bf16.mxu0 %v6886
    %10659 = vmatpush1.bf16.msra.mxu0 %v6885
    %10660 = vmatprep.subr.bf16.mxu0 %v6894
    %10661 = vmatpush1.bf16.msra.mxu0 %v6893
    %10662 = vmatprep.subr.bf16.mxu0 %v6902
    %10663 = vmatpush1.bf16.msra.mxu0 %v6901
    %10664 = vmatprep.subr.bf16.mxu0 %v6910
    %10665 = vmatpush1.bf16.msra.mxu0 %v6909
    %10666 = vmatprep.mubr.bf16.mxu0 %v1752
    %10667 = vmatmul.mubr.bf16.gmra.mrb[0].mxu0 %v1751
    %v10668 = vpop.f32.mrb[0].mxu0
    %v10669 = vadd.f32 %v10626, %v10668
    %v10670 = vpop.f32.mrb[0].mxu0
    %v10671 = vadd.f32 %v10628, %v10670
    %v10672 = vpop.f32.mrb[0].mxu0
    %v10673 = vadd.f32 %v10630, %v10672
    %v10674 = vpop.f32.mrb[0].mxu0
    %v10675 = vadd.f32 %v10632, %v10674
    %10676 = vdwg.mxu0
    %10677 = vmatprep.subr.bf16.mxu0 %v6918
    %10678 = vmatpush1.bf16.msra.mxu0 %v6917
    %10679 = vmatprep.subr.bf16.mxu0 %v6926
    %10680 = vmatpush1.bf16.msra.mxu0 %v6925
    %10681 = vmatprep.subr.bf16.mxu0 %v6934
    %10682 = vmatpush1.bf16.msra.mxu0 %v6933
    %10683 = vmatprep.subr.bf16.mxu0 %v6942
    %10684 = vmatpush1.bf16.msra.mxu0 %v6941
    %10685 = vmatprep.subr.bf16.mxu0 %v6950
    %10686 = vmatpush1.bf16.msra.mxu0 %v6949
    %10687 = vmatprep.subr.bf16.mxu0 %v6958
    %10688 = vmatpush1.bf16.msra.mxu0 %v6957
    %10689 = vmatprep.subr.bf16.mxu0 %v6966
    %10690 = vmatpush1.bf16.msra.mxu0 %v6965
    %10691 = vmatprep.subr.bf16.mxu0 %v6974
    %10692 = vmatpush1.bf16.msra.mxu0 %v6973
    %10693 = vmatprep.subr.bf16.mxu0 %v6982
    %10694 = vmatpush1.bf16.msra.mxu0 %v6981
    %10695 = vmatprep.subr.bf16.mxu0 %v6990
    %10696 = vmatpush1.bf16.msra.mxu0 %v6989
    %10697 = vmatprep.subr.bf16.mxu0 %v6998
    %10698 = vmatpush1.bf16.msra.mxu0 %v6997
    %10699 = vmatprep.subr.bf16.mxu0 %v7006
    %10700 = vmatpush1.bf16.msra.mxu0 %v7005
    %10701 = vmatprep.subr.bf16.mxu0 %v7014
    %10702 = vmatpush1.bf16.msra.mxu0 %v7013
    %10703 = vmatprep.subr.bf16.mxu0 %v7022
    %10704 = vmatpush1.bf16.msra.mxu0 %v7021
    %10705 = vmatprep.subr.bf16.mxu0 %v7030
    %10706 = vmatpush1.bf16.msra.mxu0 %v7029
    %10707 = vmatprep.subr.bf16.mxu0 %v7038
    %10708 = vmatpush1.bf16.msra.mxu0 %v7037
    %10709 = vmatprep.mubr.bf16.mxu0 %v1754
    %10710 = vmatmul.mubr.bf16.gmra.mrb[0].mxu0 %v1753
    %v10711 = vpop.f32.mrb[0].mxu0
    %v10712 = vadd.f32 %v10669, %v10711
    %v10713 = vpop.f32.mrb[0].mxu0
    %v10714 = vadd.f32 %v10671, %v10713
    %v10715 = vpop.f32.mrb[0].mxu0
    %v10716 = vadd.f32 %v10673, %v10715
    %v10717 = vpop.f32.mrb[0].mxu0
    %v10718 = vadd.f32 %v10675, %v10717
    %10719 = vdwg.mxu0
    %10720 = vmatprep.subr.bf16.mxu0 %v7046
    %10721 = vmatpush1.bf16.msra.mxu0 %v7045
    %10722 = vmatprep.subr.bf16.mxu0 %v7054
    %10723 = vmatpush1.bf16.msra.mxu0 %v7053
    %10724 = vmatprep.subr.bf16.mxu0 %v7062
    %10725 = vmatpush1.bf16.msra.mxu0 %v7061
    %10726 = vmatprep.subr.bf16.mxu0 %v7070
    %10727 = vmatpush1.bf16.msra.mxu0 %v7069
    %10728 = vmatprep.subr.bf16.mxu0 %v7078
    %10729 = vmatpush1.bf16.msra.mxu0 %v7077
    %10730 = vmatprep.subr.bf16.mxu0 %v7086
    %10731 = vmatpush1.bf16.msra.mxu0 %v7085
    %10732 = vmatprep.subr.bf16.mxu0 %v7094
    %10733 = vmatpush1.bf16.msra.mxu0 %v7093
    %10734 = vmatprep.subr.bf16.mxu0 %v7102
    %10735 = vmatpush1.bf16.msra.mxu0 %v7101
    %10736 = vmatprep.subr.bf16.mxu0 %v7110
    %10737 = vmatpush1.bf16.msra.mxu0 %v7109
    %10738 = vmatprep.subr.bf16.mxu0 %v7118
    %10739 = vmatpush1.bf16.msra.mxu0 %v7117
    %10740 = vmatprep.subr.bf16.mxu0 %v7126
    %10741 = vmatpush1.bf16.msra.mxu0 %v7125
    %10742 = vmatprep.subr.bf16.mxu0 %v7134
    %10743 = vmatpush1.bf16.msra.mxu0 %v7133
    %10744 = vmatprep.subr.bf16.mxu0 %v7142
    %10745 = vmatpush1.bf16.msra.mxu0 %v7141
    %10746 = vmatprep.subr.bf16.mxu0 %v7150
    %10747 = vmatpush1.bf16.msra.mxu0 %v7149
    %10748 = vmatprep.subr.bf16.mxu0 %v7158
    %10749 = vmatpush1.bf16.msra.mxu0 %v7157
    %10750 = vmatprep.subr.bf16.mxu0 %v7166
    %10751 = vmatpush1.bf16.msra.mxu0 %v7165
    %10752 = vmatprep.mubr.bf16.mxu0 %v1756
    %10753 = vmatmul.mubr.bf16.gmra.mrb[0].mxu0 %v1755
    %v10754 = vpop.f32.mrb[0].mxu0
    %v10755 = vadd.f32 %v10712, %v10754
    %v10756 = vpop.f32.mrb[0].mxu0
    %v10757 = vadd.f32 %v10714, %v10756
    %v10758 = vpop.f32.mrb[0].mxu0
    %v10759 = vadd.f32 %v10716, %v10758
    %v10760 = vpop.f32.mrb[0].mxu0
    %v10761 = vadd.f32 %v10718, %v10760
    %10762 = vdwg.mxu0
    %10763 = vmatprep.subr.bf16.mxu0 %v7174
    %10764 = vmatpush1.bf16.msra.mxu0 %v7173
    %10765 = vmatprep.subr.bf16.mxu0 %v7182
    %10766 = vmatpush1.bf16.msra.mxu0 %v7181
    %10767 = vmatprep.subr.bf16.mxu0 %v7190
    %10768 = vmatpush1.bf16.msra.mxu0 %v7189
    %10769 = vmatprep.subr.bf16.mxu0 %v7198
    %10770 = vmatpush1.bf16.msra.mxu0 %v7197
    %10771 = vmatprep.subr.bf16.mxu0 %v7206
    %10772 = vmatpush1.bf16.msra.mxu0 %v7205
    %10773 = vmatprep.subr.bf16.mxu0 %v7214
    %10774 = vmatpush1.bf16.msra.mxu0 %v7213
    %10775 = vmatprep.subr.bf16.mxu0 %v7222
    %10776 = vmatpush1.bf16.msra.mxu0 %v7221
    %10777 = vmatprep.subr.bf16.mxu0 %v7230
    %10778 = vmatpush1.bf16.msra.mxu0 %v7229
    %10779 = vmatprep.subr.bf16.mxu0 %v7238
    %10780 = vmatpush1.bf16.msra.mxu0 %v7237
    %10781 = vmatprep.subr.bf16.mxu0 %v7246
    %10782 = vmatpush1.bf16.msra.mxu0 %v7245
    %10783 = vmatprep.subr.bf16.mxu0 %v7254
    %10784 = vmatpush1.bf16.msra.mxu0 %v7253
    %10785 = vmatprep.subr.bf16.mxu0 %v7262
    %10786 = vmatpush1.bf16.msra.mxu0 %v7261
    %10787 = vmatprep.subr.bf16.mxu0 %v7270
    %10788 = vmatpush1.bf16.msra.mxu0 %v7269
    %10789 = vmatprep.subr.bf16.mxu0 %v7278
    %10790 = vmatpush1.bf16.msra.mxu0 %v7277
    %10791 = vmatprep.subr.bf16.mxu0 %v7286
    %10792 = vmatpush1.bf16.msra.mxu0 %v7285
    %10793 = vmatprep.subr.bf16.mxu0 %v7294
    %10794 = vmatpush1.bf16.msra.mxu0 %v7293
    %10795 = vmatprep.mubr.bf16.mxu0 %v1758
    %10796 = vmatmul.mubr.bf16.gmra.mrb[0].mxu0 %v1757
    %v10797 = vpop.f32.mrb[0].mxu0
    %v10798 = vadd.f32 %v10755, %v10797
    %v10799 = vpop.f32.mrb[0].mxu0
    %v10800 = vadd.f32 %v10757, %v10799
    %v10801 = vpop.f32.mrb[0].mxu0
    %v10802 = vadd.f32 %v10759, %v10801
    %v10803 = vpop.f32.mrb[0].mxu0
    %v10804 = vadd.f32 %v10761, %v10803
    %10805 = vdwg.mxu0
    %10806 = vmatprep.subr.bf16.mxu0 %v7302
    %10807 = vmatpush1.bf16.msra.mxu0 %v7301
    %10808 = vmatprep.subr.bf16.mxu0 %v7310
    %10809 = vmatpush1.bf16.msra.mxu0 %v7309
    %10810 = vmatprep.subr.bf16.mxu0 %v7318
    %10811 = vmatpush1.bf16.msra.mxu0 %v7317
    %10812 = vmatprep.subr.bf16.mxu0 %v7326
    %10813 = vmatpush1.bf16.msra.mxu0 %v7325
    %10814 = vmatprep.subr.bf16.mxu0 %v7334
    %10815 = vmatpush1.bf16.msra.mxu0 %v7333
    %10816 = vmatprep.subr.bf16.mxu0 %v7342
    %10817 = vmatpush1.bf16.msra.mxu0 %v7341
    %10818 = vmatprep.subr.bf16.mxu0 %v7350
    %10819 = vmatpush1.bf16.msra.mxu0 %v7349
    %10820 = vmatprep.subr.bf16.mxu0 %v7358
    %10821 = vmatpush1.bf16.msra.mxu0 %v7357
    %10822 = vmatprep.subr.bf16.mxu0 %v7366
    %10823 = vmatpush1.bf16.msra.mxu0 %v7365
    %10824 = vmatprep.subr.bf16.mxu0 %v7374
    %10825 = vmatpush1.bf16.msra.mxu0 %v7373
    %10826 = vmatprep.subr.bf16.mxu0 %v7382
    %10827 = vmatpush1.bf16.msra.mxu0 %v7381
    %10828 = vmatprep.subr.bf16.mxu0 %v7390
    %10829 = vmatpush1.bf16.msra.mxu0 %v7389
    %10830 = vmatprep.subr.bf16.mxu0 %v7398
    %10831 = vmatpush1.bf16.msra.mxu0 %v7397
    %10832 = vmatprep.subr.bf16.mxu0 %v7406
    %10833 = vmatpush1.bf16.msra.mxu0 %v7405
    %10834 = vmatprep.subr.bf16.mxu0 %v7414
    %10835 = vmatpush1.bf16.msra.mxu0 %v7413
    %10836 = vmatprep.subr.bf16.mxu0 %v7422
    %10837 = vmatpush1.bf16.msra.mxu0 %v7421
    %10838 = vmatprep.mubr.bf16.mxu0 %v1760
    %10839 = vmatmul.mubr.bf16.gmra.mrb[0].mxu0 %v1759
    %v10840 = vpop.f32.mrb[0].mxu0
    %v10841 = vadd.f32 %v10798, %v10840
    %v10842 = vpop.f32.mrb[0].mxu0
    %v10843 = vadd.f32 %v10800, %v10842
    %v10844 = vpop.f32.mrb[0].mxu0
    %v10845 = vadd.f32 %v10802, %v10844
    %v10846 = vpop.f32.mrb[0].mxu0
    %v10847 = vadd.f32 %v10804, %v10846
    %10848 = vdwg.mxu0
    %10849 = vmatprep.subr.bf16.mxu0 %v7430
    %10850 = vmatpush1.bf16.msra.mxu0 %v7429
    %10851 = vmatprep.subr.bf16.mxu0 %v7438
    %10852 = vmatpush1.bf16.msra.mxu0 %v7437
    %10853 = vmatprep.subr.bf16.mxu0 %v7446
    %10854 = vmatpush1.bf16.msra.mxu0 %v7445
    %10855 = vmatprep.subr.bf16.mxu0 %v7454
    %10856 = vmatpush1.bf16.msra.mxu0 %v7453
    %10857 = vmatprep.subr.bf16.mxu0 %v7462
    %10858 = vmatpush1.bf16.msra.mxu0 %v7461
    %10859 = vmatprep.subr.bf16.mxu0 %v7470
    %10860 = vmatpush1.bf16.msra.mxu0 %v7469
    %10861 = vmatprep.subr.bf16.mxu0 %v7478
    %10862 = vmatpush1.bf16.msra.mxu0 %v7477
    %10863 = vmatprep.subr.bf16.mxu0 %v7486
    %10864 = vmatpush1.bf16.msra.mxu0 %v7485
    %10865 = vmatprep.subr.bf16.mxu0 %v7494
    %10866 = vmatpush1.bf16.msra.mxu0 %v7493
    %10867 = vmatprep.subr.bf16.mxu0 %v7502
    %10868 = vmatpush1.bf16.msra.mxu0 %v7501
    %10869 = vmatprep.subr.bf16.mxu0 %v7510
    %10870 = vmatpush1.bf16.msra.mxu0 %v7509
    %10871 = vmatprep.subr.bf16.mxu0 %v7518
    %10872 = vmatpush1.bf16.msra.mxu0 %v7517
    %10873 = vmatprep.subr.bf16.mxu0 %v7526
    %10874 = vmatpush1.bf16.msra.mxu0 %v7525
    %10875 = vmatprep.subr.bf16.mxu0 %v7534
    %10876 = vmatpush1.bf16.msra.mxu0 %v7533
    %10877 = vmatprep.subr.bf16.mxu0 %v7542
    %10878 = vmatpush1.bf16.msra.mxu0 %v7541
    %10879 = vmatprep.subr.bf16.mxu0 %v7550
    %10880 = vmatpush1.bf16.msra.mxu0 %v7549
    %10881 = vmatprep.mubr.bf16.mxu0 %v1762
    %10882 = vmatmul.mubr.bf16.gmra.mrb[0].mxu0 %v1761
    %v10883 = vpop.f32.mrb[0].mxu0
    %v10884 = vadd.f32 %v10841, %v10883
    %v10885 = vpop.f32.mrb[0].mxu0
    %v10886 = vadd.f32 %v10843, %v10885
    %v10887 = vpop.f32.mrb[0].mxu0
    %v10888 = vadd.f32 %v10845, %v10887
    %v10889 = vpop.f32.mrb[0].mxu0
    %v10890 = vadd.f32 %v10847, %v10889
    %10891 = vdwg.mxu0
    %10892 = vmatprep.subr.bf16.mxu0 %v7558
    %10893 = vmatpush1.bf16.msra.mxu0 %v7557
    %10894 = vmatprep.subr.bf16.mxu0 %v7566
    %10895 = vmatpush1.bf16.msra.mxu0 %v7565
    %10896 = vmatprep.subr.bf16.mxu0 %v7574
    %10897 = vmatpush1.bf16.msra.mxu0 %v7573
    %10898 = vmatprep.subr.bf16.mxu0 %v7582
    %10899 = vmatpush1.bf16.msra.mxu0 %v7581
    %10900 = vmatprep.subr.bf16.mxu0 %v7590
    %10901 = vmatpush1.bf16.msra.mxu0 %v7589
    %10902 = vmatprep.subr.bf16.mxu0 %v7598
    %10903 = vmatpush1.bf16.msra.mxu0 %v7597
    %10904 = vmatprep.subr.bf16.mxu0 %v7606
    %10905 = vmatpush1.bf16.msra.mxu0 %v7605
    %10906 = vmatprep.subr.bf16.mxu0 %v7614
    %10907 = vmatpush1.bf16.msra.mxu0 %v7613
    %10908 = vmatprep.subr.bf16.mxu0 %v7622
    %10909 = vmatpush1.bf16.msra.mxu0 %v7621
    %10910 = vmatprep.subr.bf16.mxu0 %v7630
    %10911 = vmatpush1.bf16.msra.mxu0 %v7629
    %10912 = vmatprep.subr.bf16.mxu0 %v7638
    %10913 = vmatpush1.bf16.msra.mxu0 %v7637
    %10914 = vmatprep.subr.bf16.mxu0 %v7646
    %10915 = vmatpush1.bf16.msra.mxu0 %v7645
    %10916 = vmatprep.subr.bf16.mxu0 %v7654
    %10917 = vmatpush1.bf16.msra.mxu0 %v7653
    %10918 = vmatprep.subr.bf16.mxu0 %v7662
    %10919 = vmatpush1.bf16.msra.mxu0 %v7661
    %10920 = vmatprep.subr.bf16.mxu0 %v7670
    %10921 = vmatpush1.bf16.msra.mxu0 %v7669
    %10922 = vmatprep.subr.bf16.mxu0 %v7678
    %10923 = vmatpush1.bf16.msra.mxu0 %v7677
    %10924 = vmatprep.mubr.bf16.mxu0 %v1764
    %10925 = vmatmul.mubr.bf16.gmra.mrb[0].mxu0 %v1763
    %v10926 = vpop.f32.mrb[0].mxu0
    %v10927 = vadd.f32 %v10884, %v10926
    %v10928 = vpop.f32.mrb[0].mxu0
    %v10929 = vadd.f32 %v10886, %v10928
    %v10930 = vpop.f32.mrb[0].mxu0
    %v10931 = vadd.f32 %v10888, %v10930
    %v10932 = vpop.f32.mrb[0].mxu0
    %v10933 = vadd.f32 %v10890, %v10932
    %10934 = vdwg.mxu0
    %10935 = vmatprep.subr.bf16.mxu0 %v7686
    %10936 = vmatpush1.bf16.msra.mxu0 %v7685
    %10937 = vmatprep.subr.bf16.mxu0 %v7694
    %10938 = vmatpush1.bf16.msra.mxu0 %v7693
    %10939 = vmatprep.subr.bf16.mxu0 %v7702
    %10940 = vmatpush1.bf16.msra.mxu0 %v7701
    %10941 = vmatprep.subr.bf16.mxu0 %v7710
    %10942 = vmatpush1.bf16.msra.mxu0 %v7709
    %10943 = vmatprep.subr.bf16.mxu0 %v7718
    %10944 = vmatpush1.bf16.msra.mxu0 %v7717
    %10945 = vmatprep.subr.bf16.mxu0 %v7726
    %10946 = vmatpush1.bf16.msra.mxu0 %v7725
    %10947 = vmatprep.subr.bf16.mxu0 %v7734
    %10948 = vmatpush1.bf16.msra.mxu0 %v7733
    %10949 = vmatprep.subr.bf16.mxu0 %v7742
    %10950 = vmatpush1.bf16.msra.mxu0 %v7741
    %10951 = vmatprep.subr.bf16.mxu0 %v7750
    %10952 = vmatpush1.bf16.msra.mxu0 %v7749
    %10953 = vmatprep.subr.bf16.mxu0 %v7758
    %10954 = vmatpush1.bf16.msra.mxu0 %v7757
    %10955 = vmatprep.subr.bf16.mxu0 %v7766
    %10956 = vmatpush1.bf16.msra.mxu0 %v7765
    %10957 = vmatprep.subr.bf16.mxu0 %v7774
    %10958 = vmatpush1.bf16.msra.mxu0 %v7773
    %10959 = vmatprep.subr.bf16.mxu0 %v7782
    %10960 = vmatpush1.bf16.msra.mxu0 %v7781
    %10961 = vmatprep.subr.bf16.mxu0 %v7790
    %10962 = vmatpush1.bf16.msra.mxu0 %v7789
    %10963 = vmatprep.subr.bf16.mxu0 %v7798
    %10964 = vmatpush1.bf16.msra.mxu0 %v7797
    %10965 = vmatprep.subr.bf16.mxu0 %v7806
    %10966 = vmatpush1.bf16.msra.mxu0 %v7805
    %10967 = vmatprep.mubr.bf16.mxu0 %v1766
    %10968 = vmatmul.mubr.bf16.gmra.mrb[0].mxu0 %v1765
    %v10969 = vpop.f32.mrb[0].mxu0
    %v10970 = vadd.f32 %v10927, %v10969
    %v10971 = vpop.f32.mrb[0].mxu0
    %v10972 = vadd.f32 %v10929, %v10971
    %v10973 = vpop.f32.mrb[0].mxu0
    %v10974 = vadd.f32 %v10931, %v10973
    %v10975 = vpop.f32.mrb[0].mxu0
    %v10976 = vadd.f32 %v10933, %v10975
    %10977 = vdwg.mxu0
    %10978 = vmatprep.subr.bf16.mxu0 %v7814
    %10979 = vmatpush1.bf16.msra.mxu0 %v7813
    %10980 = vmatprep.subr.bf16.mxu0 %v7822
    %10981 = vmatpush1.bf16.msra.mxu0 %v7821
    %10982 = vmatprep.subr.bf16.mxu0 %v7830
    %10983 = vmatpush1.bf16.msra.mxu0 %v7829
    %10984 = vmatprep.subr.bf16.mxu0 %v7838
    %10985 = vmatpush1.bf16.msra.mxu0 %v7837
    %10986 = vmatprep.subr.bf16.mxu0 %v7846
    %10987 = vmatpush1.bf16.msra.mxu0 %v7845
    %10988 = vmatprep.subr.bf16.mxu0 %v7854
    %10989 = vmatpush1.bf16.msra.mxu0 %v7853
    %10990 = vmatprep.subr.bf16.mxu0 %v7862
    %10991 = vmatpush1.bf16.msra.mxu0 %v7861
    %10992 = vmatprep.subr.bf16.mxu0 %v7870
    %10993 = vmatpush1.bf16.msra.mxu0 %v7869
    %10994 = vmatprep.subr.bf16.mxu0 %v7878
    %10995 = vmatpush1.bf16.msra.mxu0 %v7877
    %10996 = vmatprep.subr.bf16.mxu0 %v7886
    %10997 = vmatpush1.bf16.msra.mxu0 %v7885
    %10998 = vmatprep.subr.bf16.mxu0 %v7894
    %10999 = vmatpush1.bf16.msra.mxu0 %v7893
    %11000 = vmatprep.subr.bf16.mxu0 %v7902
    %11001 = vmatpush1.bf16.msra.mxu0 %v7901
    %11002 = vmatprep.subr.bf16.mxu0 %v7910
    %11003 = vmatpush1.bf16.msra.mxu0 %v7909
    %11004 = vmatprep.subr.bf16.mxu0 %v7918
    %11005 = vmatpush1.bf16.msra.mxu0 %v7917
    %11006 = vmatprep.subr.bf16.mxu0 %v7926
    %11007 = vmatpush1.bf16.msra.mxu0 %v7925
    %11008 = vmatprep.subr.bf16.mxu0 %v7934
    %11009 = vmatpush1.bf16.msra.mxu0 %v7933
    %11010 = vmatprep.mubr.bf16.mxu0 %v1768
    %11011 = vmatmul.mubr.bf16.gmra.mrb[0].mxu0 %v1767
    %v11012 = vpop.f32.mrb[0].mxu0
    %v11013 = vadd.f32 %v10970, %v11012
    %v11014 = vpop.f32.mrb[0].mxu0
    %v11015 = vadd.f32 %v10972, %v11014
    %v11016 = vpop.f32.mrb[0].mxu0
    %v11017 = vadd.f32 %v10974, %v11016
    %v11018 = vpop.f32.mrb[0].mxu0
    %v11019 = vadd.f32 %v10976, %v11018
    %11020 = vdwg.mxu0
    %11021 = vmatprep.subr.bf16.mxu0 %v6408
    %11022 = vmatpush1.bf16.msra.mxu0 %v6407
    %11023 = vmatprep.subr.bf16.mxu0 %v6416
    %11024 = vmatpush1.bf16.msra.mxu0 %v6415
    %11025 = vmatprep.subr.bf16.mxu0 %v6424
    %11026 = vmatpush1.bf16.msra.mxu0 %v6423
    %11027 = vmatprep.subr.bf16.mxu0 %v6432
    %11028 = vmatpush1.bf16.msra.mxu0 %v6431
    %11029 = vmatprep.subr.bf16.mxu0 %v6440
    %11030 = vmatpush1.bf16.msra.mxu0 %v6439
    %11031 = vmatprep.subr.bf16.mxu0 %v6448
    %11032 = vmatpush1.bf16.msra.mxu0 %v6447
    %11033 = vmatprep.subr.bf16.mxu0 %v6456
    %11034 = vmatpush1.bf16.msra.mxu0 %v6455
    %11035 = vmatprep.subr.bf16.mxu0 %v6464
    %11036 = vmatpush1.bf16.msra.mxu0 %v6463
    %11037 = vmatprep.subr.bf16.mxu0 %v6472
    %11038 = vmatpush1.bf16.msra.mxu0 %v6471
    %11039 = vmatprep.subr.bf16.mxu0 %v6480
    %11040 = vmatpush1.bf16.msra.mxu0 %v6479
    %11041 = vmatprep.subr.bf16.mxu0 %v6488
    %11042 = vmatpush1.bf16.msra.mxu0 %v6487
    %11043 = vmatprep.subr.bf16.mxu0 %v6496
    %11044 = vmatpush1.bf16.msra.mxu0 %v6495
    %11045 = vmatprep.subr.bf16.mxu0 %v6504
    %11046 = vmatpush1.bf16.msra.mxu0 %v6503
    %11047 = vmatprep.subr.bf16.mxu0 %v6512
    %11048 = vmatpush1.bf16.msra.mxu0 %v6511
    %11049 = vmatprep.subr.bf16.mxu0 %v6520
    %11050 = vmatpush1.bf16.msra.mxu0 %v6519
    %11051 = vmatprep.subr.bf16.mxu0 %v6528
    %11052 = vmatpush1.bf16.msra.mxu0 %v6527
    %11053 = vmatprep.mubr.bf16.mxu0 %v1746
    %11054 = vmatmul.mubr.bf16.gmra.mrb[0].mxu0 %v1745
    %v11055 = vpop.f32.mrb[0].mxu0
    %v11056 = vadd.f32 %v1660, %v11055
    %v11057 = vpop.f32.mrb[0].mxu0
    %v11058 = vadd.f32 %v1664, %v11057
    %v11059 = vpop.f32.mrb[0].mxu0
    %v11060 = vadd.f32 %v1660, %v11059
    %v11061 = vpop.f32.mrb[0].mxu0
    %v11062 = vadd.f32 %v1664, %v11061
    %11063 = vdwg.mxu0
    %11064 = vmatprep.subr.bf16.mxu0 %v6536
    %11065 = vmatpush1.bf16.msra.mxu0 %v6535
    %11066 = vmatprep.subr.bf16.mxu0 %v6544
    %11067 = vmatpush1.bf16.msra.mxu0 %v6543
    %11068 = vmatprep.subr.bf16.mxu0 %v6552
    %11069 = vmatpush1.bf16.msra.mxu0 %v6551
    %11070 = vmatprep.subr.bf16.mxu0 %v6560
    %11071 = vmatpush1.bf16.msra.mxu0 %v6559
    %11072 = vmatprep.subr.bf16.mxu0 %v6568
    %11073 = vmatpush1.bf16.msra.mxu0 %v6567
    %11074 = vmatprep.subr.bf16.mxu0 %v6576
    %11075 = vmatpush1.bf16.msra.mxu0 %v6575
    %11076 = vmatprep.subr.bf16.mxu0 %v6584
    %11077 = vmatpush1.bf16.msra.mxu0 %v6583
    %11078 = vmatprep.subr.bf16.mxu0 %v6592
    %11079 = vmatpush1.bf16.msra.mxu0 %v6591
    %11080 = vmatprep.subr.bf16.mxu0 %v6600
    %11081 = vmatpush1.bf16.msra.mxu0 %v6599
    %11082 = vmatprep.subr.bf16.mxu0 %v6608
    %11083 = vmatpush1.bf16.msra.mxu0 %v6607
    %11084 = vmatprep.subr.bf16.mxu0 %v6616
    %11085 = vmatpush1.bf16.msra.mxu0 %v6615
    %11086 = vmatprep.subr.bf16.mxu0 %v6624
    %11087 = vmatpush1.bf16.msra.mxu0 %v6623
    %11088 = vmatprep.subr.bf16.mxu0 %v6632
    %11089 = vmatpush1.bf16.msra.mxu0 %v6631
    %11090 = vmatprep.subr.bf16.mxu0 %v6640
    %11091 = vmatpush1.bf16.msra.mxu0 %v6639
    %11092 = vmatprep.subr.bf16.mxu0 %v6648
    %11093 = vmatpush1.bf16.msra.mxu0 %v6647
    %11094 = vmatprep.subr.bf16.mxu0 %v6656
    %11095 = vmatpush1.bf16.msra.mxu0 %v6655
    %11096 = vmatprep.mubr.bf16.mxu0 %v1748
    %11097 = vmatmul.mubr.bf16.gmra.mrb[0].mxu0 %v1747
    %v11098 = vpop.f32.mrb[0].mxu0
    %v11099 = vadd.f32 %v11056, %v11098
    %v11100 = vpop.f32.mrb[0].mxu0
    %v11101 = vadd.f32 %v11058, %v11100
    %v11102 = vpop.f32.mrb[0].mxu0
    %v11103 = vadd.f32 %v11060, %v11102
    %v11104 = vpop.f32.mrb[0].mxu0
    %v11105 = vadd.f32 %v11062, %v11104
    %11106 = vdwg.mxu0
    %11107 = vmatprep.subr.bf16.mxu0 %v6664
    %11108 = vmatpush1.bf16.msra.mxu0 %v6663
    %11109 = vmatprep.subr.bf16.mxu0 %v6672
    %11110 = vmatpush1.bf16.msra.mxu0 %v6671
    %11111 = vmatprep.subr.bf16.mxu0 %v6680
    %11112 = vmatpush1.bf16.msra.mxu0 %v6679
    %11113 = vmatprep.subr.bf16.mxu0 %v6688
    %11114 = vmatpush1.bf16.msra.mxu0 %v6687
    %11115 = vmatprep.subr.bf16.mxu0 %v6696
    %11116 = vmatpush1.bf16.msra.mxu0 %v6695
    %11117 = vmatprep.subr.bf16.mxu0 %v6704
    %11118 = vmatpush1.bf16.msra.mxu0 %v6703
    %11119 = vmatprep.subr.bf16.mxu0 %v6712
    %11120 = vmatpush1.bf16.msra.mxu0 %v6711
    %11121 = vmatprep.subr.bf16.mxu0 %v6720
    %11122 = vmatpush1.bf16.msra.mxu0 %v6719
    %11123 = vmatprep.subr.bf16.mxu0 %v6728
    %11124 = vmatpush1.bf16.msra.mxu0 %v6727
    %11125 = vmatprep.subr.bf16.mxu0 %v6736
    %11126 = vmatpush1.bf16.msra.mxu0 %v6735
    %11127 = vmatprep.subr.bf16.mxu0 %v6744
    %11128 = vmatpush1.bf16.msra.mxu0 %v6743
    %11129 = vmatprep.subr.bf16.mxu0 %v6752
    %11130 = vmatpush1.bf16.msra.mxu0 %v6751
    %11131 = vmatprep.subr.bf16.mxu0 %v6760
    %11132 = vmatpush1.bf16.msra.mxu0 %v6759
    %11133 = vmatprep.subr.bf16.mxu0 %v6768
    %11134 = vmatpush1.bf16.msra.mxu0 %v6767
    %11135 = vmatprep.subr.bf16.mxu0 %v6776
    %11136 = vmatpush1.bf16.msra.mxu0 %v6775
    %11137 = vmatprep.subr.bf16.mxu0 %v6784
    %11138 = vmatpush1.bf16.msra.mxu0 %v6783
    %11139 = vmatprep.mubr.bf16.mxu0 %v1750
    %11140 = vmatmul.mubr.bf16.gmra.mrb[0].mxu0 %v1749
    %v11141 = vpop.f32.mrb[0].mxu0
    %v11142 = vadd.f32 %v11099, %v11141
    %v11143 = vpop.f32.mrb[0].mxu0
    %v11144 = vadd.f32 %v11101, %v11143
    %v11145 = vpop.f32.mrb[0].mxu0
    %v11146 = vadd.f32 %v11103, %v11145
    %v11147 = vpop.f32.mrb[0].mxu0
    %v11148 = vadd.f32 %v11105, %v11147
    %11149 = vdwg.mxu0
    %11150 = vmatprep.subr.bf16.mxu0 %v6792
    %11151 = vmatpush1.bf16.msra.mxu0 %v6791
    %11152 = vmatprep.subr.bf16.mxu0 %v6800
    %11153 = vmatpush1.bf16.msra.mxu0 %v6799
    %11154 = vmatprep.subr.bf16.mxu0 %v6808
    %11155 = vmatpush1.bf16.msra.mxu0 %v6807
    %11156 = vmatprep.subr.bf16.mxu0 %v6816
    %11157 = vmatpush1.bf16.msra.mxu0 %v6815
    %11158 = vmatprep.subr.bf16.mxu0 %v6824
    %11159 = vmatpush1.bf16.msra.mxu0 %v6823
    %11160 = vmatprep.subr.bf16.mxu0 %v6832
    %11161 = vmatpush1.bf16.msra.mxu0 %v6831
    %11162 = vmatprep.subr.bf16.mxu0 %v6840
    %11163 = vmatpush1.bf16.msra.mxu0 %v6839
    %11164 = vmatprep.subr.bf16.mxu0 %v6848
    %11165 = vmatpush1.bf16.msra.mxu0 %v6847
    %11166 = vmatprep.subr.bf16.mxu0 %v6856
    %11167 = vmatpush1.bf16.msra.mxu0 %v6855
    %11168 = vmatprep.subr.bf16.mxu0 %v6864
    %11169 = vmatpush1.bf16.msra.mxu0 %v6863
    %11170 = vmatprep.subr.bf16.mxu0 %v6872
    %11171 = vmatpush1.bf16.msra.mxu0 %v6871
    %11172 = vmatprep.subr.bf16.mxu0 %v6880
    %11173 = vmatpush1.bf16.msra.mxu0 %v6879
    %11174 = vmatprep.subr.bf16.mxu0 %v6888
    %11175 = vmatpush1.bf16.msra.mxu0 %v6887
    %11176 = vmatprep.subr.bf16.mxu0 %v6896
    %11177 = vmatpush1.bf16.msra.mxu0 %v6895
    %11178 = vmatprep.subr.bf16.mxu0 %v6904
    %11179 = vmatpush1.bf16.msra.mxu0 %v6903
    %11180 = vmatprep.subr.bf16.mxu0 %v6912
    %11181 = vmatpush1.bf16.msra.mxu0 %v6911
    %11182 = vmatprep.mubr.bf16.mxu0 %v1752
    %11183 = vmatmul.mubr.bf16.gmra.mrb[0].mxu0 %v1751
    %v11184 = vpop.f32.mrb[0].mxu0
    %v11185 = vadd.f32 %v11142, %v11184
    %v11186 = vpop.f32.mrb[0].mxu0
    %v11187 = vadd.f32 %v11144, %v11186
    %v11188 = vpop.f32.mrb[0].mxu0
    %v11189 = vadd.f32 %v11146, %v11188
    %v11190 = vpop.f32.mrb[0].mxu0
    %v11191 = vadd.f32 %v11148, %v11190
    %11192 = vdwg.mxu0
    %11193 = vmatprep.subr.bf16.mxu0 %v6920
    %11194 = vmatpush1.bf16.msra.mxu0 %v6919
    %11195 = vmatprep.subr.bf16.mxu0 %v6928
    %11196 = vmatpush1.bf16.msra.mxu0 %v6927
    %11197 = vmatprep.subr.bf16.mxu0 %v6936
    %11198 = vmatpush1.bf16.msra.mxu0 %v6935
    %11199 = vmatprep.subr.bf16.mxu0 %v6944
    %11200 = vmatpush1.bf16.msra.mxu0 %v6943
    %11201 = vmatprep.subr.bf16.mxu0 %v6952
    %11202 = vmatpush1.bf16.msra.mxu0 %v6951
    %11203 = vmatprep.subr.bf16.mxu0 %v6960
    %11204 = vmatpush1.bf16.msra.mxu0 %v6959
    %11205 = vmatprep.subr.bf16.mxu0 %v6968
    %11206 = vmatpush1.bf16.msra.mxu0 %v6967
    %11207 = vmatprep.subr.bf16.mxu0 %v6976
    %11208 = vmatpush1.bf16.msra.mxu0 %v6975
    %11209 = vmatprep.subr.bf16.mxu0 %v6984
    %11210 = vmatpush1.bf16.msra.mxu0 %v6983
    %11211 = vmatprep.subr.bf16.mxu0 %v6992
    %11212 = vmatpush1.bf16.msra.mxu0 %v6991
    %11213 = vmatprep.subr.bf16.mxu0 %v7000
    %11214 = vmatpush1.bf16.msra.mxu0 %v6999
    %11215 = vmatprep.subr.bf16.mxu0 %v7008
    %11216 = vmatpush1.bf16.msra.mxu0 %v7007
    %11217 = vmatprep.subr.bf16.mxu0 %v7016
    %11218 = vmatpush1.bf16.msra.mxu0 %v7015
    %11219 = vmatprep.subr.bf16.mxu0 %v7024
    %11220 = vmatpush1.bf16.msra.mxu0 %v7023
    %11221 = vmatprep.subr.bf16.mxu0 %v7032
    %11222 = vmatpush1.bf16.msra.mxu0 %v7031
    %11223 = vmatprep.subr.bf16.mxu0 %v7040
    %11224 = vmatpush1.bf16.msra.mxu0 %v7039
    %11225 = vmatprep.mubr.bf16.mxu0 %v1754
    %11226 = vmatmul.mubr.bf16.gmra.mrb[0].mxu0 %v1753
    %v11227 = vpop.f32.mrb[0].mxu0
    %v11228 = vadd.f32 %v11185, %v11227
    %v11229 = vpop.f32.mrb[0].mxu0
    %v11230 = vadd.f32 %v11187, %v11229
    %v11231 = vpop.f32.mrb[0].mxu0
    %v11232 = vadd.f32 %v11189, %v11231
    %v11233 = vpop.f32.mrb[0].mxu0
    %v11234 = vadd.f32 %v11191, %v11233
    %11235 = vdwg.mxu0
    %11236 = vmatprep.subr.bf16.mxu0 %v7048
    %11237 = vmatpush1.bf16.msra.mxu0 %v7047
    %11238 = vmatprep.subr.bf16.mxu0 %v7056
    %11239 = vmatpush1.bf16.msra.mxu0 %v7055
    %11240 = vmatprep.subr.bf16.mxu0 %v7064
    %11241 = vmatpush1.bf16.msra.mxu0 %v7063
    %11242 = vmatprep.subr.bf16.mxu0 %v7072
    %11243 = vmatpush1.bf16.msra.mxu0 %v7071
    %11244 = vmatprep.subr.bf16.mxu0 %v7080
    %11245 = vmatpush1.bf16.msra.mxu0 %v7079
    %11246 = vmatprep.subr.bf16.mxu0 %v7088
    %11247 = vmatpush1.bf16.msra.mxu0 %v7087
    %11248 = vmatprep.subr.bf16.mxu0 %v7096
    %11249 = vmatpush1.bf16.msra.mxu0 %v7095
    %11250 = vmatprep.subr.bf16.mxu0 %v7104
    %11251 = vmatpush1.bf16.msra.mxu0 %v7103
    %11252 = vmatprep.subr.bf16.mxu0 %v7112
    %11253 = vmatpush1.bf16.msra.mxu0 %v7111
    %11254 = vmatprep.subr.bf16.mxu0 %v7120
    %11255 = vmatpush1.bf16.msra.mxu0 %v7119
    %11256 = vmatprep.subr.bf16.mxu0 %v7128
    %11257 = vmatpush1.bf16.msra.mxu0 %v7127
    %11258 = vmatprep.subr.bf16.mxu0 %v7136
    %11259 = vmatpush1.bf16.msra.mxu0 %v7135
    %11260 = vmatprep.subr.bf16.mxu0 %v7144
    %11261 = vmatpush1.bf16.msra.mxu0 %v7143
    %11262 = vmatprep.subr.bf16.mxu0 %v7152
    %11263 = vmatpush1.bf16.msra.mxu0 %v7151
    %11264 = vmatprep.subr.bf16.mxu0 %v7160
    %11265 = vmatpush1.bf16.msra.mxu0 %v7159
    %11266 = vmatprep.subr.bf16.mxu0 %v7168
    %11267 = vmatpush1.bf16.msra.mxu0 %v7167
    %11268 = vmatprep.mubr.bf16.mxu0 %v1756
    %11269 = vmatmul.mubr.bf16.gmra.mrb[0].mxu0 %v1755
    %v11270 = vpop.f32.mrb[0].mxu0
    %v11271 = vadd.f32 %v11228, %v11270
    %v11272 = vpop.f32.mrb[0].mxu0
    %v11273 = vadd.f32 %v11230, %v11272
    %v11274 = vpop.f32.mrb[0].mxu0
    %v11275 = vadd.f32 %v11232, %v11274
    %v11276 = vpop.f32.mrb[0].mxu0
    %v11277 = vadd.f32 %v11234, %v11276
    %11278 = vdwg.mxu0
    %11279 = vmatprep.subr.bf16.mxu0 %v7176
    %11280 = vmatpush1.bf16.msra.mxu0 %v7175
    %11281 = vmatprep.subr.bf16.mxu0 %v7184
    %11282 = vmatpush1.bf16.msra.mxu0 %v7183
    %11283 = vmatprep.subr.bf16.mxu0 %v7192
    %11284 = vmatpush1.bf16.msra.mxu0 %v7191
    %11285 = vmatprep.subr.bf16.mxu0 %v7200
    %11286 = vmatpush1.bf16.msra.mxu0 %v7199
    %11287 = vmatprep.subr.bf16.mxu0 %v7208
    %11288 = vmatpush1.bf16.msra.mxu0 %v7207
    %11289 = vmatprep.subr.bf16.mxu0 %v7216
    %11290 = vmatpush1.bf16.msra.mxu0 %v7215
    %11291 = vmatprep.subr.bf16.mxu0 %v7224
    %11292 = vmatpush1.bf16.msra.mxu0 %v7223
    %11293 = vmatprep.subr.bf16.mxu0 %v7232
    %11294 = vmatpush1.bf16.msra.mxu0 %v7231
    %11295 = vmatprep.subr.bf16.mxu0 %v7240
    %11296 = vmatpush1.bf16.msra.mxu0 %v7239
    %11297 = vmatprep.subr.bf16.mxu0 %v7248
    %11298 = vmatpush1.bf16.msra.mxu0 %v7247
    %11299 = vmatprep.subr.bf16.mxu0 %v7256
    %11300 = vmatpush1.bf16.msra.mxu0 %v7255
    %11301 = vmatprep.subr.bf16.mxu0 %v7264
    %11302 = vmatpush1.bf16.msra.mxu0 %v7263
    %11303 = vmatprep.subr.bf16.mxu0 %v7272
    %11304 = vmatpush1.bf16.msra.mxu0 %v7271
    %11305 = vmatprep.subr.bf16.mxu0 %v7280
    %11306 = vmatpush1.bf16.msra.mxu0 %v7279
    %11307 = vmatprep.subr.bf16.mxu0 %v7288
    %11308 = vmatpush1.bf16.msra.mxu0 %v7287
    %11309 = vmatprep.subr.bf16.mxu0 %v7296
    %11310 = vmatpush1.bf16.msra.mxu0 %v7295
    %11311 = vmatprep.mubr.bf16.mxu0 %v1758
    %11312 = vmatmul.mubr.bf16.gmra.mrb[0].mxu0 %v1757
    %v11313 = vpop.f32.mrb[0].mxu0
    %v11314 = vadd.f32 %v11271, %v11313
    %v11315 = vpop.f32.mrb[0].mxu0
    %v11316 = vadd.f32 %v11273, %v11315
    %v11317 = vpop.f32.mrb[0].mxu0
    %v11318 = vadd.f32 %v11275, %v11317
    %v11319 = vpop.f32.mrb[0].mxu0
    %v11320 = vadd.f32 %v11277, %v11319
    %11321 = vdwg.mxu0
    %11322 = vmatprep.subr.bf16.mxu0 %v7304
    %11323 = vmatpush1.bf16.msra.mxu0 %v7303
    %11324 = vmatprep.subr.bf16.mxu0 %v7312
    %11325 = vmatpush1.bf16.msra.mxu0 %v7311
    %11326 = vmatprep.subr.bf16.mxu0 %v7320
    %11327 = vmatpush1.bf16.msra.mxu0 %v7319
    %11328 = vmatprep.subr.bf16.mxu0 %v7328
    %11329 = vmatpush1.bf16.msra.mxu0 %v7327
    %11330 = vmatprep.subr.bf16.mxu0 %v7336
    %11331 = vmatpush1.bf16.msra.mxu0 %v7335
    %11332 = vmatprep.subr.bf16.mxu0 %v7344
    %11333 = vmatpush1.bf16.msra.mxu0 %v7343
    %11334 = vmatprep.subr.bf16.mxu0 %v7352
    %11335 = vmatpush1.bf16.msra.mxu0 %v7351
    %11336 = vmatprep.subr.bf16.mxu0 %v7360
    %11337 = vmatpush1.bf16.msra.mxu0 %v7359
    %11338 = vmatprep.subr.bf16.mxu0 %v7368
    %11339 = vmatpush1.bf16.msra.mxu0 %v7367
    %11340 = vmatprep.subr.bf16.mxu0 %v7376
    %11341 = vmatpush1.bf16.msra.mxu0 %v7375
    %11342 = vmatprep.subr.bf16.mxu0 %v7384
    %11343 = vmatpush1.bf16.msra.mxu0 %v7383
    %11344 = vmatprep.subr.bf16.mxu0 %v7392
    %11345 = vmatpush1.bf16.msra.mxu0 %v7391
    %11346 = vmatprep.subr.bf16.mxu0 %v7400
    %11347 = vmatpush1.bf16.msra.mxu0 %v7399
    %11348 = vmatprep.subr.bf16.mxu0 %v7408
    %11349 = vmatpush1.bf16.msra.mxu0 %v7407
    %11350 = vmatprep.subr.bf16.mxu0 %v7416
    %11351 = vmatpush1.bf16.msra.mxu0 %v7415
    %11352 = vmatprep.subr.bf16.mxu0 %v7424
    %11353 = vmatpush1.bf16.msra.mxu0 %v7423
    %11354 = vmatprep.mubr.bf16.mxu0 %v1760
    %11355 = vmatmul.mubr.bf16.gmra.mrb[0].mxu0 %v1759
    %v11356 = vpop.f32.mrb[0].mxu0
    %v11357 = vadd.f32 %v11314, %v11356
    %v11358 = vpop.f32.mrb[0].mxu0
    %v11359 = vadd.f32 %v11316, %v11358
    %v11360 = vpop.f32.mrb[0].mxu0
    %v11361 = vadd.f32 %v11318, %v11360
    %v11362 = vpop.f32.mrb[0].mxu0
    %v11363 = vadd.f32 %v11320, %v11362
    %11364 = vdwg.mxu0
    %11365 = vmatprep.subr.bf16.mxu0 %v7432
    %11366 = vmatpush1.bf16.msra.mxu0 %v7431
    %11367 = vmatprep.subr.bf16.mxu0 %v7440
    %11368 = vmatpush1.bf16.msra.mxu0 %v7439
    %11369 = vmatprep.subr.bf16.mxu0 %v7448
    %11370 = vmatpush1.bf16.msra.mxu0 %v7447
    %11371 = vmatprep.subr.bf16.mxu0 %v7456
    %11372 = vmatpush1.bf16.msra.mxu0 %v7455
    %11373 = vmatprep.subr.bf16.mxu0 %v7464
    %11374 = vmatpush1.bf16.msra.mxu0 %v7463
    %11375 = vmatprep.subr.bf16.mxu0 %v7472
    %11376 = vmatpush1.bf16.msra.mxu0 %v7471
    %11377 = vmatprep.subr.bf16.mxu0 %v7480
    %11378 = vmatpush1.bf16.msra.mxu0 %v7479
    %11379 = vmatprep.subr.bf16.mxu0 %v7488
    %11380 = vmatpush1.bf16.msra.mxu0 %v7487
    %11381 = vmatprep.subr.bf16.mxu0 %v7496
    %11382 = vmatpush1.bf16.msra.mxu0 %v7495
    %11383 = vmatprep.subr.bf16.mxu0 %v7504
    %11384 = vmatpush1.bf16.msra.mxu0 %v7503
    %11385 = vmatprep.subr.bf16.mxu0 %v7512
    %11386 = vmatpush1.bf16.msra.mxu0 %v7511
    %11387 = vmatprep.subr.bf16.mxu0 %v7520
    %11388 = vmatpush1.bf16.msra.mxu0 %v7519
    %11389 = vmatprep.subr.bf16.mxu0 %v7528
    %11390 = vmatpush1.bf16.msra.mxu0 %v7527
    %11391 = vmatprep.subr.bf16.mxu0 %v7536
    %11392 = vmatpush1.bf16.msra.mxu0 %v7535
    %11393 = vmatprep.subr.bf16.mxu0 %v7544
    %11394 = vmatpush1.bf16.msra.mxu0 %v7543
    %11395 = vmatprep.subr.bf16.mxu0 %v7552
    %11396 = vmatpush1.bf16.msra.mxu0 %v7551
    %11397 = vmatprep.mubr.bf16.mxu0 %v1762
    %11398 = vmatmul.mubr.bf16.gmra.mrb[0].mxu0 %v1761
    %v11399 = vpop.f32.mrb[0].mxu0
    %v11400 = vadd.f32 %v11357, %v11399
    %v11401 = vpop.f32.mrb[0].mxu0
    %v11402 = vadd.f32 %v11359, %v11401
    %v11403 = vpop.f32.mrb[0].mxu0
    %v11404 = vadd.f32 %v11361, %v11403
    %v11405 = vpop.f32.mrb[0].mxu0
    %v11406 = vadd.f32 %v11363, %v11405
    %11407 = vdwg.mxu0
    %11408 = vmatprep.subr.bf16.mxu0 %v7560
    %11409 = vmatpush1.bf16.msra.mxu0 %v7559
    %11410 = vmatprep.subr.bf16.mxu0 %v7568
    %11411 = vmatpush1.bf16.msra.mxu0 %v7567
    %11412 = vmatprep.subr.bf16.mxu0 %v7576
    %11413 = vmatpush1.bf16.msra.mxu0 %v7575
    %11414 = vmatprep.subr.bf16.mxu0 %v7584
    %11415 = vmatpush1.bf16.msra.mxu0 %v7583
    %11416 = vmatprep.subr.bf16.mxu0 %v7592
    %11417 = vmatpush1.bf16.msra.mxu0 %v7591
    %11418 = vmatprep.subr.bf16.mxu0 %v7600
    %11419 = vmatpush1.bf16.msra.mxu0 %v7599
    %11420 = vmatprep.subr.bf16.mxu0 %v7608
    %11421 = vmatpush1.bf16.msra.mxu0 %v7607
    %11422 = vmatprep.subr.bf16.mxu0 %v7616
    %11423 = vmatpush1.bf16.msra.mxu0 %v7615
    %11424 = vmatprep.subr.bf16.mxu0 %v7624
    %11425 = vmatpush1.bf16.msra.mxu0 %v7623
    %11426 = vmatprep.subr.bf16.mxu0 %v7632
    %11427 = vmatpush1.bf16.msra.mxu0 %v7631
    %11428 = vmatprep.subr.bf16.mxu0 %v7640
    %11429 = vmatpush1.bf16.msra.mxu0 %v7639
    %11430 = vmatprep.subr.bf16.mxu0 %v7648
    %11431 = vmatpush1.bf16.msra.mxu0 %v7647
    %11432 = vmatprep.subr.bf16.mxu0 %v7656
    %11433 = vmatpush1.bf16.msra.mxu0 %v7655
    %11434 = vmatprep.subr.bf16.mxu0 %v7664
    %11435 = vmatpush1.bf16.msra.mxu0 %v7663
    %11436 = vmatprep.subr.bf16.mxu0 %v7672
    %11437 = vmatpush1.bf16.msra.mxu0 %v7671
    %11438 = vmatprep.subr.bf16.mxu0 %v7680
    %11439 = vmatpush1.bf16.msra.mxu0 %v7679
    %11440 = vmatprep.mubr.bf16.mxu0 %v1764
    %11441 = vmatmul.mubr.bf16.gmra.mrb[0].mxu0 %v1763
    %v11442 = vpop.f32.mrb[0].mxu0
    %v11443 = vadd.f32 %v11400, %v11442
    %v11444 = vpop.f32.mrb[0].mxu0
    %v11445 = vadd.f32 %v11402, %v11444
    %v11446 = vpop.f32.mrb[0].mxu0
    %v11447 = vadd.f32 %v11404, %v11446
    %v11448 = vpop.f32.mrb[0].mxu0
    %v11449 = vadd.f32 %v11406, %v11448
    %11450 = vdwg.mxu0
    %11451 = vmatprep.subr.bf16.mxu0 %v7688
    %11452 = vmatpush1.bf16.msra.mxu0 %v7687
    %11453 = vmatprep.subr.bf16.mxu0 %v7696
    %11454 = vmatpush1.bf16.msra.mxu0 %v7695
    %11455 = vmatprep.subr.bf16.mxu0 %v7704
    %11456 = vmatpush1.bf16.msra.mxu0 %v7703
    %11457 = vmatprep.subr.bf16.mxu0 %v7712
    %11458 = vmatpush1.bf16.msra.mxu0 %v7711
    %11459 = vmatprep.subr.bf16.mxu0 %v7720
    %11460 = vmatpush1.bf16.msra.mxu0 %v7719
    %11461 = vmatprep.subr.bf16.mxu0 %v7728
    %11462 = vmatpush1.bf16.msra.mxu0 %v7727
    %11463 = vmatprep.subr.bf16.mxu0 %v7736
    %11464 = vmatpush1.bf16.msra.mxu0 %v7735
    %11465 = vmatprep.subr.bf16.mxu0 %v7744
    %11466 = vmatpush1.bf16.msra.mxu0 %v7743
    %11467 = vmatprep.subr.bf16.mxu0 %v7752
    %11468 = vmatpush1.bf16.msra.mxu0 %v7751
    %11469 = vmatprep.subr.bf16.mxu0 %v7760
    %11470 = vmatpush1.bf16.msra.mxu0 %v7759
    %11471 = vmatprep.subr.bf16.mxu0 %v7768
    %11472 = vmatpush1.bf16.msra.mxu0 %v7767
    %11473 = vmatprep.subr.bf16.mxu0 %v7776
    %11474 = vmatpush1.bf16.msra.mxu0 %v7775
    %11475 = vmatprep.subr.bf16.mxu0 %v7784
    %11476 = vmatpush1.bf16.msra.mxu0 %v7783
    %11477 = vmatprep.subr.bf16.mxu0 %v7792
    %11478 = vmatpush1.bf16.msra.mxu0 %v7791
    %11479 = vmatprep.subr.bf16.mxu0 %v7800
    %11480 = vmatpush1.bf16.msra.mxu0 %v7799
    %11481 = vmatprep.subr.bf16.mxu0 %v7808
    %11482 = vmatpush1.bf16.msra.mxu0 %v7807
    %11483 = vmatprep.mubr.bf16.mxu0 %v1766
    %11484 = vmatmul.mubr.bf16.gmra.mrb[0].mxu0 %v1765
    %v11485 = vpop.f32.mrb[0].mxu0
    %v11486 = vadd.f32 %v11443, %v11485
    %v11487 = vpop.f32.mrb[0].mxu0
    %v11488 = vadd.f32 %v11445, %v11487
    %v11489 = vpop.f32.mrb[0].mxu0
    %v11490 = vadd.f32 %v11447, %v11489
    %v11491 = vpop.f32.mrb[0].mxu0
    %v11492 = vadd.f32 %v11449, %v11491
    %11493 = vdwg.mxu0
    %11494 = vmatprep.subr.bf16.mxu0 %v7816
    %11495 = vmatpush1.bf16.msra.mxu0 %v7815
    %11496 = vmatprep.subr.bf16.mxu0 %v7824
    %11497 = vmatpush1.bf16.msra.mxu0 %v7823
    %11498 = vmatprep.subr.bf16.mxu0 %v7832
    %11499 = vmatpush1.bf16.msra.mxu0 %v7831
    %11500 = vmatprep.subr.bf16.mxu0 %v7840
    %11501 = vmatpush1.bf16.msra.mxu0 %v7839
    %11502 = vmatprep.subr.bf16.mxu0 %v7848
    %11503 = vmatpush1.bf16.msra.mxu0 %v7847
    %11504 = vmatprep.subr.bf16.mxu0 %v7856
    %11505 = vmatpush1.bf16.msra.mxu0 %v7855
    %11506 = vmatprep.subr.bf16.mxu0 %v7864
    %11507 = vmatpush1.bf16.msra.mxu0 %v7863
    %11508 = vmatprep.subr.bf16.mxu0 %v7872
    %11509 = vmatpush1.bf16.msra.mxu0 %v7871
    %11510 = vmatprep.subr.bf16.mxu0 %v7880
    %11511 = vmatpush1.bf16.msra.mxu0 %v7879
    %11512 = vmatprep.subr.bf16.mxu0 %v7888
    %11513 = vmatpush1.bf16.msra.mxu0 %v7887
    %11514 = vmatprep.subr.bf16.mxu0 %v7896
    %11515 = vmatpush1.bf16.msra.mxu0 %v7895
    %11516 = vmatprep.subr.bf16.mxu0 %v7904
    %11517 = vmatpush1.bf16.msra.mxu0 %v7903
    %11518 = vmatprep.subr.bf16.mxu0 %v7912
    %11519 = vmatpush1.bf16.msra.mxu0 %v7911
    %11520 = vmatprep.subr.bf16.mxu0 %v7920
    %11521 = vmatpush1.bf16.msra.mxu0 %v7919
    %11522 = vmatprep.subr.bf16.mxu0 %v7928
    %11523 = vmatpush1.bf16.msra.mxu0 %v7927
    %11524 = vmatprep.subr.bf16.mxu0 %v7936
    %11525 = vmatpush1.bf16.msra.mxu0 %v7935
    %11526 = vmatprep.mubr.bf16.mxu0 %v1768
    %11527 = vmatmul.mubr.bf16.gmra.mrb[0].mxu0 %v1767
    %v11528 = vpop.f32.mrb[0].mxu0
    %v11529 = vadd.f32 %v11486, %v11528
    %v11530 = vpop.f32.mrb[0].mxu0
    %v11531 = vadd.f32 %v11488, %v11530
    %v11532 = vpop.f32.mrb[0].mxu0
    %v11533 = vadd.f32 %v11490, %v11532
    %v11534 = vpop.f32.mrb[0].mxu0
    %v11535 = vadd.f32 %v11492, %v11534
    %11536 = vdwg.mxu0
    %v11537 = vmax.f32 %v9981, 0.0
    %v11538 = vmax.f32 %v9983, 0.0
    %v11539 = vmax.f32 %v10497, 0.0
    %v11540 = vmax.f32 %v10499, 0.0
    %v11541 = vmax.f32 %v11013, 0.0
    %v11542 = vmax.f32 %v11015, 0.0
    %v11543 = vmax.f32 %v11529, 0.0
    %v11544 = vmax.f32 %v11531, 0.0
    %v11545 = vmax.f32 %v9985, 0.0
    %v11546 = vmax.f32 %v9987, 0.0
    %v11547 = vmax.f32 %v10501, 0.0
    %v11548 = vmax.f32 %v10503, 0.0
    %v11549 = vmax.f32 %v11017, 0.0
    %v11550 = vmax.f32 %v11019, 0.0
    %v11551 = vmax.f32 %v11533, 0.0
    %v11552 = vmax.f32 %v11535, 0.0
    %v11553 = vld [vmem:[#allocation6] sm:$0xff]
    %v11554 = vld [vmem:[#allocation6 + $0x8] sm:$0xff]
    %v11555 = vld [vmem:[#allocation6 + $0x10] sm:$0xff]
    %v11556 = vld [vmem:[#allocation6 + $0x18] sm:$0xff]
    %v11557 = vld [vmem:[#allocation6 + $0x20] sm:$0xff]
    %v11558 = vld [vmem:[#allocation6 + $0x28] sm:$0xff]
    %v11559 = vld [vmem:[#allocation6 + $0x30] sm:$0xff]
    %v11560 = vld [vmem:[#allocation6 + $0x38] sm:$0xff]
    %v11561 = vld [vmem:[#allocation6 + $0x40] sm:$0xff]
    %v11562 = vld [vmem:[#allocation6 + $0x48] sm:$0xff]
    %v11563 = vld [vmem:[#allocation6 + $0x50] sm:$0xff]
    %v11564 = vld [vmem:[#allocation6 + $0x58] sm:$0xff]
    %v11565 = vld [vmem:[#allocation6 + $0x60] sm:$0xff]
    %v11566 = vld [vmem:[#allocation6 + $0x68] sm:$0xff]
    %v11567 = vld [vmem:[#allocation6 + $0x70] sm:$0xff]
    %v11568 = vld [vmem:[#allocation6 + $0x78] sm:$0xff]
    %v11569 = vld [vmem:[#allocation6 + $0x80] sm:$0xff]
    %v11570 = vld [vmem:[#allocation6 + $0x88] sm:$0xff]
    %v11571 = vld [vmem:[#allocation6 + $0x90] sm:$0xff]
    %v11572 = vld [vmem:[#allocation6 + $0x98] sm:$0xff]
    %v11573 = vld [vmem:[#allocation6 + $0xa0] sm:$0xff]
    %v11574 = vld [vmem:[#allocation6 + $0xa8] sm:$0xff]
    %v11575 = vld [vmem:[#allocation6 + $0xb0] sm:$0xff]
    %v11576 = vld [vmem:[#allocation6 + $0xb8] sm:$0xff]
    %v11577 = vld [vmem:[#allocation6 + $0xc0] sm:$0xff]
    %v11578 = vld [vmem:[#allocation6 + $0xc8] sm:$0xff]
    %v11579 = vld [vmem:[#allocation6 + $0xd0] sm:$0xff]
    %v11580 = vld [vmem:[#allocation6 + $0xd8] sm:$0xff]
    %v11581 = vld [vmem:[#allocation6 + $0xe0] sm:$0xff]
    %v11582 = vld [vmem:[#allocation6 + $0xe8] sm:$0xff]
    %v11583 = vld [vmem:[#allocation6 + $0xf0] sm:$0xff]
    %v11584 = vld [vmem:[#allocation6 + $0xf8] sm:$0xff]
    %v11585 = vld [vmem:[#allocation6 + $0x100] sm:$0xff]
    %v11586 = vld [vmem:[#allocation6 + $0x108] sm:$0xff]
    %v11587 = vld [vmem:[#allocation6 + $0x110] sm:$0xff]
    %v11588 = vld [vmem:[#allocation6 + $0x118] sm:$0xff]
    %v11589 = vld [vmem:[#allocation6 + $0x120] sm:$0xff]
    %v11590 = vld [vmem:[#allocation6 + $0x128] sm:$0xff]
    %v11591 = vld [vmem:[#allocation6 + $0x130] sm:$0xff]
    %v11592 = vld [vmem:[#allocation6 + $0x138] sm:$0xff]
    %v11593 = vld [vmem:[#allocation6 + $0x140] sm:$0xff]
    %v11594 = vld [vmem:[#allocation6 + $0x148] sm:$0xff]
    %v11595 = vld [vmem:[#allocation6 + $0x150] sm:$0xff]
    %v11596 = vld [vmem:[#allocation6 + $0x158] sm:$0xff]
    %v11597 = vld [vmem:[#allocation6 + $0x160] sm:$0xff]
    %v11598 = vld [vmem:[#allocation6 + $0x168] sm:$0xff]
    %v11599 = vld [vmem:[#allocation6 + $0x170] sm:$0xff]
    %v11600 = vld [vmem:[#allocation6 + $0x178] sm:$0xff]
    %v11601 = vld [vmem:[#allocation6 + $0x180] sm:$0xff]
    %v11602 = vld [vmem:[#allocation6 + $0x188] sm:$0xff]
    %v11603 = vld [vmem:[#allocation6 + $0x190] sm:$0xff]
    %v11604 = vld [vmem:[#allocation6 + $0x198] sm:$0xff]
    %v11605 = vld [vmem:[#allocation6 + $0x1a0] sm:$0xff]
    %v11606 = vld [vmem:[#allocation6 + $0x1a8] sm:$0xff]
    %v11607 = vld [vmem:[#allocation6 + $0x1b0] sm:$0xff]
    %v11608 = vld [vmem:[#allocation6 + $0x1b8] sm:$0xff]
    %v11609 = vld [vmem:[#allocation6 + $0x1c0] sm:$0xff]
    %v11610 = vld [vmem:[#allocation6 + $0x1c8] sm:$0xff]
    %v11611 = vld [vmem:[#allocation6 + $0x1d0] sm:$0xff]
    %v11612 = vld [vmem:[#allocation6 + $0x1d8] sm:$0xff]
    %v11613 = vld [vmem:[#allocation6 + $0x1e0] sm:$0xff]
    %v11614 = vld [vmem:[#allocation6 + $0x1e8] sm:$0xff]
    %v11615 = vld [vmem:[#allocation6 + $0x1f0] sm:$0xff]
    %v11616 = vld [vmem:[#allocation6 + $0x1f8] sm:$0xff]
    %v11617 = vld [vmem:[#allocation6 + $0x200] sm:$0xff]
    %v11618 = vld [vmem:[#allocation6 + $0x208] sm:$0xff]
    %v11619 = vld [vmem:[#allocation6 + $0x210] sm:$0xff]
    %v11620 = vld [vmem:[#allocation6 + $0x218] sm:$0xff]
    %v11621 = vld [vmem:[#allocation6 + $0x220] sm:$0xff]
    %v11622 = vld [vmem:[#allocation6 + $0x228] sm:$0xff]
    %v11623 = vld [vmem:[#allocation6 + $0x230] sm:$0xff]
    %v11624 = vld [vmem:[#allocation6 + $0x238] sm:$0xff]
    %v11625 = vld [vmem:[#allocation6 + $0x240] sm:$0xff]
    %v11626 = vld [vmem:[#allocation6 + $0x248] sm:$0xff]
    %v11627 = vld [vmem:[#allocation6 + $0x250] sm:$0xff]
    %v11628 = vld [vmem:[#allocation6 + $0x258] sm:$0xff]
    %v11629 = vld [vmem:[#allocation6 + $0x260] sm:$0xff]
    %v11630 = vld [vmem:[#allocation6 + $0x268] sm:$0xff]
    %v11631 = vld [vmem:[#allocation6 + $0x270] sm:$0xff]
    %v11632 = vld [vmem:[#allocation6 + $0x278] sm:$0xff]
    %v11633 = vld [vmem:[#allocation6 + $0x280] sm:$0xff]
    %v11634 = vld [vmem:[#allocation6 + $0x288] sm:$0xff]
    %v11635 = vld [vmem:[#allocation6 + $0x290] sm:$0xff]
    %v11636 = vld [vmem:[#allocation6 + $0x298] sm:$0xff]
    %v11637 = vld [vmem:[#allocation6 + $0x2a0] sm:$0xff]
    %v11638 = vld [vmem:[#allocation6 + $0x2a8] sm:$0xff]
    %v11639 = vld [vmem:[#allocation6 + $0x2b0] sm:$0xff]
    %v11640 = vld [vmem:[#allocation6 + $0x2b8] sm:$0xff]
    %v11641 = vld [vmem:[#allocation6 + $0x2c0] sm:$0xff]
    %v11642 = vld [vmem:[#allocation6 + $0x2c8] sm:$0xff]
    %v11643 = vld [vmem:[#allocation6 + $0x2d0] sm:$0xff]
    %v11644 = vld [vmem:[#allocation6 + $0x2d8] sm:$0xff]
    %v11645 = vld [vmem:[#allocation6 + $0x2e0] sm:$0xff]
    %v11646 = vld [vmem:[#allocation6 + $0x2e8] sm:$0xff]
    %v11647 = vld [vmem:[#allocation6 + $0x2f0] sm:$0xff]
    %v11648 = vld [vmem:[#allocation6 + $0x2f8] sm:$0xff]
    %v11649 = vld [vmem:[#allocation6 + $0x300] sm:$0xff]
    %v11650 = vld [vmem:[#allocation6 + $0x308] sm:$0xff]
    %v11651 = vld [vmem:[#allocation6 + $0x310] sm:$0xff]
    %v11652 = vld [vmem:[#allocation6 + $0x318] sm:$0xff]
    %v11653 = vld [vmem:[#allocation6 + $0x320] sm:$0xff]
    %v11654 = vld [vmem:[#allocation6 + $0x328] sm:$0xff]
    %v11655 = vld [vmem:[#allocation6 + $0x330] sm:$0xff]
    %v11656 = vld [vmem:[#allocation6 + $0x338] sm:$0xff]
    %v11657 = vld [vmem:[#allocation6 + $0x340] sm:$0xff]
    %v11658 = vld [vmem:[#allocation6 + $0x348] sm:$0xff]
    %v11659 = vld [vmem:[#allocation6 + $0x350] sm:$0xff]
    %v11660 = vld [vmem:[#allocation6 + $0x358] sm:$0xff]
    %v11661 = vld [vmem:[#allocation6 + $0x360] sm:$0xff]
    %v11662 = vld [vmem:[#allocation6 + $0x368] sm:$0xff]
    %v11663 = vld [vmem:[#allocation6 + $0x370] sm:$0xff]
    %v11664 = vld [vmem:[#allocation6 + $0x378] sm:$0xff]
    %v11665 = vld [vmem:[#allocation6 + $0x380] sm:$0xff]
    %v11666 = vld [vmem:[#allocation6 + $0x388] sm:$0xff]
    %v11667 = vld [vmem:[#allocation6 + $0x390] sm:$0xff]
    %v11668 = vld [vmem:[#allocation6 + $0x398] sm:$0xff]
    %v11669 = vld [vmem:[#allocation6 + $0x3a0] sm:$0xff]
    %v11670 = vld [vmem:[#allocation6 + $0x3a8] sm:$0xff]
    %v11671 = vld [vmem:[#allocation6 + $0x3b0] sm:$0xff]
    %v11672 = vld [vmem:[#allocation6 + $0x3b8] sm:$0xff]
    %v11673 = vld [vmem:[#allocation6 + $0x3c0] sm:$0xff]
    %v11674 = vld [vmem:[#allocation6 + $0x3c8] sm:$0xff]
    %v11675 = vld [vmem:[#allocation6 + $0x3d0] sm:$0xff]
    %v11676 = vld [vmem:[#allocation6 + $0x3d8] sm:$0xff]
    %v11677 = vld [vmem:[#allocation6 + $0x3e0] sm:$0xff]
    %v11678 = vld [vmem:[#allocation6 + $0x3e8] sm:$0xff]
    %v11679 = vld [vmem:[#allocation6 + $0x3f0] sm:$0xff]
    %v11680 = vld [vmem:[#allocation6 + $0x3f8] sm:$0xff]
    %v11681 = vld [vmem:[#allocation7] sm:$0x1]
    %v11683 = vlaneseq
    %v11684 = vshrl.u32 %v11683, 7
    %v11685 = vsub.s32 0, %v11684
    %v11686 = vrot.slane %v11681, %v11685
    %11688 = vmatprep.subr.mxu0 0.0
    %11689 = vmatpush1.msra.mxu0 %v11553
    %11690 = vmatprep.subr.mxu0 0.0
    %11691 = vmatpush1.msra.mxu0 %v11554
    %11692 = vmatprep.subr.mxu0 0.0
    %11693 = vmatpush1.msra.mxu0 %v11555
    %11694 = vmatprep.subr.mxu0 0.0
    %11695 = vmatpush1.msra.mxu0 %v11556
    %11696 = vmatprep.subr.mxu0 0.0
    %11697 = vmatpush1.msra.mxu0 %v11557
    %11698 = vmatprep.subr.mxu0 0.0
    %11699 = vmatpush1.msra.mxu0 %v11558
    %11700 = vmatprep.subr.mxu0 0.0
    %11701 = vmatpush1.msra.mxu0 %v11559
    %11702 = vmatprep.subr.mxu0 0.0
    %11703 = vmatpush1.msra.mxu0 %v11560
    %11704 = vmatprep.subr.mxu0 0.0
    %11705 = vmatpush1.msra.mxu0 %v11561
    %11706 = vmatprep.subr.mxu0 0.0
    %11707 = vmatpush1.msra.mxu0 %v11562
    %11708 = vmatprep.subr.mxu0 0.0
    %11709 = vmatpush1.msra.mxu0 %v11563
    %11710 = vmatprep.subr.mxu0 0.0
    %11711 = vmatpush1.msra.mxu0 %v11564
    %11712 = vmatprep.subr.mxu0 0.0
    %11713 = vmatpush1.msra.mxu0 %v11565
    %11714 = vmatprep.subr.mxu0 0.0
    %11715 = vmatpush1.msra.mxu0 %v11566
    %11716 = vmatprep.subr.mxu0 0.0
    %11717 = vmatpush1.msra.mxu0 %v11567
    %11718 = vmatprep.subr.mxu0 0.0
    %11719 = vmatpush1.msra.mxu0 %v11568
    %11720 = vmatprep.subr.mxu0 0.0
    %11721 = vmatpush1.msra.mxu0 %v11569
    %11722 = vmatprep.subr.mxu0 0.0
    %11723 = vmatpush1.msra.mxu0 %v11570
    %11724 = vmatprep.subr.mxu0 0.0
    %11725 = vmatpush1.msra.mxu0 %v11571
    %11726 = vmatprep.subr.mxu0 0.0
    %11727 = vmatpush1.msra.mxu0 %v11572
    %11728 = vmatprep.subr.mxu0 0.0
    %11729 = vmatpush1.msra.mxu0 %v11573
    %11730 = vmatprep.subr.mxu0 0.0
    %11731 = vmatpush1.msra.mxu0 %v11574
    %11732 = vmatprep.subr.mxu0 0.0
    %11733 = vmatpush1.msra.mxu0 %v11575
    %11734 = vmatprep.subr.mxu0 0.0
    %11735 = vmatpush1.msra.mxu0 %v11576
    %11736 = vmatprep.subr.mxu0 0.0
    %11737 = vmatpush1.msra.mxu0 %v11577
    %11738 = vmatprep.subr.mxu0 0.0
    %11739 = vmatpush1.msra.mxu0 %v11578
    %11740 = vmatprep.subr.mxu0 0.0
    %11741 = vmatpush1.msra.mxu0 %v11579
    %11742 = vmatprep.subr.mxu0 0.0
    %11743 = vmatpush1.msra.mxu0 %v11580
    %11744 = vmatprep.subr.mxu0 0.0
    %11745 = vmatpush1.msra.mxu0 %v11581
    %11746 = vmatprep.subr.mxu0 0.0
    %11747 = vmatpush1.msra.mxu0 %v11582
    %11748 = vmatprep.subr.mxu0 0.0
    %11749 = vmatpush1.msra.mxu0 %v11583
    %11750 = vmatprep.subr.mxu0 0.0
    %11751 = vmatpush1.msra.mxu0 %v11584
    %11752 = vmatprep.mubr.f32.mxu0 %v11538
    %11753 = vmatmul.mubr.f32.gmra.mrb[0].mxu0 %v11537
    %v11754 = vpop.f32.mrb[0].mxu0
    %v11755 = vadd.f32 %v11686, %v11754
    %v11756 = vpop.f32.mrb[0].mxu0
    %11757 = vmatprep.mubr.f32.mxu0 %v11546
    %11758 = vmatmul.mubr.f32.gmra.mrb[0].mxu0 %v11545
    %v11759 = vpop.f32.mrb[0].mxu0
    %v11760 = vadd.f32 %v11686, %v11759
    %v11761 = vpop.f32.mrb[0].mxu0
    %11762 = vdwg.mxu0
    %11763 = vmatprep.subr.mxu0 0.0
    %11764 = vmatpush1.msra.mxu0 %v11585
    %11765 = vmatprep.subr.mxu0 0.0
    %11766 = vmatpush1.msra.mxu0 %v11586
    %11767 = vmatprep.subr.mxu0 0.0
    %11768 = vmatpush1.msra.mxu0 %v11587
    %11769 = vmatprep.subr.mxu0 0.0
    %11770 = vmatpush1.msra.mxu0 %v11588
    %11771 = vmatprep.subr.mxu0 0.0
    %11772 = vmatpush1.msra.mxu0 %v11589
    %11773 = vmatprep.subr.mxu0 0.0
    %11774 = vmatpush1.msra.mxu0 %v11590
    %11775 = vmatprep.subr.mxu0 0.0
    %11776 = vmatpush1.msra.mxu0 %v11591
    %11777 = vmatprep.subr.mxu0 0.0
    %11778 = vmatpush1.msra.mxu0 %v11592
    %11779 = vmatprep.subr.mxu0 0.0
    %11780 = vmatpush1.msra.mxu0 %v11593
    %11781 = vmatprep.subr.mxu0 0.0
    %11782 = vmatpush1.msra.mxu0 %v11594
    %11783 = vmatprep.subr.mxu0 0.0
    %11784 = vmatpush1.msra.mxu0 %v11595
    %11785 = vmatprep.subr.mxu0 0.0
    %11786 = vmatpush1.msra.mxu0 %v11596
    %11787 = vmatprep.subr.mxu0 0.0
    %11788 = vmatpush1.msra.mxu0 %v11597
    %11789 = vmatprep.subr.mxu0 0.0
    %11790 = vmatpush1.msra.mxu0 %v11598
    %11791 = vmatprep.subr.mxu0 0.0
    %11792 = vmatpush1.msra.mxu0 %v11599
    %11793 = vmatprep.subr.mxu0 0.0
    %11794 = vmatpush1.msra.mxu0 %v11600
    %11795 = vmatprep.subr.mxu0 0.0
    %11796 = vmatpush1.msra.mxu0 %v11601
    %11797 = vmatprep.subr.mxu0 0.0
    %11798 = vmatpush1.msra.mxu0 %v11602
    %11799 = vmatprep.subr.mxu0 0.0
    %11800 = vmatpush1.msra.mxu0 %v11603
    %11801 = vmatprep.subr.mxu0 0.0
    %11802 = vmatpush1.msra.mxu0 %v11604
    %11803 = vmatprep.subr.mxu0 0.0
    %11804 = vmatpush1.msra.mxu0 %v11605
    %11805 = vmatprep.subr.mxu0 0.0
    %11806 = vmatpush1.msra.mxu0 %v11606
    %11807 = vmatprep.subr.mxu0 0.0
    %11808 = vmatpush1.msra.mxu0 %v11607
    %11809 = vmatprep.subr.mxu0 0.0
    %11810 = vmatpush1.msra.mxu0 %v11608
    %11811 = vmatprep.subr.mxu0 0.0
    %11812 = vmatpush1.msra.mxu0 %v11609
    %11813 = vmatprep.subr.mxu0 0.0
    %11814 = vmatpush1.msra.mxu0 %v11610
    %11815 = vmatprep.subr.mxu0 0.0
    %11816 = vmatpush1.msra.mxu0 %v11611
    %11817 = vmatprep.subr.mxu0 0.0
    %11818 = vmatpush1.msra.mxu0 %v11612
    %11819 = vmatprep.subr.mxu0 0.0
    %11820 = vmatpush1.msra.mxu0 %v11613
    %11821 = vmatprep.subr.mxu0 0.0
    %11822 = vmatpush1.msra.mxu0 %v11614
    %11823 = vmatprep.subr.mxu0 0.0
    %11824 = vmatpush1.msra.mxu0 %v11615
    %11825 = vmatprep.subr.mxu0 0.0
    %11826 = vmatpush1.msra.mxu0 %v11616
    %11827 = vmatprep.mubr.f32.mxu0 %v11540
    %11828 = vmatmul.mubr.f32.gmra.mrb[0].mxu0 %v11539
    %v11829 = vpop.f32.mrb[0].mxu0
    %v11830 = vadd.f32 %v11755, %v11829
    %v11831 = vpop.f32.mrb[0].mxu0
    %11832 = vmatprep.mubr.f32.mxu0 %v11548
    %11833 = vmatmul.mubr.f32.gmra.mrb[0].mxu0 %v11547
    %v11834 = vpop.f32.mrb[0].mxu0
    %v11835 = vadd.f32 %v11760, %v11834
    %v11836 = vpop.f32.mrb[0].mxu0
    %11837 = vdwg.mxu0
    %11838 = vmatprep.subr.mxu0 0.0
    %11839 = vmatpush1.msra.mxu0 %v11617
    %11840 = vmatprep.subr.mxu0 0.0
    %11841 = vmatpush1.msra.mxu0 %v11618
    %11842 = vmatprep.subr.mxu0 0.0
    %11843 = vmatpush1.msra.mxu0 %v11619
    %11844 = vmatprep.subr.mxu0 0.0
    %11845 = vmatpush1.msra.mxu0 %v11620
    %11846 = vmatprep.subr.mxu0 0.0
    %11847 = vmatpush1.msra.mxu0 %v11621
    %11848 = vmatprep.subr.mxu0 0.0
    %11849 = vmatpush1.msra.mxu0 %v11622
    %11850 = vmatprep.subr.mxu0 0.0
    %11851 = vmatpush1.msra.mxu0 %v11623
    %11852 = vmatprep.subr.mxu0 0.0
    %11853 = vmatpush1.msra.mxu0 %v11624
    %11854 = vmatprep.subr.mxu0 0.0
    %11855 = vmatpush1.msra.mxu0 %v11625
    %11856 = vmatprep.subr.mxu0 0.0
    %11857 = vmatpush1.msra.mxu0 %v11626
    %11858 = vmatprep.subr.mxu0 0.0
    %11859 = vmatpush1.msra.mxu0 %v11627
    %11860 = vmatprep.subr.mxu0 0.0
    %11861 = vmatpush1.msra.mxu0 %v11628
    %11862 = vmatprep.subr.mxu0 0.0
    %11863 = vmatpush1.msra.mxu0 %v11629
    %11864 = vmatprep.subr.mxu0 0.0
    %11865 = vmatpush1.msra.mxu0 %v11630
    %11866 = vmatprep.subr.mxu0 0.0
    %11867 = vmatpush1.msra.mxu0 %v11631
    %11868 = vmatprep.subr.mxu0 0.0
    %11869 = vmatpush1.msra.mxu0 %v11632
    %11870 = vmatprep.subr.mxu0 0.0
    %11871 = vmatpush1.msra.mxu0 %v11633
    %11872 = vmatprep.subr.mxu0 0.0
    %11873 = vmatpush1.msra.mxu0 %v11634
    %11874 = vmatprep.subr.mxu0 0.0
    %11875 = vmatpush1.msra.mxu0 %v11635
    %11876 = vmatprep.subr.mxu0 0.0
    %11877 = vmatpush1.msra.mxu0 %v11636
    %11878 = vmatprep.subr.mxu0 0.0
    %11879 = vmatpush1.msra.mxu0 %v11637
    %11880 = vmatprep.subr.mxu0 0.0
    %11881 = vmatpush1.msra.mxu0 %v11638
    %11882 = vmatprep.subr.mxu0 0.0
    %11883 = vmatpush1.msra.mxu0 %v11639
    %11884 = vmatprep.subr.mxu0 0.0
    %11885 = vmatpush1.msra.mxu0 %v11640
    %11886 = vmatprep.subr.mxu0 0.0
    %11887 = vmatpush1.msra.mxu0 %v11641
    %11888 = vmatprep.subr.mxu0 0.0
    %11889 = vmatpush1.msra.mxu0 %v11642
    %11890 = vmatprep.subr.mxu0 0.0
    %11891 = vmatpush1.msra.mxu0 %v11643
    %11892 = vmatprep.subr.mxu0 0.0
    %11893 = vmatpush1.msra.mxu0 %v11644
    %11894 = vmatprep.subr.mxu0 0.0
    %11895 = vmatpush1.msra.mxu0 %v11645
    %11896 = vmatprep.subr.mxu0 0.0
    %11897 = vmatpush1.msra.mxu0 %v11646
    %11898 = vmatprep.subr.mxu0 0.0
    %11899 = vmatpush1.msra.mxu0 %v11647
    %11900 = vmatprep.subr.mxu0 0.0
    %11901 = vmatpush1.msra.mxu0 %v11648
    %11902 = vmatprep.mubr.f32.mxu0 %v11542
    %11903 = vmatmul.mubr.f32.gmra.mrb[0].mxu0 %v11541
    %v11904 = vpop.f32.mrb[0].mxu0
    %v11905 = vadd.f32 %v11830, %v11904
    %v11906 = vpop.f32.mrb[0].mxu0
    %11907 = vmatprep.mubr.f32.mxu0 %v11550
    %11908 = vmatmul.mubr.f32.gmra.mrb[0].mxu0 %v11549
    %v11909 = vpop.f32.mrb[0].mxu0
    %v11910 = vadd.f32 %v11835, %v11909
    %v11911 = vpop.f32.mrb[0].mxu0
    %11912 = vdwg.mxu0
    %11913 = vmatprep.subr.mxu0 0.0
    %11914 = vmatpush1.msra.mxu0 %v11649
    %11915 = vmatprep.subr.mxu0 0.0
    %11916 = vmatpush1.msra.mxu0 %v11650
    %11917 = vmatprep.subr.mxu0 0.0
    %11918 = vmatpush1.msra.mxu0 %v11651
    %11919 = vmatprep.subr.mxu0 0.0
    %11920 = vmatpush1.msra.mxu0 %v11652
    %11921 = vmatprep.subr.mxu0 0.0
    %11922 = vmatpush1.msra.mxu0 %v11653
    %11923 = vmatprep.subr.mxu0 0.0
    %11924 = vmatpush1.msra.mxu0 %v11654
    %11925 = vmatprep.subr.mxu0 0.0
    %11926 = vmatpush1.msra.mxu0 %v11655
    %11927 = vmatprep.subr.mxu0 0.0
    %11928 = vmatpush1.msra.mxu0 %v11656
    %11929 = vmatprep.subr.mxu0 0.0
    %11930 = vmatpush1.msra.mxu0 %v11657
    %11931 = vmatprep.subr.mxu0 0.0
    %11932 = vmatpush1.msra.mxu0 %v11658
    %11933 = vmatprep.subr.mxu0 0.0
    %11934 = vmatpush1.msra.mxu0 %v11659
    %11935 = vmatprep.subr.mxu0 0.0
    %11936 = vmatpush1.msra.mxu0 %v11660
    %11937 = vmatprep.subr.mxu0 0.0
    %11938 = vmatpush1.msra.mxu0 %v11661
    %11939 = vmatprep.subr.mxu0 0.0
    %11940 = vmatpush1.msra.mxu0 %v11662
    %11941 = vmatprep.subr.mxu0 0.0
    %11942 = vmatpush1.msra.mxu0 %v11663
    %11943 = vmatprep.subr.mxu0 0.0
    %11944 = vmatpush1.msra.mxu0 %v11664
    %11945 = vmatprep.subr.mxu0 0.0
    %11946 = vmatpush1.msra.mxu0 %v11665
    %11947 = vmatprep.subr.mxu0 0.0
    %11948 = vmatpush1.msra.mxu0 %v11666
    %11949 = vmatprep.subr.mxu0 0.0
    %11950 = vmatpush1.msra.mxu0 %v11667
    %11951 = vmatprep.subr.mxu0 0.0
    %11952 = vmatpush1.msra.mxu0 %v11668
    %11953 = vmatprep.subr.mxu0 0.0
    %11954 = vmatpush1.msra.mxu0 %v11669
    %11955 = vmatprep.subr.mxu0 0.0
    %11956 = vmatpush1.msra.mxu0 %v11670
    %11957 = vmatprep.subr.mxu0 0.0
    %11958 = vmatpush1.msra.mxu0 %v11671
    %11959 = vmatprep.subr.mxu0 0.0
    %11960 = vmatpush1.msra.mxu0 %v11672
    %11961 = vmatprep.subr.mxu0 0.0
    %11962 = vmatpush1.msra.mxu0 %v11673
    %11963 = vmatprep.subr.mxu0 0.0
    %11964 = vmatpush1.msra.mxu0 %v11674
    %11965 = vmatprep.subr.mxu0 0.0
    %11966 = vmatpush1.msra.mxu0 %v11675
    %11967 = vmatprep.subr.mxu0 0.0
    %11968 = vmatpush1.msra.mxu0 %v11676
    %11969 = vmatprep.subr.mxu0 0.0
    %11970 = vmatpush1.msra.mxu0 %v11677
    %11971 = vmatprep.subr.mxu0 0.0
    %11972 = vmatpush1.msra.mxu0 %v11678
    %11973 = vmatprep.subr.mxu0 0.0
    %11974 = vmatpush1.msra.mxu0 %v11679
    %11975 = vmatprep.subr.mxu0 0.0
    %11976 = vmatpush1.msra.mxu0 %v11680
    %11977 = vmatprep.mubr.f32.mxu0 %v11544
    %11978 = vmatmul.mubr.f32.gmra.mrb[0].mxu0 %v11543
    %v11979 = vpop.f32.mrb[0].mxu0
    %v11980 = vadd.f32 %v11905, %v11979
    %v11981 = vpop.f32.mrb[0].mxu0
    %11982 = vmatprep.mubr.f32.mxu0 %v11552
    %11983 = vmatmul.mubr.f32.gmra.mrb[0].mxu0 %v11551
    %v11984 = vpop.f32.mrb[0].mxu0
    %v11985 = vadd.f32 %v11910, %v11984
    %v11986 = vpop.f32.mrb[0].mxu0
    %11987 = vdwg.mxu0
    %11988 = vst [vmem:[%s5] sm:$0xff] %v11980
    %11989 = vst [vmem:[%s5 + $0x8] sm:$0xff] %v11985
    // Predicated region
    $region38: #{mlp_logits.1} parent=1 // pred_check
      _
    $region39: #{mlp_logits.1} parent=1 // pred_check_branch
      %11991 = sbr.rel (0) target = $region41
    $region40: #{mlp_logits.1} parent=1 // pred_region
      _
    $region41: #{mlp_logits.1} parent=1 // pred_fallthru
      _
    // Predicated region
    $region42: #{mlp_logits.1} parent=1 // pred_check
      _
    $region43: #{mlp_logits.1} parent=1 // pred_check_branch
      %11993 = sbr.rel (0) target = $region45
    $region44: #{mlp_logits.1} parent=1 // pred_region
      _
    $region45: #{mlp_logits.1} parent=1 // pred_fallthru
      _
    %11994 = vsyncpa [#allocation3], 1
    %11995 = vsyncpa [#allocation5], 1
    %11996 = vsyncpa [#allocation8], 1

</llo_original>
